<compile_context>
chip_gen: v6e
topology: v6e:2x2x1
jax: 0.10.0
libtpu: 0.0.40
codegen_flags: <defaults>
</compile_context>

<pallas_src>
import numpy as np
import jax
import jax.numpy as jnp
from jax.experimental import pallas as pl
from jax.experimental.pallas import tpu as pltpu

LANES = 128  # channel dims are zero-padded to a full lane width


# ----------------------------------------------------------------------------
# Kernel factory (all shape parameters are static Python ints)
# ----------------------------------------------------------------------------
def _make_kernel(H, W, CP, MARG):
    HW = H * W

    def kernel(x_ref, w1_ref, s1_ref, b1_ref, w2_ref, s2_ref, b2_ref,
               mleft_ref, mright_ref, sel_ref, skip_ref, down_ref,
               buf1, buf2):
        # Zero both margin buffers: the zero margins implement the conv
        # "padding=1" halo, so no wrapper-side spatial padding is needed.
        buf1[...] = jnp.zeros_like(buf1)
        buf2[...] = jnp.zeros_like(buf2)

        # Place conv1 input (flat H*W rows, channels already padded to CP
        # lanes) into the interior of buf1.
        buf1[pl.ds(MARG, HW), :] = x_ref[0]

        def conv3x3_bn_relu(src, w_ref, s_ref, b_ref):
            # src: (HW + 2*MARG, CP) f32 margin buffer with zero halo.
            # One bf16 MXU matmul per 3x3 tap, f32 accumulation.
            acc = None
            for t in range(9):
                dh, dw = t // 3 - 1, t % 3 - 1
                d = dh * W + dw
                tap = src[pl.ds(MARG + d, HW), :]            # contiguous slice
                if dw == -1:                                 # fix row wrap of
                    tap = tap * mleft_ref[...]               # horizontal taps
                elif dw == 1:
                    tap = tap * mright_ref[...]
                contrib = jnp.dot(tap.astype(jnp.bfloat16), w_ref[t],
                                  preferred_element_type=jnp.float32)
                acc = contrib if acc is None else acc + contrib
            # folded (inference) BatchNorm + ReLU
            return jnp.maximum(acc * s_ref[...] + b_ref[...], 0.0)

        # ---- conv1 + BN + ReLU -> conv2 + BN + ReLU (all in VMEM) ---------
        h1 = conv3x3_bn_relu(buf1, w1_ref, s1_ref, b1_ref)
        buf2[pl.ds(MARG, HW), :] = h1
        h2 = conv3x3_bn_relu(buf2, w2_ref, s2_ref, b2_ref)

        skip_ref[0] = h2.astype(skip_ref.dtype)              # lane-dense store

        # ---- fused 2x2 max-pool epilogue -----------------------------------
        # Reuse buf1 to take shifted (row+1 / row+W / row+W+1) slices of h2.
        buf1[pl.ds(0, HW), :] = h2
        buf1[pl.ds(HW, MARG), :] = jnp.zeros((MARG, CP), jnp.float32)
        c01 = buf1[pl.ds(1, HW), :]
        c10 = buf1[pl.ds(W, HW), :]
        c11 = buf1[pl.ds(W + 1, HW), :]
        m4 = jnp.maximum(jnp.maximum(h2, c01), jnp.maximum(c10, c11))

        # Compact the (even row, even col) entries with a 0/1 selection
        # matmul.  hi/lo bf16 split keeps it on the plain bf16 MXU path while
        # remaining accurate to ~2^-16 relative.
        hi = m4.astype(jnp.bfloat16)
        lo = (m4 - hi.astype(jnp.float32)).astype(jnp.bfloat16)
        sel = sel_ref[...]
        pooled = (jnp.dot(sel, hi, preferred_element_type=jnp.float32)
                  + jnp.dot(sel, lo, preferred_element_type=jnp.float32))
        down_ref[0] = pooled.astype(down_ref.dtype)

    return kernel


# ----------------------------------------------------------------------------
# DownBlock forward: (down_out, skip_out), both NCHW like the PyTorch module.
# ----------------------------------------------------------------------------
def down_block_forward(x_nchw, params):
    N, Cin, H, W = x_nchw.shape
    Ct = params["w1"].shape[-1]
    assert Cin <= LANES and Ct <= LANES, "demo kernel supports <=128 channels"
    CP = LANES
    HW, Mp = H * W, (H // 2) * (W // 2)
    MARG = ((W + 1 + 7) // 8) * 8          # halo margin, multiple of 8 rows
    RB = HW + 2 * MARG                     # margin-buffer rows

    # NCHW -> (N, H*W, CP): flat spatial on sublanes, padded channels on lanes
    x = jnp.transpose(x_nchw, (0, 2, 3, 1)).astype(jnp.float32)
    x = x.reshape(N, HW, Cin)
    x = jnp.pad(x, ((0, 0), (0, 0), (0, CP - Cin)))

    def prep_w(w):                         # (3,3,ci,Ct) HWIO -> (9, CP, CP) bf16
        ci = w.shape[2]
        wt = w.reshape(9, ci, Ct)
        wt = jnp.pad(wt, ((0, 0), (0, CP - ci), (0, CP - Ct)))
        return wt.astype(jnp.bfloat16)

    def prep_v(v):                         # (Ct,) -> (1, CP) f32
        return jnp.pad(v, (0, CP - Ct)).reshape(1, CP).astype(jnp.float32)

    w1m, w2m = prep_w(params["w1"]), prep_w(params["w2"])
    s1, b1 = prep_v(params["scale1"]), prep_v(params["bias1"])
    s2, b2 = prep_v(params["scale2"]), prep_v(params["bias2"])

    # Host-built constants (shape-dependent only; XLA constant-folds them).
    col = np.arange(HW) % W
    mleft = jnp.asarray((col != 0).astype(np.float32).reshape(HW, 1))
    mright = jnp.asarray((col != W - 1).astype(np.float32).reshape(HW, 1))

    sel_np = np.zeros((Mp, HW), np.float32)
    p = np.arange(Mp)
    i, j = p // (W // 2), p % (W // 2)
    sel_np[p, (2 * i) * W + 2 * j] = 1.0   # pick (even row, even col) entries
    sel = jnp.asarray(sel_np, jnp.bfloat16)

    kernel = _make_kernel(H, W, CP, MARG)

    skip2d, down2d = pl.pallas_call(
        kernel,
        out_shape=(jax.ShapeDtypeStruct((N, HW, CP), jnp.float32),
                   jax.ShapeDtypeStruct((N, Mp, CP), jnp.float32)),
        grid_spec=pltpu.PrefetchScalarGridSpec(
            num_scalar_prefetch=0,
            grid=(N,),
            in_specs=[
                pl.BlockSpec((1, HW, CP), lambda n: (n, 0, 0)),   # x
                pl.BlockSpec((9, CP, CP), lambda n: (0, 0, 0)),   # w1 taps
                pl.BlockSpec((1, CP), lambda n: (0, 0)),          # scale1
                pl.BlockSpec((1, CP), lambda n: (0, 0)),          # bias1
                pl.BlockSpec((9, CP, CP), lambda n: (0, 0, 0)),   # w2 taps
                pl.BlockSpec((1, CP), lambda n: (0, 0)),          # scale2
                pl.BlockSpec((1, CP), lambda n: (0, 0)),          # bias2
                pl.BlockSpec((HW, 1), lambda n: (0, 0)),          # mask w==0
                pl.BlockSpec((HW, 1), lambda n: (0, 0)),          # mask w==W-1
                pl.BlockSpec((Mp, HW), lambda n: (0, 0)),         # pool select
            ],
            out_specs=[
                pl.BlockSpec((1, HW, CP), lambda n: (n, 0, 0)),   # skip
                pl.BlockSpec((1, Mp, CP), lambda n: (n, 0, 0)),   # down
            ],
            scratch_shapes=[
                pltpu.VMEM((RB, CP), jnp.float32),    # margin buf (conv1 in / pool)
                pltpu.VMEM((RB, CP), jnp.float32),    # margin buf (conv2 in)
            ]),
        compiler_params=pltpu.CompilerParams(
            dimension_semantics=("parallel",)),
    )(x, w1m, s1, b1, w2m, s2, b2, mleft, mright, sel)

    skip = skip2d[:, :, :Ct].reshape(N, H, W, Ct)
    down = down2d[:, :, :Ct].reshape(N, H // 2, W // 2, Ct)
    return (jnp.transpose(down, (0, 3, 1, 2)),    # down_out  NCHW
            jnp.transpose(skip, (0, 3, 1, 2)))    # skip_out  NCHW


# ----------------------------------------------------------------------------
# Deterministic parameter init (Conv2d weight+bias, BN gamma/beta/mean/var
# folded into per-channel scale/bias — inference-mode BN)
# ----------------------------------------------------------------------------
def init_params(key, cin, cout):
    ks = jax.random.split(key, 12)
    eps = 1e-5

    def fold_bn(kg, kb, km, kv, kcb, c):
        gamma = 1.0 + 0.1 * jax.random.normal(kg, (c,), jnp.float32)
        beta = 0.1 * jax.random.normal(kb, (c,), jnp.float32)
        mean = 0.1 * jax.random.normal(km, (c,), jnp.float32)
        var = 0.5 + jnp.abs(jax.random.normal(kv, (c,), jnp.float32))
        conv_b = 0.1 * jax.random.normal(kcb, (c,), jnp.float32)
        scale = gamma * jax.lax.rsqrt(var + eps)
        bias = beta + (conv_b - mean) * scale
        return scale, bias

    w1 = 0.2 * jax.random.normal(ks[0], (3, 3, cin, cout), jnp.float32)   # HWIO
    w2 = 0.2 * jax.random.normal(ks[1], (3, 3, cout, cout), jnp.float32)
    s1, b1 = fold_bn(ks[2], ks[3], ks[4], ks[5], ks[6], cout)
    s2, b2 = fold_bn(ks[7], ks[8], ks[9], ks[10], ks[11], cout)
    return {"w1": w1, "scale1": s1, "bias1": b1,
            "w2": w2, "scale2": s2, "bias2": b2}


# ----------------------------------------------------------------------------
# Pure-JAX reference (same bf16-operand / f32-accumulate numerics)
# ----------------------------------------------------------------------------
def reference_forward(x_nchw, p):
    x = jnp.transpose(x_nchw, (0, 2, 3, 1)).astype(jnp.float32)

    def cbr(x, w, s, b):
        y = jax.lax.conv_general_dilated(
            x.astype(jnp.bfloat16), w.astype(jnp.bfloat16),
            window_strides=(1, 1), padding="SAME",
            dimension_numbers=("NHWC", "HWIO", "NHWC"),
            preferred_element_type=jnp.float32)
        return jnp.maximum(y * s + b, 0.0)

    h = cbr(x, p["w1"], p["scale1"], p["bias1"])
    skip = cbr(h, p["w2"], p["scale2"], p["bias2"])
    down = jax.lax.reduce_window(skip, -jnp.inf, jax.lax.max,
                                 (1, 2, 2, 1), (1, 2, 2, 1), "VALID")
    return (jnp.transpose(down, (0, 3, 1, 2)),
            jnp.transpose(skip, (0, 3, 1, 2)))


if __name__ == "__main__":
    key = jax.random.PRNGKey(0)
    kx, kp = jax.random.split(key)

    N, Cin, Cout, H, W = 2, 4, 8, 16, 16
    x = jax.random.normal(kx, (N, Cin, H, W), jnp.float32)   # NCHW like PyTorch
    params = init_params(kp, Cin, Cout)

    down_out, skip_out = jax.jit(down_block_forward)(x, params)
    jax.block_until_ready((down_out, skip_out))

    assert down_out.shape == (N, Cout, H // 2, W // 2), down_out.shape
    assert skip_out.shape == (N, Cout, H, W), skip_out.shape

    ref_down, ref_skip = reference_forward(x, params)

    # Both kernel and reference feed bf16 operands to the MXU with f32
    # accumulation and re-round the intermediate activation to bf16; tiny f32
    # summation-order differences can flip individual bf16 roundings, so the
    # element-wise tolerance is loose while the mean-error check stays tight.
    for got, ref in ((skip_out, ref_skip), (down_out, ref_down)):
        max_err = float(jnp.max(jnp.abs(got - ref)))
        mean_err = float(jnp.mean(jnp.abs(got - ref)))
        assert jnp.allclose(got, ref, atol=1e-1, rtol=1e-1), (max_err, mean_err)
        assert mean_err < 1e-2, (max_err, mean_err)

    print("KERNEL_OK")
</pallas_src>

<mosaic_0001>
module attributes {stable_mosaic.version = 11 : i64} {
  func.func @kernel(%arg0: i32, %arg1: memref<1x256x128xf32, #tpu.memory_space<vmem>>, %arg2: memref<9x128x128xbf16, #tpu.memory_space<vmem>>, %arg3: memref<1x128xf32, #tpu.memory_space<vmem>>, %arg4: memref<1x128xf32, #tpu.memory_space<vmem>>, %arg5: memref<9x128x128xbf16, #tpu.memory_space<vmem>>, %arg6: memref<1x128xf32, #tpu.memory_space<vmem>>, %arg7: memref<1x128xf32, #tpu.memory_space<vmem>>, %arg8: memref<256x1xf32, #tpu.memory_space<vmem>>, %arg9: memref<256x1xf32, #tpu.memory_space<vmem>>, %arg10: memref<64x256xbf16, #tpu.memory_space<vmem>>, %arg11: memref<1x256x128xf32, #tpu.memory_space<vmem>>, %arg12: memref<1x64x128xf32, #tpu.memory_space<vmem>>, %arg13: memref<304x128xf32, #tpu.memory_space<vmem>>, %arg14: memref<304x128xf32, #tpu.memory_space<vmem>>) attributes {dimension_semantics = [#tpu.dimension_semantics<parallel>], iteration_bounds = array<i64: 2>, scalar_prefetch = 0 : i64, scratch_operands = 2 : i64, tpu.core_type = #tpu.core_type<tc>, window_params = [{transform_indices = @transform_0, window_bounds = array<i64: 1, 256, 128>}, {pipeline_mode = #tpu.pipeline_mode<synchronous>, transform_indices = @transform_1, window_bounds = array<i64: 9, 128, 128>}, {pipeline_mode = #tpu.pipeline_mode<synchronous>, transform_indices = @transform_2, window_bounds = array<i64: 1, 128>}, {pipeline_mode = #tpu.pipeline_mode<synchronous>, transform_indices = @transform_3, window_bounds = array<i64: 1, 128>}, {pipeline_mode = #tpu.pipeline_mode<synchronous>, transform_indices = @transform_4, window_bounds = array<i64: 9, 128, 128>}, {pipeline_mode = #tpu.pipeline_mode<synchronous>, transform_indices = @transform_5, window_bounds = array<i64: 1, 128>}, {pipeline_mode = #tpu.pipeline_mode<synchronous>, transform_indices = @transform_6, window_bounds = array<i64: 1, 128>}, {pipeline_mode = #tpu.pipeline_mode<synchronous>, transform_indices = @transform_7, window_bounds = array<i64: 256, 1>}, {pipeline_mode = #tpu.pipeline_mode<synchronous>, transform_indices = @transform_8, window_bounds = array<i64: 256, 1>}, {pipeline_mode = #tpu.pipeline_mode<synchronous>, transform_indices = @transform_9, window_bounds = array<i64: 64, 256>}, {transform_indices = @transform_10, window_bounds = array<i64: 1, 256, 128>}, {transform_indices = @transform_11, window_bounds = array<i64: 1, 64, 128>}]} {
    %cst = arith.constant 0.000000e+00 : f32
    %0 = vector.broadcast %cst : f32 to vector<304x128xf32>
    %c0 = arith.constant 0 : index
    %c0_0 = arith.constant 0 : index
    %1 = vector.load %arg13[%c0, %c0_0] : memref<304x128xf32, #tpu.memory_space<vmem>>, vector<304x128xf32>
    tpu.vector_store %arg13[%c0, %c0_0], %0 {strides = array<i32>} : memref<304x128xf32, #tpu.memory_space<vmem>>, vector<304x128xf32>,
    %cst_1 = arith.constant 0.000000e+00 : f32
    %2 = vector.broadcast %cst_1 : f32 to vector<304x128xf32>
    %c0_2 = arith.constant 0 : index
    %c0_3 = arith.constant 0 : index
    %3 = vector.load %arg14[%c0_2, %c0_3] : memref<304x128xf32, #tpu.memory_space<vmem>>, vector<304x128xf32>
    tpu.vector_store %arg14[%c0_2, %c0_3], %2 {strides = array<i32>} : memref<304x128xf32, #tpu.memory_space<vmem>>, vector<304x128xf32>,
    %c0_4 = arith.constant 0 : index
    %c0_5 = arith.constant 0 : index
    %c0_6 = arith.constant 0 : index
    %4 = vector.load %arg1[%c0_4, %c0_5, %c0_6] : memref<1x256x128xf32, #tpu.memory_space<vmem>>, vector<1x256x128xf32>
    %5 = vector.shape_cast %4 : vector<1x256x128xf32> to vector<256x128xf32>
    %c24 = arith.constant 24 : index
    %c0_7 = arith.constant 0 : index
    %6 = vector.load %arg13[%c24, %c0_7] : memref<304x128xf32, #tpu.memory_space<vmem>>, vector<256x128xf32>
    tpu.vector_store %arg13[%c24, %c0_7], %5 {strides = array<i32>} : memref<304x128xf32, #tpu.memory_space<vmem>>, vector<256x128xf32>,
    %c7 = arith.constant 7 : index
    %c0_8 = arith.constant 0 : index
    %7 = vector.load %arg13[%c7, %c0_8] : memref<304x128xf32, #tpu.memory_space<vmem>>, vector<256x128xf32>
    %c0_9 = arith.constant 0 : index
    %c0_10 = arith.constant 0 : index
    %8 = vector.load %arg8[%c0_9, %c0_10] : memref<256x1xf32, #tpu.memory_space<vmem>>, vector<256x1xf32>
    %9 = vector.broadcast %8 : vector<256x1xf32> to vector<256x128xf32>
    %10 = arith.mulf %7, %9 : vector<256x128xf32>
    %11 = arith.truncf %10 : vector<256x128xf32> to vector<256x128xbf16>
    %c0_11 = arith.constant 0 : index
    %c0_12 = arith.constant 0 : index
    %c0_13 = arith.constant 0 : index
    %12 = vector.load %arg2[%c0_11, %c0_12, %c0_13] : memref<9x128x128xbf16, #tpu.memory_space<vmem>>, vector<1x128x128xbf16>
    %13 = vector.shape_cast %12 : vector<1x128x128xbf16> to vector<128x128xbf16>
    %cst_14 = arith.constant dense<0.000000e+00> : vector<256x128xf32>
    %14 = tpu.matmul %11, %13, %cst_14 {dimension_numbers = #tpu.dot_dimension_numbers<[1], [0], [0], [1], [0, 0, 1, 1], [], []>} : vector<256x128xbf16>, vector<128x128xbf16>, vector<256x128xf32> -> vector<256x128xf32>
    %c8 = arith.constant 8 : index
    %c0_15 = arith.constant 0 : index
    %15 = vector.load %arg13[%c8, %c0_15] : memref<304x128xf32, #tpu.memory_space<vmem>>, vector<256x128xf32>
    %16 = arith.truncf %15 : vector<256x128xf32> to vector<256x128xbf16>
    %c1 = arith.constant 1 : index
    %c0_16 = arith.constant 0 : index
    %c0_17 = arith.constant 0 : index
    %17 = vector.load %arg2[%c1, %c0_16, %c0_17] : memref<9x128x128xbf16, #tpu.memory_space<vmem>>, vector<1x128x128xbf16>
    %18 = vector.shape_cast %17 : vector<1x128x128xbf16> to vector<128x128xbf16>
    %cst_18 = arith.constant dense<0.000000e+00> : vector<256x128xf32>
    %19 = tpu.matmul %16, %18, %cst_18 {dimension_numbers = #tpu.dot_dimension_numbers<[1], [0], [0], [1], [0, 0, 1, 1], [], []>} : vector<256x128xbf16>, vector<128x128xbf16>, vector<256x128xf32> -> vector<256x128xf32>
    %20 = arith.addf %14, %19 : vector<256x128xf32>
    %c9 = arith.constant 9 : index
    %c0_19 = arith.constant 0 : index
    %21 = vector.load %arg13[%c9, %c0_19] : memref<304x128xf32, #tpu.memory_space<vmem>>, vector<256x128xf32>
    %c0_20 = arith.constant 0 : index
    %c0_21 = arith.constant 0 : index
    %22 = vector.load %arg9[%c0_20, %c0_21] : memref<256x1xf32, #tpu.memory_space<vmem>>, vector<256x1xf32>
    %23 = vector.broadcast %22 : vector<256x1xf32> to vector<256x128xf32>
    %24 = arith.mulf %21, %23 : vector<256x128xf32>
    %25 = arith.truncf %24 : vector<256x128xf32> to vector<256x128xbf16>
    %c2 = arith.constant 2 : index
    %c0_22 = arith.constant 0 : index
    %c0_23 = arith.constant 0 : index
    %26 = vector.load %arg2[%c2, %c0_22, %c0_23] : memref<9x128x128xbf16, #tpu.memory_space<vmem>>, vector<1x128x128xbf16>
    %27 = vector.shape_cast %26 : vector<1x128x128xbf16> to vector<128x128xbf16>
    %cst_24 = arith.constant dense<0.000000e+00> : vector<256x128xf32>
    %28 = tpu.matmul %25, %27, %cst_24 {dimension_numbers = #tpu.dot_dimension_numbers<[1], [0], [0], [1], [0, 0, 1, 1], [], []>} : vector<256x128xbf16>, vector<128x128xbf16>, vector<256x128xf32> -> vector<256x128xf32>
    %29 = arith.addf %20, %28 : vector<256x128xf32>
    %c23 = arith.constant 23 : index
    %c0_25 = arith.constant 0 : index
    %30 = vector.load %arg13[%c23, %c0_25] : memref<304x128xf32, #tpu.memory_space<vmem>>, vector<256x128xf32>
    %c0_26 = arith.constant 0 : index
    %c0_27 = arith.constant 0 : index
    %31 = vector.load %arg8[%c0_26, %c0_27] : memref<256x1xf32, #tpu.memory_space<vmem>>, vector<256x1xf32>
    %32 = vector.broadcast %31 : vector<256x1xf32> to vector<256x128xf32>
    %33 = arith.mulf %30, %32 : vector<256x128xf32>
    %34 = arith.truncf %33 : vector<256x128xf32> to vector<256x128xbf16>
    %c3 = arith.constant 3 : index
    %c0_28 = arith.constant 0 : index
    %c0_29 = arith.constant 0 : index
    %35 = vector.load %arg2[%c3, %c0_28, %c0_29] : memref<9x128x128xbf16, #tpu.memory_space<vmem>>, vector<1x128x128xbf16>
    %36 = vector.shape_cast %35 : vector<1x128x128xbf16> to vector<128x128xbf16>
    %cst_30 = arith.constant dense<0.000000e+00> : vector<256x128xf32>
    %37 = tpu.matmul %34, %36, %cst_30 {dimension_numbers = #tpu.dot_dimension_numbers<[1], [0], [0], [1], [0, 0, 1, 1], [], []>} : vector<256x128xbf16>, vector<128x128xbf16>, vector<256x128xf32> -> vector<256x128xf32>
    %38 = arith.addf %29, %37 : vector<256x128xf32>
    %c24_31 = arith.constant 24 : index
    %c0_32 = arith.constant 0 : index
    %39 = vector.load %arg13[%c24_31, %c0_32] : memref<304x128xf32, #tpu.memory_space<vmem>>, vector<256x128xf32>
    %40 = arith.truncf %39 : vector<256x128xf32> to vector<256x128xbf16>
    %c4 = arith.constant 4 : index
    %c0_33 = arith.constant 0 : index
    %c0_34 = arith.constant 0 : index
    %41 = vector.load %arg2[%c4, %c0_33, %c0_34] : memref<9x128x128xbf16, #tpu.memory_space<vmem>>, vector<1x128x128xbf16>
    %42 = vector.shape_cast %41 : vector<1x128x128xbf16> to vector<128x128xbf16>
    %cst_35 = arith.constant dense<0.000000e+00> : vector<256x128xf32>
    %43 = tpu.matmul %40, %42, %cst_35 {dimension_numbers = #tpu.dot_dimension_numbers<[1], [0], [0], [1], [0, 0, 1, 1], [], []>} : vector<256x128xbf16>, vector<128x128xbf16>, vector<256x128xf32> -> vector<256x128xf32>
    %44 = arith.addf %38, %43 : vector<256x128xf32>
    %c25 = arith.constant 25 : index
    %c0_36 = arith.constant 0 : index
    %45 = vector.load %arg13[%c25, %c0_36] : memref<304x128xf32, #tpu.memory_space<vmem>>, vector<256x128xf32>
    %c0_37 = arith.constant 0 : index
    %c0_38 = arith.constant 0 : index
    %46 = vector.load %arg9[%c0_37, %c0_38] : memref<256x1xf32, #tpu.memory_space<vmem>>, vector<256x1xf32>
    %47 = vector.broadcast %46 : vector<256x1xf32> to vector<256x128xf32>
    %48 = arith.mulf %45, %47 : vector<256x128xf32>
    %49 = arith.truncf %48 : vector<256x128xf32> to vector<256x128xbf16>
    %c5 = arith.constant 5 : index
    %c0_39 = arith.constant 0 : index
    %c0_40 = arith.constant 0 : index
    %50 = vector.load %arg2[%c5, %c0_39, %c0_40] : memref<9x128x128xbf16, #tpu.memory_space<vmem>>, vector<1x128x128xbf16>
    %51 = vector.shape_cast %50 : vector<1x128x128xbf16> to vector<128x128xbf16>
    %cst_41 = arith.constant dense<0.000000e+00> : vector<256x128xf32>
    %52 = tpu.matmul %49, %51, %cst_41 {dimension_numbers = #tpu.dot_dimension_numbers<[1], [0], [0], [1], [0, 0, 1, 1], [], []>} : vector<256x128xbf16>, vector<128x128xbf16>, vector<256x128xf32> -> vector<256x128xf32>
    %53 = arith.addf %44, %52 : vector<256x128xf32>
    %c39 = arith.constant 39 : index
    %c0_42 = arith.constant 0 : index
    %54 = vector.load %arg13[%c39, %c0_42] : memref<304x128xf32, #tpu.memory_space<vmem>>, vector<256x128xf32>
    %c0_43 = arith.constant 0 : index
    %c0_44 = arith.constant 0 : index
    %55 = vector.load %arg8[%c0_43, %c0_44] : memref<256x1xf32, #tpu.memory_space<vmem>>, vector<256x1xf32>
    %56 = vector.broadcast %55 : vector<256x1xf32> to vector<256x128xf32>
    %57 = arith.mulf %54, %56 : vector<256x128xf32>
    %58 = arith.truncf %57 : vector<256x128xf32> to vector<256x128xbf16>
    %c6 = arith.constant 6 : index
    %c0_45 = arith.constant 0 : index
    %c0_46 = arith.constant 0 : index
    %59 = vector.load %arg2[%c6, %c0_45, %c0_46] : memref<9x128x128xbf16, #tpu.memory_space<vmem>>, vector<1x128x128xbf16>
    %60 = vector.shape_cast %59 : vector<1x128x128xbf16> to vector<128x128xbf16>
    %cst_47 = arith.constant dense<0.000000e+00> : vector<256x128xf32>
    %61 = tpu.matmul %58, %60, %cst_47 {dimension_numbers = #tpu.dot_dimension_numbers<[1], [0], [0], [1], [0, 0, 1, 1], [], []>} : vector<256x128xbf16>, vector<128x128xbf16>, vector<256x128xf32> -> vector<256x128xf32>
    %62 = arith.addf %53, %61 : vector<256x128xf32>
    %c40 = arith.constant 40 : index
    %c0_48 = arith.constant 0 : index
    %63 = vector.load %arg13[%c40, %c0_48] : memref<304x128xf32, #tpu.memory_space<vmem>>, vector<256x128xf32>
    %64 = arith.truncf %63 : vector<256x128xf32> to vector<256x128xbf16>
    %c7_49 = arith.constant 7 : index
    %c0_50 = arith.constant 0 : index
    %c0_51 = arith.constant 0 : index
    %65 = vector.load %arg2[%c7_49, %c0_50, %c0_51] : memref<9x128x128xbf16, #tpu.memory_space<vmem>>, vector<1x128x128xbf16>
    %66 = vector.shape_cast %65 : vector<1x128x128xbf16> to vector<128x128xbf16>
    %cst_52 = arith.constant dense<0.000000e+00> : vector<256x128xf32>
    %67 = tpu.matmul %64, %66, %cst_52 {dimension_numbers = #tpu.dot_dimension_numbers<[1], [0], [0], [1], [0, 0, 1, 1], [], []>} : vector<256x128xbf16>, vector<128x128xbf16>, vector<256x128xf32> -> vector<256x128xf32>
    %68 = arith.addf %62, %67 : vector<256x128xf32>
    %c41 = arith.constant 41 : index
    %c0_53 = arith.constant 0 : index
    %69 = vector.load %arg13[%c41, %c0_53] : memref<304x128xf32, #tpu.memory_space<vmem>>, vector<256x128xf32>
    %c0_54 = arith.constant 0 : index
    %c0_55 = arith.constant 0 : index
    %70 = vector.load %arg9[%c0_54, %c0_55] : memref<256x1xf32, #tpu.memory_space<vmem>>, vector<256x1xf32>
    %71 = vector.broadcast %70 : vector<256x1xf32> to vector<256x128xf32>
    %72 = arith.mulf %69, %71 : vector<256x128xf32>
    %73 = arith.truncf %72 : vector<256x128xf32> to vector<256x128xbf16>
    %c8_56 = arith.constant 8 : index
    %c0_57 = arith.constant 0 : index
    %c0_58 = arith.constant 0 : index
    %74 = vector.load %arg2[%c8_56, %c0_57, %c0_58] : memref<9x128x128xbf16, #tpu.memory_space<vmem>>, vector<1x128x128xbf16>
    %75 = vector.shape_cast %74 : vector<1x128x128xbf16> to vector<128x128xbf16>
    %cst_59 = arith.constant dense<0.000000e+00> : vector<256x128xf32>
    %76 = tpu.matmul %73, %75, %cst_59 {dimension_numbers = #tpu.dot_dimension_numbers<[1], [0], [0], [1], [0, 0, 1, 1], [], []>} : vector<256x128xbf16>, vector<128x128xbf16>, vector<256x128xf32> -> vector<256x128xf32>
    %77 = arith.addf %68, %76 : vector<256x128xf32>
    %c0_60 = arith.constant 0 : index
    %c0_61 = arith.constant 0 : index
    %78 = vector.load %arg3[%c0_60, %c0_61] : memref<1x128xf32, #tpu.memory_space<vmem>>, vector<1x128xf32>
    %79 = vector.broadcast %78 : vector<1x128xf32> to vector<256x128xf32>
    %80 = arith.mulf %77, %79 : vector<256x128xf32>
    %c0_62 = arith.constant 0 : index
    %c0_63 = arith.constant 0 : index
    %81 = vector.load %arg4[%c0_62, %c0_63] : memref<1x128xf32, #tpu.memory_space<vmem>>, vector<1x128xf32>
    %82 = vector.broadcast %81 : vector<1x128xf32> to vector<256x128xf32>
    %83 = arith.addf %80, %82 : vector<256x128xf32>
    %cst_64 = arith.constant 0.000000e+00 : f32
    %84 = vector.broadcast %cst_64 : f32 to vector<256x128xf32>
    %85 = arith.maximumf %83, %84 : vector<256x128xf32>
    %c24_65 = arith.constant 24 : index
    %c0_66 = arith.constant 0 : index
    %86 = vector.load %arg14[%c24_65, %c0_66] : memref<304x128xf32, #tpu.memory_space<vmem>>, vector<256x128xf32>
    tpu.vector_store %arg14[%c24_65, %c0_66], %85 {strides = array<i32>} : memref<304x128xf32, #tpu.memory_space<vmem>>, vector<256x128xf32>,
    %c7_67 = arith.constant 7 : index
    %c0_68 = arith.constant 0 : index
    %87 = vector.load %arg14[%c7_67, %c0_68] : memref<304x128xf32, #tpu.memory_space<vmem>>, vector<256x128xf32>
    %c0_69 = arith.constant 0 : index
    %c0_70 = arith.constant 0 : index
    %88 = vector.load %arg8[%c0_69, %c0_70] : memref<256x1xf32, #tpu.memory_space<vmem>>, vector<256x1xf32>
    %89 = vector.broadcast %88 : vector<256x1xf32> to vector<256x128xf32>
    %90 = arith.mulf %87, %89 : vector<256x128xf32>
    %91 = arith.truncf %90 : vector<256x128xf32> to vector<256x128xbf16>
    %c0_71 = arith.constant 0 : index
    %c0_72 = arith.constant 0 : index
    %c0_73 = arith.constant 0 : index
    %92 = vector.load %arg5[%c0_71, %c0_72, %c0_73] : memref<9x128x128xbf16, #tpu.memory_space<vmem>>, vector<1x128x128xbf16>
    %93 = vector.shape_cast %92 : vector<1x128x128xbf16> to vector<128x128xbf16>
    %cst_74 = arith.constant dense<0.000000e+00> : vector<256x128xf32>
    %94 = tpu.matmul %91, %93, %cst_74 {dimension_numbers = #tpu.dot_dimension_numbers<[1], [0], [0], [1], [0, 0, 1, 1], [], []>} : vector<256x128xbf16>, vector<128x128xbf16>, vector<256x128xf32> -> vector<256x128xf32>
    %c8_75 = arith.constant 8 : index
    %c0_76 = arith.constant 0 : index
    %95 = vector.load %arg14[%c8_75, %c0_76] : memref<304x128xf32, #tpu.memory_space<vmem>>, vector<256x128xf32>
    %96 = arith.truncf %95 : vector<256x128xf32> to vector<256x128xbf16>
    %c1_77 = arith.constant 1 : index
    %c0_78 = arith.constant 0 : index
    %c0_79 = arith.constant 0 : index
    %97 = vector.load %arg5[%c1_77, %c0_78, %c0_79] : memref<9x128x128xbf16, #tpu.memory_space<vmem>>, vector<1x128x128xbf16>
    %98 = vector.shape_cast %97 : vector<1x128x128xbf16> to vector<128x128xbf16>
    %cst_80 = arith.constant dense<0.000000e+00> : vector<256x128xf32>
    %99 = tpu.matmul %96, %98, %cst_80 {dimension_numbers = #tpu.dot_dimension_numbers<[1], [0], [0], [1], [0, 0, 1, 1], [], []>} : vector<256x128xbf16>, vector<128x128xbf16>, vector<256x128xf32> -> vector<256x128xf32>
    %100 = arith.addf %94, %99 : vector<256x128xf32>
    %c9_81 = arith.constant 9 : index
    %c0_82 = arith.constant 0 : index
    %101 = vector.load %arg14[%c9_81, %c0_82] : memref<304x128xf32, #tpu.memory_space<vmem>>, vector<256x128xf32>
    %c0_83 = arith.constant 0 : index
    %c0_84 = arith.constant 0 : index
    %102 = vector.load %arg9[%c0_83, %c0_84] : memref<256x1xf32, #tpu.memory_space<vmem>>, vector<256x1xf32>
    %103 = vector.broadcast %102 : vector<256x1xf32> to vector<256x128xf32>
    %104 = arith.mulf %101, %103 : vector<256x128xf32>
    %105 = arith.truncf %104 : vector<256x128xf32> to vector<256x128xbf16>
    %c2_85 = arith.constant 2 : index
    %c0_86 = arith.constant 0 : index
    %c0_87 = arith.constant 0 : index
    %106 = vector.load %arg5[%c2_85, %c0_86, %c0_87] : memref<9x128x128xbf16, #tpu.memory_space<vmem>>, vector<1x128x128xbf16>
    %107 = vector.shape_cast %106 : vector<1x128x128xbf16> to vector<128x128xbf16>
    %cst_88 = arith.constant dense<0.000000e+00> : vector<256x128xf32>
    %108 = tpu.matmul %105, %107, %cst_88 {dimension_numbers = #tpu.dot_dimension_numbers<[1], [0], [0], [1], [0, 0, 1, 1], [], []>} : vector<256x128xbf16>, vector<128x128xbf16>, vector<256x128xf32> -> vector<256x128xf32>
    %109 = arith.addf %100, %108 : vector<256x128xf32>
    %c23_89 = arith.constant 23 : index
    %c0_90 = arith.constant 0 : index
    %110 = vector.load %arg14[%c23_89, %c0_90] : memref<304x128xf32, #tpu.memory_space<vmem>>, vector<256x128xf32>
    %c0_91 = arith.constant 0 : index
    %c0_92 = arith.constant 0 : index
    %111 = vector.load %arg8[%c0_91, %c0_92] : memref<256x1xf32, #tpu.memory_space<vmem>>, vector<256x1xf32>
    %112 = vector.broadcast %111 : vector<256x1xf32> to vector<256x128xf32>
    %113 = arith.mulf %110, %112 : vector<256x128xf32>
    %114 = arith.truncf %113 : vector<256x128xf32> to vector<256x128xbf16>
    %c3_93 = arith.constant 3 : index
    %c0_94 = arith.constant 0 : index
    %c0_95 = arith.constant 0 : index
    %115 = vector.load %arg5[%c3_93, %c0_94, %c0_95] : memref<9x128x128xbf16, #tpu.memory_space<vmem>>, vector<1x128x128xbf16>
    %116 = vector.shape_cast %115 : vector<1x128x128xbf16> to vector<128x128xbf16>
    %cst_96 = arith.constant dense<0.000000e+00> : vector<256x128xf32>
    %117 = tpu.matmul %114, %116, %cst_96 {dimension_numbers = #tpu.dot_dimension_numbers<[1], [0], [0], [1], [0, 0, 1, 1], [], []>} : vector<256x128xbf16>, vector<128x128xbf16>, vector<256x128xf32> -> vector<256x128xf32>
    %118 = arith.addf %109, %117 : vector<256x128xf32>
    %c24_97 = arith.constant 24 : index
    %c0_98 = arith.constant 0 : index
    %119 = vector.load %arg14[%c24_97, %c0_98] : memref<304x128xf32, #tpu.memory_space<vmem>>, vector<256x128xf32>
    %120 = arith.truncf %119 : vector<256x128xf32> to vector<256x128xbf16>
    %c4_99 = arith.constant 4 : index
    %c0_100 = arith.constant 0 : index
    %c0_101 = arith.constant 0 : index
    %121 = vector.load %arg5[%c4_99, %c0_100, %c0_101] : memref<9x128x128xbf16, #tpu.memory_space<vmem>>, vector<1x128x128xbf16>
    %122 = vector.shape_cast %121 : vector<1x128x128xbf16> to vector<128x128xbf16>
    %cst_102 = arith.constant dense<0.000000e+00> : vector<256x128xf32>
    %123 = tpu.matmul %120, %122, %cst_102 {dimension_numbers = #tpu.dot_dimension_numbers<[1], [0], [0], [1], [0, 0, 1, 1], [], []>} : vector<256x128xbf16>, vector<128x128xbf16>, vector<256x128xf32> -> vector<256x128xf32>
    %124 = arith.addf %118, %123 : vector<256x128xf32>
    %c25_103 = arith.constant 25 : index
    %c0_104 = arith.constant 0 : index
    %125 = vector.load %arg14[%c25_103, %c0_104] : memref<304x128xf32, #tpu.memory_space<vmem>>, vector<256x128xf32>
    %c0_105 = arith.constant 0 : index
    %c0_106 = arith.constant 0 : index
    %126 = vector.load %arg9[%c0_105, %c0_106] : memref<256x1xf32, #tpu.memory_space<vmem>>, vector<256x1xf32>
    %127 = vector.broadcast %126 : vector<256x1xf32> to vector<256x128xf32>
    %128 = arith.mulf %125, %127 : vector<256x128xf32>
    %129 = arith.truncf %128 : vector<256x128xf32> to vector<256x128xbf16>
    %c5_107 = arith.constant 5 : index
    %c0_108 = arith.constant 0 : index
    %c0_109 = arith.constant 0 : index
    %130 = vector.load %arg5[%c5_107, %c0_108, %c0_109] : memref<9x128x128xbf16, #tpu.memory_space<vmem>>, vector<1x128x128xbf16>
    %131 = vector.shape_cast %130 : vector<1x128x128xbf16> to vector<128x128xbf16>
    %cst_110 = arith.constant dense<0.000000e+00> : vector<256x128xf32>
    %132 = tpu.matmul %129, %131, %cst_110 {dimension_numbers = #tpu.dot_dimension_numbers<[1], [0], [0], [1], [0, 0, 1, 1], [], []>} : vector<256x128xbf16>, vector<128x128xbf16>, vector<256x128xf32> -> vector<256x128xf32>
    %133 = arith.addf %124, %132 : vector<256x128xf32>
    %c39_111 = arith.constant 39 : index
    %c0_112 = arith.constant 0 : index
    %134 = vector.load %arg14[%c39_111, %c0_112] : memref<304x128xf32, #tpu.memory_space<vmem>>, vector<256x128xf32>
    %c0_113 = arith.constant 0 : index
    %c0_114 = arith.constant 0 : index
    %135 = vector.load %arg8[%c0_113, %c0_114] : memref<256x1xf32, #tpu.memory_space<vmem>>, vector<256x1xf32>
    %136 = vector.broadcast %135 : vector<256x1xf32> to vector<256x128xf32>
    %137 = arith.mulf %134, %136 : vector<256x128xf32>
    %138 = arith.truncf %137 : vector<256x128xf32> to vector<256x128xbf16>
    %c6_115 = arith.constant 6 : index
    %c0_116 = arith.constant 0 : index
    %c0_117 = arith.constant 0 : index
    %139 = vector.load %arg5[%c6_115, %c0_116, %c0_117] : memref<9x128x128xbf16, #tpu.memory_space<vmem>>, vector<1x128x128xbf16>
    %140 = vector.shape_cast %139 : vector<1x128x128xbf16> to vector<128x128xbf16>
    %cst_118 = arith.constant dense<0.000000e+00> : vector<256x128xf32>
    %141 = tpu.matmul %138, %140, %cst_118 {dimension_numbers = #tpu.dot_dimension_numbers<[1], [0], [0], [1], [0, 0, 1, 1], [], []>} : vector<256x128xbf16>, vector<128x128xbf16>, vector<256x128xf32> -> vector<256x128xf32>
    %142 = arith.addf %133, %141 : vector<256x128xf32>
    %c40_119 = arith.constant 40 : index
    %c0_120 = arith.constant 0 : index
    %143 = vector.load %arg14[%c40_119, %c0_120] : memref<304x128xf32, #tpu.memory_space<vmem>>, vector<256x128xf32>
    %144 = arith.truncf %143 : vector<256x128xf32> to vector<256x128xbf16>
    %c7_121 = arith.constant 7 : index
    %c0_122 = arith.constant 0 : index
    %c0_123 = arith.constant 0 : index
    %145 = vector.load %arg5[%c7_121, %c0_122, %c0_123] : memref<9x128x128xbf16, #tpu.memory_space<vmem>>, vector<1x128x128xbf16>
    %146 = vector.shape_cast %145 : vector<1x128x128xbf16> to vector<128x128xbf16>
    %cst_124 = arith.constant dense<0.000000e+00> : vector<256x128xf32>
    %147 = tpu.matmul %144, %146, %cst_124 {dimension_numbers = #tpu.dot_dimension_numbers<[1], [0], [0], [1], [0, 0, 1, 1], [], []>} : vector<256x128xbf16>, vector<128x128xbf16>, vector<256x128xf32> -> vector<256x128xf32>
    %148 = arith.addf %142, %147 : vector<256x128xf32>
    %c41_125 = arith.constant 41 : index
    %c0_126 = arith.constant 0 : index
    %149 = vector.load %arg14[%c41_125, %c0_126] : memref<304x128xf32, #tpu.memory_space<vmem>>, vector<256x128xf32>
    %c0_127 = arith.constant 0 : index
    %c0_128 = arith.constant 0 : index
    %150 = vector.load %arg9[%c0_127, %c0_128] : memref<256x1xf32, #tpu.memory_space<vmem>>, vector<256x1xf32>
    %151 = vector.broadcast %150 : vector<256x1xf32> to vector<256x128xf32>
    %152 = arith.mulf %149, %151 : vector<256x128xf32>
    %153 = arith.truncf %152 : vector<256x128xf32> to vector<256x128xbf16>
    %c8_129 = arith.constant 8 : index
    %c0_130 = arith.constant 0 : index
    %c0_131 = arith.constant 0 : index
    %154 = vector.load %arg5[%c8_129, %c0_130, %c0_131] : memref<9x128x128xbf16, #tpu.memory_space<vmem>>, vector<1x128x128xbf16>
    %155 = vector.shape_cast %154 : vector<1x128x128xbf16> to vector<128x128xbf16>
    %cst_132 = arith.constant dense<0.000000e+00> : vector<256x128xf32>
    %156 = tpu.matmul %153, %155, %cst_132 {dimension_numbers = #tpu.dot_dimension_numbers<[1], [0], [0], [1], [0, 0, 1, 1], [], []>} : vector<256x128xbf16>, vector<128x128xbf16>, vector<256x128xf32> -> vector<256x128xf32>
    %157 = arith.addf %148, %156 : vector<256x128xf32>
    %c0_133 = arith.constant 0 : index
    %c0_134 = arith.constant 0 : index
    %158 = vector.load %arg6[%c0_133, %c0_134] : memref<1x128xf32, #tpu.memory_space<vmem>>, vector<1x128xf32>
    %159 = vector.broadcast %158 : vector<1x128xf32> to vector<256x128xf32>
    %160 = arith.mulf %157, %159 : vector<256x128xf32>
    %c0_135 = arith.constant 0 : index
    %c0_136 = arith.constant 0 : index
    %161 = vector.load %arg7[%c0_135, %c0_136] : memref<1x128xf32, #tpu.memory_space<vmem>>, vector<1x128xf32>
    %162 = vector.broadcast %161 : vector<1x128xf32> to vector<256x128xf32>
    %163 = arith.addf %160, %162 : vector<256x128xf32>
    %cst_137 = arith.constant 0.000000e+00 : f32
    %164 = vector.broadcast %cst_137 : f32 to vector<256x128xf32>
    %165 = arith.maximumf %163, %164 : vector<256x128xf32>
    %c0_138 = arith.constant 0 : index
    %c0_139 = arith.constant 0 : index
    %c0_140 = arith.constant 0 : index
    %166 = vector.load %arg11[%c0_138, %c0_139, %c0_140] : memref<1x256x128xf32, #tpu.memory_space<vmem>>, vector<1x256x128xf32>
    %167 = vector.shape_cast %166 : vector<1x256x128xf32> to vector<256x128xf32>
    %168 = vector.shape_cast %165 : vector<256x128xf32> to vector<1x256x128xf32>
    tpu.vector_store %arg11[%c0_138, %c0_139, %c0_140], %168 {strides = array<i32>} : memref<1x256x128xf32, #tpu.memory_space<vmem>>, vector<1x256x128xf32>,
    %c0_141 = arith.constant 0 : index
    %c0_142 = arith.constant 0 : index
    %169 = vector.load %arg13[%c0_141, %c0_142] : memref<304x128xf32, #tpu.memory_space<vmem>>, vector<256x128xf32>
    tpu.vector_store %arg13[%c0_141, %c0_142], %165 {strides = array<i32>} : memref<304x128xf32, #tpu.memory_space<vmem>>, vector<256x128xf32>,
    %cst_143 = arith.constant 0.000000e+00 : f32
    %170 = vector.broadcast %cst_143 : f32 to vector<24x128xf32>
    %c256 = arith.constant 256 : index
    %c0_144 = arith.constant 0 : index
    %171 = vector.load %arg13[%c256, %c0_144] : memref<304x128xf32, #tpu.memory_space<vmem>>, vector<24x128xf32>
    tpu.vector_store %arg13[%c256, %c0_144], %170 {strides = array<i32>} : memref<304x128xf32, #tpu.memory_space<vmem>>, vector<24x128xf32>,
    %c1_145 = arith.constant 1 : index
    %c0_146 = arith.constant 0 : index
    %172 = vector.load %arg13[%c1_145, %c0_146] : memref<304x128xf32, #tpu.memory_space<vmem>>, vector<256x128xf32>
    %c16 = arith.constant 16 : index
    %c0_147 = arith.constant 0 : index
    %173 = vector.load %arg13[%c16, %c0_147] : memref<304x128xf32, #tpu.memory_space<vmem>>, vector<256x128xf32>
    %c17 = arith.constant 17 : index
    %c0_148 = arith.constant 0 : index
    %174 = vector.load %arg13[%c17, %c0_148] : memref<304x128xf32, #tpu.memory_space<vmem>>, vector<256x128xf32>
    %175 = arith.maximumf %165, %172 : vector<256x128xf32>
    %176 = arith.maximumf %173, %174 : vector<256x128xf32>
    %177 = arith.maximumf %175, %176 : vector<256x128xf32>
    %178 = arith.truncf %177 : vector<256x128xf32> to vector<256x128xbf16>
    %179 = arith.extf %178 : vector<256x128xbf16> to vector<256x128xf32>
    %180 = arith.subf %177, %179 : vector<256x128xf32>
    %181 = arith.truncf %180 : vector<256x128xf32> to vector<256x128xbf16>
    %c0_149 = arith.constant 0 : index
    %c0_150 = arith.constant 0 : index
    %182 = vector.load %arg10[%c0_149, %c0_150] : memref<64x256xbf16, #tpu.memory_space<vmem>>, vector<64x256xbf16>
    %cst_151 = arith.constant dense<0.000000e+00> : vector<64x128xf32>
    %183 = tpu.matmul %182, %178, %cst_151 {dimension_numbers = #tpu.dot_dimension_numbers<[1], [0], [0], [1], [0, 0, 1, 1], [], []>} : vector<64x256xbf16>, vector<256x128xbf16>, vector<64x128xf32> -> vector<64x128xf32>
    %cst_152 = arith.constant dense<0.000000e+00> : vector<64x128xf32>
    %184 = tpu.matmul %182, %181, %cst_152 {dimension_numbers = #tpu.dot_dimension_numbers<[1], [0], [0], [1], [0, 0, 1, 1], [], []>} : vector<64x256xbf16>, vector<256x128xbf16>, vector<64x128xf32> -> vector<64x128xf32>
    %185 = arith.addf %183, %184 : vector<64x128xf32>
    %c0_153 = arith.constant 0 : index
    %c0_154 = arith.constant 0 : index
    %c0_155 = arith.constant 0 : index
    %186 = vector.load %arg12[%c0_153, %c0_154, %c0_155] : memref<1x64x128xf32, #tpu.memory_space<vmem>>, vector<1x64x128xf32>
    %187 = vector.shape_cast %186 : vector<1x64x128xf32> to vector<64x128xf32>
    %188 = vector.shape_cast %185 : vector<64x128xf32> to vector<1x64x128xf32>
    tpu.vector_store %arg12[%c0_153, %c0_154, %c0_155], %188 {strides = array<i32>} : memref<1x64x128xf32, #tpu.memory_space<vmem>>, vector<1x64x128xf32>,
    return
  }
  func.func @transform_0(%arg0: i32) -> (i32, i32, i32) {
    %c0_i32 = arith.constant 0 : i32
    %c0_i32_0 = arith.constant 0 : i32
    %c0_i32_1 = arith.constant 0 : i32
    return %arg0, %c0_i32, %c0_i32_0 : i32, i32, i32
  }
  func.func @transform_1(%arg0: i32) -> (i32, i32, i32) {
    %c0_i32 = arith.constant 0 : i32
    %c0_i32_0 = arith.constant 0 : i32
    %c0_i32_1 = arith.constant 0 : i32
    %c0_i32_2 = arith.constant 0 : i32
    return %c0_i32, %c0_i32_0, %c0_i32_1 : i32, i32, i32
  }
  func.func @transform_2(%arg0: i32) -> (i32, i32) {
    %c0_i32 = arith.constant 0 : i32
    %c0_i32_0 = arith.constant 0 : i32
    %c0_i32_1 = arith.constant 0 : i32
    return %c0_i32, %c0_i32_0 : i32, i32
  }
  func.func @transform_3(%arg0: i32) -> (i32, i32) {
    %c0_i32 = arith.constant 0 : i32
    %c0_i32_0 = arith.constant 0 : i32
    %c0_i32_1 = arith.constant 0 : i32
    return %c0_i32, %c0_i32_0 : i32, i32
  }
  func.func @transform_4(%arg0: i32) -> (i32, i32, i32) {
    %c0_i32 = arith.constant 0 : i32
    %c0_i32_0 = arith.constant 0 : i32
    %c0_i32_1 = arith.constant 0 : i32
    %c0_i32_2 = arith.constant 0 : i32
    return %c0_i32, %c0_i32_0, %c0_i32_1 : i32, i32, i32
  }
  func.func @transform_5(%arg0: i32) -> (i32, i32) {
    %c0_i32 = arith.constant 0 : i32
    %c0_i32_0 = arith.constant 0 : i32
    %c0_i32_1 = arith.constant 0 : i32
    return %c0_i32, %c0_i32_0 : i32, i32
  }
  func.func @transform_6(%arg0: i32) -> (i32, i32) {
    %c0_i32 = arith.constant 0 : i32
    %c0_i32_0 = arith.constant 0 : i32
    %c0_i32_1 = arith.constant 0 : i32
    return %c0_i32, %c0_i32_0 : i32, i32
  }
  func.func @transform_7(%arg0: i32) -> (i32, i32) {
    %c0_i32 = arith.constant 0 : i32
    %c0_i32_0 = arith.constant 0 : i32
    %c0_i32_1 = arith.constant 0 : i32
    return %c0_i32, %c0_i32_0 : i32, i32
  }
  func.func @transform_8(%arg0: i32) -> (i32, i32) {
    %c0_i32 = arith.constant 0 : i32
    %c0_i32_0 = arith.constant 0 : i32
    %c0_i32_1 = arith.constant 0 : i32
    return %c0_i32, %c0_i32_0 : i32, i32
  }
  func.func @transform_9(%arg0: i32) -> (i32, i32) {
    %c0_i32 = arith.constant 0 : i32
    %c0_i32_0 = arith.constant 0 : i32
    %c0_i32_1 = arith.constant 0 : i32
    return %c0_i32, %c0_i32_0 : i32, i32
  }
  func.func @transform_10(%arg0: i32) -> (i32, i32, i32) {
    %c0_i32 = arith.constant 0 : i32
    %c0_i32_0 = arith.constant 0 : i32
    %c0_i32_1 = arith.constant 0 : i32
    return %arg0, %c0_i32, %c0_i32_0 : i32, i32, i32
  }
  func.func @transform_11(%arg0: i32) -> (i32, i32, i32) {
    %c0_i32 = arith.constant 0 : i32
    %c0_i32_0 = arith.constant 0 : i32
    %c0_i32_1 = arith.constant 0 : i32
    return %arg0, %c0_i32, %c0_i32_0 : i32, i32, i32
  }
}

</mosaic_0001>

<llo_original>
// kernel: down_block_forward.1
$region0: #{down_block_forward.1}
  #allocation0 [shape = 'u32[]', space=smem, size = 0x4, offset = 0x4, fixed_abs, tag = 'smem constant byte address 0x4 - core index']
  #allocation1 [shape = 'u32[144,128]{1,0:T(1,128)}', space=vmem, size = 0x12000, scoped, tag = 'internal scratch']
  #allocation2 [shape = 'f32[304,128]{1,0:T(8,128)}', space=vmem, size = 0x26000, scoped, tag = 'scratch operand']
  #allocation3 [shape = 'f32[304,128]{1,0:T(8,128)}', space=vmem, size = 0x26000, scoped, tag = 'scratch operand']
  %s0 = inlined_call_operand.vmem [shape: f32[2,256,128], index: 0, kind: input, shape index: {}]
  %s1 = inlined_call_operand.vmem [shape: bf16[9,128,128], index: 1, kind: input, shape index: {}]
  %s2 = inlined_call_operand.vmem [shape: f32[1,128], index: 2, kind: input, shape index: {}]
  %s3 = inlined_call_operand.vmem [shape: f32[1,128], index: 3, kind: input, shape index: {}]
  %s4 = inlined_call_operand.vmem [shape: bf16[9,128,128], index: 4, kind: input, shape index: {}]
  %s5 = inlined_call_operand.vmem [shape: f32[1,128], index: 5, kind: input, shape index: {}]
  %s6 = inlined_call_operand.vmem [shape: f32[1,128], index: 6, kind: input, shape index: {}]
  %s7 = inlined_call_operand.vmem [shape: f32[256,1], index: 7, kind: input, shape index: {}]
  %s8 = inlined_call_operand.vmem [shape: f32[256,1], index: 8, kind: input, shape index: {}]
  %s9 = inlined_call_operand.vmem [shape: bf16[64,256], index: 9, kind: input, shape index: {}]
  %s10 = inlined_call_operand.vmem [shape: f32[2,256,128], index: 10, kind: output, shape index: {0}]
  %s11 = inlined_call_operand.vmem [shape: f32[2,64,128], index: 11, kind: output, shape index: {1}]
  %12 = xla_tuple %s10, %s11
  %s13 = sld [smem:[#allocation0]]
  $region81: #{down_block_forward.1} parent=0
    _
  %s15 = ssub.s32 1, %s13
  %s16 = scalar_select 0, %s15, %s13
  loop: start=0, step=1, limit=4
  $region2: #{down_block_forward.1} parent=0 // loop_pre_header
    _
  $region3: #{down_block_forward.1} parent=0 // loop_header
    %s18 = sphi 0, %s22
    %p19 = scmp.ge.s32.totalorder %s18, 4
    %s28 = sphi 0, %s30
    %s31 = sphi 0, %s28
    %s32 = sphi 0, %s31
    %s48 = sphi 0, %s32
    %s52 = sphi 0, %s52
    %s54 = sphi 0, %s52
    %s55 = sphi 0, %s54
    %s69 = sphi 0, %s55
    %s73 = sphi 0, %s73
    %s75 = sphi 0, %s73
    %s76 = sphi 0, %s75
    %s90 = sphi 0, %s76
    %s94 = sphi 0, %s94
    %s96 = sphi 0, %s94
    %s97 = sphi 0, %s96
    %s111 = sphi 0, %s97
    %s115 = sphi 0, %s115
    %s117 = sphi 0, %s115
    %s118 = sphi 0, %s117
    %s132 = sphi 0, %s118
    %s136 = sphi 0, %s136
    %s138 = sphi 0, %s136
    %s139 = sphi 0, %s138
    %s153 = sphi 0, %s139
    %s157 = sphi 0, %s157
    %s159 = sphi 0, %s157
    %s160 = sphi 0, %s159
    %s174 = sphi 0, %s160
    %s178 = sphi 0, %s178
    %s180 = sphi 0, %s178
    %s181 = sphi 0, %s180
    %s195 = sphi 0, %s181
    %s199 = sphi 0, %s199
    %s201 = sphi 0, %s199
    %s202 = sphi 0, %s201
    %s216 = sphi 0, %s202
    %s220 = sphi 0, %s220
    %s222 = sphi 0, %s220
    %s223 = sphi 0, %s222
    %s237 = sphi 0, %s223
    %s243 = sphi 0, %s245
    %s246 = sphi 0, %s243
    %s247 = sphi 0, %s246
    %s263 = sphi 0, %s247
    %s269 = sphi 0, %s271
    %s272 = sphi 0, %s269
    %s273 = sphi 0, %s272
    %s289 = sphi 0, %s273
  $region4: #{down_block_forward.1} parent=0 // loop_header_branch
    %21 = sbr.rel (%p19) target = $region8
  $region5: #{down_block_forward.1} parent=0 // loop_body
    %s23 = ssub.s32 %s18, 1
    %s24 = ssub.s32 %s18, 2
    %s25 = sadd.s32 %s18, 1
    %s26 = ssub.s32 %s18, %s25
    %p27 = scmp.eq.s32.totalorder %s26, 0
    %s29 = sadd.s32 %s28, 1
    %s30 = scalar_select %p27, %s28, %s29
    %p33 = pneg %p27
    %p34 = scmp.eq.s32.totalorder %s18, 1
    %p35 = por %p33, %p34
    %p36 = scmp.ne.s32.totalorder %s28, %s31
    %p37 = scmp.eq.s32.totalorder %s18, 0
    %p38 = por %p36, %p37
    %p39 = scmp.ne.s32.totalorder %s28, %s31
    %p40 = scmp.eq.s32.totalorder %s23, 1
    %p41 = por %p39, %p40
    %p42 = scmp.ne.s32.totalorder %s31, %s32
    %p43 = scmp.eq.s32.totalorder %s23, 0
    %p44 = por %p42, %p43
    %p45 = scmp.ne.s32.totalorder %s31, %s32
    %p46 = scmp.eq.s32.totalorder %s24, 1
    %p47 = por %p45, %p46
    %p49 = scmp.ne.s32.totalorder %s32, %s48
    %p50 = scmp.eq.s32.totalorder %s24, 0
    %p51 = por %p49, %p50
    %s53 = sadd.s32 %s52, 1
    %p56 = scmp.eq.s32.totalorder %s18, 1
    %p57 = scmp.ne.s32.totalorder %s52, %s54
    %p58 = scmp.eq.s32.totalorder %s18, 0
    %p59 = por %p57, %p58
    %p60 = scmp.ne.s32.totalorder %s52, %s54
    %p61 = scmp.eq.s32.totalorder %s23, 1
    %p62 = por %p60, %p61
    %p63 = scmp.ne.s32.totalorder %s54, %s55
    %p64 = scmp.eq.s32.totalorder %s23, 0
    %p65 = por %p63, %p64
    %p66 = scmp.ne.s32.totalorder %s54, %s55
    %p67 = scmp.eq.s32.totalorder %s24, 1
    %p68 = por %p66, %p67
    %p70 = scmp.ne.s32.totalorder %s55, %s69
    %p71 = scmp.eq.s32.totalorder %s24, 0
    %p72 = por %p70, %p71
    %s74 = sadd.s32 %s73, 1
    %p77 = scmp.eq.s32.totalorder %s18, 1
    %p78 = scmp.ne.s32.totalorder %s73, %s75
    %p79 = scmp.eq.s32.totalorder %s18, 0
    %p80 = por %p78, %p79
    %p81 = scmp.ne.s32.totalorder %s73, %s75
    %p82 = scmp.eq.s32.totalorder %s23, 1
    %p83 = por %p81, %p82
    %p84 = scmp.ne.s32.totalorder %s75, %s76
    %p85 = scmp.eq.s32.totalorder %s23, 0
    %p86 = por %p84, %p85
    %p87 = scmp.ne.s32.totalorder %s75, %s76
    %p88 = scmp.eq.s32.totalorder %s24, 1
    %p89 = por %p87, %p88
    %p91 = scmp.ne.s32.totalorder %s76, %s90
    %p92 = scmp.eq.s32.totalorder %s24, 0
    %p93 = por %p91, %p92
    %s95 = sadd.s32 %s94, 1
    %p98 = scmp.eq.s32.totalorder %s18, 1
    %p99 = scmp.ne.s32.totalorder %s94, %s96
    %p100 = scmp.eq.s32.totalorder %s18, 0
    %p101 = por %p99, %p100
    %p102 = scmp.ne.s32.totalorder %s94, %s96
    %p103 = scmp.eq.s32.totalorder %s23, 1
    %p104 = por %p102, %p103
    %p105 = scmp.ne.s32.totalorder %s96, %s97
    %p106 = scmp.eq.s32.totalorder %s23, 0
    %p107 = por %p105, %p106
    %p108 = scmp.ne.s32.totalorder %s96, %s97
    %p109 = scmp.eq.s32.totalorder %s24, 1
    %p110 = por %p108, %p109
    %p112 = scmp.ne.s32.totalorder %s97, %s111
    %p113 = scmp.eq.s32.totalorder %s24, 0
    %p114 = por %p112, %p113
    %s116 = sadd.s32 %s115, 1
    %p119 = scmp.eq.s32.totalorder %s18, 1
    %p120 = scmp.ne.s32.totalorder %s115, %s117
    %p121 = scmp.eq.s32.totalorder %s18, 0
    %p122 = por %p120, %p121
    %p123 = scmp.ne.s32.totalorder %s115, %s117
    %p124 = scmp.eq.s32.totalorder %s23, 1
    %p125 = por %p123, %p124
    %p126 = scmp.ne.s32.totalorder %s117, %s118
    %p127 = scmp.eq.s32.totalorder %s23, 0
    %p128 = por %p126, %p127
    %p129 = scmp.ne.s32.totalorder %s117, %s118
    %p130 = scmp.eq.s32.totalorder %s24, 1
    %p131 = por %p129, %p130
    %p133 = scmp.ne.s32.totalorder %s118, %s132
    %p134 = scmp.eq.s32.totalorder %s24, 0
    %p135 = por %p133, %p134
    %s137 = sadd.s32 %s136, 1
    %p140 = scmp.eq.s32.totalorder %s18, 1
    %p141 = scmp.ne.s32.totalorder %s136, %s138
    %p142 = scmp.eq.s32.totalorder %s18, 0
    %p143 = por %p141, %p142
    %p144 = scmp.ne.s32.totalorder %s136, %s138
    %p145 = scmp.eq.s32.totalorder %s23, 1
    %p146 = por %p144, %p145
    %p147 = scmp.ne.s32.totalorder %s138, %s139
    %p148 = scmp.eq.s32.totalorder %s23, 0
    %p149 = por %p147, %p148
    %p150 = scmp.ne.s32.totalorder %s138, %s139
    %p151 = scmp.eq.s32.totalorder %s24, 1
    %p152 = por %p150, %p151
    %p154 = scmp.ne.s32.totalorder %s139, %s153
    %p155 = scmp.eq.s32.totalorder %s24, 0
    %p156 = por %p154, %p155
    %s158 = sadd.s32 %s157, 1
    %p161 = scmp.eq.s32.totalorder %s18, 1
    %p162 = scmp.ne.s32.totalorder %s157, %s159
    %p163 = scmp.eq.s32.totalorder %s18, 0
    %p164 = por %p162, %p163
    %p165 = scmp.ne.s32.totalorder %s157, %s159
    %p166 = scmp.eq.s32.totalorder %s23, 1
    %p167 = por %p165, %p166
    %p168 = scmp.ne.s32.totalorder %s159, %s160
    %p169 = scmp.eq.s32.totalorder %s23, 0
    %p170 = por %p168, %p169
    %p171 = scmp.ne.s32.totalorder %s159, %s160
    %p172 = scmp.eq.s32.totalorder %s24, 1
    %p173 = por %p171, %p172
    %p175 = scmp.ne.s32.totalorder %s160, %s174
    %p176 = scmp.eq.s32.totalorder %s24, 0
    %p177 = por %p175, %p176
    %s179 = sadd.s32 %s178, 1
    %p182 = scmp.eq.s32.totalorder %s18, 1
    %p183 = scmp.ne.s32.totalorder %s178, %s180
    %p184 = scmp.eq.s32.totalorder %s18, 0
    %p185 = por %p183, %p184
    %p186 = scmp.ne.s32.totalorder %s178, %s180
    %p187 = scmp.eq.s32.totalorder %s23, 1
    %p188 = por %p186, %p187
    %p189 = scmp.ne.s32.totalorder %s180, %s181
    %p190 = scmp.eq.s32.totalorder %s23, 0
    %p191 = por %p189, %p190
    %p192 = scmp.ne.s32.totalorder %s180, %s181
    %p193 = scmp.eq.s32.totalorder %s24, 1
    %p194 = por %p192, %p193
    %p196 = scmp.ne.s32.totalorder %s181, %s195
    %p197 = scmp.eq.s32.totalorder %s24, 0
    %p198 = por %p196, %p197
    %s200 = sadd.s32 %s199, 1
    %p203 = scmp.eq.s32.totalorder %s18, 1
    %p204 = scmp.ne.s32.totalorder %s199, %s201
    %p205 = scmp.eq.s32.totalorder %s18, 0
    %p206 = por %p204, %p205
    %p207 = scmp.ne.s32.totalorder %s199, %s201
    %p208 = scmp.eq.s32.totalorder %s23, 1
    %p209 = por %p207, %p208
    %p210 = scmp.ne.s32.totalorder %s201, %s202
    %p211 = scmp.eq.s32.totalorder %s23, 0
    %p212 = por %p210, %p211
    %p213 = scmp.ne.s32.totalorder %s201, %s202
    %p214 = scmp.eq.s32.totalorder %s24, 1
    %p215 = por %p213, %p214
    %p217 = scmp.ne.s32.totalorder %s202, %s216
    %p218 = scmp.eq.s32.totalorder %s24, 0
    %p219 = por %p217, %p218
    %s221 = sadd.s32 %s220, 1
    %p224 = scmp.eq.s32.totalorder %s18, 1
    %p225 = scmp.ne.s32.totalorder %s220, %s222
    %p226 = scmp.eq.s32.totalorder %s18, 0
    %p227 = por %p225, %p226
    %p228 = scmp.ne.s32.totalorder %s220, %s222
    %p229 = scmp.eq.s32.totalorder %s23, 1
    %p230 = por %p228, %p229
    %p231 = scmp.ne.s32.totalorder %s222, %s223
    %p232 = scmp.eq.s32.totalorder %s23, 0
    %p233 = por %p231, %p232
    %p234 = scmp.ne.s32.totalorder %s222, %s223
    %p235 = scmp.eq.s32.totalorder %s24, 1
    %p236 = por %p234, %p235
    %p238 = scmp.ne.s32.totalorder %s223, %s237
    %p239 = scmp.eq.s32.totalorder %s24, 0
    %p240 = por %p238, %p239
    %s241 = ssub.s32 %s18, %s25
    %p242 = scmp.eq.s32.totalorder %s241, 0
    %s244 = sadd.s32 %s243, 1
    %s245 = scalar_select %p242, %s243, %s244
    %p248 = pneg %p242
    %p249 = scmp.eq.s32.totalorder %s18, 1
    %p250 = por %p248, %p249
    %p251 = scmp.ne.s32.totalorder %s243, %s246
    %p252 = scmp.eq.s32.totalorder %s18, 0
    %p253 = por %p251, %p252
    %p254 = scmp.ne.s32.totalorder %s243, %s246
    %p255 = scmp.eq.s32.totalorder %s23, 1
    %p256 = por %p254, %p255
    %p257 = scmp.ne.s32.totalorder %s246, %s247
    %p258 = scmp.eq.s32.totalorder %s23, 0
    %p259 = por %p257, %p258
    %p260 = scmp.ne.s32.totalorder %s246, %s247
    %p261 = scmp.eq.s32.totalorder %s24, 1
    %p262 = por %p260, %p261
    %p264 = scmp.ne.s32.totalorder %s247, %s263
    %p265 = scmp.eq.s32.totalorder %s24, 0
    %p266 = por %p264, %p265
    %s267 = ssub.s32 %s18, %s25
    %p268 = scmp.eq.s32.totalorder %s267, 0
    %s270 = sadd.s32 %s269, 1
    %s271 = scalar_select %p268, %s269, %s270
    %p274 = pneg %p268
    %p275 = scmp.eq.s32.totalorder %s18, 1
    %p276 = por %p274, %p275
    %p277 = scmp.ne.s32.totalorder %s269, %s272
    %p278 = scmp.eq.s32.totalorder %s18, 0
    %p279 = por %p277, %p278
    %p280 = scmp.ne.s32.totalorder %s269, %s272
    %p281 = scmp.eq.s32.totalorder %s23, 1
    %p282 = por %p280, %p281
    %p283 = scmp.ne.s32.totalorder %s272, %s273
    %p284 = scmp.eq.s32.totalorder %s23, 0
    %p285 = por %p283, %p284
    %p286 = scmp.ne.s32.totalorder %s272, %s273
    %p287 = scmp.eq.s32.totalorder %s24, 1
    %p288 = por %p286, %p287
    %p290 = scmp.ne.s32.totalorder %s273, %s289
    %p291 = scmp.eq.s32.totalorder %s24, 0
    %p292 = por %p290, %p291
    %p293 = scmp.le.s32.totalorder 1, %s18
    %p294 = scmp.lt.s32.totalorder %s18, 3
    %p295 = pnand %p293, %p294
    %p296 = pneg %p295
    // Predicated region
    $region9: #{down_block_forward.1} parent=5 // pred_check
      _
    $region10: #{down_block_forward.1} parent=5 // pred_check_branch
      %298 = sbr.rel (%p295) target = $region12
    $region11: #{down_block_forward.1} parent=5 // pred_region
      %s299 = ssub.s32 %s18, 1
      // Predicated region
      $region13: #{down_block_forward.1} parent=11 // pred_check
        %p300 = pneg %p65
      $region14: #{down_block_forward.1} parent=11 // pred_check_branch
        %302 = sbr.rel (%p300) target = $region16
      $region15: #{down_block_forward.1} parent=11 // pred_region
        _
      $region16: #{down_block_forward.1} parent=11 // pred_fallthru
        _
      // Predicated region
      $region17: #{down_block_forward.1} parent=11 // pred_check
        %p303 = pneg %p86
      $region18: #{down_block_forward.1} parent=11 // pred_check_branch
        %305 = sbr.rel (%p303) target = $region20
      $region19: #{down_block_forward.1} parent=11 // pred_region
        _
      $region20: #{down_block_forward.1} parent=11 // pred_fallthru
        _
      // Predicated region
      $region21: #{down_block_forward.1} parent=11 // pred_check
        %p306 = pneg %p107
      $region22: #{down_block_forward.1} parent=11 // pred_check_branch
        %308 = sbr.rel (%p306) target = $region24
      $region23: #{down_block_forward.1} parent=11 // pred_region
        _
      $region24: #{down_block_forward.1} parent=11 // pred_fallthru
        _
      // Predicated region
      $region25: #{down_block_forward.1} parent=11 // pred_check
        %p309 = pneg %p128
      $region26: #{down_block_forward.1} parent=11 // pred_check_branch
        %311 = sbr.rel (%p309) target = $region28
      $region27: #{down_block_forward.1} parent=11 // pred_region
        _
      $region28: #{down_block_forward.1} parent=11 // pred_fallthru
        _
      // Predicated region
      $region29: #{down_block_forward.1} parent=11 // pred_check
        %p312 = pneg %p149
      $region30: #{down_block_forward.1} parent=11 // pred_check_branch
        %314 = sbr.rel (%p312) target = $region32
      $region31: #{down_block_forward.1} parent=11 // pred_region
        _
      $region32: #{down_block_forward.1} parent=11 // pred_fallthru
        _
      // Predicated region
      $region33: #{down_block_forward.1} parent=11 // pred_check
        %p315 = pneg %p170
      $region34: #{down_block_forward.1} parent=11 // pred_check_branch
        %317 = sbr.rel (%p315) target = $region36
      $region35: #{down_block_forward.1} parent=11 // pred_region
        _
      $region36: #{down_block_forward.1} parent=11 // pred_fallthru
        _
      // Predicated region
      $region37: #{down_block_forward.1} parent=11 // pred_check
        %p318 = pneg %p191
      $region38: #{down_block_forward.1} parent=11 // pred_check_branch
        %320 = sbr.rel (%p318) target = $region40
      $region39: #{down_block_forward.1} parent=11 // pred_region
        _
      $region40: #{down_block_forward.1} parent=11 // pred_fallthru
        _
      // Predicated region
      $region41: #{down_block_forward.1} parent=11 // pred_check
        %p321 = pneg %p212
      $region42: #{down_block_forward.1} parent=11 // pred_check_branch
        %323 = sbr.rel (%p321) target = $region44
      $region43: #{down_block_forward.1} parent=11 // pred_region
        _
      $region44: #{down_block_forward.1} parent=11 // pred_fallthru
        _
      // Predicated region
      $region45: #{down_block_forward.1} parent=11 // pred_check
        %p324 = pneg %p233
      $region46: #{down_block_forward.1} parent=11 // pred_check_branch
        %326 = sbr.rel (%p324) target = $region48
      $region47: #{down_block_forward.1} parent=11 // pred_region
        _
      $region48: #{down_block_forward.1} parent=11 // pred_fallthru
        _
    $region12: #{down_block_forward.1} parent=5 // pred_fallthru
      _
    %p327 = scmp.lt.s32.totalorder %s18, 2
    // Predicated region
    $region49: #{down_block_forward.1} parent=5 // pred_check
      %p328 = pneg %p327
    $region50: #{down_block_forward.1} parent=5 // pred_check_branch
      %330 = sbr.rel (%p328) target = $region52
    $region51: #{down_block_forward.1} parent=5 // pred_region
      // Predicated region
      $region53: #{down_block_forward.1} parent=51 // pred_check
        %p331 = pneg %p38
      $region54: #{down_block_forward.1} parent=51 // pred_check_branch
        %333 = sbr.rel (%p331) target = $region56
      $region55: #{down_block_forward.1} parent=51 // pred_region
        %p334 = scmp.lt.s32.totalorder %s18, 1
        %s335 = scalar_select %p334, %s18, 1
        %s336 = smul.addr %s335, 32
        %s337 = smul.addr %s336, 8
        %s338 = scalar_lea.vmem %s0, %s337
      $region56: #{down_block_forward.1} parent=51 // pred_fallthru
        _
    $region52: #{down_block_forward.1} parent=5 // pred_fallthru
      _
    %p339 = scmp.le.s32.totalorder 1, %s18
    %p340 = scmp.lt.s32.totalorder %s18, 3
    %p341 = pnand %p339, %p340
    %p342 = pneg %p341
    // Predicated region
    $region57: #{down_block_forward.1} parent=5 // pred_check
      _
    $region58: #{down_block_forward.1} parent=5 // pred_check_branch
      %344 = sbr.rel (%p341) target = $region60
    $region59: #{down_block_forward.1} parent=5 // pred_region
      %s345 = ssub.s32 %s18, 1
      %p346 = scmp.lt.s32.totalorder %s23, 1
      %s347 = scalar_select %p346, %s23, 1
      %s348 = smul.addr %s347, 32
      %s349 = smul.addr %s348, 8
      %s350 = scalar_lea.vmem %s0, %s349
      %p351 = pneg %p44
      %p352 = pneg %p41
      %p353 = pneg %p65
      %p354 = pneg %p62
      %p355 = pneg %p86
      %p356 = pneg %p83
      %p357 = pneg %p107
      %p358 = pneg %p104
      %p359 = pneg %p128
      %p360 = pneg %p125
      %p361 = pneg %p149
      %p362 = pneg %p146
      %p363 = pneg %p170
      %p364 = pneg %p167
      %p365 = pneg %p191
      %p366 = pneg %p188
      %p367 = pneg %p212
      %p368 = pneg %p209
      %p369 = pneg %p233
      %p370 = pneg %p230
      %p371 = pneg %p259
      %p372 = pneg %p256
      %p373 = scmp.lt.s32.totalorder %s23, 1
      %s374 = scalar_select %p373, %s23, 1
      %s375 = smul.addr %s374, 32
      %s376 = smul.addr %s375, 8
      %s377 = scalar_lea.vmem %s10, %s376
      %p378 = pneg %p285
      %p379 = pneg %p282
      %p380 = scmp.lt.s32.totalorder %s23, 1
      %s381 = scalar_select %p380, %s23, 1
      %s382 = smul.addr %s381, 8
      %s383 = smul.addr %s382, 8
      %s384 = scalar_lea.vmem %s11, %s383
      %p385 = scmp.lt.s32.totalorder %s23, 1
      %s386 = scalar_select %p385, %s23, 1
      %s387 = smul.addr %s386, 32
      %s388 = smul.addr %s387, 8
      %s389 = scalar_lea.vmem %s0, %s388
      %p390 = scmp.lt.s32.totalorder %s23, 1
      %s391 = scalar_select %p390, %s23, 1
      %s392 = smul.addr %s391, 32
      %s393 = smul.addr %s392, 8
      %s394 = scalar_lea.vmem %s10, %s393
      %p395 = scmp.lt.s32.totalorder %s23, 1
      %s396 = scalar_select %p395, %s23, 1
      %s397 = smul.addr %s396, 8
      %s398 = smul.addr %s397, 8
      %s399 = scalar_lea.vmem %s11, %s398
      %401 = vst [vmem:[#allocation2] sm:$0xff] 0.0
      %402 = vst [vmem:[#allocation2 + $0x8] sm:$0xff] 0.0
      %403 = vst [vmem:[#allocation2 + $0x10] sm:$0xff] 0.0
      %404 = vst [vmem:[#allocation2 + $0x18] sm:$0xff] 0.0
      %405 = vst [vmem:[#allocation2 + $0x20] sm:$0xff] 0.0
      %406 = vst [vmem:[#allocation2 + $0x28] sm:$0xff] 0.0
      %407 = vst [vmem:[#allocation2 + $0x30] sm:$0xff] 0.0
      %408 = vst [vmem:[#allocation2 + $0x38] sm:$0xff] 0.0
      %409 = vst [vmem:[#allocation2 + $0x40] sm:$0xff] 0.0
      %410 = vst [vmem:[#allocation2 + $0x48] sm:$0xff] 0.0
      %411 = vst [vmem:[#allocation2 + $0x50] sm:$0xff] 0.0
      %412 = vst [vmem:[#allocation2 + $0x58] sm:$0xff] 0.0
      %413 = vst [vmem:[#allocation2 + $0x60] sm:$0xff] 0.0
      %414 = vst [vmem:[#allocation2 + $0x68] sm:$0xff] 0.0
      %415 = vst [vmem:[#allocation2 + $0x70] sm:$0xff] 0.0
      %416 = vst [vmem:[#allocation2 + $0x78] sm:$0xff] 0.0
      %417 = vst [vmem:[#allocation2 + $0x80] sm:$0xff] 0.0
      %418 = vst [vmem:[#allocation2 + $0x88] sm:$0xff] 0.0
      %419 = vst [vmem:[#allocation2 + $0x90] sm:$0xff] 0.0
      %420 = vst [vmem:[#allocation2 + $0x98] sm:$0xff] 0.0
      %421 = vst [vmem:[#allocation2 + $0xa0] sm:$0xff] 0.0
      %422 = vst [vmem:[#allocation2 + $0xa8] sm:$0xff] 0.0
      %423 = vst [vmem:[#allocation2 + $0xb0] sm:$0xff] 0.0
      %424 = vst [vmem:[#allocation2 + $0xb8] sm:$0xff] 0.0
      %425 = vst [vmem:[#allocation2 + $0xc0] sm:$0xff] 0.0
      %426 = vst [vmem:[#allocation2 + $0xc8] sm:$0xff] 0.0
      %427 = vst [vmem:[#allocation2 + $0xd0] sm:$0xff] 0.0
      %428 = vst [vmem:[#allocation2 + $0xd8] sm:$0xff] 0.0
      %429 = vst [vmem:[#allocation2 + $0xe0] sm:$0xff] 0.0
      %430 = vst [vmem:[#allocation2 + $0xe8] sm:$0xff] 0.0
      %431 = vst [vmem:[#allocation2 + $0xf0] sm:$0xff] 0.0
      %432 = vst [vmem:[#allocation2 + $0xf8] sm:$0xff] 0.0
      %433 = vst [vmem:[#allocation2 + $0x100] sm:$0xff] 0.0
      %434 = vst [vmem:[#allocation2 + $0x108] sm:$0xff] 0.0
      %435 = vst [vmem:[#allocation2 + $0x110] sm:$0xff] 0.0
      %436 = vst [vmem:[#allocation2 + $0x118] sm:$0xff] 0.0
      %437 = vst [vmem:[#allocation2 + $0x120] sm:$0xff] 0.0
      %438 = vst [vmem:[#allocation2 + $0x128] sm:$0xff] 0.0
      %439 = vst [vmem:[#allocation3] sm:$0xff] 0.0
      %440 = vst [vmem:[#allocation3 + $0x8] sm:$0xff] 0.0
      %441 = vst [vmem:[#allocation3 + $0x10] sm:$0xff] 0.0
      %442 = vst [vmem:[#allocation3 + $0x18] sm:$0xff] 0.0
      %443 = vst [vmem:[#allocation3 + $0x20] sm:$0xff] 0.0
      %444 = vst [vmem:[#allocation3 + $0x28] sm:$0xff] 0.0
      %445 = vst [vmem:[#allocation3 + $0x30] sm:$0xff] 0.0
      %446 = vst [vmem:[#allocation3 + $0x38] sm:$0xff] 0.0
      %447 = vst [vmem:[#allocation3 + $0x40] sm:$0xff] 0.0
      %448 = vst [vmem:[#allocation3 + $0x48] sm:$0xff] 0.0
      %449 = vst [vmem:[#allocation3 + $0x50] sm:$0xff] 0.0
      %450 = vst [vmem:[#allocation3 + $0x58] sm:$0xff] 0.0
      %451 = vst [vmem:[#allocation3 + $0x60] sm:$0xff] 0.0
      %452 = vst [vmem:[#allocation3 + $0x68] sm:$0xff] 0.0
      %453 = vst [vmem:[#allocation3 + $0x70] sm:$0xff] 0.0
      %454 = vst [vmem:[#allocation3 + $0x78] sm:$0xff] 0.0
      %455 = vst [vmem:[#allocation3 + $0x80] sm:$0xff] 0.0
      %456 = vst [vmem:[#allocation3 + $0x88] sm:$0xff] 0.0
      %457 = vst [vmem:[#allocation3 + $0x90] sm:$0xff] 0.0
      %458 = vst [vmem:[#allocation3 + $0x98] sm:$0xff] 0.0
      %459 = vst [vmem:[#allocation3 + $0xa0] sm:$0xff] 0.0
      %460 = vst [vmem:[#allocation3 + $0xa8] sm:$0xff] 0.0
      %461 = vst [vmem:[#allocation3 + $0xb0] sm:$0xff] 0.0
      %462 = vst [vmem:[#allocation3 + $0xb8] sm:$0xff] 0.0
      %463 = vst [vmem:[#allocation3 + $0xc0] sm:$0xff] 0.0
      %464 = vst [vmem:[#allocation3 + $0xc8] sm:$0xff] 0.0
      %465 = vst [vmem:[#allocation3 + $0xd0] sm:$0xff] 0.0
      %466 = vst [vmem:[#allocation3 + $0xd8] sm:$0xff] 0.0
      %467 = vst [vmem:[#allocation3 + $0xe0] sm:$0xff] 0.0
      %468 = vst [vmem:[#allocation3 + $0xe8] sm:$0xff] 0.0
      %469 = vst [vmem:[#allocation3 + $0xf0] sm:$0xff] 0.0
      %470 = vst [vmem:[#allocation3 + $0xf8] sm:$0xff] 0.0
      %471 = vst [vmem:[#allocation3 + $0x100] sm:$0xff] 0.0
      %472 = vst [vmem:[#allocation3 + $0x108] sm:$0xff] 0.0
      %473 = vst [vmem:[#allocation3 + $0x110] sm:$0xff] 0.0
      %474 = vst [vmem:[#allocation3 + $0x118] sm:$0xff] 0.0
      %475 = vst [vmem:[#allocation3 + $0x120] sm:$0xff] 0.0
      %476 = vst [vmem:[#allocation3 + $0x128] sm:$0xff] 0.0
      %v477 = vld [vmem:[%s389] sm:$0xff]
      %v478 = vld [vmem:[%s389 + $0x8] sm:$0xff]
      %v479 = vld [vmem:[%s389 + $0x10] sm:$0xff]
      %v480 = vld [vmem:[%s389 + $0x18] sm:$0xff]
      %v481 = vld [vmem:[%s389 + $0x20] sm:$0xff]
      %v482 = vld [vmem:[%s389 + $0x28] sm:$0xff]
      %v483 = vld [vmem:[%s389 + $0x30] sm:$0xff]
      %v484 = vld [vmem:[%s389 + $0x38] sm:$0xff]
      %v485 = vld [vmem:[%s389 + $0x40] sm:$0xff]
      %v486 = vld [vmem:[%s389 + $0x48] sm:$0xff]
      %v487 = vld [vmem:[%s389 + $0x50] sm:$0xff]
      %v488 = vld [vmem:[%s389 + $0x58] sm:$0xff]
      %v489 = vld [vmem:[%s389 + $0x60] sm:$0xff]
      %v490 = vld [vmem:[%s389 + $0x68] sm:$0xff]
      %v491 = vld [vmem:[%s389 + $0x70] sm:$0xff]
      %v492 = vld [vmem:[%s389 + $0x78] sm:$0xff]
      %v493 = vld [vmem:[%s389 + $0x80] sm:$0xff]
      %v494 = vld [vmem:[%s389 + $0x88] sm:$0xff]
      %v495 = vld [vmem:[%s389 + $0x90] sm:$0xff]
      %v496 = vld [vmem:[%s389 + $0x98] sm:$0xff]
      %v497 = vld [vmem:[%s389 + $0xa0] sm:$0xff]
      %v498 = vld [vmem:[%s389 + $0xa8] sm:$0xff]
      %v499 = vld [vmem:[%s389 + $0xb0] sm:$0xff]
      %v500 = vld [vmem:[%s389 + $0xb8] sm:$0xff]
      %v501 = vld [vmem:[%s389 + $0xc0] sm:$0xff]
      %v502 = vld [vmem:[%s389 + $0xc8] sm:$0xff]
      %v503 = vld [vmem:[%s389 + $0xd0] sm:$0xff]
      %v504 = vld [vmem:[%s389 + $0xd8] sm:$0xff]
      %v505 = vld [vmem:[%s389 + $0xe0] sm:$0xff]
      %v506 = vld [vmem:[%s389 + $0xe8] sm:$0xff]
      %v507 = vld [vmem:[%s389 + $0xf0] sm:$0xff]
      %v508 = vld [vmem:[%s389 + $0xf8] sm:$0xff]
      %509 = vst [vmem:[#allocation2 + $0x18] sm:$0xff] %v477
      %510 = vst [vmem:[#allocation2 + $0x20] sm:$0xff] %v478
      %511 = vst [vmem:[#allocation2 + $0x28] sm:$0xff] %v479
      %512 = vst [vmem:[#allocation2 + $0x30] sm:$0xff] %v480
      %513 = vst [vmem:[#allocation2 + $0x38] sm:$0xff] %v481
      %514 = vst [vmem:[#allocation2 + $0x40] sm:$0xff] %v482
      %515 = vst [vmem:[#allocation2 + $0x48] sm:$0xff] %v483
      %516 = vst [vmem:[#allocation2 + $0x50] sm:$0xff] %v484
      %517 = vst [vmem:[#allocation2 + $0x58] sm:$0xff] %v485
      %518 = vst [vmem:[#allocation2 + $0x60] sm:$0xff] %v486
      %519 = vst [vmem:[#allocation2 + $0x68] sm:$0xff] %v487
      %520 = vst [vmem:[#allocation2 + $0x70] sm:$0xff] %v488
      %521 = vst [vmem:[#allocation2 + $0x78] sm:$0xff] %v489
      %522 = vst [vmem:[#allocation2 + $0x80] sm:$0xff] %v490
      %523 = vst [vmem:[#allocation2 + $0x88] sm:$0xff] %v491
      %524 = vst [vmem:[#allocation2 + $0x90] sm:$0xff] %v492
      %525 = vst [vmem:[#allocation2 + $0x98] sm:$0xff] %v493
      %526 = vst [vmem:[#allocation2 + $0xa0] sm:$0xff] %v494
      %527 = vst [vmem:[#allocation2 + $0xa8] sm:$0xff] %v495
      %528 = vst [vmem:[#allocation2 + $0xb0] sm:$0xff] %v496
      %529 = vst [vmem:[#allocation2 + $0xb8] sm:$0xff] %v497
      %530 = vst [vmem:[#allocation2 + $0xc0] sm:$0xff] %v498
      %531 = vst [vmem:[#allocation2 + $0xc8] sm:$0xff] %v499
      %532 = vst [vmem:[#allocation2 + $0xd0] sm:$0xff] %v500
      %533 = vst [vmem:[#allocation2 + $0xd8] sm:$0xff] %v501
      %534 = vst [vmem:[#allocation2 + $0xe0] sm:$0xff] %v502
      %535 = vst [vmem:[#allocation2 + $0xe8] sm:$0xff] %v503
      %536 = vst [vmem:[#allocation2 + $0xf0] sm:$0xff] %v504
      %537 = vst [vmem:[#allocation2 + $0xf8] sm:$0xff] %v505
      %538 = vst [vmem:[#allocation2 + $0x100] sm:$0xff] %v506
      %539 = vst [vmem:[#allocation2 + $0x108] sm:$0xff] %v507
      %540 = vst [vmem:[#allocation2 + $0x110] sm:$0xff] %v508
      %v541 = vld [vmem:[#allocation2 + $0x7] sm:$0xff]
      %v542 = vld [vmem:[#allocation2 + $0xf] sm:$0xff]
      %v543 = vld [vmem:[#allocation2 + $0x17] sm:$0xff]
      %v544 = vld [vmem:[#allocation2 + $0x1f] sm:$0xff]
      %v545 = vld [vmem:[#allocation2 + $0x27] sm:$0xff]
      %v546 = vld [vmem:[#allocation2 + $0x2f] sm:$0xff]
      %v547 = vld [vmem:[#allocation2 + $0x37] sm:$0xff]
      %v548 = vld [vmem:[#allocation2 + $0x3f] sm:$0xff]
      %v549 = vld [vmem:[#allocation2 + $0x47] sm:$0xff]
      %v550 = vld [vmem:[#allocation2 + $0x4f] sm:$0xff]
      %v551 = vld [vmem:[#allocation2 + $0x57] sm:$0xff]
      %v552 = vld [vmem:[#allocation2 + $0x5f] sm:$0xff]
      %v553 = vld [vmem:[#allocation2 + $0x67] sm:$0xff]
      %v554 = vld [vmem:[#allocation2 + $0x6f] sm:$0xff]
      %v555 = vld [vmem:[#allocation2 + $0x77] sm:$0xff]
      %v556 = vld [vmem:[#allocation2 + $0x7f] sm:$0xff]
      %v557 = vld [vmem:[#allocation2 + $0x87] sm:$0xff]
      %v558 = vld [vmem:[#allocation2 + $0x8f] sm:$0xff]
      %v559 = vld [vmem:[#allocation2 + $0x97] sm:$0xff]
      %v560 = vld [vmem:[#allocation2 + $0x9f] sm:$0xff]
      %v561 = vld [vmem:[#allocation2 + $0xa7] sm:$0xff]
      %v562 = vld [vmem:[#allocation2 + $0xaf] sm:$0xff]
      %v563 = vld [vmem:[#allocation2 + $0xb7] sm:$0xff]
      %v564 = vld [vmem:[#allocation2 + $0xbf] sm:$0xff]
      %v565 = vld [vmem:[#allocation2 + $0xc7] sm:$0xff]
      %v566 = vld [vmem:[#allocation2 + $0xcf] sm:$0xff]
      %v567 = vld [vmem:[#allocation2 + $0xd7] sm:$0xff]
      %v568 = vld [vmem:[#allocation2 + $0xdf] sm:$0xff]
      %v569 = vld [vmem:[#allocation2 + $0xe7] sm:$0xff]
      %v570 = vld [vmem:[#allocation2 + $0xef] sm:$0xff]
      %v571 = vld [vmem:[#allocation2 + $0xf7] sm:$0xff]
      %v572 = vld [vmem:[#allocation2 + $0xff] sm:$0xff]
      %v573 = vld [vmem:[%s7] sm:$0xff]
      %v574 = vld [vmem:[%s7 + $0x8] sm:$0xff]
      %v575 = vld [vmem:[%s7 + $0x10] sm:$0xff]
      %v576 = vld [vmem:[%s7 + $0x18] sm:$0xff]
      %v577 = vld [vmem:[%s7 + $0x20] sm:$0xff]
      %v578 = vld [vmem:[%s7 + $0x28] sm:$0xff]
      %v579 = vld [vmem:[%s7 + $0x30] sm:$0xff]
      %v580 = vld [vmem:[%s7 + $0x38] sm:$0xff]
      %v581 = vld [vmem:[%s7 + $0x40] sm:$0xff]
      %v582 = vld [vmem:[%s7 + $0x48] sm:$0xff]
      %v583 = vld [vmem:[%s7 + $0x50] sm:$0xff]
      %v584 = vld [vmem:[%s7 + $0x58] sm:$0xff]
      %v585 = vld [vmem:[%s7 + $0x60] sm:$0xff]
      %v586 = vld [vmem:[%s7 + $0x68] sm:$0xff]
      %v587 = vld [vmem:[%s7 + $0x70] sm:$0xff]
      %v588 = vld [vmem:[%s7 + $0x78] sm:$0xff]
      %v589 = vld [vmem:[%s7 + $0x80] sm:$0xff]
      %v590 = vld [vmem:[%s7 + $0x88] sm:$0xff]
      %v591 = vld [vmem:[%s7 + $0x90] sm:$0xff]
      %v592 = vld [vmem:[%s7 + $0x98] sm:$0xff]
      %v593 = vld [vmem:[%s7 + $0xa0] sm:$0xff]
      %v594 = vld [vmem:[%s7 + $0xa8] sm:$0xff]
      %v595 = vld [vmem:[%s7 + $0xb0] sm:$0xff]
      %v596 = vld [vmem:[%s7 + $0xb8] sm:$0xff]
      %v597 = vld [vmem:[%s7 + $0xc0] sm:$0xff]
      %v598 = vld [vmem:[%s7 + $0xc8] sm:$0xff]
      %v599 = vld [vmem:[%s7 + $0xd0] sm:$0xff]
      %v600 = vld [vmem:[%s7 + $0xd8] sm:$0xff]
      %v601 = vld [vmem:[%s7 + $0xe0] sm:$0xff]
      %v602 = vld [vmem:[%s7 + $0xe8] sm:$0xff]
      %v603 = vld [vmem:[%s7 + $0xf0] sm:$0xff]
      %v604 = vld [vmem:[%s7 + $0xf8] sm:$0xff]
      %606 = vset.pattern.permute.xlu0 0
      %607 = vperm.xlu0 %606, %v573
      %v608 = vpop.permute.xlu0 %607
      %611 = vset.pattern.permute.xlu0 0
      %612 = vperm.xlu0 %611, %v574
      %v613 = vpop.permute.xlu0 %612
      %616 = vset.pattern.permute.xlu0 0
      %617 = vperm.xlu0 %616, %v575
      %v618 = vpop.permute.xlu0 %617
      %621 = vset.pattern.permute.xlu0 0
      %622 = vperm.xlu0 %621, %v576
      %v623 = vpop.permute.xlu0 %622
      %626 = vset.pattern.permute.xlu0 0
      %627 = vperm.xlu0 %626, %v577
      %v628 = vpop.permute.xlu0 %627
      %631 = vset.pattern.permute.xlu0 0
      %632 = vperm.xlu0 %631, %v578
      %v633 = vpop.permute.xlu0 %632
      %636 = vset.pattern.permute.xlu0 0
      %637 = vperm.xlu0 %636, %v579
      %v638 = vpop.permute.xlu0 %637
      %641 = vset.pattern.permute.xlu0 0
      %642 = vperm.xlu0 %641, %v580
      %v643 = vpop.permute.xlu0 %642
      %646 = vset.pattern.permute.xlu0 0
      %647 = vperm.xlu0 %646, %v581
      %v648 = vpop.permute.xlu0 %647
      %651 = vset.pattern.permute.xlu0 0
      %652 = vperm.xlu0 %651, %v582
      %v653 = vpop.permute.xlu0 %652
      %656 = vset.pattern.permute.xlu0 0
      %657 = vperm.xlu0 %656, %v583
      %v658 = vpop.permute.xlu0 %657
      %661 = vset.pattern.permute.xlu0 0
      %662 = vperm.xlu0 %661, %v584
      %v663 = vpop.permute.xlu0 %662
      %666 = vset.pattern.permute.xlu0 0
      %667 = vperm.xlu0 %666, %v585
      %v668 = vpop.permute.xlu0 %667
      %671 = vset.pattern.permute.xlu0 0
      %672 = vperm.xlu0 %671, %v586
      %v673 = vpop.permute.xlu0 %672
      %676 = vset.pattern.permute.xlu0 0
      %677 = vperm.xlu0 %676, %v587
      %v678 = vpop.permute.xlu0 %677
      %681 = vset.pattern.permute.xlu0 0
      %682 = vperm.xlu0 %681, %v588
      %v683 = vpop.permute.xlu0 %682
      %686 = vset.pattern.permute.xlu0 0
      %687 = vperm.xlu0 %686, %v589
      %v688 = vpop.permute.xlu0 %687
      %691 = vset.pattern.permute.xlu0 0
      %692 = vperm.xlu0 %691, %v590
      %v693 = vpop.permute.xlu0 %692
      %696 = vset.pattern.permute.xlu0 0
      %697 = vperm.xlu0 %696, %v591
      %v698 = vpop.permute.xlu0 %697
      %701 = vset.pattern.permute.xlu0 0
      %702 = vperm.xlu0 %701, %v592
      %v703 = vpop.permute.xlu0 %702
      %706 = vset.pattern.permute.xlu0 0
      %707 = vperm.xlu0 %706, %v593
      %v708 = vpop.permute.xlu0 %707
      %711 = vset.pattern.permute.xlu0 0
      %712 = vperm.xlu0 %711, %v594
      %v713 = vpop.permute.xlu0 %712
      %716 = vset.pattern.permute.xlu0 0
      %717 = vperm.xlu0 %716, %v595
      %v718 = vpop.permute.xlu0 %717
      %721 = vset.pattern.permute.xlu0 0
      %722 = vperm.xlu0 %721, %v596
      %v723 = vpop.permute.xlu0 %722
      %726 = vset.pattern.permute.xlu0 0
      %727 = vperm.xlu0 %726, %v597
      %v728 = vpop.permute.xlu0 %727
      %731 = vset.pattern.permute.xlu0 0
      %732 = vperm.xlu0 %731, %v598
      %v733 = vpop.permute.xlu0 %732
      %736 = vset.pattern.permute.xlu0 0
      %737 = vperm.xlu0 %736, %v599
      %v738 = vpop.permute.xlu0 %737
      %741 = vset.pattern.permute.xlu0 0
      %742 = vperm.xlu0 %741, %v600
      %v743 = vpop.permute.xlu0 %742
      %746 = vset.pattern.permute.xlu0 0
      %747 = vperm.xlu0 %746, %v601
      %v748 = vpop.permute.xlu0 %747
      %751 = vset.pattern.permute.xlu0 0
      %752 = vperm.xlu0 %751, %v602
      %v753 = vpop.permute.xlu0 %752
      %756 = vset.pattern.permute.xlu0 0
      %757 = vperm.xlu0 %756, %v603
      %v758 = vpop.permute.xlu0 %757
      %761 = vset.pattern.permute.xlu0 0
      %762 = vperm.xlu0 %761, %v604
      %v763 = vpop.permute.xlu0 %762
      %v765 = vmul.f32 %v541, %v608
      %v766 = vmul.f32 %v542, %v613
      %v767 = vmul.f32 %v543, %v618
      %v768 = vmul.f32 %v544, %v623
      %v769 = vmul.f32 %v545, %v628
      %v770 = vmul.f32 %v546, %v633
      %v771 = vmul.f32 %v547, %v638
      %v772 = vmul.f32 %v548, %v643
      %v773 = vmul.f32 %v549, %v648
      %v774 = vmul.f32 %v550, %v653
      %v775 = vmul.f32 %v551, %v658
      %v776 = vmul.f32 %v552, %v663
      %v777 = vmul.f32 %v553, %v668
      %v778 = vmul.f32 %v554, %v673
      %v779 = vmul.f32 %v555, %v678
      %v780 = vmul.f32 %v556, %v683
      %v781 = vmul.f32 %v557, %v688
      %v782 = vmul.f32 %v558, %v693
      %v783 = vmul.f32 %v559, %v698
      %v784 = vmul.f32 %v560, %v703
      %v785 = vmul.f32 %v561, %v708
      %v786 = vmul.f32 %v562, %v713
      %v787 = vmul.f32 %v563, %v718
      %v788 = vmul.f32 %v564, %v723
      %v789 = vmul.f32 %v565, %v728
      %v790 = vmul.f32 %v566, %v733
      %v791 = vmul.f32 %v567, %v738
      %v792 = vmul.f32 %v568, %v743
      %v793 = vmul.f32 %v569, %v748
      %v794 = vmul.f32 %v570, %v753
      %v795 = vmul.f32 %v571, %v758
      %v796 = vmul.f32 %v572, %v763
      %v797 = vpack.c.bf16 %v766, %v765
      %v798 = vpack.c.bf16 %v768, %v767
      %v799 = vpack.c.bf16 %v770, %v769
      %v800 = vpack.c.bf16 %v772, %v771
      %v801 = vpack.c.bf16 %v774, %v773
      %v802 = vpack.c.bf16 %v776, %v775
      %v803 = vpack.c.bf16 %v778, %v777
      %v804 = vpack.c.bf16 %v780, %v779
      %v805 = vpack.c.bf16 %v782, %v781
      %v806 = vpack.c.bf16 %v784, %v783
      %v807 = vpack.c.bf16 %v786, %v785
      %v808 = vpack.c.bf16 %v788, %v787
      %v809 = vpack.c.bf16 %v790, %v789
      %v810 = vpack.c.bf16 %v792, %v791
      %v811 = vpack.c.bf16 %v794, %v793
      %v812 = vpack.c.bf16 %v796, %v795
      %v813 = vld [vmem:[%s1] sm:$0xf]
      %v814 = vld [vmem:[%s1 + $0x4] sm:$0xf]
      %v815 = vld [vmem:[%s1 + $0x8] sm:$0xf]
      %v816 = vld [vmem:[%s1 + $0xc] sm:$0xf]
      %v817 = vld [vmem:[%s1 + $0x10] sm:$0xf]
      %v818 = vld [vmem:[%s1 + $0x14] sm:$0xf]
      %v819 = vld [vmem:[%s1 + $0x18] sm:$0xf]
      %v820 = vld [vmem:[%s1 + $0x1c] sm:$0xf]
      %v821 = vld [vmem:[%s1 + $0x20] sm:$0xf]
      %v822 = vld [vmem:[%s1 + $0x24] sm:$0xf]
      %v823 = vld [vmem:[%s1 + $0x28] sm:$0xf]
      %v824 = vld [vmem:[%s1 + $0x2c] sm:$0xf]
      %v825 = vld [vmem:[%s1 + $0x30] sm:$0xf]
      %v826 = vld [vmem:[%s1 + $0x34] sm:$0xf]
      %v827 = vld [vmem:[%s1 + $0x38] sm:$0xf]
      %v828 = vld [vmem:[%s1 + $0x3c] sm:$0xf]
      %v829 = vld [vmem:[#allocation2 + $0x8] sm:$0xff]
      %v830 = vld [vmem:[#allocation2 + $0x10] sm:$0xff]
      %v831 = vld [vmem:[#allocation2 + $0x18] sm:$0xff]
      %v832 = vld [vmem:[#allocation2 + $0x20] sm:$0xff]
      %v833 = vld [vmem:[#allocation2 + $0x28] sm:$0xff]
      %v834 = vld [vmem:[#allocation2 + $0x30] sm:$0xff]
      %v835 = vld [vmem:[#allocation2 + $0x38] sm:$0xff]
      %v836 = vld [vmem:[#allocation2 + $0x40] sm:$0xff]
      %v837 = vld [vmem:[#allocation2 + $0x48] sm:$0xff]
      %v838 = vld [vmem:[#allocation2 + $0x50] sm:$0xff]
      %v839 = vld [vmem:[#allocation2 + $0x58] sm:$0xff]
      %v840 = vld [vmem:[#allocation2 + $0x60] sm:$0xff]
      %v841 = vld [vmem:[#allocation2 + $0x68] sm:$0xff]
      %v842 = vld [vmem:[#allocation2 + $0x70] sm:$0xff]
      %v843 = vld [vmem:[#allocation2 + $0x78] sm:$0xff]
      %v844 = vld [vmem:[#allocation2 + $0x80] sm:$0xff]
      %v845 = vld [vmem:[#allocation2 + $0x88] sm:$0xff]
      %v846 = vld [vmem:[#allocation2 + $0x90] sm:$0xff]
      %v847 = vld [vmem:[#allocation2 + $0x98] sm:$0xff]
      %v848 = vld [vmem:[#allocation2 + $0xa0] sm:$0xff]
      %v849 = vld [vmem:[#allocation2 + $0xa8] sm:$0xff]
      %v850 = vld [vmem:[#allocation2 + $0xb0] sm:$0xff]
      %v851 = vld [vmem:[#allocation2 + $0xb8] sm:$0xff]
      %v852 = vld [vmem:[#allocation2 + $0xc0] sm:$0xff]
      %v853 = vld [vmem:[#allocation2 + $0xc8] sm:$0xff]
      %v854 = vld [vmem:[#allocation2 + $0xd0] sm:$0xff]
      %v855 = vld [vmem:[#allocation2 + $0xd8] sm:$0xff]
      %v856 = vld [vmem:[#allocation2 + $0xe0] sm:$0xff]
      %v857 = vld [vmem:[#allocation2 + $0xe8] sm:$0xff]
      %v858 = vld [vmem:[#allocation2 + $0xf0] sm:$0xff]
      %v859 = vld [vmem:[#allocation2 + $0xf8] sm:$0xff]
      %v860 = vld [vmem:[#allocation2 + $0x100] sm:$0xff]
      %v861 = vpack.c.bf16 %v830, %v829
      %v862 = vpack.c.bf16 %v832, %v831
      %v863 = vpack.c.bf16 %v834, %v833
      %v864 = vpack.c.bf16 %v836, %v835
      %v865 = vpack.c.bf16 %v838, %v837
      %v866 = vpack.c.bf16 %v840, %v839
      %v867 = vpack.c.bf16 %v842, %v841
      %v868 = vpack.c.bf16 %v844, %v843
      %v869 = vpack.c.bf16 %v846, %v845
      %v870 = vpack.c.bf16 %v848, %v847
      %v871 = vpack.c.bf16 %v850, %v849
      %v872 = vpack.c.bf16 %v852, %v851
      %v873 = vpack.c.bf16 %v854, %v853
      %v874 = vpack.c.bf16 %v856, %v855
      %v875 = vpack.c.bf16 %v858, %v857
      %v876 = vpack.c.bf16 %v860, %v859
      %s877 = scalar_lea.vmem %s1, 64
      %v878 = vld [vmem:[%s877] sm:$0xf]
      %v879 = vld [vmem:[%s877 + $0x4] sm:$0xf]
      %v880 = vld [vmem:[%s877 + $0x8] sm:$0xf]
      %v881 = vld [vmem:[%s877 + $0xc] sm:$0xf]
      %v882 = vld [vmem:[%s877 + $0x10] sm:$0xf]
      %v883 = vld [vmem:[%s877 + $0x14] sm:$0xf]
      %v884 = vld [vmem:[%s877 + $0x18] sm:$0xf]
      %v885 = vld [vmem:[%s877 + $0x1c] sm:$0xf]
      %v886 = vld [vmem:[%s877 + $0x20] sm:$0xf]
      %v887 = vld [vmem:[%s877 + $0x24] sm:$0xf]
      %v888 = vld [vmem:[%s877 + $0x28] sm:$0xf]
      %v889 = vld [vmem:[%s877 + $0x2c] sm:$0xf]
      %v890 = vld [vmem:[%s877 + $0x30] sm:$0xf]
      %v891 = vld [vmem:[%s877 + $0x34] sm:$0xf]
      %v892 = vld [vmem:[%s877 + $0x38] sm:$0xf]
      %v893 = vld [vmem:[%s877 + $0x3c] sm:$0xf]
      %v910 = vunpack.c.l.b16 %v878
      %v911 = vunpack.c.l.b16 %v879
      %v912 = vunpack.c.l.b16 %v880
      %v913 = vunpack.c.l.b16 %v881
      %v914 = vunpack.c.l.b16 %v882
      %v915 = vunpack.c.l.b16 %v883
      %v916 = vunpack.c.l.b16 %v884
      %v917 = vunpack.c.l.b16 %v885
      %v918 = vunpack.c.l.b16 %v886
      %v919 = vunpack.c.l.b16 %v887
      %v920 = vunpack.c.l.b16 %v888
      %v921 = vunpack.c.l.b16 %v889
      %v922 = vunpack.c.l.b16 %v890
      %v923 = vunpack.c.l.b16 %v891
      %v924 = vunpack.c.l.b16 %v892
      %v925 = vunpack.c.l.b16 %v893
      %v926 = vpack.c.b16 %v911, %v910
      %v927 = vpack.c.b16 %v913, %v912
      %v928 = vpack.c.b16 %v915, %v914
      %v929 = vpack.c.b16 %v917, %v916
      %v930 = vpack.c.b16 %v919, %v918
      %v931 = vpack.c.b16 %v921, %v920
      %v932 = vpack.c.b16 %v923, %v922
      %v933 = vpack.c.b16 %v925, %v924
      %942 = vmatprep.subr.bf16.mxu0 0
      %943 = vmatpush1.bf16.msra.mxu0 %v933
      %944 = vmatprep.subr.bf16.mxu0 0
      %945 = vmatpush1.bf16.msra.mxu0 %v932
      %946 = vmatprep.subr.bf16.mxu0 0
      %947 = vmatpush1.bf16.msra.mxu0 %v931
      %948 = vmatprep.subr.bf16.mxu0 0
      %949 = vmatpush1.bf16.msra.mxu0 %v930
      %950 = vmatprep.subr.bf16.mxu0 0
      %951 = vmatpush1.bf16.msra.mxu0 %v929
      %952 = vmatprep.subr.bf16.mxu0 0
      %953 = vmatpush1.bf16.msra.mxu0 %v928
      %954 = vmatprep.subr.bf16.mxu0 0
      %955 = vmatpush1.bf16.msra.mxu0 %v927
      %956 = vmatprep.subr.bf16.mxu0 0
      %957 = vmatpush1.bf16.msra.mxu0 %v926
      %958 = vmatprep.subr.bf16.mxu0 0
      %959 = vmatpush2.bf16.msra.mxu0 0
      %960 = vmatprep.subr.bf16.mxu0 0
      %961 = vmatpush2.bf16.msra.mxu0 0
      %962 = vmatprep.subr.bf16.mxu0 0
      %963 = vmatpush2.bf16.msra.mxu0 0
      %964 = vmatprep.subr.bf16.mxu0 0
      %965 = vmatpush2.bf16.msra.mxu0 0
      %966 = vmatprep.subr.bf16.mxu0 0
      %967 = vmatpush2.bf16.msra.mxu0 0
      %968 = vmatprep.subr.bf16.mxu0 0
      %969 = vmatpush2.bf16.msra.mxu0 0
      %970 = vmatprep.subr.bf16.mxu0 0
      %971 = vmatpush2.bf16.msra.mxu0 0
      %972 = vmatprep.subr.bf16.mxu0 0
      %973 = vmatpush2.bf16.msra.mxu0 0
      %974 = vmatprep.mubr.bf16.mxu0 0
      %975 = vmatmul.mubr.bf16.gmra.mxu0 %v861
      %v976 = vpop.f32.mrf.mxu0
      %v977 = vadd.f32 0.0, %v976
      %v978 = vpop.f32.mrf.mxu0
      %v979 = vpop.f32.mrf.mxu0
      %v980 = vadd.f32 0.0, %v979
      %v981 = vpop.f32.mrf.mxu0
      %982 = vmatprep.mubr.bf16.mxu0 0
      %983 = vmatmul.mubr.bf16.gmra.mxu0 %v862
      %v984 = vpop.f32.mrf.mxu0
      %v985 = vadd.f32 0.0, %v984
      %v986 = vpop.f32.mrf.mxu0
      %v987 = vpop.f32.mrf.mxu0
      %v988 = vadd.f32 0.0, %v987
      %v989 = vpop.f32.mrf.mxu0
      %990 = vmatprep.mubr.bf16.mxu0 0
      %991 = vmatmul.mubr.bf16.gmra.mxu0 %v863
      %v992 = vpop.f32.mrf.mxu0
      %v993 = vadd.f32 0.0, %v992
      %v994 = vpop.f32.mrf.mxu0
      %v995 = vpop.f32.mrf.mxu0
      %v996 = vadd.f32 0.0, %v995
      %v997 = vpop.f32.mrf.mxu0
      %998 = vmatprep.mubr.bf16.mxu0 0
      %999 = vmatmul.mubr.bf16.gmra.mxu0 %v864
      %v1000 = vpop.f32.mrf.mxu0
      %v1001 = vadd.f32 0.0, %v1000
      %v1002 = vpop.f32.mrf.mxu0
      %v1003 = vpop.f32.mrf.mxu0
      %v1004 = vadd.f32 0.0, %v1003
      %v1005 = vpop.f32.mrf.mxu0
      %1006 = vmatprep.mubr.bf16.mxu0 0
      %1007 = vmatmul.mubr.bf16.gmra.mxu0 %v865
      %v1008 = vpop.f32.mrf.mxu0
      %v1009 = vadd.f32 0.0, %v1008
      %v1010 = vpop.f32.mrf.mxu0
      %v1011 = vpop.f32.mrf.mxu0
      %v1012 = vadd.f32 0.0, %v1011
      %v1013 = vpop.f32.mrf.mxu0
      %1014 = vmatprep.mubr.bf16.mxu0 0
      %1015 = vmatmul.mubr.bf16.gmra.mxu0 %v866
      %v1016 = vpop.f32.mrf.mxu0
      %v1017 = vadd.f32 0.0, %v1016
      %v1018 = vpop.f32.mrf.mxu0
      %v1019 = vpop.f32.mrf.mxu0
      %v1020 = vadd.f32 0.0, %v1019
      %v1021 = vpop.f32.mrf.mxu0
      %1022 = vmatprep.mubr.bf16.mxu0 0
      %1023 = vmatmul.mubr.bf16.gmra.mxu0 %v867
      %v1024 = vpop.f32.mrf.mxu0
      %v1025 = vadd.f32 0.0, %v1024
      %v1026 = vpop.f32.mrf.mxu0
      %v1027 = vpop.f32.mrf.mxu0
      %v1028 = vadd.f32 0.0, %v1027
      %v1029 = vpop.f32.mrf.mxu0
      %1030 = vmatprep.mubr.bf16.mxu0 0
      %1031 = vmatmul.mubr.bf16.gmra.mxu0 %v868
      %v1032 = vpop.f32.mrf.mxu0
      %v1033 = vadd.f32 0.0, %v1032
      %v1034 = vpop.f32.mrf.mxu0
      %v1035 = vpop.f32.mrf.mxu0
      %v1036 = vadd.f32 0.0, %v1035
      %v1037 = vpop.f32.mrf.mxu0
      %1038 = vmatprep.mubr.bf16.mxu0 0
      %1039 = vmatmul.mubr.bf16.gmra.mxu0 %v869
      %v1040 = vpop.f32.mrf.mxu0
      %v1041 = vadd.f32 0.0, %v1040
      %v1042 = vpop.f32.mrf.mxu0
      %v1043 = vpop.f32.mrf.mxu0
      %v1044 = vadd.f32 0.0, %v1043
      %v1045 = vpop.f32.mrf.mxu0
      %1046 = vmatprep.mubr.bf16.mxu0 0
      %1047 = vmatmul.mubr.bf16.gmra.mxu0 %v870
      %v1048 = vpop.f32.mrf.mxu0
      %v1049 = vadd.f32 0.0, %v1048
      %v1050 = vpop.f32.mrf.mxu0
      %v1051 = vpop.f32.mrf.mxu0
      %v1052 = vadd.f32 0.0, %v1051
      %v1053 = vpop.f32.mrf.mxu0
      %1054 = vmatprep.mubr.bf16.mxu0 0
      %1055 = vmatmul.mubr.bf16.gmra.mxu0 %v871
      %v1056 = vpop.f32.mrf.mxu0
      %v1057 = vadd.f32 0.0, %v1056
      %v1058 = vpop.f32.mrf.mxu0
      %v1059 = vpop.f32.mrf.mxu0
      %v1060 = vadd.f32 0.0, %v1059
      %v1061 = vpop.f32.mrf.mxu0
      %1062 = vmatprep.mubr.bf16.mxu0 0
      %1063 = vmatmul.mubr.bf16.gmra.mxu0 %v872
      %v1064 = vpop.f32.mrf.mxu0
      %v1065 = vadd.f32 0.0, %v1064
      %v1066 = vpop.f32.mrf.mxu0
      %v1067 = vpop.f32.mrf.mxu0
      %v1068 = vadd.f32 0.0, %v1067
      %v1069 = vpop.f32.mrf.mxu0
      %1070 = vmatprep.mubr.bf16.mxu0 0
      %1071 = vmatmul.mubr.bf16.gmra.mxu0 %v873
      %v1072 = vpop.f32.mrf.mxu0
      %v1073 = vadd.f32 0.0, %v1072
      %v1074 = vpop.f32.mrf.mxu0
      %v1075 = vpop.f32.mrf.mxu0
      %v1076 = vadd.f32 0.0, %v1075
      %v1077 = vpop.f32.mrf.mxu0
      %1078 = vmatprep.mubr.bf16.mxu0 0
      %1079 = vmatmul.mubr.bf16.gmra.mxu0 %v874
      %v1080 = vpop.f32.mrf.mxu0
      %v1081 = vadd.f32 0.0, %v1080
      %v1082 = vpop.f32.mrf.mxu0
      %v1083 = vpop.f32.mrf.mxu0
      %v1084 = vadd.f32 0.0, %v1083
      %v1085 = vpop.f32.mrf.mxu0
      %1086 = vmatprep.mubr.bf16.mxu0 0
      %1087 = vmatmul.mubr.bf16.gmra.mxu0 %v875
      %v1088 = vpop.f32.mrf.mxu0
      %v1089 = vadd.f32 0.0, %v1088
      %v1090 = vpop.f32.mrf.mxu0
      %v1091 = vpop.f32.mrf.mxu0
      %v1092 = vadd.f32 0.0, %v1091
      %v1093 = vpop.f32.mrf.mxu0
      %1094 = vmatprep.mubr.bf16.mxu0 0
      %1095 = vmatmul.mubr.bf16.gmra.mxu0 %v876
      %v1096 = vpop.f32.mrf.mxu0
      %v1097 = vadd.f32 0.0, %v1096
      %v1098 = vpop.f32.mrf.mxu0
      %v1099 = vpop.f32.mrf.mxu0
      %v1100 = vadd.f32 0.0, %v1099
      %v1101 = vpop.f32.mrf.mxu0
      %1102 = vdwg.mxu0
      %v1119 = vunpack.c.l.b16 %v813
      %v1120 = vunpack.c.l.b16 %v814
      %v1121 = vunpack.c.l.b16 %v815
      %v1122 = vunpack.c.l.b16 %v816
      %v1123 = vunpack.c.l.b16 %v817
      %v1124 = vunpack.c.l.b16 %v818
      %v1125 = vunpack.c.l.b16 %v819
      %v1126 = vunpack.c.l.b16 %v820
      %v1127 = vunpack.c.l.b16 %v821
      %v1128 = vunpack.c.l.b16 %v822
      %v1129 = vunpack.c.l.b16 %v823
      %v1130 = vunpack.c.l.b16 %v824
      %v1131 = vunpack.c.l.b16 %v825
      %v1132 = vunpack.c.l.b16 %v826
      %v1133 = vunpack.c.l.b16 %v827
      %v1134 = vunpack.c.l.b16 %v828
      %v1135 = vpack.c.b16 %v1120, %v1119
      %v1136 = vpack.c.b16 %v1122, %v1121
      %v1137 = vpack.c.b16 %v1124, %v1123
      %v1138 = vpack.c.b16 %v1126, %v1125
      %v1139 = vpack.c.b16 %v1128, %v1127
      %v1140 = vpack.c.b16 %v1130, %v1129
      %v1141 = vpack.c.b16 %v1132, %v1131
      %v1142 = vpack.c.b16 %v1134, %v1133
      %1151 = vmatprep.subr.bf16.mxu0 0
      %1152 = vmatpush1.bf16.msra.mxu0 %v1142
      %1153 = vmatprep.subr.bf16.mxu0 0
      %1154 = vmatpush1.bf16.msra.mxu0 %v1141
      %1155 = vmatprep.subr.bf16.mxu0 0
      %1156 = vmatpush1.bf16.msra.mxu0 %v1140
      %1157 = vmatprep.subr.bf16.mxu0 0
      %1158 = vmatpush1.bf16.msra.mxu0 %v1139
      %1159 = vmatprep.subr.bf16.mxu0 0
      %1160 = vmatpush1.bf16.msra.mxu0 %v1138
      %1161 = vmatprep.subr.bf16.mxu0 0
      %1162 = vmatpush1.bf16.msra.mxu0 %v1137
      %1163 = vmatprep.subr.bf16.mxu0 0
      %1164 = vmatpush1.bf16.msra.mxu0 %v1136
      %1165 = vmatprep.subr.bf16.mxu0 0
      %1166 = vmatpush1.bf16.msra.mxu0 %v1135
      %1167 = vmatprep.subr.bf16.mxu0 0
      %1168 = vmatpush2.bf16.msra.mxu0 0
      %1169 = vmatprep.subr.bf16.mxu0 0
      %1170 = vmatpush2.bf16.msra.mxu0 0
      %1171 = vmatprep.subr.bf16.mxu0 0
      %1172 = vmatpush2.bf16.msra.mxu0 0
      %1173 = vmatprep.subr.bf16.mxu0 0
      %1174 = vmatpush2.bf16.msra.mxu0 0
      %1175 = vmatprep.subr.bf16.mxu0 0
      %1176 = vmatpush2.bf16.msra.mxu0 0
      %1177 = vmatprep.subr.bf16.mxu0 0
      %1178 = vmatpush2.bf16.msra.mxu0 0
      %1179 = vmatprep.subr.bf16.mxu0 0
      %1180 = vmatpush2.bf16.msra.mxu0 0
      %1181 = vmatprep.subr.bf16.mxu0 0
      %1182 = vmatpush2.bf16.msra.mxu0 0
      %1183 = vmatprep.mubr.bf16.mxu0 0
      %1184 = vmatmul.mubr.bf16.gmra.mxu0 %v797
      %v1185 = vpop.f32.mrf.mxu0
      %v1186 = vadd.f32 %v977, %v1185
      %v1187 = vpop.f32.mrf.mxu0
      %v1188 = vpop.f32.mrf.mxu0
      %v1189 = vadd.f32 %v980, %v1188
      %v1190 = vpop.f32.mrf.mxu0
      %1191 = vmatprep.mubr.bf16.mxu0 0
      %1192 = vmatmul.mubr.bf16.gmra.mxu0 %v798
      %v1193 = vpop.f32.mrf.mxu0
      %v1194 = vadd.f32 %v985, %v1193
      %v1195 = vpop.f32.mrf.mxu0
      %v1196 = vpop.f32.mrf.mxu0
      %v1197 = vadd.f32 %v988, %v1196
      %v1198 = vpop.f32.mrf.mxu0
      %1199 = vmatprep.mubr.bf16.mxu0 0
      %1200 = vmatmul.mubr.bf16.gmra.mxu0 %v799
      %v1201 = vpop.f32.mrf.mxu0
      %v1202 = vadd.f32 %v993, %v1201
      %v1203 = vpop.f32.mrf.mxu0
      %v1204 = vpop.f32.mrf.mxu0
      %v1205 = vadd.f32 %v996, %v1204
      %v1206 = vpop.f32.mrf.mxu0
      %1207 = vmatprep.mubr.bf16.mxu0 0
      %1208 = vmatmul.mubr.bf16.gmra.mxu0 %v800
      %v1209 = vpop.f32.mrf.mxu0
      %v1210 = vadd.f32 %v1001, %v1209
      %v1211 = vpop.f32.mrf.mxu0
      %v1212 = vpop.f32.mrf.mxu0
      %v1213 = vadd.f32 %v1004, %v1212
      %v1214 = vpop.f32.mrf.mxu0
      %1215 = vmatprep.mubr.bf16.mxu0 0
      %1216 = vmatmul.mubr.bf16.gmra.mxu0 %v801
      %v1217 = vpop.f32.mrf.mxu0
      %v1218 = vadd.f32 %v1009, %v1217
      %v1219 = vpop.f32.mrf.mxu0
      %v1220 = vpop.f32.mrf.mxu0
      %v1221 = vadd.f32 %v1012, %v1220
      %v1222 = vpop.f32.mrf.mxu0
      %1223 = vmatprep.mubr.bf16.mxu0 0
      %1224 = vmatmul.mubr.bf16.gmra.mxu0 %v802
      %v1225 = vpop.f32.mrf.mxu0
      %v1226 = vadd.f32 %v1017, %v1225
      %v1227 = vpop.f32.mrf.mxu0
      %v1228 = vpop.f32.mrf.mxu0
      %v1229 = vadd.f32 %v1020, %v1228
      %v1230 = vpop.f32.mrf.mxu0
      %1231 = vmatprep.mubr.bf16.mxu0 0
      %1232 = vmatmul.mubr.bf16.gmra.mxu0 %v803
      %v1233 = vpop.f32.mrf.mxu0
      %v1234 = vadd.f32 %v1025, %v1233
      %v1235 = vpop.f32.mrf.mxu0
      %v1236 = vpop.f32.mrf.mxu0
      %v1237 = vadd.f32 %v1028, %v1236
      %v1238 = vpop.f32.mrf.mxu0
      %1239 = vmatprep.mubr.bf16.mxu0 0
      %1240 = vmatmul.mubr.bf16.gmra.mxu0 %v804
      %v1241 = vpop.f32.mrf.mxu0
      %v1242 = vadd.f32 %v1033, %v1241
      %v1243 = vpop.f32.mrf.mxu0
      %v1244 = vpop.f32.mrf.mxu0
      %v1245 = vadd.f32 %v1036, %v1244
      %v1246 = vpop.f32.mrf.mxu0
      %1247 = vmatprep.mubr.bf16.mxu0 0
      %1248 = vmatmul.mubr.bf16.gmra.mxu0 %v805
      %v1249 = vpop.f32.mrf.mxu0
      %v1250 = vadd.f32 %v1041, %v1249
      %v1251 = vpop.f32.mrf.mxu0
      %v1252 = vpop.f32.mrf.mxu0
      %v1253 = vadd.f32 %v1044, %v1252
      %v1254 = vpop.f32.mrf.mxu0
      %1255 = vmatprep.mubr.bf16.mxu0 0
      %1256 = vmatmul.mubr.bf16.gmra.mxu0 %v806
      %v1257 = vpop.f32.mrf.mxu0
      %v1258 = vadd.f32 %v1049, %v1257
      %v1259 = vpop.f32.mrf.mxu0
      %v1260 = vpop.f32.mrf.mxu0
      %v1261 = vadd.f32 %v1052, %v1260
      %v1262 = vpop.f32.mrf.mxu0
      %1263 = vmatprep.mubr.bf16.mxu0 0
      %1264 = vmatmul.mubr.bf16.gmra.mxu0 %v807
      %v1265 = vpop.f32.mrf.mxu0
      %v1266 = vadd.f32 %v1057, %v1265
      %v1267 = vpop.f32.mrf.mxu0
      %v1268 = vpop.f32.mrf.mxu0
      %v1269 = vadd.f32 %v1060, %v1268
      %v1270 = vpop.f32.mrf.mxu0
      %1271 = vmatprep.mubr.bf16.mxu0 0
      %1272 = vmatmul.mubr.bf16.gmra.mxu0 %v808
      %v1273 = vpop.f32.mrf.mxu0
      %v1274 = vadd.f32 %v1065, %v1273
      %v1275 = vpop.f32.mrf.mxu0
      %v1276 = vpop.f32.mrf.mxu0
      %v1277 = vadd.f32 %v1068, %v1276
      %v1278 = vpop.f32.mrf.mxu0
      %1279 = vmatprep.mubr.bf16.mxu0 0
      %1280 = vmatmul.mubr.bf16.gmra.mxu0 %v809
      %v1281 = vpop.f32.mrf.mxu0
      %v1282 = vadd.f32 %v1073, %v1281
      %v1283 = vpop.f32.mrf.mxu0
      %v1284 = vpop.f32.mrf.mxu0
      %v1285 = vadd.f32 %v1076, %v1284
      %v1286 = vpop.f32.mrf.mxu0
      %1287 = vmatprep.mubr.bf16.mxu0 0
      %1288 = vmatmul.mubr.bf16.gmra.mxu0 %v810
      %v1289 = vpop.f32.mrf.mxu0
      %v1290 = vadd.f32 %v1081, %v1289
      %v1291 = vpop.f32.mrf.mxu0
      %v1292 = vpop.f32.mrf.mxu0
      %v1293 = vadd.f32 %v1084, %v1292
      %v1294 = vpop.f32.mrf.mxu0
      %1295 = vmatprep.mubr.bf16.mxu0 0
      %1296 = vmatmul.mubr.bf16.gmra.mxu0 %v811
      %v1297 = vpop.f32.mrf.mxu0
      %v1298 = vadd.f32 %v1089, %v1297
      %v1299 = vpop.f32.mrf.mxu0
      %v1300 = vpop.f32.mrf.mxu0
      %v1301 = vadd.f32 %v1092, %v1300
      %v1302 = vpop.f32.mrf.mxu0
      %1303 = vmatprep.mubr.bf16.mxu0 0
      %1304 = vmatmul.mubr.bf16.gmra.mxu0 %v812
      %v1305 = vpop.f32.mrf.mxu0
      %v1306 = vadd.f32 %v1097, %v1305
      %v1307 = vpop.f32.mrf.mxu0
      %v1308 = vpop.f32.mrf.mxu0
      %v1309 = vadd.f32 %v1100, %v1308
      %v1310 = vpop.f32.mrf.mxu0
      %1311 = vdwg.mxu0
      %v1312 = vld [vmem:[#allocation2 + $0x9] sm:$0xff]
      %v1313 = vld [vmem:[#allocation2 + $0x11] sm:$0xff]
      %v1314 = vld [vmem:[#allocation2 + $0x19] sm:$0xff]
      %v1315 = vld [vmem:[#allocation2 + $0x21] sm:$0xff]
      %v1316 = vld [vmem:[#allocation2 + $0x29] sm:$0xff]
      %v1317 = vld [vmem:[#allocation2 + $0x31] sm:$0xff]
      %v1318 = vld [vmem:[#allocation2 + $0x39] sm:$0xff]
      %v1319 = vld [vmem:[#allocation2 + $0x41] sm:$0xff]
      %v1320 = vld [vmem:[#allocation2 + $0x49] sm:$0xff]
      %v1321 = vld [vmem:[#allocation2 + $0x51] sm:$0xff]
      %v1322 = vld [vmem:[#allocation2 + $0x59] sm:$0xff]
      %v1323 = vld [vmem:[#allocation2 + $0x61] sm:$0xff]
      %v1324 = vld [vmem:[#allocation2 + $0x69] sm:$0xff]
      %v1325 = vld [vmem:[#allocation2 + $0x71] sm:$0xff]
      %v1326 = vld [vmem:[#allocation2 + $0x79] sm:$0xff]
      %v1327 = vld [vmem:[#allocation2 + $0x81] sm:$0xff]
      %v1328 = vld [vmem:[#allocation2 + $0x89] sm:$0xff]
      %v1329 = vld [vmem:[#allocation2 + $0x91] sm:$0xff]
      %v1330 = vld [vmem:[#allocation2 + $0x99] sm:$0xff]
      %v1331 = vld [vmem:[#allocation2 + $0xa1] sm:$0xff]
      %v1332 = vld [vmem:[#allocation2 + $0xa9] sm:$0xff]
      %v1333 = vld [vmem:[#allocation2 + $0xb1] sm:$0xff]
      %v1334 = vld [vmem:[#allocation2 + $0xb9] sm:$0xff]
      %v1335 = vld [vmem:[#allocation2 + $0xc1] sm:$0xff]
      %v1336 = vld [vmem:[#allocation2 + $0xc9] sm:$0xff]
      %v1337 = vld [vmem:[#allocation2 + $0xd1] sm:$0xff]
      %v1338 = vld [vmem:[#allocation2 + $0xd9] sm:$0xff]
      %v1339 = vld [vmem:[#allocation2 + $0xe1] sm:$0xff]
      %v1340 = vld [vmem:[#allocation2 + $0xe9] sm:$0xff]
      %v1341 = vld [vmem:[#allocation2 + $0xf1] sm:$0xff]
      %v1342 = vld [vmem:[#allocation2 + $0xf9] sm:$0xff]
      %v1343 = vld [vmem:[#allocation2 + $0x101] sm:$0xff]
      %v1344 = vld [vmem:[%s8] sm:$0xff]
      %v1345 = vld [vmem:[%s8 + $0x8] sm:$0xff]
      %v1346 = vld [vmem:[%s8 + $0x10] sm:$0xff]
      %v1347 = vld [vmem:[%s8 + $0x18] sm:$0xff]
      %v1348 = vld [vmem:[%s8 + $0x20] sm:$0xff]
      %v1349 = vld [vmem:[%s8 + $0x28] sm:$0xff]
      %v1350 = vld [vmem:[%s8 + $0x30] sm:$0xff]
      %v1351 = vld [vmem:[%s8 + $0x38] sm:$0xff]
      %v1352 = vld [vmem:[%s8 + $0x40] sm:$0xff]
      %v1353 = vld [vmem:[%s8 + $0x48] sm:$0xff]
      %v1354 = vld [vmem:[%s8 + $0x50] sm:$0xff]
      %v1355 = vld [vmem:[%s8 + $0x58] sm:$0xff]
      %v1356 = vld [vmem:[%s8 + $0x60] sm:$0xff]
      %v1357 = vld [vmem:[%s8 + $0x68] sm:$0xff]
      %v1358 = vld [vmem:[%s8 + $0x70] sm:$0xff]
      %v1359 = vld [vmem:[%s8 + $0x78] sm:$0xff]
      %v1360 = vld [vmem:[%s8 + $0x80] sm:$0xff]
      %v1361 = vld [vmem:[%s8 + $0x88] sm:$0xff]
      %v1362 = vld [vmem:[%s8 + $0x90] sm:$0xff]
      %v1363 = vld [vmem:[%s8 + $0x98] sm:$0xff]
      %v1364 = vld [vmem:[%s8 + $0xa0] sm:$0xff]
      %v1365 = vld [vmem:[%s8 + $0xa8] sm:$0xff]
      %v1366 = vld [vmem:[%s8 + $0xb0] sm:$0xff]
      %v1367 = vld [vmem:[%s8 + $0xb8] sm:$0xff]
      %v1368 = vld [vmem:[%s8 + $0xc0] sm:$0xff]
      %v1369 = vld [vmem:[%s8 + $0xc8] sm:$0xff]
      %v1370 = vld [vmem:[%s8 + $0xd0] sm:$0xff]
      %v1371 = vld [vmem:[%s8 + $0xd8] sm:$0xff]
      %v1372 = vld [vmem:[%s8 + $0xe0] sm:$0xff]
      %v1373 = vld [vmem:[%s8 + $0xe8] sm:$0xff]
      %v1374 = vld [vmem:[%s8 + $0xf0] sm:$0xff]
      %v1375 = vld [vmem:[%s8 + $0xf8] sm:$0xff]
      %1377 = vset.pattern.permute.xlu0 0
      %1378 = vperm.xlu0 %1377, %v1344
      %v1379 = vpop.permute.xlu0 %1378
      %1382 = vset.pattern.permute.xlu0 0
      %1383 = vperm.xlu0 %1382, %v1345
      %v1384 = vpop.permute.xlu0 %1383
      %1387 = vset.pattern.permute.xlu0 0
      %1388 = vperm.xlu0 %1387, %v1346
      %v1389 = vpop.permute.xlu0 %1388
      %1392 = vset.pattern.permute.xlu0 0
      %1393 = vperm.xlu0 %1392, %v1347
      %v1394 = vpop.permute.xlu0 %1393
      %1397 = vset.pattern.permute.xlu0 0
      %1398 = vperm.xlu0 %1397, %v1348
      %v1399 = vpop.permute.xlu0 %1398
      %1402 = vset.pattern.permute.xlu0 0
      %1403 = vperm.xlu0 %1402, %v1349
      %v1404 = vpop.permute.xlu0 %1403
      %1407 = vset.pattern.permute.xlu0 0
      %1408 = vperm.xlu0 %1407, %v1350
      %v1409 = vpop.permute.xlu0 %1408
      %1412 = vset.pattern.permute.xlu0 0
      %1413 = vperm.xlu0 %1412, %v1351
      %v1414 = vpop.permute.xlu0 %1413
      %1417 = vset.pattern.permute.xlu0 0
      %1418 = vperm.xlu0 %1417, %v1352
      %v1419 = vpop.permute.xlu0 %1418
      %1422 = vset.pattern.permute.xlu0 0
      %1423 = vperm.xlu0 %1422, %v1353
      %v1424 = vpop.permute.xlu0 %1423
      %1427 = vset.pattern.permute.xlu0 0
      %1428 = vperm.xlu0 %1427, %v1354
      %v1429 = vpop.permute.xlu0 %1428
      %1432 = vset.pattern.permute.xlu0 0
      %1433 = vperm.xlu0 %1432, %v1355
      %v1434 = vpop.permute.xlu0 %1433
      %1437 = vset.pattern.permute.xlu0 0
      %1438 = vperm.xlu0 %1437, %v1356
      %v1439 = vpop.permute.xlu0 %1438
      %1442 = vset.pattern.permute.xlu0 0
      %1443 = vperm.xlu0 %1442, %v1357
      %v1444 = vpop.permute.xlu0 %1443
      %1447 = vset.pattern.permute.xlu0 0
      %1448 = vperm.xlu0 %1447, %v1358
      %v1449 = vpop.permute.xlu0 %1448
      %1452 = vset.pattern.permute.xlu0 0
      %1453 = vperm.xlu0 %1452, %v1359
      %v1454 = vpop.permute.xlu0 %1453
      %1457 = vset.pattern.permute.xlu0 0
      %1458 = vperm.xlu0 %1457, %v1360
      %v1459 = vpop.permute.xlu0 %1458
      %1462 = vset.pattern.permute.xlu0 0
      %1463 = vperm.xlu0 %1462, %v1361
      %v1464 = vpop.permute.xlu0 %1463
      %1467 = vset.pattern.permute.xlu0 0
      %1468 = vperm.xlu0 %1467, %v1362
      %v1469 = vpop.permute.xlu0 %1468
      %1472 = vset.pattern.permute.xlu0 0
      %1473 = vperm.xlu0 %1472, %v1363
      %v1474 = vpop.permute.xlu0 %1473
      %1477 = vset.pattern.permute.xlu0 0
      %1478 = vperm.xlu0 %1477, %v1364
      %v1479 = vpop.permute.xlu0 %1478
      %1482 = vset.pattern.permute.xlu0 0
      %1483 = vperm.xlu0 %1482, %v1365
      %v1484 = vpop.permute.xlu0 %1483
      %1487 = vset.pattern.permute.xlu0 0
      %1488 = vperm.xlu0 %1487, %v1366
      %v1489 = vpop.permute.xlu0 %1488
      %1492 = vset.pattern.permute.xlu0 0
      %1493 = vperm.xlu0 %1492, %v1367
      %v1494 = vpop.permute.xlu0 %1493
      %1497 = vset.pattern.permute.xlu0 0
      %1498 = vperm.xlu0 %1497, %v1368
      %v1499 = vpop.permute.xlu0 %1498
      %1502 = vset.pattern.permute.xlu0 0
      %1503 = vperm.xlu0 %1502, %v1369
      %v1504 = vpop.permute.xlu0 %1503
      %1507 = vset.pattern.permute.xlu0 0
      %1508 = vperm.xlu0 %1507, %v1370
      %v1509 = vpop.permute.xlu0 %1508
      %1512 = vset.pattern.permute.xlu0 0
      %1513 = vperm.xlu0 %1512, %v1371
      %v1514 = vpop.permute.xlu0 %1513
      %1517 = vset.pattern.permute.xlu0 0
      %1518 = vperm.xlu0 %1517, %v1372
      %v1519 = vpop.permute.xlu0 %1518
      %1522 = vset.pattern.permute.xlu0 0
      %1523 = vperm.xlu0 %1522, %v1373
      %v1524 = vpop.permute.xlu0 %1523
      %1527 = vset.pattern.permute.xlu0 0
      %1528 = vperm.xlu0 %1527, %v1374
      %v1529 = vpop.permute.xlu0 %1528
      %1532 = vset.pattern.permute.xlu0 0
      %1533 = vperm.xlu0 %1532, %v1375
      %v1534 = vpop.permute.xlu0 %1533
      %v1536 = vmul.f32 %v1312, %v1379
      %v1537 = vmul.f32 %v1313, %v1384
      %v1538 = vmul.f32 %v1314, %v1389
      %v1539 = vmul.f32 %v1315, %v1394
      %v1540 = vmul.f32 %v1316, %v1399
      %v1541 = vmul.f32 %v1317, %v1404
      %v1542 = vmul.f32 %v1318, %v1409
      %v1543 = vmul.f32 %v1319, %v1414
      %v1544 = vmul.f32 %v1320, %v1419
      %v1545 = vmul.f32 %v1321, %v1424
      %v1546 = vmul.f32 %v1322, %v1429
      %v1547 = vmul.f32 %v1323, %v1434
      %v1548 = vmul.f32 %v1324, %v1439
      %v1549 = vmul.f32 %v1325, %v1444
      %v1550 = vmul.f32 %v1326, %v1449
      %v1551 = vmul.f32 %v1327, %v1454
      %v1552 = vmul.f32 %v1328, %v1459
      %v1553 = vmul.f32 %v1329, %v1464
      %v1554 = vmul.f32 %v1330, %v1469
      %v1555 = vmul.f32 %v1331, %v1474
      %v1556 = vmul.f32 %v1332, %v1479
      %v1557 = vmul.f32 %v1333, %v1484
      %v1558 = vmul.f32 %v1334, %v1489
      %v1559 = vmul.f32 %v1335, %v1494
      %v1560 = vmul.f32 %v1336, %v1499
      %v1561 = vmul.f32 %v1337, %v1504
      %v1562 = vmul.f32 %v1338, %v1509
      %v1563 = vmul.f32 %v1339, %v1514
      %v1564 = vmul.f32 %v1340, %v1519
      %v1565 = vmul.f32 %v1341, %v1524
      %v1566 = vmul.f32 %v1342, %v1529
      %v1567 = vmul.f32 %v1343, %v1534
      %v1568 = vpack.c.bf16 %v1537, %v1536
      %v1569 = vpack.c.bf16 %v1539, %v1538
      %v1570 = vpack.c.bf16 %v1541, %v1540
      %v1571 = vpack.c.bf16 %v1543, %v1542
      %v1572 = vpack.c.bf16 %v1545, %v1544
      %v1573 = vpack.c.bf16 %v1547, %v1546
      %v1574 = vpack.c.bf16 %v1549, %v1548
      %v1575 = vpack.c.bf16 %v1551, %v1550
      %v1576 = vpack.c.bf16 %v1553, %v1552
      %v1577 = vpack.c.bf16 %v1555, %v1554
      %v1578 = vpack.c.bf16 %v1557, %v1556
      %v1579 = vpack.c.bf16 %v1559, %v1558
      %v1580 = vpack.c.bf16 %v1561, %v1560
      %v1581 = vpack.c.bf16 %v1563, %v1562
      %v1582 = vpack.c.bf16 %v1565, %v1564
      %v1583 = vpack.c.bf16 %v1567, %v1566
      %s1584 = scalar_lea.vmem %s1, 128
      %v1585 = vld [vmem:[%s1584] sm:$0xf]
      %v1586 = vld [vmem:[%s1584 + $0x4] sm:$0xf]
      %v1587 = vld [vmem:[%s1584 + $0x8] sm:$0xf]
      %v1588 = vld [vmem:[%s1584 + $0xc] sm:$0xf]
      %v1589 = vld [vmem:[%s1584 + $0x10] sm:$0xf]
      %v1590 = vld [vmem:[%s1584 + $0x14] sm:$0xf]
      %v1591 = vld [vmem:[%s1584 + $0x18] sm:$0xf]
      %v1592 = vld [vmem:[%s1584 + $0x1c] sm:$0xf]
      %v1593 = vld [vmem:[%s1584 + $0x20] sm:$0xf]
      %v1594 = vld [vmem:[%s1584 + $0x24] sm:$0xf]
      %v1595 = vld [vmem:[%s1584 + $0x28] sm:$0xf]
      %v1596 = vld [vmem:[%s1584 + $0x2c] sm:$0xf]
      %v1597 = vld [vmem:[%s1584 + $0x30] sm:$0xf]
      %v1598 = vld [vmem:[%s1584 + $0x34] sm:$0xf]
      %v1599 = vld [vmem:[%s1584 + $0x38] sm:$0xf]
      %v1600 = vld [vmem:[%s1584 + $0x3c] sm:$0xf]
      %v1617 = vunpack.c.l.b16 %v1585
      %v1618 = vunpack.c.l.b16 %v1586
      %v1619 = vunpack.c.l.b16 %v1587
      %v1620 = vunpack.c.l.b16 %v1588
      %v1621 = vunpack.c.l.b16 %v1589
      %v1622 = vunpack.c.l.b16 %v1590
      %v1623 = vunpack.c.l.b16 %v1591
      %v1624 = vunpack.c.l.b16 %v1592
      %v1625 = vunpack.c.l.b16 %v1593
      %v1626 = vunpack.c.l.b16 %v1594
      %v1627 = vunpack.c.l.b16 %v1595
      %v1628 = vunpack.c.l.b16 %v1596
      %v1629 = vunpack.c.l.b16 %v1597
      %v1630 = vunpack.c.l.b16 %v1598
      %v1631 = vunpack.c.l.b16 %v1599
      %v1632 = vunpack.c.l.b16 %v1600
      %v1633 = vpack.c.b16 %v1618, %v1617
      %v1634 = vpack.c.b16 %v1620, %v1619
      %v1635 = vpack.c.b16 %v1622, %v1621
      %v1636 = vpack.c.b16 %v1624, %v1623
      %v1637 = vpack.c.b16 %v1626, %v1625
      %v1638 = vpack.c.b16 %v1628, %v1627
      %v1639 = vpack.c.b16 %v1630, %v1629
      %v1640 = vpack.c.b16 %v1632, %v1631
      %1649 = vmatprep.subr.bf16.mxu0 0
      %1650 = vmatpush1.bf16.msra.mxu0 %v1640
      %1651 = vmatprep.subr.bf16.mxu0 0
      %1652 = vmatpush1.bf16.msra.mxu0 %v1639
      %1653 = vmatprep.subr.bf16.mxu0 0
      %1654 = vmatpush1.bf16.msra.mxu0 %v1638
      %1655 = vmatprep.subr.bf16.mxu0 0
      %1656 = vmatpush1.bf16.msra.mxu0 %v1637
      %1657 = vmatprep.subr.bf16.mxu0 0
      %1658 = vmatpush1.bf16.msra.mxu0 %v1636
      %1659 = vmatprep.subr.bf16.mxu0 0
      %1660 = vmatpush1.bf16.msra.mxu0 %v1635
      %1661 = vmatprep.subr.bf16.mxu0 0
      %1662 = vmatpush1.bf16.msra.mxu0 %v1634
      %1663 = vmatprep.subr.bf16.mxu0 0
      %1664 = vmatpush1.bf16.msra.mxu0 %v1633
      %1665 = vmatprep.subr.bf16.mxu0 0
      %1666 = vmatpush2.bf16.msra.mxu0 0
      %1667 = vmatprep.subr.bf16.mxu0 0
      %1668 = vmatpush2.bf16.msra.mxu0 0
      %1669 = vmatprep.subr.bf16.mxu0 0
      %1670 = vmatpush2.bf16.msra.mxu0 0
      %1671 = vmatprep.subr.bf16.mxu0 0
      %1672 = vmatpush2.bf16.msra.mxu0 0
      %1673 = vmatprep.subr.bf16.mxu0 0
      %1674 = vmatpush2.bf16.msra.mxu0 0
      %1675 = vmatprep.subr.bf16.mxu0 0
      %1676 = vmatpush2.bf16.msra.mxu0 0
      %1677 = vmatprep.subr.bf16.mxu0 0
      %1678 = vmatpush2.bf16.msra.mxu0 0
      %1679 = vmatprep.subr.bf16.mxu0 0
      %1680 = vmatpush2.bf16.msra.mxu0 0
      %1681 = vmatprep.mubr.bf16.mxu0 0
      %1682 = vmatmul.mubr.bf16.gmra.mxu0 %v1568
      %v1683 = vpop.f32.mrf.mxu0
      %v1684 = vadd.f32 0.0, %v1683
      %v1685 = vpop.f32.mrf.mxu0
      %v1686 = vpop.f32.mrf.mxu0
      %v1687 = vadd.f32 0.0, %v1686
      %v1688 = vpop.f32.mrf.mxu0
      %1689 = vmatprep.mubr.bf16.mxu0 0
      %1690 = vmatmul.mubr.bf16.gmra.mxu0 %v1569
      %v1691 = vpop.f32.mrf.mxu0
      %v1692 = vadd.f32 0.0, %v1691
      %v1693 = vpop.f32.mrf.mxu0
      %v1694 = vpop.f32.mrf.mxu0
      %v1695 = vadd.f32 0.0, %v1694
      %v1696 = vpop.f32.mrf.mxu0
      %1697 = vmatprep.mubr.bf16.mxu0 0
      %1698 = vmatmul.mubr.bf16.gmra.mxu0 %v1570
      %v1699 = vpop.f32.mrf.mxu0
      %v1700 = vadd.f32 0.0, %v1699
      %v1701 = vpop.f32.mrf.mxu0
      %v1702 = vpop.f32.mrf.mxu0
      %v1703 = vadd.f32 0.0, %v1702
      %v1704 = vpop.f32.mrf.mxu0
      %1705 = vmatprep.mubr.bf16.mxu0 0
      %1706 = vmatmul.mubr.bf16.gmra.mxu0 %v1571
      %v1707 = vpop.f32.mrf.mxu0
      %v1708 = vadd.f32 0.0, %v1707
      %v1709 = vpop.f32.mrf.mxu0
      %v1710 = vpop.f32.mrf.mxu0
      %v1711 = vadd.f32 0.0, %v1710
      %v1712 = vpop.f32.mrf.mxu0
      %1713 = vmatprep.mubr.bf16.mxu0 0
      %1714 = vmatmul.mubr.bf16.gmra.mxu0 %v1572
      %v1715 = vpop.f32.mrf.mxu0
      %v1716 = vadd.f32 0.0, %v1715
      %v1717 = vpop.f32.mrf.mxu0
      %v1718 = vpop.f32.mrf.mxu0
      %v1719 = vadd.f32 0.0, %v1718
      %v1720 = vpop.f32.mrf.mxu0
      %1721 = vmatprep.mubr.bf16.mxu0 0
      %1722 = vmatmul.mubr.bf16.gmra.mxu0 %v1573
      %v1723 = vpop.f32.mrf.mxu0
      %v1724 = vadd.f32 0.0, %v1723
      %v1725 = vpop.f32.mrf.mxu0
      %v1726 = vpop.f32.mrf.mxu0
      %v1727 = vadd.f32 0.0, %v1726
      %v1728 = vpop.f32.mrf.mxu0
      %1729 = vmatprep.mubr.bf16.mxu0 0
      %1730 = vmatmul.mubr.bf16.gmra.mxu0 %v1574
      %v1731 = vpop.f32.mrf.mxu0
      %v1732 = vadd.f32 0.0, %v1731
      %v1733 = vpop.f32.mrf.mxu0
      %v1734 = vpop.f32.mrf.mxu0
      %v1735 = vadd.f32 0.0, %v1734
      %v1736 = vpop.f32.mrf.mxu0
      %1737 = vmatprep.mubr.bf16.mxu0 0
      %1738 = vmatmul.mubr.bf16.gmra.mxu0 %v1575
      %v1739 = vpop.f32.mrf.mxu0
      %v1740 = vadd.f32 0.0, %v1739
      %v1741 = vpop.f32.mrf.mxu0
      %v1742 = vpop.f32.mrf.mxu0
      %v1743 = vadd.f32 0.0, %v1742
      %v1744 = vpop.f32.mrf.mxu0
      %1745 = vmatprep.mubr.bf16.mxu0 0
      %1746 = vmatmul.mubr.bf16.gmra.mxu0 %v1576
      %v1747 = vpop.f32.mrf.mxu0
      %v1748 = vadd.f32 0.0, %v1747
      %v1749 = vpop.f32.mrf.mxu0
      %v1750 = vpop.f32.mrf.mxu0
      %v1751 = vadd.f32 0.0, %v1750
      %v1752 = vpop.f32.mrf.mxu0
      %1753 = vmatprep.mubr.bf16.mxu0 0
      %1754 = vmatmul.mubr.bf16.gmra.mxu0 %v1577
      %v1755 = vpop.f32.mrf.mxu0
      %v1756 = vadd.f32 0.0, %v1755
      %v1757 = vpop.f32.mrf.mxu0
      %v1758 = vpop.f32.mrf.mxu0
      %v1759 = vadd.f32 0.0, %v1758
      %v1760 = vpop.f32.mrf.mxu0
      %1761 = vmatprep.mubr.bf16.mxu0 0
      %1762 = vmatmul.mubr.bf16.gmra.mxu0 %v1578
      %v1763 = vpop.f32.mrf.mxu0
      %v1764 = vadd.f32 0.0, %v1763
      %v1765 = vpop.f32.mrf.mxu0
      %v1766 = vpop.f32.mrf.mxu0
      %v1767 = vadd.f32 0.0, %v1766
      %v1768 = vpop.f32.mrf.mxu0
      %1769 = vmatprep.mubr.bf16.mxu0 0
      %1770 = vmatmul.mubr.bf16.gmra.mxu0 %v1579
      %v1771 = vpop.f32.mrf.mxu0
      %v1772 = vadd.f32 0.0, %v1771
      %v1773 = vpop.f32.mrf.mxu0
      %v1774 = vpop.f32.mrf.mxu0
      %v1775 = vadd.f32 0.0, %v1774
      %v1776 = vpop.f32.mrf.mxu0
      %1777 = vmatprep.mubr.bf16.mxu0 0
      %1778 = vmatmul.mubr.bf16.gmra.mxu0 %v1580
      %v1779 = vpop.f32.mrf.mxu0
      %v1780 = vadd.f32 0.0, %v1779
      %v1781 = vpop.f32.mrf.mxu0
      %v1782 = vpop.f32.mrf.mxu0
      %v1783 = vadd.f32 0.0, %v1782
      %v1784 = vpop.f32.mrf.mxu0
      %1785 = vmatprep.mubr.bf16.mxu0 0
      %1786 = vmatmul.mubr.bf16.gmra.mxu0 %v1581
      %v1787 = vpop.f32.mrf.mxu0
      %v1788 = vadd.f32 0.0, %v1787
      %v1789 = vpop.f32.mrf.mxu0
      %v1790 = vpop.f32.mrf.mxu0
      %v1791 = vadd.f32 0.0, %v1790
      %v1792 = vpop.f32.mrf.mxu0
      %1793 = vmatprep.mubr.bf16.mxu0 0
      %1794 = vmatmul.mubr.bf16.gmra.mxu0 %v1582
      %v1795 = vpop.f32.mrf.mxu0
      %v1796 = vadd.f32 0.0, %v1795
      %v1797 = vpop.f32.mrf.mxu0
      %v1798 = vpop.f32.mrf.mxu0
      %v1799 = vadd.f32 0.0, %v1798
      %v1800 = vpop.f32.mrf.mxu0
      %1801 = vmatprep.mubr.bf16.mxu0 0
      %1802 = vmatmul.mubr.bf16.gmra.mxu0 %v1583
      %v1803 = vpop.f32.mrf.mxu0
      %v1804 = vadd.f32 0.0, %v1803
      %v1805 = vpop.f32.mrf.mxu0
      %v1806 = vpop.f32.mrf.mxu0
      %v1807 = vadd.f32 0.0, %v1806
      %v1808 = vpop.f32.mrf.mxu0
      %1809 = vdwg.mxu0
      %v1810 = vadd.f32 %v1186, %v1684
      %v1811 = vadd.f32 %v1189, %v1687
      %v1812 = vadd.f32 %v1194, %v1692
      %v1813 = vadd.f32 %v1197, %v1695
      %v1814 = vadd.f32 %v1202, %v1700
      %v1815 = vadd.f32 %v1205, %v1703
      %v1816 = vadd.f32 %v1210, %v1708
      %v1817 = vadd.f32 %v1213, %v1711
      %v1818 = vadd.f32 %v1218, %v1716
      %v1819 = vadd.f32 %v1221, %v1719
      %v1820 = vadd.f32 %v1226, %v1724
      %v1821 = vadd.f32 %v1229, %v1727
      %v1822 = vadd.f32 %v1234, %v1732
      %v1823 = vadd.f32 %v1237, %v1735
      %v1824 = vadd.f32 %v1242, %v1740
      %v1825 = vadd.f32 %v1245, %v1743
      %v1826 = vadd.f32 %v1250, %v1748
      %v1827 = vadd.f32 %v1253, %v1751
      %v1828 = vadd.f32 %v1258, %v1756
      %v1829 = vadd.f32 %v1261, %v1759
      %v1830 = vadd.f32 %v1266, %v1764
      %v1831 = vadd.f32 %v1269, %v1767
      %v1832 = vadd.f32 %v1274, %v1772
      %v1833 = vadd.f32 %v1277, %v1775
      %v1834 = vadd.f32 %v1282, %v1780
      %v1835 = vadd.f32 %v1285, %v1783
      %v1836 = vadd.f32 %v1290, %v1788
      %v1837 = vadd.f32 %v1293, %v1791
      %v1838 = vadd.f32 %v1298, %v1796
      %v1839 = vadd.f32 %v1301, %v1799
      %v1840 = vadd.f32 %v1306, %v1804
      %v1841 = vadd.f32 %v1309, %v1807
      %v1842 = vld [vmem:[#allocation2 + $0x17] sm:$0xff]
      %v1843 = vld [vmem:[#allocation2 + $0x1f] sm:$0xff]
      %v1844 = vld [vmem:[#allocation2 + $0x27] sm:$0xff]
      %v1845 = vld [vmem:[#allocation2 + $0x2f] sm:$0xff]
      %v1846 = vld [vmem:[#allocation2 + $0x37] sm:$0xff]
      %v1847 = vld [vmem:[#allocation2 + $0x3f] sm:$0xff]
      %v1848 = vld [vmem:[#allocation2 + $0x47] sm:$0xff]
      %v1849 = vld [vmem:[#allocation2 + $0x4f] sm:$0xff]
      %v1850 = vld [vmem:[#allocation2 + $0x57] sm:$0xff]
      %v1851 = vld [vmem:[#allocation2 + $0x5f] sm:$0xff]
      %v1852 = vld [vmem:[#allocation2 + $0x67] sm:$0xff]
      %v1853 = vld [vmem:[#allocation2 + $0x6f] sm:$0xff]
      %v1854 = vld [vmem:[#allocation2 + $0x77] sm:$0xff]
      %v1855 = vld [vmem:[#allocation2 + $0x7f] sm:$0xff]
      %v1856 = vld [vmem:[#allocation2 + $0x87] sm:$0xff]
      %v1857 = vld [vmem:[#allocation2 + $0x8f] sm:$0xff]
      %v1858 = vld [vmem:[#allocation2 + $0x97] sm:$0xff]
      %v1859 = vld [vmem:[#allocation2 + $0x9f] sm:$0xff]
      %v1860 = vld [vmem:[#allocation2 + $0xa7] sm:$0xff]
      %v1861 = vld [vmem:[#allocation2 + $0xaf] sm:$0xff]
      %v1862 = vld [vmem:[#allocation2 + $0xb7] sm:$0xff]
      %v1863 = vld [vmem:[#allocation2 + $0xbf] sm:$0xff]
      %v1864 = vld [vmem:[#allocation2 + $0xc7] sm:$0xff]
      %v1865 = vld [vmem:[#allocation2 + $0xcf] sm:$0xff]
      %v1866 = vld [vmem:[#allocation2 + $0xd7] sm:$0xff]
      %v1867 = vld [vmem:[#allocation2 + $0xdf] sm:$0xff]
      %v1868 = vld [vmem:[#allocation2 + $0xe7] sm:$0xff]
      %v1869 = vld [vmem:[#allocation2 + $0xef] sm:$0xff]
      %v1870 = vld [vmem:[#allocation2 + $0xf7] sm:$0xff]
      %v1871 = vld [vmem:[#allocation2 + $0xff] sm:$0xff]
      %v1872 = vld [vmem:[#allocation2 + $0x107] sm:$0xff]
      %v1873 = vld [vmem:[#allocation2 + $0x10f] sm:$0xff]
      %v1874 = vmul.f32 %v1842, %v608
      %v1875 = vmul.f32 %v1843, %v613
      %v1876 = vmul.f32 %v1844, %v618
      %v1877 = vmul.f32 %v1845, %v623
      %v1878 = vmul.f32 %v1846, %v628
      %v1879 = vmul.f32 %v1847, %v633
      %v1880 = vmul.f32 %v1848, %v638
      %v1881 = vmul.f32 %v1849, %v643
      %v1882 = vmul.f32 %v1850, %v648
      %v1883 = vmul.f32 %v1851, %v653
      %v1884 = vmul.f32 %v1852, %v658
      %v1885 = vmul.f32 %v1853, %v663
      %v1886 = vmul.f32 %v1854, %v668
      %v1887 = vmul.f32 %v1855, %v673
      %v1888 = vmul.f32 %v1856, %v678
      %v1889 = vmul.f32 %v1857, %v683
      %v1890 = vmul.f32 %v1858, %v688
      %v1891 = vmul.f32 %v1859, %v693
      %v1892 = vmul.f32 %v1860, %v698
      %v1893 = vmul.f32 %v1861, %v703
      %v1894 = vmul.f32 %v1862, %v708
      %v1895 = vmul.f32 %v1863, %v713
      %v1896 = vmul.f32 %v1864, %v718
      %v1897 = vmul.f32 %v1865, %v723
      %v1898 = vmul.f32 %v1866, %v728
      %v1899 = vmul.f32 %v1867, %v733
      %v1900 = vmul.f32 %v1868, %v738
      %v1901 = vmul.f32 %v1869, %v743
      %v1902 = vmul.f32 %v1870, %v748
      %v1903 = vmul.f32 %v1871, %v753
      %v1904 = vmul.f32 %v1872, %v758
      %v1905 = vmul.f32 %v1873, %v763
      %v1906 = vpack.c.bf16 %v1875, %v1874
      %v1907 = vpack.c.bf16 %v1877, %v1876
      %v1908 = vpack.c.bf16 %v1879, %v1878
      %v1909 = vpack.c.bf16 %v1881, %v1880
      %v1910 = vpack.c.bf16 %v1883, %v1882
      %v1911 = vpack.c.bf16 %v1885, %v1884
      %v1912 = vpack.c.bf16 %v1887, %v1886
      %v1913 = vpack.c.bf16 %v1889, %v1888
      %v1914 = vpack.c.bf16 %v1891, %v1890
      %v1915 = vpack.c.bf16 %v1893, %v1892
      %v1916 = vpack.c.bf16 %v1895, %v1894
      %v1917 = vpack.c.bf16 %v1897, %v1896
      %v1918 = vpack.c.bf16 %v1899, %v1898
      %v1919 = vpack.c.bf16 %v1901, %v1900
      %v1920 = vpack.c.bf16 %v1903, %v1902
      %v1921 = vpack.c.bf16 %v1905, %v1904
      %s1922 = scalar_lea.vmem %s1, 192
      %v1923 = vld [vmem:[%s1922] sm:$0xf]
      %v1924 = vld [vmem:[%s1922 + $0x4] sm:$0xf]
      %v1925 = vld [vmem:[%s1922 + $0x8] sm:$0xf]
      %v1926 = vld [vmem:[%s1922 + $0xc] sm:$0xf]
      %v1927 = vld [vmem:[%s1922 + $0x10] sm:$0xf]
      %v1928 = vld [vmem:[%s1922 + $0x14] sm:$0xf]
      %v1929 = vld [vmem:[%s1922 + $0x18] sm:$0xf]
      %v1930 = vld [vmem:[%s1922 + $0x1c] sm:$0xf]
      %v1931 = vld [vmem:[%s1922 + $0x20] sm:$0xf]
      %v1932 = vld [vmem:[%s1922 + $0x24] sm:$0xf]
      %v1933 = vld [vmem:[%s1922 + $0x28] sm:$0xf]
      %v1934 = vld [vmem:[%s1922 + $0x2c] sm:$0xf]
      %v1935 = vld [vmem:[%s1922 + $0x30] sm:$0xf]
      %v1936 = vld [vmem:[%s1922 + $0x34] sm:$0xf]
      %v1937 = vld [vmem:[%s1922 + $0x38] sm:$0xf]
      %v1938 = vld [vmem:[%s1922 + $0x3c] sm:$0xf]
      %v1955 = vunpack.c.l.b16 %v1923
      %v1956 = vunpack.c.l.b16 %v1924
      %v1957 = vunpack.c.l.b16 %v1925
      %v1958 = vunpack.c.l.b16 %v1926
      %v1959 = vunpack.c.l.b16 %v1927
      %v1960 = vunpack.c.l.b16 %v1928
      %v1961 = vunpack.c.l.b16 %v1929
      %v1962 = vunpack.c.l.b16 %v1930
      %v1963 = vunpack.c.l.b16 %v1931
      %v1964 = vunpack.c.l.b16 %v1932
      %v1965 = vunpack.c.l.b16 %v1933
      %v1966 = vunpack.c.l.b16 %v1934
      %v1967 = vunpack.c.l.b16 %v1935
      %v1968 = vunpack.c.l.b16 %v1936
      %v1969 = vunpack.c.l.b16 %v1937
      %v1970 = vunpack.c.l.b16 %v1938
      %v1971 = vpack.c.b16 %v1956, %v1955
      %v1972 = vpack.c.b16 %v1958, %v1957
      %v1973 = vpack.c.b16 %v1960, %v1959
      %v1974 = vpack.c.b16 %v1962, %v1961
      %v1975 = vpack.c.b16 %v1964, %v1963
      %v1976 = vpack.c.b16 %v1966, %v1965
      %v1977 = vpack.c.b16 %v1968, %v1967
      %v1978 = vpack.c.b16 %v1970, %v1969
      %1987 = vmatprep.subr.bf16.mxu0 0
      %1988 = vmatpush1.bf16.msra.mxu0 %v1978
      %1989 = vmatprep.subr.bf16.mxu0 0
      %1990 = vmatpush1.bf16.msra.mxu0 %v1977
      %1991 = vmatprep.subr.bf16.mxu0 0
      %1992 = vmatpush1.bf16.msra.mxu0 %v1976
      %1993 = vmatprep.subr.bf16.mxu0 0
      %1994 = vmatpush1.bf16.msra.mxu0 %v1975
      %1995 = vmatprep.subr.bf16.mxu0 0
      %1996 = vmatpush1.bf16.msra.mxu0 %v1974
      %1997 = vmatprep.subr.bf16.mxu0 0
      %1998 = vmatpush1.bf16.msra.mxu0 %v1973
      %1999 = vmatprep.subr.bf16.mxu0 0
      %2000 = vmatpush1.bf16.msra.mxu0 %v1972
      %2001 = vmatprep.subr.bf16.mxu0 0
      %2002 = vmatpush1.bf16.msra.mxu0 %v1971
      %2003 = vmatprep.subr.bf16.mxu0 0
      %2004 = vmatpush2.bf16.msra.mxu0 0
      %2005 = vmatprep.subr.bf16.mxu0 0
      %2006 = vmatpush2.bf16.msra.mxu0 0
      %2007 = vmatprep.subr.bf16.mxu0 0
      %2008 = vmatpush2.bf16.msra.mxu0 0
      %2009 = vmatprep.subr.bf16.mxu0 0
      %2010 = vmatpush2.bf16.msra.mxu0 0
      %2011 = vmatprep.subr.bf16.mxu0 0
      %2012 = vmatpush2.bf16.msra.mxu0 0
      %2013 = vmatprep.subr.bf16.mxu0 0
      %2014 = vmatpush2.bf16.msra.mxu0 0
      %2015 = vmatprep.subr.bf16.mxu0 0
      %2016 = vmatpush2.bf16.msra.mxu0 0
      %2017 = vmatprep.subr.bf16.mxu0 0
      %2018 = vmatpush2.bf16.msra.mxu0 0
      %2019 = vmatprep.mubr.bf16.mxu0 0
      %2020 = vmatmul.mubr.bf16.gmra.mxu0 %v1906
      %v2021 = vpop.f32.mrf.mxu0
      %v2022 = vadd.f32 0.0, %v2021
      %v2023 = vpop.f32.mrf.mxu0
      %v2024 = vpop.f32.mrf.mxu0
      %v2025 = vadd.f32 0.0, %v2024
      %v2026 = vpop.f32.mrf.mxu0
      %2027 = vmatprep.mubr.bf16.mxu0 0
      %2028 = vmatmul.mubr.bf16.gmra.mxu0 %v1907
      %v2029 = vpop.f32.mrf.mxu0
      %v2030 = vadd.f32 0.0, %v2029
      %v2031 = vpop.f32.mrf.mxu0
      %v2032 = vpop.f32.mrf.mxu0
      %v2033 = vadd.f32 0.0, %v2032
      %v2034 = vpop.f32.mrf.mxu0
      %2035 = vmatprep.mubr.bf16.mxu0 0
      %2036 = vmatmul.mubr.bf16.gmra.mxu0 %v1908
      %v2037 = vpop.f32.mrf.mxu0
      %v2038 = vadd.f32 0.0, %v2037
      %v2039 = vpop.f32.mrf.mxu0
      %v2040 = vpop.f32.mrf.mxu0
      %v2041 = vadd.f32 0.0, %v2040
      %v2042 = vpop.f32.mrf.mxu0
      %2043 = vmatprep.mubr.bf16.mxu0 0
      %2044 = vmatmul.mubr.bf16.gmra.mxu0 %v1909
      %v2045 = vpop.f32.mrf.mxu0
      %v2046 = vadd.f32 0.0, %v2045
      %v2047 = vpop.f32.mrf.mxu0
      %v2048 = vpop.f32.mrf.mxu0
      %v2049 = vadd.f32 0.0, %v2048
      %v2050 = vpop.f32.mrf.mxu0
      %2051 = vmatprep.mubr.bf16.mxu0 0
      %2052 = vmatmul.mubr.bf16.gmra.mxu0 %v1910
      %v2053 = vpop.f32.mrf.mxu0
      %v2054 = vadd.f32 0.0, %v2053
      %v2055 = vpop.f32.mrf.mxu0
      %v2056 = vpop.f32.mrf.mxu0
      %v2057 = vadd.f32 0.0, %v2056
      %v2058 = vpop.f32.mrf.mxu0
      %2059 = vmatprep.mubr.bf16.mxu0 0
      %2060 = vmatmul.mubr.bf16.gmra.mxu0 %v1911
      %v2061 = vpop.f32.mrf.mxu0
      %v2062 = vadd.f32 0.0, %v2061
      %v2063 = vpop.f32.mrf.mxu0
      %v2064 = vpop.f32.mrf.mxu0
      %v2065 = vadd.f32 0.0, %v2064
      %v2066 = vpop.f32.mrf.mxu0
      %2067 = vmatprep.mubr.bf16.mxu0 0
      %2068 = vmatmul.mubr.bf16.gmra.mxu0 %v1912
      %v2069 = vpop.f32.mrf.mxu0
      %v2070 = vadd.f32 0.0, %v2069
      %v2071 = vpop.f32.mrf.mxu0
      %v2072 = vpop.f32.mrf.mxu0
      %v2073 = vadd.f32 0.0, %v2072
      %v2074 = vpop.f32.mrf.mxu0
      %2075 = vmatprep.mubr.bf16.mxu0 0
      %2076 = vmatmul.mubr.bf16.gmra.mxu0 %v1913
      %v2077 = vpop.f32.mrf.mxu0
      %v2078 = vadd.f32 0.0, %v2077
      %v2079 = vpop.f32.mrf.mxu0
      %v2080 = vpop.f32.mrf.mxu0
      %v2081 = vadd.f32 0.0, %v2080
      %v2082 = vpop.f32.mrf.mxu0
      %2083 = vmatprep.mubr.bf16.mxu0 0
      %2084 = vmatmul.mubr.bf16.gmra.mxu0 %v1914
      %v2085 = vpop.f32.mrf.mxu0
      %v2086 = vadd.f32 0.0, %v2085
      %v2087 = vpop.f32.mrf.mxu0
      %v2088 = vpop.f32.mrf.mxu0
      %v2089 = vadd.f32 0.0, %v2088
      %v2090 = vpop.f32.mrf.mxu0
      %2091 = vmatprep.mubr.bf16.mxu0 0
      %2092 = vmatmul.mubr.bf16.gmra.mxu0 %v1915
      %v2093 = vpop.f32.mrf.mxu0
      %v2094 = vadd.f32 0.0, %v2093
      %v2095 = vpop.f32.mrf.mxu0
      %v2096 = vpop.f32.mrf.mxu0
      %v2097 = vadd.f32 0.0, %v2096
      %v2098 = vpop.f32.mrf.mxu0
      %2099 = vmatprep.mubr.bf16.mxu0 0
      %2100 = vmatmul.mubr.bf16.gmra.mxu0 %v1916
      %v2101 = vpop.f32.mrf.mxu0
      %v2102 = vadd.f32 0.0, %v2101
      %v2103 = vpop.f32.mrf.mxu0
      %v2104 = vpop.f32.mrf.mxu0
      %v2105 = vadd.f32 0.0, %v2104
      %v2106 = vpop.f32.mrf.mxu0
      %2107 = vmatprep.mubr.bf16.mxu0 0
      %2108 = vmatmul.mubr.bf16.gmra.mxu0 %v1917
      %v2109 = vpop.f32.mrf.mxu0
      %v2110 = vadd.f32 0.0, %v2109
      %v2111 = vpop.f32.mrf.mxu0
      %v2112 = vpop.f32.mrf.mxu0
      %v2113 = vadd.f32 0.0, %v2112
      %v2114 = vpop.f32.mrf.mxu0
      %2115 = vmatprep.mubr.bf16.mxu0 0
      %2116 = vmatmul.mubr.bf16.gmra.mxu0 %v1918
      %v2117 = vpop.f32.mrf.mxu0
      %v2118 = vadd.f32 0.0, %v2117
      %v2119 = vpop.f32.mrf.mxu0
      %v2120 = vpop.f32.mrf.mxu0
      %v2121 = vadd.f32 0.0, %v2120
      %v2122 = vpop.f32.mrf.mxu0
      %2123 = vmatprep.mubr.bf16.mxu0 0
      %2124 = vmatmul.mubr.bf16.gmra.mxu0 %v1919
      %v2125 = vpop.f32.mrf.mxu0
      %v2126 = vadd.f32 0.0, %v2125
      %v2127 = vpop.f32.mrf.mxu0
      %v2128 = vpop.f32.mrf.mxu0
      %v2129 = vadd.f32 0.0, %v2128
      %v2130 = vpop.f32.mrf.mxu0
      %2131 = vmatprep.mubr.bf16.mxu0 0
      %2132 = vmatmul.mubr.bf16.gmra.mxu0 %v1920
      %v2133 = vpop.f32.mrf.mxu0
      %v2134 = vadd.f32 0.0, %v2133
      %v2135 = vpop.f32.mrf.mxu0
      %v2136 = vpop.f32.mrf.mxu0
      %v2137 = vadd.f32 0.0, %v2136
      %v2138 = vpop.f32.mrf.mxu0
      %2139 = vmatprep.mubr.bf16.mxu0 0
      %2140 = vmatmul.mubr.bf16.gmra.mxu0 %v1921
      %v2141 = vpop.f32.mrf.mxu0
      %v2142 = vadd.f32 0.0, %v2141
      %v2143 = vpop.f32.mrf.mxu0
      %v2144 = vpop.f32.mrf.mxu0
      %v2145 = vadd.f32 0.0, %v2144
      %v2146 = vpop.f32.mrf.mxu0
      %2147 = vdwg.mxu0
      %v2148 = vadd.f32 %v1810, %v2022
      %v2149 = vadd.f32 %v1811, %v2025
      %v2150 = vadd.f32 %v1812, %v2030
      %v2151 = vadd.f32 %v1813, %v2033
      %v2152 = vadd.f32 %v1814, %v2038
      %v2153 = vadd.f32 %v1815, %v2041
      %v2154 = vadd.f32 %v1816, %v2046
      %v2155 = vadd.f32 %v1817, %v2049
      %v2156 = vadd.f32 %v1818, %v2054
      %v2157 = vadd.f32 %v1819, %v2057
      %v2158 = vadd.f32 %v1820, %v2062
      %v2159 = vadd.f32 %v1821, %v2065
      %v2160 = vadd.f32 %v1822, %v2070
      %v2161 = vadd.f32 %v1823, %v2073
      %v2162 = vadd.f32 %v1824, %v2078
      %v2163 = vadd.f32 %v1825, %v2081
      %v2164 = vadd.f32 %v1826, %v2086
      %v2165 = vadd.f32 %v1827, %v2089
      %v2166 = vadd.f32 %v1828, %v2094
      %v2167 = vadd.f32 %v1829, %v2097
      %v2168 = vadd.f32 %v1830, %v2102
      %v2169 = vadd.f32 %v1831, %v2105
      %v2170 = vadd.f32 %v1832, %v2110
      %v2171 = vadd.f32 %v1833, %v2113
      %v2172 = vadd.f32 %v1834, %v2118
      %v2173 = vadd.f32 %v1835, %v2121
      %v2174 = vadd.f32 %v1836, %v2126
      %v2175 = vadd.f32 %v1837, %v2129
      %v2176 = vadd.f32 %v1838, %v2134
      %v2177 = vadd.f32 %v1839, %v2137
      %v2178 = vadd.f32 %v1840, %v2142
      %v2179 = vadd.f32 %v1841, %v2145
      %v2180 = vld [vmem:[#allocation2 + $0x18] sm:$0xff]
      %v2181 = vld [vmem:[#allocation2 + $0x20] sm:$0xff]
      %v2182 = vld [vmem:[#allocation2 + $0x28] sm:$0xff]
      %v2183 = vld [vmem:[#allocation2 + $0x30] sm:$0xff]
      %v2184 = vld [vmem:[#allocation2 + $0x38] sm:$0xff]
      %v2185 = vld [vmem:[#allocation2 + $0x40] sm:$0xff]
      %v2186 = vld [vmem:[#allocation2 + $0x48] sm:$0xff]
      %v2187 = vld [vmem:[#allocation2 + $0x50] sm:$0xff]
      %v2188 = vld [vmem:[#allocation2 + $0x58] sm:$0xff]
      %v2189 = vld [vmem:[#allocation2 + $0x60] sm:$0xff]
      %v2190 = vld [vmem:[#allocation2 + $0x68] sm:$0xff]
      %v2191 = vld [vmem:[#allocation2 + $0x70] sm:$0xff]
      %v2192 = vld [vmem:[#allocation2 + $0x78] sm:$0xff]
      %v2193 = vld [vmem:[#allocation2 + $0x80] sm:$0xff]
      %v2194 = vld [vmem:[#allocation2 + $0x88] sm:$0xff]
      %v2195 = vld [vmem:[#allocation2 + $0x90] sm:$0xff]
      %v2196 = vld [vmem:[#allocation2 + $0x98] sm:$0xff]
      %v2197 = vld [vmem:[#allocation2 + $0xa0] sm:$0xff]
      %v2198 = vld [vmem:[#allocation2 + $0xa8] sm:$0xff]
      %v2199 = vld [vmem:[#allocation2 + $0xb0] sm:$0xff]
      %v2200 = vld [vmem:[#allocation2 + $0xb8] sm:$0xff]
      %v2201 = vld [vmem:[#allocation2 + $0xc0] sm:$0xff]
      %v2202 = vld [vmem:[#allocation2 + $0xc8] sm:$0xff]
      %v2203 = vld [vmem:[#allocation2 + $0xd0] sm:$0xff]
      %v2204 = vld [vmem:[#allocation2 + $0xd8] sm:$0xff]
      %v2205 = vld [vmem:[#allocation2 + $0xe0] sm:$0xff]
      %v2206 = vld [vmem:[#allocation2 + $0xe8] sm:$0xff]
      %v2207 = vld [vmem:[#allocation2 + $0xf0] sm:$0xff]
      %v2208 = vld [vmem:[#allocation2 + $0xf8] sm:$0xff]
      %v2209 = vld [vmem:[#allocation2 + $0x100] sm:$0xff]
      %v2210 = vld [vmem:[#allocation2 + $0x108] sm:$0xff]
      %v2211 = vld [vmem:[#allocation2 + $0x110] sm:$0xff]
      %v2212 = vpack.c.bf16 %v2181, %v2180
      %v2213 = vpack.c.bf16 %v2183, %v2182
      %v2214 = vpack.c.bf16 %v2185, %v2184
      %v2215 = vpack.c.bf16 %v2187, %v2186
      %v2216 = vpack.c.bf16 %v2189, %v2188
      %v2217 = vpack.c.bf16 %v2191, %v2190
      %v2218 = vpack.c.bf16 %v2193, %v2192
      %v2219 = vpack.c.bf16 %v2195, %v2194
      %v2220 = vpack.c.bf16 %v2197, %v2196
      %v2221 = vpack.c.bf16 %v2199, %v2198
      %v2222 = vpack.c.bf16 %v2201, %v2200
      %v2223 = vpack.c.bf16 %v2203, %v2202
      %v2224 = vpack.c.bf16 %v2205, %v2204
      %v2225 = vpack.c.bf16 %v2207, %v2206
      %v2226 = vpack.c.bf16 %v2209, %v2208
      %v2227 = vpack.c.bf16 %v2211, %v2210
      %s2228 = scalar_lea.vmem %s1, 256
      %v2229 = vld [vmem:[%s2228] sm:$0xf]
      %v2230 = vld [vmem:[%s2228 + $0x4] sm:$0xf]
      %v2231 = vld [vmem:[%s2228 + $0x8] sm:$0xf]
      %v2232 = vld [vmem:[%s2228 + $0xc] sm:$0xf]
      %v2233 = vld [vmem:[%s2228 + $0x10] sm:$0xf]
      %v2234 = vld [vmem:[%s2228 + $0x14] sm:$0xf]
      %v2235 = vld [vmem:[%s2228 + $0x18] sm:$0xf]
      %v2236 = vld [vmem:[%s2228 + $0x1c] sm:$0xf]
      %v2237 = vld [vmem:[%s2228 + $0x20] sm:$0xf]
      %v2238 = vld [vmem:[%s2228 + $0x24] sm:$0xf]
      %v2239 = vld [vmem:[%s2228 + $0x28] sm:$0xf]
      %v2240 = vld [vmem:[%s2228 + $0x2c] sm:$0xf]
      %v2241 = vld [vmem:[%s2228 + $0x30] sm:$0xf]
      %v2242 = vld [vmem:[%s2228 + $0x34] sm:$0xf]
      %v2243 = vld [vmem:[%s2228 + $0x38] sm:$0xf]
      %v2244 = vld [vmem:[%s2228 + $0x3c] sm:$0xf]
      %v2261 = vunpack.c.l.b16 %v2229
      %v2262 = vunpack.c.l.b16 %v2230
      %v2263 = vunpack.c.l.b16 %v2231
      %v2264 = vunpack.c.l.b16 %v2232
      %v2265 = vunpack.c.l.b16 %v2233
      %v2266 = vunpack.c.l.b16 %v2234
      %v2267 = vunpack.c.l.b16 %v2235
      %v2268 = vunpack.c.l.b16 %v2236
      %v2269 = vunpack.c.l.b16 %v2237
      %v2270 = vunpack.c.l.b16 %v2238
      %v2271 = vunpack.c.l.b16 %v2239
      %v2272 = vunpack.c.l.b16 %v2240
      %v2273 = vunpack.c.l.b16 %v2241
      %v2274 = vunpack.c.l.b16 %v2242
      %v2275 = vunpack.c.l.b16 %v2243
      %v2276 = vunpack.c.l.b16 %v2244
      %v2277 = vpack.c.b16 %v2262, %v2261
      %v2278 = vpack.c.b16 %v2264, %v2263
      %v2279 = vpack.c.b16 %v2266, %v2265
      %v2280 = vpack.c.b16 %v2268, %v2267
      %v2281 = vpack.c.b16 %v2270, %v2269
      %v2282 = vpack.c.b16 %v2272, %v2271
      %v2283 = vpack.c.b16 %v2274, %v2273
      %v2284 = vpack.c.b16 %v2276, %v2275
      %2293 = vmatprep.subr.bf16.mxu0 0
      %2294 = vmatpush1.bf16.msra.mxu0 %v2284
      %2295 = vmatprep.subr.bf16.mxu0 0
      %2296 = vmatpush1.bf16.msra.mxu0 %v2283
      %2297 = vmatprep.subr.bf16.mxu0 0
      %2298 = vmatpush1.bf16.msra.mxu0 %v2282
      %2299 = vmatprep.subr.bf16.mxu0 0
      %2300 = vmatpush1.bf16.msra.mxu0 %v2281
      %2301 = vmatprep.subr.bf16.mxu0 0
      %2302 = vmatpush1.bf16.msra.mxu0 %v2280
      %2303 = vmatprep.subr.bf16.mxu0 0
      %2304 = vmatpush1.bf16.msra.mxu0 %v2279
      %2305 = vmatprep.subr.bf16.mxu0 0
      %2306 = vmatpush1.bf16.msra.mxu0 %v2278
      %2307 = vmatprep.subr.bf16.mxu0 0
      %2308 = vmatpush1.bf16.msra.mxu0 %v2277
      %2309 = vmatprep.subr.bf16.mxu0 0
      %2310 = vmatpush2.bf16.msra.mxu0 0
      %2311 = vmatprep.subr.bf16.mxu0 0
      %2312 = vmatpush2.bf16.msra.mxu0 0
      %2313 = vmatprep.subr.bf16.mxu0 0
      %2314 = vmatpush2.bf16.msra.mxu0 0
      %2315 = vmatprep.subr.bf16.mxu0 0
      %2316 = vmatpush2.bf16.msra.mxu0 0
      %2317 = vmatprep.subr.bf16.mxu0 0
      %2318 = vmatpush2.bf16.msra.mxu0 0
      %2319 = vmatprep.subr.bf16.mxu0 0
      %2320 = vmatpush2.bf16.msra.mxu0 0
      %2321 = vmatprep.subr.bf16.mxu0 0
      %2322 = vmatpush2.bf16.msra.mxu0 0
      %2323 = vmatprep.subr.bf16.mxu0 0
      %2324 = vmatpush2.bf16.msra.mxu0 0
      %2325 = vmatprep.mubr.bf16.mxu0 0
      %2326 = vmatmul.mubr.bf16.gmra.mxu0 %v2212
      %v2327 = vpop.f32.mrf.mxu0
      %v2328 = vadd.f32 0.0, %v2327
      %v2329 = vpop.f32.mrf.mxu0
      %v2330 = vpop.f32.mrf.mxu0
      %v2331 = vadd.f32 0.0, %v2330
      %v2332 = vpop.f32.mrf.mxu0
      %2333 = vmatprep.mubr.bf16.mxu0 0
      %2334 = vmatmul.mubr.bf16.gmra.mxu0 %v2213
      %v2335 = vpop.f32.mrf.mxu0
      %v2336 = vadd.f32 0.0, %v2335
      %v2337 = vpop.f32.mrf.mxu0
      %v2338 = vpop.f32.mrf.mxu0
      %v2339 = vadd.f32 0.0, %v2338
      %v2340 = vpop.f32.mrf.mxu0
      %2341 = vmatprep.mubr.bf16.mxu0 0
      %2342 = vmatmul.mubr.bf16.gmra.mxu0 %v2214
      %v2343 = vpop.f32.mrf.mxu0
      %v2344 = vadd.f32 0.0, %v2343
      %v2345 = vpop.f32.mrf.mxu0
      %v2346 = vpop.f32.mrf.mxu0
      %v2347 = vadd.f32 0.0, %v2346
      %v2348 = vpop.f32.mrf.mxu0
      %2349 = vmatprep.mubr.bf16.mxu0 0
      %2350 = vmatmul.mubr.bf16.gmra.mxu0 %v2215
      %v2351 = vpop.f32.mrf.mxu0
      %v2352 = vadd.f32 0.0, %v2351
      %v2353 = vpop.f32.mrf.mxu0
      %v2354 = vpop.f32.mrf.mxu0
      %v2355 = vadd.f32 0.0, %v2354
      %v2356 = vpop.f32.mrf.mxu0
      %2357 = vmatprep.mubr.bf16.mxu0 0
      %2358 = vmatmul.mubr.bf16.gmra.mxu0 %v2216
      %v2359 = vpop.f32.mrf.mxu0
      %v2360 = vadd.f32 0.0, %v2359
      %v2361 = vpop.f32.mrf.mxu0
      %v2362 = vpop.f32.mrf.mxu0
      %v2363 = vadd.f32 0.0, %v2362
      %v2364 = vpop.f32.mrf.mxu0
      %2365 = vmatprep.mubr.bf16.mxu0 0
      %2366 = vmatmul.mubr.bf16.gmra.mxu0 %v2217
      %v2367 = vpop.f32.mrf.mxu0
      %v2368 = vadd.f32 0.0, %v2367
      %v2369 = vpop.f32.mrf.mxu0
      %v2370 = vpop.f32.mrf.mxu0
      %v2371 = vadd.f32 0.0, %v2370
      %v2372 = vpop.f32.mrf.mxu0
      %2373 = vmatprep.mubr.bf16.mxu0 0
      %2374 = vmatmul.mubr.bf16.gmra.mxu0 %v2218
      %v2375 = vpop.f32.mrf.mxu0
      %v2376 = vadd.f32 0.0, %v2375
      %v2377 = vpop.f32.mrf.mxu0
      %v2378 = vpop.f32.mrf.mxu0
      %v2379 = vadd.f32 0.0, %v2378
      %v2380 = vpop.f32.mrf.mxu0
      %2381 = vmatprep.mubr.bf16.mxu0 0
      %2382 = vmatmul.mubr.bf16.gmra.mxu0 %v2219
      %v2383 = vpop.f32.mrf.mxu0
      %v2384 = vadd.f32 0.0, %v2383
      %v2385 = vpop.f32.mrf.mxu0
      %v2386 = vpop.f32.mrf.mxu0
      %v2387 = vadd.f32 0.0, %v2386
      %v2388 = vpop.f32.mrf.mxu0
      %2389 = vmatprep.mubr.bf16.mxu0 0
      %2390 = vmatmul.mubr.bf16.gmra.mxu0 %v2220
      %v2391 = vpop.f32.mrf.mxu0
      %v2392 = vadd.f32 0.0, %v2391
      %v2393 = vpop.f32.mrf.mxu0
      %v2394 = vpop.f32.mrf.mxu0
      %v2395 = vadd.f32 0.0, %v2394
      %v2396 = vpop.f32.mrf.mxu0
      %2397 = vmatprep.mubr.bf16.mxu0 0
      %2398 = vmatmul.mubr.bf16.gmra.mxu0 %v2221
      %v2399 = vpop.f32.mrf.mxu0
      %v2400 = vadd.f32 0.0, %v2399
      %v2401 = vpop.f32.mrf.mxu0
      %v2402 = vpop.f32.mrf.mxu0
      %v2403 = vadd.f32 0.0, %v2402
      %v2404 = vpop.f32.mrf.mxu0
      %2405 = vmatprep.mubr.bf16.mxu0 0
      %2406 = vmatmul.mubr.bf16.gmra.mxu0 %v2222
      %v2407 = vpop.f32.mrf.mxu0
      %v2408 = vadd.f32 0.0, %v2407
      %v2409 = vpop.f32.mrf.mxu0
      %v2410 = vpop.f32.mrf.mxu0
      %v2411 = vadd.f32 0.0, %v2410
      %v2412 = vpop.f32.mrf.mxu0
      %2413 = vmatprep.mubr.bf16.mxu0 0
      %2414 = vmatmul.mubr.bf16.gmra.mxu0 %v2223
      %v2415 = vpop.f32.mrf.mxu0
      %v2416 = vadd.f32 0.0, %v2415
      %v2417 = vpop.f32.mrf.mxu0
      %v2418 = vpop.f32.mrf.mxu0
      %v2419 = vadd.f32 0.0, %v2418
      %v2420 = vpop.f32.mrf.mxu0
      %2421 = vmatprep.mubr.bf16.mxu0 0
      %2422 = vmatmul.mubr.bf16.gmra.mxu0 %v2224
      %v2423 = vpop.f32.mrf.mxu0
      %v2424 = vadd.f32 0.0, %v2423
      %v2425 = vpop.f32.mrf.mxu0
      %v2426 = vpop.f32.mrf.mxu0
      %v2427 = vadd.f32 0.0, %v2426
      %v2428 = vpop.f32.mrf.mxu0
      %2429 = vmatprep.mubr.bf16.mxu0 0
      %2430 = vmatmul.mubr.bf16.gmra.mxu0 %v2225
      %v2431 = vpop.f32.mrf.mxu0
      %v2432 = vadd.f32 0.0, %v2431
      %v2433 = vpop.f32.mrf.mxu0
      %v2434 = vpop.f32.mrf.mxu0
      %v2435 = vadd.f32 0.0, %v2434
      %v2436 = vpop.f32.mrf.mxu0
      %2437 = vmatprep.mubr.bf16.mxu0 0
      %2438 = vmatmul.mubr.bf16.gmra.mxu0 %v2226
      %v2439 = vpop.f32.mrf.mxu0
      %v2440 = vadd.f32 0.0, %v2439
      %v2441 = vpop.f32.mrf.mxu0
      %v2442 = vpop.f32.mrf.mxu0
      %v2443 = vadd.f32 0.0, %v2442
      %v2444 = vpop.f32.mrf.mxu0
      %2445 = vmatprep.mubr.bf16.mxu0 0
      %2446 = vmatmul.mubr.bf16.gmra.mxu0 %v2227
      %v2447 = vpop.f32.mrf.mxu0
      %v2448 = vadd.f32 0.0, %v2447
      %v2449 = vpop.f32.mrf.mxu0
      %v2450 = vpop.f32.mrf.mxu0
      %v2451 = vadd.f32 0.0, %v2450
      %v2452 = vpop.f32.mrf.mxu0
      %2453 = vdwg.mxu0
      %v2454 = vadd.f32 %v2148, %v2328
      %v2455 = vadd.f32 %v2149, %v2331
      %v2456 = vadd.f32 %v2150, %v2336
      %v2457 = vadd.f32 %v2151, %v2339
      %v2458 = vadd.f32 %v2152, %v2344
      %v2459 = vadd.f32 %v2153, %v2347
      %v2460 = vadd.f32 %v2154, %v2352
      %v2461 = vadd.f32 %v2155, %v2355
      %v2462 = vadd.f32 %v2156, %v2360
      %v2463 = vadd.f32 %v2157, %v2363
      %v2464 = vadd.f32 %v2158, %v2368
      %v2465 = vadd.f32 %v2159, %v2371
      %v2466 = vadd.f32 %v2160, %v2376
      %v2467 = vadd.f32 %v2161, %v2379
      %v2468 = vadd.f32 %v2162, %v2384
      %v2469 = vadd.f32 %v2163, %v2387
      %v2470 = vadd.f32 %v2164, %v2392
      %v2471 = vadd.f32 %v2165, %v2395
      %v2472 = vadd.f32 %v2166, %v2400
      %v2473 = vadd.f32 %v2167, %v2403
      %v2474 = vadd.f32 %v2168, %v2408
      %v2475 = vadd.f32 %v2169, %v2411
      %v2476 = vadd.f32 %v2170, %v2416
      %v2477 = vadd.f32 %v2171, %v2419
      %v2478 = vadd.f32 %v2172, %v2424
      %v2479 = vadd.f32 %v2173, %v2427
      %v2480 = vadd.f32 %v2174, %v2432
      %v2481 = vadd.f32 %v2175, %v2435
      %v2482 = vadd.f32 %v2176, %v2440
      %v2483 = vadd.f32 %v2177, %v2443
      %v2484 = vadd.f32 %v2178, %v2448
      %v2485 = vadd.f32 %v2179, %v2451
      %v2486 = vld [vmem:[#allocation2 + $0x19] sm:$0xff]
      %v2487 = vld [vmem:[#allocation2 + $0x21] sm:$0xff]
      %v2488 = vld [vmem:[#allocation2 + $0x29] sm:$0xff]
      %v2489 = vld [vmem:[#allocation2 + $0x31] sm:$0xff]
      %v2490 = vld [vmem:[#allocation2 + $0x39] sm:$0xff]
      %v2491 = vld [vmem:[#allocation2 + $0x41] sm:$0xff]
      %v2492 = vld [vmem:[#allocation2 + $0x49] sm:$0xff]
      %v2493 = vld [vmem:[#allocation2 + $0x51] sm:$0xff]
      %v2494 = vld [vmem:[#allocation2 + $0x59] sm:$0xff]
      %v2495 = vld [vmem:[#allocation2 + $0x61] sm:$0xff]
      %v2496 = vld [vmem:[#allocation2 + $0x69] sm:$0xff]
      %v2497 = vld [vmem:[#allocation2 + $0x71] sm:$0xff]
      %v2498 = vld [vmem:[#allocation2 + $0x79] sm:$0xff]
      %v2499 = vld [vmem:[#allocation2 + $0x81] sm:$0xff]
      %v2500 = vld [vmem:[#allocation2 + $0x89] sm:$0xff]
      %v2501 = vld [vmem:[#allocation2 + $0x91] sm:$0xff]
      %v2502 = vld [vmem:[#allocation2 + $0x99] sm:$0xff]
      %v2503 = vld [vmem:[#allocation2 + $0xa1] sm:$0xff]
      %v2504 = vld [vmem:[#allocation2 + $0xa9] sm:$0xff]
      %v2505 = vld [vmem:[#allocation2 + $0xb1] sm:$0xff]
      %v2506 = vld [vmem:[#allocation2 + $0xb9] sm:$0xff]
      %v2507 = vld [vmem:[#allocation2 + $0xc1] sm:$0xff]
      %v2508 = vld [vmem:[#allocation2 + $0xc9] sm:$0xff]
      %v2509 = vld [vmem:[#allocation2 + $0xd1] sm:$0xff]
      %v2510 = vld [vmem:[#allocation2 + $0xd9] sm:$0xff]
      %v2511 = vld [vmem:[#allocation2 + $0xe1] sm:$0xff]
      %v2512 = vld [vmem:[#allocation2 + $0xe9] sm:$0xff]
      %v2513 = vld [vmem:[#allocation2 + $0xf1] sm:$0xff]
      %v2514 = vld [vmem:[#allocation2 + $0xf9] sm:$0xff]
      %v2515 = vld [vmem:[#allocation2 + $0x101] sm:$0xff]
      %v2516 = vld [vmem:[#allocation2 + $0x109] sm:$0xff]
      %v2517 = vld [vmem:[#allocation2 + $0x111] sm:$0xff]
      %v2518 = vmul.f32 %v2486, %v1379
      %v2519 = vmul.f32 %v2487, %v1384
      %v2520 = vmul.f32 %v2488, %v1389
      %v2521 = vmul.f32 %v2489, %v1394
      %v2522 = vmul.f32 %v2490, %v1399
      %v2523 = vmul.f32 %v2491, %v1404
      %v2524 = vmul.f32 %v2492, %v1409
      %v2525 = vmul.f32 %v2493, %v1414
      %v2526 = vmul.f32 %v2494, %v1419
      %v2527 = vmul.f32 %v2495, %v1424
      %v2528 = vmul.f32 %v2496, %v1429
      %v2529 = vmul.f32 %v2497, %v1434
      %v2530 = vmul.f32 %v2498, %v1439
      %v2531 = vmul.f32 %v2499, %v1444
      %v2532 = vmul.f32 %v2500, %v1449
      %v2533 = vmul.f32 %v2501, %v1454
      %v2534 = vmul.f32 %v2502, %v1459
      %v2535 = vmul.f32 %v2503, %v1464
      %v2536 = vmul.f32 %v2504, %v1469
      %v2537 = vmul.f32 %v2505, %v1474
      %v2538 = vmul.f32 %v2506, %v1479
      %v2539 = vmul.f32 %v2507, %v1484
      %v2540 = vmul.f32 %v2508, %v1489
      %v2541 = vmul.f32 %v2509, %v1494
      %v2542 = vmul.f32 %v2510, %v1499
      %v2543 = vmul.f32 %v2511, %v1504
      %v2544 = vmul.f32 %v2512, %v1509
      %v2545 = vmul.f32 %v2513, %v1514
      %v2546 = vmul.f32 %v2514, %v1519
      %v2547 = vmul.f32 %v2515, %v1524
      %v2548 = vmul.f32 %v2516, %v1529
      %v2549 = vmul.f32 %v2517, %v1534
      %v2550 = vpack.c.bf16 %v2519, %v2518
      %v2551 = vpack.c.bf16 %v2521, %v2520
      %v2552 = vpack.c.bf16 %v2523, %v2522
      %v2553 = vpack.c.bf16 %v2525, %v2524
      %v2554 = vpack.c.bf16 %v2527, %v2526
      %v2555 = vpack.c.bf16 %v2529, %v2528
      %v2556 = vpack.c.bf16 %v2531, %v2530
      %v2557 = vpack.c.bf16 %v2533, %v2532
      %v2558 = vpack.c.bf16 %v2535, %v2534
      %v2559 = vpack.c.bf16 %v2537, %v2536
      %v2560 = vpack.c.bf16 %v2539, %v2538
      %v2561 = vpack.c.bf16 %v2541, %v2540
      %v2562 = vpack.c.bf16 %v2543, %v2542
      %v2563 = vpack.c.bf16 %v2545, %v2544
      %v2564 = vpack.c.bf16 %v2547, %v2546
      %v2565 = vpack.c.bf16 %v2549, %v2548
      %s2566 = scalar_lea.vmem %s1, 320
      %v2567 = vld [vmem:[%s2566] sm:$0xf]
      %v2568 = vld [vmem:[%s2566 + $0x4] sm:$0xf]
      %v2569 = vld [vmem:[%s2566 + $0x8] sm:$0xf]
      %v2570 = vld [vmem:[%s2566 + $0xc] sm:$0xf]
      %v2571 = vld [vmem:[%s2566 + $0x10] sm:$0xf]
      %v2572 = vld [vmem:[%s2566 + $0x14] sm:$0xf]
      %v2573 = vld [vmem:[%s2566 + $0x18] sm:$0xf]
      %v2574 = vld [vmem:[%s2566 + $0x1c] sm:$0xf]
      %v2575 = vld [vmem:[%s2566 + $0x20] sm:$0xf]
      %v2576 = vld [vmem:[%s2566 + $0x24] sm:$0xf]
      %v2577 = vld [vmem:[%s2566 + $0x28] sm:$0xf]
      %v2578 = vld [vmem:[%s2566 + $0x2c] sm:$0xf]
      %v2579 = vld [vmem:[%s2566 + $0x30] sm:$0xf]
      %v2580 = vld [vmem:[%s2566 + $0x34] sm:$0xf]
      %v2581 = vld [vmem:[%s2566 + $0x38] sm:$0xf]
      %v2582 = vld [vmem:[%s2566 + $0x3c] sm:$0xf]
      %v2599 = vunpack.c.l.b16 %v2567
      %v2600 = vunpack.c.l.b16 %v2568
      %v2601 = vunpack.c.l.b16 %v2569
      %v2602 = vunpack.c.l.b16 %v2570
      %v2603 = vunpack.c.l.b16 %v2571
      %v2604 = vunpack.c.l.b16 %v2572
      %v2605 = vunpack.c.l.b16 %v2573
      %v2606 = vunpack.c.l.b16 %v2574
      %v2607 = vunpack.c.l.b16 %v2575
      %v2608 = vunpack.c.l.b16 %v2576
      %v2609 = vunpack.c.l.b16 %v2577
      %v2610 = vunpack.c.l.b16 %v2578
      %v2611 = vunpack.c.l.b16 %v2579
      %v2612 = vunpack.c.l.b16 %v2580
      %v2613 = vunpack.c.l.b16 %v2581
      %v2614 = vunpack.c.l.b16 %v2582
      %v2615 = vpack.c.b16 %v2600, %v2599
      %v2616 = vpack.c.b16 %v2602, %v2601
      %v2617 = vpack.c.b16 %v2604, %v2603
      %v2618 = vpack.c.b16 %v2606, %v2605
      %v2619 = vpack.c.b16 %v2608, %v2607
      %v2620 = vpack.c.b16 %v2610, %v2609
      %v2621 = vpack.c.b16 %v2612, %v2611
      %v2622 = vpack.c.b16 %v2614, %v2613
      %2631 = vmatprep.subr.bf16.mxu0 0
      %2632 = vmatpush1.bf16.msra.mxu0 %v2622
      %2633 = vmatprep.subr.bf16.mxu0 0
      %2634 = vmatpush1.bf16.msra.mxu0 %v2621
      %2635 = vmatprep.subr.bf16.mxu0 0
      %2636 = vmatpush1.bf16.msra.mxu0 %v2620
      %2637 = vmatprep.subr.bf16.mxu0 0
      %2638 = vmatpush1.bf16.msra.mxu0 %v2619
      %2639 = vmatprep.subr.bf16.mxu0 0
      %2640 = vmatpush1.bf16.msra.mxu0 %v2618
      %2641 = vmatprep.subr.bf16.mxu0 0
      %2642 = vmatpush1.bf16.msra.mxu0 %v2617
      %2643 = vmatprep.subr.bf16.mxu0 0
      %2644 = vmatpush1.bf16.msra.mxu0 %v2616
      %2645 = vmatprep.subr.bf16.mxu0 0
      %2646 = vmatpush1.bf16.msra.mxu0 %v2615
      %2647 = vmatprep.subr.bf16.mxu0 0
      %2648 = vmatpush2.bf16.msra.mxu0 0
      %2649 = vmatprep.subr.bf16.mxu0 0
      %2650 = vmatpush2.bf16.msra.mxu0 0
      %2651 = vmatprep.subr.bf16.mxu0 0
      %2652 = vmatpush2.bf16.msra.mxu0 0
      %2653 = vmatprep.subr.bf16.mxu0 0
      %2654 = vmatpush2.bf16.msra.mxu0 0
      %2655 = vmatprep.subr.bf16.mxu0 0
      %2656 = vmatpush2.bf16.msra.mxu0 0
      %2657 = vmatprep.subr.bf16.mxu0 0
      %2658 = vmatpush2.bf16.msra.mxu0 0
      %2659 = vmatprep.subr.bf16.mxu0 0
      %2660 = vmatpush2.bf16.msra.mxu0 0
      %2661 = vmatprep.subr.bf16.mxu0 0
      %2662 = vmatpush2.bf16.msra.mxu0 0
      %2663 = vmatprep.mubr.bf16.mxu0 0
      %2664 = vmatmul.mubr.bf16.gmra.mxu0 %v2550
      %v2665 = vpop.f32.mrf.mxu0
      %v2666 = vadd.f32 0.0, %v2665
      %v2667 = vpop.f32.mrf.mxu0
      %v2668 = vpop.f32.mrf.mxu0
      %v2669 = vadd.f32 0.0, %v2668
      %v2670 = vpop.f32.mrf.mxu0
      %2671 = vmatprep.mubr.bf16.mxu0 0
      %2672 = vmatmul.mubr.bf16.gmra.mxu0 %v2551
      %v2673 = vpop.f32.mrf.mxu0
      %v2674 = vadd.f32 0.0, %v2673
      %v2675 = vpop.f32.mrf.mxu0
      %v2676 = vpop.f32.mrf.mxu0
      %v2677 = vadd.f32 0.0, %v2676
      %v2678 = vpop.f32.mrf.mxu0
      %2679 = vmatprep.mubr.bf16.mxu0 0
      %2680 = vmatmul.mubr.bf16.gmra.mxu0 %v2552
      %v2681 = vpop.f32.mrf.mxu0
      %v2682 = vadd.f32 0.0, %v2681
      %v2683 = vpop.f32.mrf.mxu0
      %v2684 = vpop.f32.mrf.mxu0
      %v2685 = vadd.f32 0.0, %v2684
      %v2686 = vpop.f32.mrf.mxu0
      %2687 = vmatprep.mubr.bf16.mxu0 0
      %2688 = vmatmul.mubr.bf16.gmra.mxu0 %v2553
      %v2689 = vpop.f32.mrf.mxu0
      %v2690 = vadd.f32 0.0, %v2689
      %v2691 = vpop.f32.mrf.mxu0
      %v2692 = vpop.f32.mrf.mxu0
      %v2693 = vadd.f32 0.0, %v2692
      %v2694 = vpop.f32.mrf.mxu0
      %2695 = vmatprep.mubr.bf16.mxu0 0
      %2696 = vmatmul.mubr.bf16.gmra.mxu0 %v2554
      %v2697 = vpop.f32.mrf.mxu0
      %v2698 = vadd.f32 0.0, %v2697
      %v2699 = vpop.f32.mrf.mxu0
      %v2700 = vpop.f32.mrf.mxu0
      %v2701 = vadd.f32 0.0, %v2700
      %v2702 = vpop.f32.mrf.mxu0
      %2703 = vmatprep.mubr.bf16.mxu0 0
      %2704 = vmatmul.mubr.bf16.gmra.mxu0 %v2555
      %v2705 = vpop.f32.mrf.mxu0
      %v2706 = vadd.f32 0.0, %v2705
      %v2707 = vpop.f32.mrf.mxu0
      %v2708 = vpop.f32.mrf.mxu0
      %v2709 = vadd.f32 0.0, %v2708
      %v2710 = vpop.f32.mrf.mxu0
      %2711 = vmatprep.mubr.bf16.mxu0 0
      %2712 = vmatmul.mubr.bf16.gmra.mxu0 %v2556
      %v2713 = vpop.f32.mrf.mxu0
      %v2714 = vadd.f32 0.0, %v2713
      %v2715 = vpop.f32.mrf.mxu0
      %v2716 = vpop.f32.mrf.mxu0
      %v2717 = vadd.f32 0.0, %v2716
      %v2718 = vpop.f32.mrf.mxu0
      %2719 = vmatprep.mubr.bf16.mxu0 0
      %2720 = vmatmul.mubr.bf16.gmra.mxu0 %v2557
      %v2721 = vpop.f32.mrf.mxu0
      %v2722 = vadd.f32 0.0, %v2721
      %v2723 = vpop.f32.mrf.mxu0
      %v2724 = vpop.f32.mrf.mxu0
      %v2725 = vadd.f32 0.0, %v2724
      %v2726 = vpop.f32.mrf.mxu0
      %2727 = vmatprep.mubr.bf16.mxu0 0
      %2728 = vmatmul.mubr.bf16.gmra.mxu0 %v2558
      %v2729 = vpop.f32.mrf.mxu0
      %v2730 = vadd.f32 0.0, %v2729
      %v2731 = vpop.f32.mrf.mxu0
      %v2732 = vpop.f32.mrf.mxu0
      %v2733 = vadd.f32 0.0, %v2732
      %v2734 = vpop.f32.mrf.mxu0
      %2735 = vmatprep.mubr.bf16.mxu0 0
      %2736 = vmatmul.mubr.bf16.gmra.mxu0 %v2559
      %v2737 = vpop.f32.mrf.mxu0
      %v2738 = vadd.f32 0.0, %v2737
      %v2739 = vpop.f32.mrf.mxu0
      %v2740 = vpop.f32.mrf.mxu0
      %v2741 = vadd.f32 0.0, %v2740
      %v2742 = vpop.f32.mrf.mxu0
      %2743 = vmatprep.mubr.bf16.mxu0 0
      %2744 = vmatmul.mubr.bf16.gmra.mxu0 %v2560
      %v2745 = vpop.f32.mrf.mxu0
      %v2746 = vadd.f32 0.0, %v2745
      %v2747 = vpop.f32.mrf.mxu0
      %v2748 = vpop.f32.mrf.mxu0
      %v2749 = vadd.f32 0.0, %v2748
      %v2750 = vpop.f32.mrf.mxu0
      %2751 = vmatprep.mubr.bf16.mxu0 0
      %2752 = vmatmul.mubr.bf16.gmra.mxu0 %v2561
      %v2753 = vpop.f32.mrf.mxu0
      %v2754 = vadd.f32 0.0, %v2753
      %v2755 = vpop.f32.mrf.mxu0
      %v2756 = vpop.f32.mrf.mxu0
      %v2757 = vadd.f32 0.0, %v2756
      %v2758 = vpop.f32.mrf.mxu0
      %2759 = vmatprep.mubr.bf16.mxu0 0
      %2760 = vmatmul.mubr.bf16.gmra.mxu0 %v2562
      %v2761 = vpop.f32.mrf.mxu0
      %v2762 = vadd.f32 0.0, %v2761
      %v2763 = vpop.f32.mrf.mxu0
      %v2764 = vpop.f32.mrf.mxu0
      %v2765 = vadd.f32 0.0, %v2764
      %v2766 = vpop.f32.mrf.mxu0
      %2767 = vmatprep.mubr.bf16.mxu0 0
      %2768 = vmatmul.mubr.bf16.gmra.mxu0 %v2563
      %v2769 = vpop.f32.mrf.mxu0
      %v2770 = vadd.f32 0.0, %v2769
      %v2771 = vpop.f32.mrf.mxu0
      %v2772 = vpop.f32.mrf.mxu0
      %v2773 = vadd.f32 0.0, %v2772
      %v2774 = vpop.f32.mrf.mxu0
      %2775 = vmatprep.mubr.bf16.mxu0 0
      %2776 = vmatmul.mubr.bf16.gmra.mxu0 %v2564
      %v2777 = vpop.f32.mrf.mxu0
      %v2778 = vadd.f32 0.0, %v2777
      %v2779 = vpop.f32.mrf.mxu0
      %v2780 = vpop.f32.mrf.mxu0
      %v2781 = vadd.f32 0.0, %v2780
      %v2782 = vpop.f32.mrf.mxu0
      %2783 = vmatprep.mubr.bf16.mxu0 0
      %2784 = vmatmul.mubr.bf16.gmra.mxu0 %v2565
      %v2785 = vpop.f32.mrf.mxu0
      %v2786 = vadd.f32 0.0, %v2785
      %v2787 = vpop.f32.mrf.mxu0
      %v2788 = vpop.f32.mrf.mxu0
      %v2789 = vadd.f32 0.0, %v2788
      %v2790 = vpop.f32.mrf.mxu0
      %2791 = vdwg.mxu0
      %v2792 = vadd.f32 %v2454, %v2666
      %v2793 = vadd.f32 %v2455, %v2669
      %v2794 = vadd.f32 %v2456, %v2674
      %v2795 = vadd.f32 %v2457, %v2677
      %v2796 = vadd.f32 %v2458, %v2682
      %v2797 = vadd.f32 %v2459, %v2685
      %v2798 = vadd.f32 %v2460, %v2690
      %v2799 = vadd.f32 %v2461, %v2693
      %v2800 = vadd.f32 %v2462, %v2698
      %v2801 = vadd.f32 %v2463, %v2701
      %v2802 = vadd.f32 %v2464, %v2706
      %v2803 = vadd.f32 %v2465, %v2709
      %v2804 = vadd.f32 %v2466, %v2714
      %v2805 = vadd.f32 %v2467, %v2717
      %v2806 = vadd.f32 %v2468, %v2722
      %v2807 = vadd.f32 %v2469, %v2725
      %v2808 = vadd.f32 %v2470, %v2730
      %v2809 = vadd.f32 %v2471, %v2733
      %v2810 = vadd.f32 %v2472, %v2738
      %v2811 = vadd.f32 %v2473, %v2741
      %v2812 = vadd.f32 %v2474, %v2746
      %v2813 = vadd.f32 %v2475, %v2749
      %v2814 = vadd.f32 %v2476, %v2754
      %v2815 = vadd.f32 %v2477, %v2757
      %v2816 = vadd.f32 %v2478, %v2762
      %v2817 = vadd.f32 %v2479, %v2765
      %v2818 = vadd.f32 %v2480, %v2770
      %v2819 = vadd.f32 %v2481, %v2773
      %v2820 = vadd.f32 %v2482, %v2778
      %v2821 = vadd.f32 %v2483, %v2781
      %v2822 = vadd.f32 %v2484, %v2786
      %v2823 = vadd.f32 %v2485, %v2789
      %v2824 = vld [vmem:[#allocation2 + $0x27] sm:$0xff]
      %v2825 = vld [vmem:[#allocation2 + $0x2f] sm:$0xff]
      %v2826 = vld [vmem:[#allocation2 + $0x37] sm:$0xff]
      %v2827 = vld [vmem:[#allocation2 + $0x3f] sm:$0xff]
      %v2828 = vld [vmem:[#allocation2 + $0x47] sm:$0xff]
      %v2829 = vld [vmem:[#allocation2 + $0x4f] sm:$0xff]
      %v2830 = vld [vmem:[#allocation2 + $0x57] sm:$0xff]
      %v2831 = vld [vmem:[#allocation2 + $0x5f] sm:$0xff]
      %v2832 = vld [vmem:[#allocation2 + $0x67] sm:$0xff]
      %v2833 = vld [vmem:[#allocation2 + $0x6f] sm:$0xff]
      %v2834 = vld [vmem:[#allocation2 + $0x77] sm:$0xff]
      %v2835 = vld [vmem:[#allocation2 + $0x7f] sm:$0xff]
      %v2836 = vld [vmem:[#allocation2 + $0x87] sm:$0xff]
      %v2837 = vld [vmem:[#allocation2 + $0x8f] sm:$0xff]
      %v2838 = vld [vmem:[#allocation2 + $0x97] sm:$0xff]
      %v2839 = vld [vmem:[#allocation2 + $0x9f] sm:$0xff]
      %v2840 = vld [vmem:[#allocation2 + $0xa7] sm:$0xff]
      %v2841 = vld [vmem:[#allocation2 + $0xaf] sm:$0xff]
      %v2842 = vld [vmem:[#allocation2 + $0xb7] sm:$0xff]
      %v2843 = vld [vmem:[#allocation2 + $0xbf] sm:$0xff]
      %v2844 = vld [vmem:[#allocation2 + $0xc7] sm:$0xff]
      %v2845 = vld [vmem:[#allocation2 + $0xcf] sm:$0xff]
      %v2846 = vld [vmem:[#allocation2 + $0xd7] sm:$0xff]
      %v2847 = vld [vmem:[#allocation2 + $0xdf] sm:$0xff]
      %v2848 = vld [vmem:[#allocation2 + $0xe7] sm:$0xff]
      %v2849 = vld [vmem:[#allocation2 + $0xef] sm:$0xff]
      %v2850 = vld [vmem:[#allocation2 + $0xf7] sm:$0xff]
      %v2851 = vld [vmem:[#allocation2 + $0xff] sm:$0xff]
      %v2852 = vld [vmem:[#allocation2 + $0x107] sm:$0xff]
      %v2853 = vld [vmem:[#allocation2 + $0x10f] sm:$0xff]
      %v2854 = vld [vmem:[#allocation2 + $0x117] sm:$0xff]
      %v2855 = vld [vmem:[#allocation2 + $0x11f] sm:$0xff]
      %v2856 = vmul.f32 %v2824, %v608
      %v2857 = vmul.f32 %v2825, %v613
      %v2858 = vmul.f32 %v2826, %v618
      %v2859 = vmul.f32 %v2827, %v623
      %v2860 = vmul.f32 %v2828, %v628
      %v2861 = vmul.f32 %v2829, %v633
      %v2862 = vmul.f32 %v2830, %v638
      %v2863 = vmul.f32 %v2831, %v643
      %v2864 = vmul.f32 %v2832, %v648
      %v2865 = vmul.f32 %v2833, %v653
      %v2866 = vmul.f32 %v2834, %v658
      %v2867 = vmul.f32 %v2835, %v663
      %v2868 = vmul.f32 %v2836, %v668
      %v2869 = vmul.f32 %v2837, %v673
      %v2870 = vmul.f32 %v2838, %v678
      %v2871 = vmul.f32 %v2839, %v683
      %v2872 = vmul.f32 %v2840, %v688
      %v2873 = vmul.f32 %v2841, %v693
      %v2874 = vmul.f32 %v2842, %v698
      %v2875 = vmul.f32 %v2843, %v703
      %v2876 = vmul.f32 %v2844, %v708
      %v2877 = vmul.f32 %v2845, %v713
      %v2878 = vmul.f32 %v2846, %v718
      %v2879 = vmul.f32 %v2847, %v723
      %v2880 = vmul.f32 %v2848, %v728
      %v2881 = vmul.f32 %v2849, %v733
      %v2882 = vmul.f32 %v2850, %v738
      %v2883 = vmul.f32 %v2851, %v743
      %v2884 = vmul.f32 %v2852, %v748
      %v2885 = vmul.f32 %v2853, %v753
      %v2886 = vmul.f32 %v2854, %v758
      %v2887 = vmul.f32 %v2855, %v763
      %v2888 = vpack.c.bf16 %v2857, %v2856
      %v2889 = vpack.c.bf16 %v2859, %v2858
      %v2890 = vpack.c.bf16 %v2861, %v2860
      %v2891 = vpack.c.bf16 %v2863, %v2862
      %v2892 = vpack.c.bf16 %v2865, %v2864
      %v2893 = vpack.c.bf16 %v2867, %v2866
      %v2894 = vpack.c.bf16 %v2869, %v2868
      %v2895 = vpack.c.bf16 %v2871, %v2870
      %v2896 = vpack.c.bf16 %v2873, %v2872
      %v2897 = vpack.c.bf16 %v2875, %v2874
      %v2898 = vpack.c.bf16 %v2877, %v2876
      %v2899 = vpack.c.bf16 %v2879, %v2878
      %v2900 = vpack.c.bf16 %v2881, %v2880
      %v2901 = vpack.c.bf16 %v2883, %v2882
      %v2902 = vpack.c.bf16 %v2885, %v2884
      %v2903 = vpack.c.bf16 %v2887, %v2886
      %s2904 = scalar_lea.vmem %s1, 384
      %v2905 = vld [vmem:[%s2904] sm:$0xf]
      %v2906 = vld [vmem:[%s2904 + $0x4] sm:$0xf]
      %v2907 = vld [vmem:[%s2904 + $0x8] sm:$0xf]
      %v2908 = vld [vmem:[%s2904 + $0xc] sm:$0xf]
      %v2909 = vld [vmem:[%s2904 + $0x10] sm:$0xf]
      %v2910 = vld [vmem:[%s2904 + $0x14] sm:$0xf]
      %v2911 = vld [vmem:[%s2904 + $0x18] sm:$0xf]
      %v2912 = vld [vmem:[%s2904 + $0x1c] sm:$0xf]
      %v2913 = vld [vmem:[%s2904 + $0x20] sm:$0xf]
      %v2914 = vld [vmem:[%s2904 + $0x24] sm:$0xf]
      %v2915 = vld [vmem:[%s2904 + $0x28] sm:$0xf]
      %v2916 = vld [vmem:[%s2904 + $0x2c] sm:$0xf]
      %v2917 = vld [vmem:[%s2904 + $0x30] sm:$0xf]
      %v2918 = vld [vmem:[%s2904 + $0x34] sm:$0xf]
      %v2919 = vld [vmem:[%s2904 + $0x38] sm:$0xf]
      %v2920 = vld [vmem:[%s2904 + $0x3c] sm:$0xf]
      %v2937 = vunpack.c.l.b16 %v2905
      %v2938 = vunpack.c.l.b16 %v2906
      %v2939 = vunpack.c.l.b16 %v2907
      %v2940 = vunpack.c.l.b16 %v2908
      %v2941 = vunpack.c.l.b16 %v2909
      %v2942 = vunpack.c.l.b16 %v2910
      %v2943 = vunpack.c.l.b16 %v2911
      %v2944 = vunpack.c.l.b16 %v2912
      %v2945 = vunpack.c.l.b16 %v2913
      %v2946 = vunpack.c.l.b16 %v2914
      %v2947 = vunpack.c.l.b16 %v2915
      %v2948 = vunpack.c.l.b16 %v2916
      %v2949 = vunpack.c.l.b16 %v2917
      %v2950 = vunpack.c.l.b16 %v2918
      %v2951 = vunpack.c.l.b16 %v2919
      %v2952 = vunpack.c.l.b16 %v2920
      %v2953 = vpack.c.b16 %v2938, %v2937
      %v2954 = vpack.c.b16 %v2940, %v2939
      %v2955 = vpack.c.b16 %v2942, %v2941
      %v2956 = vpack.c.b16 %v2944, %v2943
      %v2957 = vpack.c.b16 %v2946, %v2945
      %v2958 = vpack.c.b16 %v2948, %v2947
      %v2959 = vpack.c.b16 %v2950, %v2949
      %v2960 = vpack.c.b16 %v2952, %v2951
      %2969 = vmatprep.subr.bf16.mxu0 0
      %2970 = vmatpush1.bf16.msra.mxu0 %v2960
      %2971 = vmatprep.subr.bf16.mxu0 0
      %2972 = vmatpush1.bf16.msra.mxu0 %v2959
      %2973 = vmatprep.subr.bf16.mxu0 0
      %2974 = vmatpush1.bf16.msra.mxu0 %v2958
      %2975 = vmatprep.subr.bf16.mxu0 0
      %2976 = vmatpush1.bf16.msra.mxu0 %v2957
      %2977 = vmatprep.subr.bf16.mxu0 0
      %2978 = vmatpush1.bf16.msra.mxu0 %v2956
      %2979 = vmatprep.subr.bf16.mxu0 0
      %2980 = vmatpush1.bf16.msra.mxu0 %v2955
      %2981 = vmatprep.subr.bf16.mxu0 0
      %2982 = vmatpush1.bf16.msra.mxu0 %v2954
      %2983 = vmatprep.subr.bf16.mxu0 0
      %2984 = vmatpush1.bf16.msra.mxu0 %v2953
      %2985 = vmatprep.subr.bf16.mxu0 0
      %2986 = vmatpush2.bf16.msra.mxu0 0
      %2987 = vmatprep.subr.bf16.mxu0 0
      %2988 = vmatpush2.bf16.msra.mxu0 0
      %2989 = vmatprep.subr.bf16.mxu0 0
      %2990 = vmatpush2.bf16.msra.mxu0 0
      %2991 = vmatprep.subr.bf16.mxu0 0
      %2992 = vmatpush2.bf16.msra.mxu0 0
      %2993 = vmatprep.subr.bf16.mxu0 0
      %2994 = vmatpush2.bf16.msra.mxu0 0
      %2995 = vmatprep.subr.bf16.mxu0 0
      %2996 = vmatpush2.bf16.msra.mxu0 0
      %2997 = vmatprep.subr.bf16.mxu0 0
      %2998 = vmatpush2.bf16.msra.mxu0 0
      %2999 = vmatprep.subr.bf16.mxu0 0
      %3000 = vmatpush2.bf16.msra.mxu0 0
      %3001 = vmatprep.mubr.bf16.mxu0 0
      %3002 = vmatmul.mubr.bf16.gmra.mxu0 %v2888
      %v3003 = vpop.f32.mrf.mxu0
      %v3004 = vadd.f32 0.0, %v3003
      %v3005 = vpop.f32.mrf.mxu0
      %v3006 = vpop.f32.mrf.mxu0
      %v3007 = vadd.f32 0.0, %v3006
      %v3008 = vpop.f32.mrf.mxu0
      %3009 = vmatprep.mubr.bf16.mxu0 0
      %3010 = vmatmul.mubr.bf16.gmra.mxu0 %v2889
      %v3011 = vpop.f32.mrf.mxu0
      %v3012 = vadd.f32 0.0, %v3011
      %v3013 = vpop.f32.mrf.mxu0
      %v3014 = vpop.f32.mrf.mxu0
      %v3015 = vadd.f32 0.0, %v3014
      %v3016 = vpop.f32.mrf.mxu0
      %3017 = vmatprep.mubr.bf16.mxu0 0
      %3018 = vmatmul.mubr.bf16.gmra.mxu0 %v2890
      %v3019 = vpop.f32.mrf.mxu0
      %v3020 = vadd.f32 0.0, %v3019
      %v3021 = vpop.f32.mrf.mxu0
      %v3022 = vpop.f32.mrf.mxu0
      %v3023 = vadd.f32 0.0, %v3022
      %v3024 = vpop.f32.mrf.mxu0
      %3025 = vmatprep.mubr.bf16.mxu0 0
      %3026 = vmatmul.mubr.bf16.gmra.mxu0 %v2891
      %v3027 = vpop.f32.mrf.mxu0
      %v3028 = vadd.f32 0.0, %v3027
      %v3029 = vpop.f32.mrf.mxu0
      %v3030 = vpop.f32.mrf.mxu0
      %v3031 = vadd.f32 0.0, %v3030
      %v3032 = vpop.f32.mrf.mxu0
      %3033 = vmatprep.mubr.bf16.mxu0 0
      %3034 = vmatmul.mubr.bf16.gmra.mxu0 %v2892
      %v3035 = vpop.f32.mrf.mxu0
      %v3036 = vadd.f32 0.0, %v3035
      %v3037 = vpop.f32.mrf.mxu0
      %v3038 = vpop.f32.mrf.mxu0
      %v3039 = vadd.f32 0.0, %v3038
      %v3040 = vpop.f32.mrf.mxu0
      %3041 = vmatprep.mubr.bf16.mxu0 0
      %3042 = vmatmul.mubr.bf16.gmra.mxu0 %v2893
      %v3043 = vpop.f32.mrf.mxu0
      %v3044 = vadd.f32 0.0, %v3043
      %v3045 = vpop.f32.mrf.mxu0
      %v3046 = vpop.f32.mrf.mxu0
      %v3047 = vadd.f32 0.0, %v3046
      %v3048 = vpop.f32.mrf.mxu0
      %3049 = vmatprep.mubr.bf16.mxu0 0
      %3050 = vmatmul.mubr.bf16.gmra.mxu0 %v2894
      %v3051 = vpop.f32.mrf.mxu0
      %v3052 = vadd.f32 0.0, %v3051
      %v3053 = vpop.f32.mrf.mxu0
      %v3054 = vpop.f32.mrf.mxu0
      %v3055 = vadd.f32 0.0, %v3054
      %v3056 = vpop.f32.mrf.mxu0
      %3057 = vmatprep.mubr.bf16.mxu0 0
      %3058 = vmatmul.mubr.bf16.gmra.mxu0 %v2895
      %v3059 = vpop.f32.mrf.mxu0
      %v3060 = vadd.f32 0.0, %v3059
      %v3061 = vpop.f32.mrf.mxu0
      %v3062 = vpop.f32.mrf.mxu0
      %v3063 = vadd.f32 0.0, %v3062
      %v3064 = vpop.f32.mrf.mxu0
      %3065 = vmatprep.mubr.bf16.mxu0 0
      %3066 = vmatmul.mubr.bf16.gmra.mxu0 %v2896
      %v3067 = vpop.f32.mrf.mxu0
      %v3068 = vadd.f32 0.0, %v3067
      %v3069 = vpop.f32.mrf.mxu0
      %v3070 = vpop.f32.mrf.mxu0
      %v3071 = vadd.f32 0.0, %v3070
      %v3072 = vpop.f32.mrf.mxu0
      %3073 = vmatprep.mubr.bf16.mxu0 0
      %3074 = vmatmul.mubr.bf16.gmra.mxu0 %v2897
      %v3075 = vpop.f32.mrf.mxu0
      %v3076 = vadd.f32 0.0, %v3075
      %v3077 = vpop.f32.mrf.mxu0
      %v3078 = vpop.f32.mrf.mxu0
      %v3079 = vadd.f32 0.0, %v3078
      %v3080 = vpop.f32.mrf.mxu0
      %3081 = vmatprep.mubr.bf16.mxu0 0
      %3082 = vmatmul.mubr.bf16.gmra.mxu0 %v2898
      %v3083 = vpop.f32.mrf.mxu0
      %v3084 = vadd.f32 0.0, %v3083
      %v3085 = vpop.f32.mrf.mxu0
      %v3086 = vpop.f32.mrf.mxu0
      %v3087 = vadd.f32 0.0, %v3086
      %v3088 = vpop.f32.mrf.mxu0
      %3089 = vmatprep.mubr.bf16.mxu0 0
      %3090 = vmatmul.mubr.bf16.gmra.mxu0 %v2899
      %v3091 = vpop.f32.mrf.mxu0
      %v3092 = vadd.f32 0.0, %v3091
      %v3093 = vpop.f32.mrf.mxu0
      %v3094 = vpop.f32.mrf.mxu0
      %v3095 = vadd.f32 0.0, %v3094
      %v3096 = vpop.f32.mrf.mxu0
      %3097 = vmatprep.mubr.bf16.mxu0 0
      %3098 = vmatmul.mubr.bf16.gmra.mxu0 %v2900
      %v3099 = vpop.f32.mrf.mxu0
      %v3100 = vadd.f32 0.0, %v3099
      %v3101 = vpop.f32.mrf.mxu0
      %v3102 = vpop.f32.mrf.mxu0
      %v3103 = vadd.f32 0.0, %v3102
      %v3104 = vpop.f32.mrf.mxu0
      %3105 = vmatprep.mubr.bf16.mxu0 0
      %3106 = vmatmul.mubr.bf16.gmra.mxu0 %v2901
      %v3107 = vpop.f32.mrf.mxu0
      %v3108 = vadd.f32 0.0, %v3107
      %v3109 = vpop.f32.mrf.mxu0
      %v3110 = vpop.f32.mrf.mxu0
      %v3111 = vadd.f32 0.0, %v3110
      %v3112 = vpop.f32.mrf.mxu0
      %3113 = vmatprep.mubr.bf16.mxu0 0
      %3114 = vmatmul.mubr.bf16.gmra.mxu0 %v2902
      %v3115 = vpop.f32.mrf.mxu0
      %v3116 = vadd.f32 0.0, %v3115
      %v3117 = vpop.f32.mrf.mxu0
      %v3118 = vpop.f32.mrf.mxu0
      %v3119 = vadd.f32 0.0, %v3118
      %v3120 = vpop.f32.mrf.mxu0
      %3121 = vmatprep.mubr.bf16.mxu0 0
      %3122 = vmatmul.mubr.bf16.gmra.mxu0 %v2903
      %v3123 = vpop.f32.mrf.mxu0
      %v3124 = vadd.f32 0.0, %v3123
      %v3125 = vpop.f32.mrf.mxu0
      %v3126 = vpop.f32.mrf.mxu0
      %v3127 = vadd.f32 0.0, %v3126
      %v3128 = vpop.f32.mrf.mxu0
      %3129 = vdwg.mxu0
      %v3130 = vadd.f32 %v2792, %v3004
      %v3131 = vadd.f32 %v2793, %v3007
      %v3132 = vadd.f32 %v2794, %v3012
      %v3133 = vadd.f32 %v2795, %v3015
      %v3134 = vadd.f32 %v2796, %v3020
      %v3135 = vadd.f32 %v2797, %v3023
      %v3136 = vadd.f32 %v2798, %v3028
      %v3137 = vadd.f32 %v2799, %v3031
      %v3138 = vadd.f32 %v2800, %v3036
      %v3139 = vadd.f32 %v2801, %v3039
      %v3140 = vadd.f32 %v2802, %v3044
      %v3141 = vadd.f32 %v2803, %v3047
      %v3142 = vadd.f32 %v2804, %v3052
      %v3143 = vadd.f32 %v2805, %v3055
      %v3144 = vadd.f32 %v2806, %v3060
      %v3145 = vadd.f32 %v2807, %v3063
      %v3146 = vadd.f32 %v2808, %v3068
      %v3147 = vadd.f32 %v2809, %v3071
      %v3148 = vadd.f32 %v2810, %v3076
      %v3149 = vadd.f32 %v2811, %v3079
      %v3150 = vadd.f32 %v2812, %v3084
      %v3151 = vadd.f32 %v2813, %v3087
      %v3152 = vadd.f32 %v2814, %v3092
      %v3153 = vadd.f32 %v2815, %v3095
      %v3154 = vadd.f32 %v2816, %v3100
      %v3155 = vadd.f32 %v2817, %v3103
      %v3156 = vadd.f32 %v2818, %v3108
      %v3157 = vadd.f32 %v2819, %v3111
      %v3158 = vadd.f32 %v2820, %v3116
      %v3159 = vadd.f32 %v2821, %v3119
      %v3160 = vadd.f32 %v2822, %v3124
      %v3161 = vadd.f32 %v2823, %v3127
      %v3162 = vld [vmem:[#allocation2 + $0x28] sm:$0xff]
      %v3163 = vld [vmem:[#allocation2 + $0x30] sm:$0xff]
      %v3164 = vld [vmem:[#allocation2 + $0x38] sm:$0xff]
      %v3165 = vld [vmem:[#allocation2 + $0x40] sm:$0xff]
      %v3166 = vld [vmem:[#allocation2 + $0x48] sm:$0xff]
      %v3167 = vld [vmem:[#allocation2 + $0x50] sm:$0xff]
      %v3168 = vld [vmem:[#allocation2 + $0x58] sm:$0xff]
      %v3169 = vld [vmem:[#allocation2 + $0x60] sm:$0xff]
      %v3170 = vld [vmem:[#allocation2 + $0x68] sm:$0xff]
      %v3171 = vld [vmem:[#allocation2 + $0x70] sm:$0xff]
      %v3172 = vld [vmem:[#allocation2 + $0x78] sm:$0xff]
      %v3173 = vld [vmem:[#allocation2 + $0x80] sm:$0xff]
      %v3174 = vld [vmem:[#allocation2 + $0x88] sm:$0xff]
      %v3175 = vld [vmem:[#allocation2 + $0x90] sm:$0xff]
      %v3176 = vld [vmem:[#allocation2 + $0x98] sm:$0xff]
      %v3177 = vld [vmem:[#allocation2 + $0xa0] sm:$0xff]
      %v3178 = vld [vmem:[#allocation2 + $0xa8] sm:$0xff]
      %v3179 = vld [vmem:[#allocation2 + $0xb0] sm:$0xff]
      %v3180 = vld [vmem:[#allocation2 + $0xb8] sm:$0xff]
      %v3181 = vld [vmem:[#allocation2 + $0xc0] sm:$0xff]
      %v3182 = vld [vmem:[#allocation2 + $0xc8] sm:$0xff]
      %v3183 = vld [vmem:[#allocation2 + $0xd0] sm:$0xff]
      %v3184 = vld [vmem:[#allocation2 + $0xd8] sm:$0xff]
      %v3185 = vld [vmem:[#allocation2 + $0xe0] sm:$0xff]
      %v3186 = vld [vmem:[#allocation2 + $0xe8] sm:$0xff]
      %v3187 = vld [vmem:[#allocation2 + $0xf0] sm:$0xff]
      %v3188 = vld [vmem:[#allocation2 + $0xf8] sm:$0xff]
      %v3189 = vld [vmem:[#allocation2 + $0x100] sm:$0xff]
      %v3190 = vld [vmem:[#allocation2 + $0x108] sm:$0xff]
      %v3191 = vld [vmem:[#allocation2 + $0x110] sm:$0xff]
      %v3192 = vld [vmem:[#allocation2 + $0x118] sm:$0xff]
      %v3193 = vld [vmem:[#allocation2 + $0x120] sm:$0xff]
      %v3194 = vpack.c.bf16 %v3163, %v3162
      %v3195 = vpack.c.bf16 %v3165, %v3164
      %v3196 = vpack.c.bf16 %v3167, %v3166
      %v3197 = vpack.c.bf16 %v3169, %v3168
      %v3198 = vpack.c.bf16 %v3171, %v3170
      %v3199 = vpack.c.bf16 %v3173, %v3172
      %v3200 = vpack.c.bf16 %v3175, %v3174
      %v3201 = vpack.c.bf16 %v3177, %v3176
      %v3202 = vpack.c.bf16 %v3179, %v3178
      %v3203 = vpack.c.bf16 %v3181, %v3180
      %v3204 = vpack.c.bf16 %v3183, %v3182
      %v3205 = vpack.c.bf16 %v3185, %v3184
      %v3206 = vpack.c.bf16 %v3187, %v3186
      %v3207 = vpack.c.bf16 %v3189, %v3188
      %v3208 = vpack.c.bf16 %v3191, %v3190
      %v3209 = vpack.c.bf16 %v3193, %v3192
      %s3210 = scalar_lea.vmem %s1, 448
      %v3211 = vld [vmem:[%s3210] sm:$0xf]
      %v3212 = vld [vmem:[%s3210 + $0x4] sm:$0xf]
      %v3213 = vld [vmem:[%s3210 + $0x8] sm:$0xf]
      %v3214 = vld [vmem:[%s3210 + $0xc] sm:$0xf]
      %v3215 = vld [vmem:[%s3210 + $0x10] sm:$0xf]
      %v3216 = vld [vmem:[%s3210 + $0x14] sm:$0xf]
      %v3217 = vld [vmem:[%s3210 + $0x18] sm:$0xf]
      %v3218 = vld [vmem:[%s3210 + $0x1c] sm:$0xf]
      %v3219 = vld [vmem:[%s3210 + $0x20] sm:$0xf]
      %v3220 = vld [vmem:[%s3210 + $0x24] sm:$0xf]
      %v3221 = vld [vmem:[%s3210 + $0x28] sm:$0xf]
      %v3222 = vld [vmem:[%s3210 + $0x2c] sm:$0xf]
      %v3223 = vld [vmem:[%s3210 + $0x30] sm:$0xf]
      %v3224 = vld [vmem:[%s3210 + $0x34] sm:$0xf]
      %v3225 = vld [vmem:[%s3210 + $0x38] sm:$0xf]
      %v3226 = vld [vmem:[%s3210 + $0x3c] sm:$0xf]
      %v3243 = vunpack.c.l.b16 %v3211
      %v3244 = vunpack.c.l.b16 %v3212
      %v3245 = vunpack.c.l.b16 %v3213
      %v3246 = vunpack.c.l.b16 %v3214
      %v3247 = vunpack.c.l.b16 %v3215
      %v3248 = vunpack.c.l.b16 %v3216
      %v3249 = vunpack.c.l.b16 %v3217
      %v3250 = vunpack.c.l.b16 %v3218
      %v3251 = vunpack.c.l.b16 %v3219
      %v3252 = vunpack.c.l.b16 %v3220
      %v3253 = vunpack.c.l.b16 %v3221
      %v3254 = vunpack.c.l.b16 %v3222
      %v3255 = vunpack.c.l.b16 %v3223
      %v3256 = vunpack.c.l.b16 %v3224
      %v3257 = vunpack.c.l.b16 %v3225
      %v3258 = vunpack.c.l.b16 %v3226
      %v3259 = vpack.c.b16 %v3244, %v3243
      %v3260 = vpack.c.b16 %v3246, %v3245
      %v3261 = vpack.c.b16 %v3248, %v3247
      %v3262 = vpack.c.b16 %v3250, %v3249
      %v3263 = vpack.c.b16 %v3252, %v3251
      %v3264 = vpack.c.b16 %v3254, %v3253
      %v3265 = vpack.c.b16 %v3256, %v3255
      %v3266 = vpack.c.b16 %v3258, %v3257
      %3275 = vmatprep.subr.bf16.mxu0 0
      %3276 = vmatpush1.bf16.msra.mxu0 %v3266
      %3277 = vmatprep.subr.bf16.mxu0 0
      %3278 = vmatpush1.bf16.msra.mxu0 %v3265
      %3279 = vmatprep.subr.bf16.mxu0 0
      %3280 = vmatpush1.bf16.msra.mxu0 %v3264
      %3281 = vmatprep.subr.bf16.mxu0 0
      %3282 = vmatpush1.bf16.msra.mxu0 %v3263
      %3283 = vmatprep.subr.bf16.mxu0 0
      %3284 = vmatpush1.bf16.msra.mxu0 %v3262
      %3285 = vmatprep.subr.bf16.mxu0 0
      %3286 = vmatpush1.bf16.msra.mxu0 %v3261
      %3287 = vmatprep.subr.bf16.mxu0 0
      %3288 = vmatpush1.bf16.msra.mxu0 %v3260
      %3289 = vmatprep.subr.bf16.mxu0 0
      %3290 = vmatpush1.bf16.msra.mxu0 %v3259
      %3291 = vmatprep.subr.bf16.mxu0 0
      %3292 = vmatpush2.bf16.msra.mxu0 0
      %3293 = vmatprep.subr.bf16.mxu0 0
      %3294 = vmatpush2.bf16.msra.mxu0 0
      %3295 = vmatprep.subr.bf16.mxu0 0
      %3296 = vmatpush2.bf16.msra.mxu0 0
      %3297 = vmatprep.subr.bf16.mxu0 0
      %3298 = vmatpush2.bf16.msra.mxu0 0
      %3299 = vmatprep.subr.bf16.mxu0 0
      %3300 = vmatpush2.bf16.msra.mxu0 0
      %3301 = vmatprep.subr.bf16.mxu0 0
      %3302 = vmatpush2.bf16.msra.mxu0 0
      %3303 = vmatprep.subr.bf16.mxu0 0
      %3304 = vmatpush2.bf16.msra.mxu0 0
      %3305 = vmatprep.subr.bf16.mxu0 0
      %3306 = vmatpush2.bf16.msra.mxu0 0
      %3307 = vmatprep.mubr.bf16.mxu0 0
      %3308 = vmatmul.mubr.bf16.gmra.mxu0 %v3194
      %v3309 = vpop.f32.mrf.mxu0
      %v3310 = vadd.f32 0.0, %v3309
      %v3311 = vpop.f32.mrf.mxu0
      %v3312 = vpop.f32.mrf.mxu0
      %v3313 = vadd.f32 0.0, %v3312
      %v3314 = vpop.f32.mrf.mxu0
      %3315 = vmatprep.mubr.bf16.mxu0 0
      %3316 = vmatmul.mubr.bf16.gmra.mxu0 %v3195
      %v3317 = vpop.f32.mrf.mxu0
      %v3318 = vadd.f32 0.0, %v3317
      %v3319 = vpop.f32.mrf.mxu0
      %v3320 = vpop.f32.mrf.mxu0
      %v3321 = vadd.f32 0.0, %v3320
      %v3322 = vpop.f32.mrf.mxu0
      %3323 = vmatprep.mubr.bf16.mxu0 0
      %3324 = vmatmul.mubr.bf16.gmra.mxu0 %v3196
      %v3325 = vpop.f32.mrf.mxu0
      %v3326 = vadd.f32 0.0, %v3325
      %v3327 = vpop.f32.mrf.mxu0
      %v3328 = vpop.f32.mrf.mxu0
      %v3329 = vadd.f32 0.0, %v3328
      %v3330 = vpop.f32.mrf.mxu0
      %3331 = vmatprep.mubr.bf16.mxu0 0
      %3332 = vmatmul.mubr.bf16.gmra.mxu0 %v3197
      %v3333 = vpop.f32.mrf.mxu0
      %v3334 = vadd.f32 0.0, %v3333
      %v3335 = vpop.f32.mrf.mxu0
      %v3336 = vpop.f32.mrf.mxu0
      %v3337 = vadd.f32 0.0, %v3336
      %v3338 = vpop.f32.mrf.mxu0
      %3339 = vmatprep.mubr.bf16.mxu0 0
      %3340 = vmatmul.mubr.bf16.gmra.mxu0 %v3198
      %v3341 = vpop.f32.mrf.mxu0
      %v3342 = vadd.f32 0.0, %v3341
      %v3343 = vpop.f32.mrf.mxu0
      %v3344 = vpop.f32.mrf.mxu0
      %v3345 = vadd.f32 0.0, %v3344
      %v3346 = vpop.f32.mrf.mxu0
      %3347 = vmatprep.mubr.bf16.mxu0 0
      %3348 = vmatmul.mubr.bf16.gmra.mxu0 %v3199
      %v3349 = vpop.f32.mrf.mxu0
      %v3350 = vadd.f32 0.0, %v3349
      %v3351 = vpop.f32.mrf.mxu0
      %v3352 = vpop.f32.mrf.mxu0
      %v3353 = vadd.f32 0.0, %v3352
      %v3354 = vpop.f32.mrf.mxu0
      %3355 = vmatprep.mubr.bf16.mxu0 0
      %3356 = vmatmul.mubr.bf16.gmra.mxu0 %v3200
      %v3357 = vpop.f32.mrf.mxu0
      %v3358 = vadd.f32 0.0, %v3357
      %v3359 = vpop.f32.mrf.mxu0
      %v3360 = vpop.f32.mrf.mxu0
      %v3361 = vadd.f32 0.0, %v3360
      %v3362 = vpop.f32.mrf.mxu0
      %3363 = vmatprep.mubr.bf16.mxu0 0
      %3364 = vmatmul.mubr.bf16.gmra.mxu0 %v3201
      %v3365 = vpop.f32.mrf.mxu0
      %v3366 = vadd.f32 0.0, %v3365
      %v3367 = vpop.f32.mrf.mxu0
      %v3368 = vpop.f32.mrf.mxu0
      %v3369 = vadd.f32 0.0, %v3368
      %v3370 = vpop.f32.mrf.mxu0
      %3371 = vmatprep.mubr.bf16.mxu0 0
      %3372 = vmatmul.mubr.bf16.gmra.mxu0 %v3202
      %v3373 = vpop.f32.mrf.mxu0
      %v3374 = vadd.f32 0.0, %v3373
      %v3375 = vpop.f32.mrf.mxu0
      %v3376 = vpop.f32.mrf.mxu0
      %v3377 = vadd.f32 0.0, %v3376
      %v3378 = vpop.f32.mrf.mxu0
      %3379 = vmatprep.mubr.bf16.mxu0 0
      %3380 = vmatmul.mubr.bf16.gmra.mxu0 %v3203
      %v3381 = vpop.f32.mrf.mxu0
      %v3382 = vadd.f32 0.0, %v3381
      %v3383 = vpop.f32.mrf.mxu0
      %v3384 = vpop.f32.mrf.mxu0
      %v3385 = vadd.f32 0.0, %v3384
      %v3386 = vpop.f32.mrf.mxu0
      %3387 = vmatprep.mubr.bf16.mxu0 0
      %3388 = vmatmul.mubr.bf16.gmra.mxu0 %v3204
      %v3389 = vpop.f32.mrf.mxu0
      %v3390 = vadd.f32 0.0, %v3389
      %v3391 = vpop.f32.mrf.mxu0
      %v3392 = vpop.f32.mrf.mxu0
      %v3393 = vadd.f32 0.0, %v3392
      %v3394 = vpop.f32.mrf.mxu0
      %3395 = vmatprep.mubr.bf16.mxu0 0
      %3396 = vmatmul.mubr.bf16.gmra.mxu0 %v3205
      %v3397 = vpop.f32.mrf.mxu0
      %v3398 = vadd.f32 0.0, %v3397
      %v3399 = vpop.f32.mrf.mxu0
      %v3400 = vpop.f32.mrf.mxu0
      %v3401 = vadd.f32 0.0, %v3400
      %v3402 = vpop.f32.mrf.mxu0
      %3403 = vmatprep.mubr.bf16.mxu0 0
      %3404 = vmatmul.mubr.bf16.gmra.mxu0 %v3206
      %v3405 = vpop.f32.mrf.mxu0
      %v3406 = vadd.f32 0.0, %v3405
      %v3407 = vpop.f32.mrf.mxu0
      %v3408 = vpop.f32.mrf.mxu0
      %v3409 = vadd.f32 0.0, %v3408
      %v3410 = vpop.f32.mrf.mxu0
      %3411 = vmatprep.mubr.bf16.mxu0 0
      %3412 = vmatmul.mubr.bf16.gmra.mxu0 %v3207
      %v3413 = vpop.f32.mrf.mxu0
      %v3414 = vadd.f32 0.0, %v3413
      %v3415 = vpop.f32.mrf.mxu0
      %v3416 = vpop.f32.mrf.mxu0
      %v3417 = vadd.f32 0.0, %v3416
      %v3418 = vpop.f32.mrf.mxu0
      %3419 = vmatprep.mubr.bf16.mxu0 0
      %3420 = vmatmul.mubr.bf16.gmra.mxu0 %v3208
      %v3421 = vpop.f32.mrf.mxu0
      %v3422 = vadd.f32 0.0, %v3421
      %v3423 = vpop.f32.mrf.mxu0
      %v3424 = vpop.f32.mrf.mxu0
      %v3425 = vadd.f32 0.0, %v3424
      %v3426 = vpop.f32.mrf.mxu0
      %3427 = vmatprep.mubr.bf16.mxu0 0
      %3428 = vmatmul.mubr.bf16.gmra.mxu0 %v3209
      %v3429 = vpop.f32.mrf.mxu0
      %v3430 = vadd.f32 0.0, %v3429
      %v3431 = vpop.f32.mrf.mxu0
      %v3432 = vpop.f32.mrf.mxu0
      %v3433 = vadd.f32 0.0, %v3432
      %v3434 = vpop.f32.mrf.mxu0
      %3435 = vdwg.mxu0
      %v3436 = vadd.f32 %v3130, %v3310
      %v3437 = vadd.f32 %v3131, %v3313
      %v3438 = vadd.f32 %v3132, %v3318
      %v3439 = vadd.f32 %v3133, %v3321
      %v3440 = vadd.f32 %v3134, %v3326
      %v3441 = vadd.f32 %v3135, %v3329
      %v3442 = vadd.f32 %v3136, %v3334
      %v3443 = vadd.f32 %v3137, %v3337
      %v3444 = vadd.f32 %v3138, %v3342
      %v3445 = vadd.f32 %v3139, %v3345
      %v3446 = vadd.f32 %v3140, %v3350
      %v3447 = vadd.f32 %v3141, %v3353
      %v3448 = vadd.f32 %v3142, %v3358
      %v3449 = vadd.f32 %v3143, %v3361
      %v3450 = vadd.f32 %v3144, %v3366
      %v3451 = vadd.f32 %v3145, %v3369
      %v3452 = vadd.f32 %v3146, %v3374
      %v3453 = vadd.f32 %v3147, %v3377
      %v3454 = vadd.f32 %v3148, %v3382
      %v3455 = vadd.f32 %v3149, %v3385
      %v3456 = vadd.f32 %v3150, %v3390
      %v3457 = vadd.f32 %v3151, %v3393
      %v3458 = vadd.f32 %v3152, %v3398
      %v3459 = vadd.f32 %v3153, %v3401
      %v3460 = vadd.f32 %v3154, %v3406
      %v3461 = vadd.f32 %v3155, %v3409
      %v3462 = vadd.f32 %v3156, %v3414
      %v3463 = vadd.f32 %v3157, %v3417
      %v3464 = vadd.f32 %v3158, %v3422
      %v3465 = vadd.f32 %v3159, %v3425
      %v3466 = vadd.f32 %v3160, %v3430
      %v3467 = vadd.f32 %v3161, %v3433
      %v3468 = vld [vmem:[#allocation2 + $0x29] sm:$0xff]
      %v3469 = vld [vmem:[#allocation2 + $0x31] sm:$0xff]
      %v3470 = vld [vmem:[#allocation2 + $0x39] sm:$0xff]
      %v3471 = vld [vmem:[#allocation2 + $0x41] sm:$0xff]
      %v3472 = vld [vmem:[#allocation2 + $0x49] sm:$0xff]
      %v3473 = vld [vmem:[#allocation2 + $0x51] sm:$0xff]
      %v3474 = vld [vmem:[#allocation2 + $0x59] sm:$0xff]
      %v3475 = vld [vmem:[#allocation2 + $0x61] sm:$0xff]
      %v3476 = vld [vmem:[#allocation2 + $0x69] sm:$0xff]
      %v3477 = vld [vmem:[#allocation2 + $0x71] sm:$0xff]
      %v3478 = vld [vmem:[#allocation2 + $0x79] sm:$0xff]
      %v3479 = vld [vmem:[#allocation2 + $0x81] sm:$0xff]
      %v3480 = vld [vmem:[#allocation2 + $0x89] sm:$0xff]
      %v3481 = vld [vmem:[#allocation2 + $0x91] sm:$0xff]
      %v3482 = vld [vmem:[#allocation2 + $0x99] sm:$0xff]
      %v3483 = vld [vmem:[#allocation2 + $0xa1] sm:$0xff]
      %v3484 = vld [vmem:[#allocation2 + $0xa9] sm:$0xff]
      %v3485 = vld [vmem:[#allocation2 + $0xb1] sm:$0xff]
      %v3486 = vld [vmem:[#allocation2 + $0xb9] sm:$0xff]
      %v3487 = vld [vmem:[#allocation2 + $0xc1] sm:$0xff]
      %v3488 = vld [vmem:[#allocation2 + $0xc9] sm:$0xff]
      %v3489 = vld [vmem:[#allocation2 + $0xd1] sm:$0xff]
      %v3490 = vld [vmem:[#allocation2 + $0xd9] sm:$0xff]
      %v3491 = vld [vmem:[#allocation2 + $0xe1] sm:$0xff]
      %v3492 = vld [vmem:[#allocation2 + $0xe9] sm:$0xff]
      %v3493 = vld [vmem:[#allocation2 + $0xf1] sm:$0xff]
      %v3494 = vld [vmem:[#allocation2 + $0xf9] sm:$0xff]
      %v3495 = vld [vmem:[#allocation2 + $0x101] sm:$0xff]
      %v3496 = vld [vmem:[#allocation2 + $0x109] sm:$0xff]
      %v3497 = vld [vmem:[#allocation2 + $0x111] sm:$0xff]
      %v3498 = vld [vmem:[#allocation2 + $0x119] sm:$0xff]
      %v3499 = vld [vmem:[#allocation2 + $0x121] sm:$0xff]
      %v3500 = vmul.f32 %v3468, %v1379
      %v3501 = vmul.f32 %v3469, %v1384
      %v3502 = vmul.f32 %v3470, %v1389
      %v3503 = vmul.f32 %v3471, %v1394
      %v3504 = vmul.f32 %v3472, %v1399
      %v3505 = vmul.f32 %v3473, %v1404
      %v3506 = vmul.f32 %v3474, %v1409
      %v3507 = vmul.f32 %v3475, %v1414
      %v3508 = vmul.f32 %v3476, %v1419
      %v3509 = vmul.f32 %v3477, %v1424
      %v3510 = vmul.f32 %v3478, %v1429
      %v3511 = vmul.f32 %v3479, %v1434
      %v3512 = vmul.f32 %v3480, %v1439
      %v3513 = vmul.f32 %v3481, %v1444
      %v3514 = vmul.f32 %v3482, %v1449
      %v3515 = vmul.f32 %v3483, %v1454
      %v3516 = vmul.f32 %v3484, %v1459
      %v3517 = vmul.f32 %v3485, %v1464
      %v3518 = vmul.f32 %v3486, %v1469
      %v3519 = vmul.f32 %v3487, %v1474
      %v3520 = vmul.f32 %v3488, %v1479
      %v3521 = vmul.f32 %v3489, %v1484
      %v3522 = vmul.f32 %v3490, %v1489
      %v3523 = vmul.f32 %v3491, %v1494
      %v3524 = vmul.f32 %v3492, %v1499
      %v3525 = vmul.f32 %v3493, %v1504
      %v3526 = vmul.f32 %v3494, %v1509
      %v3527 = vmul.f32 %v3495, %v1514
      %v3528 = vmul.f32 %v3496, %v1519
      %v3529 = vmul.f32 %v3497, %v1524
      %v3530 = vmul.f32 %v3498, %v1529
      %v3531 = vmul.f32 %v3499, %v1534
      %v3532 = vpack.c.bf16 %v3501, %v3500
      %v3533 = vpack.c.bf16 %v3503, %v3502
      %v3534 = vpack.c.bf16 %v3505, %v3504
      %v3535 = vpack.c.bf16 %v3507, %v3506
      %v3536 = vpack.c.bf16 %v3509, %v3508
      %v3537 = vpack.c.bf16 %v3511, %v3510
      %v3538 = vpack.c.bf16 %v3513, %v3512
      %v3539 = vpack.c.bf16 %v3515, %v3514
      %v3540 = vpack.c.bf16 %v3517, %v3516
      %v3541 = vpack.c.bf16 %v3519, %v3518
      %v3542 = vpack.c.bf16 %v3521, %v3520
      %v3543 = vpack.c.bf16 %v3523, %v3522
      %v3544 = vpack.c.bf16 %v3525, %v3524
      %v3545 = vpack.c.bf16 %v3527, %v3526
      %v3546 = vpack.c.bf16 %v3529, %v3528
      %v3547 = vpack.c.bf16 %v3531, %v3530
      %s3548 = scalar_lea.vmem %s1, 512
      %v3549 = vld [vmem:[%s3548] sm:$0xf]
      %v3550 = vld [vmem:[%s3548 + $0x4] sm:$0xf]
      %v3551 = vld [vmem:[%s3548 + $0x8] sm:$0xf]
      %v3552 = vld [vmem:[%s3548 + $0xc] sm:$0xf]
      %v3553 = vld [vmem:[%s3548 + $0x10] sm:$0xf]
      %v3554 = vld [vmem:[%s3548 + $0x14] sm:$0xf]
      %v3555 = vld [vmem:[%s3548 + $0x18] sm:$0xf]
      %v3556 = vld [vmem:[%s3548 + $0x1c] sm:$0xf]
      %v3557 = vld [vmem:[%s3548 + $0x20] sm:$0xf]
      %v3558 = vld [vmem:[%s3548 + $0x24] sm:$0xf]
      %v3559 = vld [vmem:[%s3548 + $0x28] sm:$0xf]
      %v3560 = vld [vmem:[%s3548 + $0x2c] sm:$0xf]
      %v3561 = vld [vmem:[%s3548 + $0x30] sm:$0xf]
      %v3562 = vld [vmem:[%s3548 + $0x34] sm:$0xf]
      %v3563 = vld [vmem:[%s3548 + $0x38] sm:$0xf]
      %v3564 = vld [vmem:[%s3548 + $0x3c] sm:$0xf]
      %v3581 = vunpack.c.l.b16 %v3549
      %v3582 = vunpack.c.l.b16 %v3550
      %v3583 = vunpack.c.l.b16 %v3551
      %v3584 = vunpack.c.l.b16 %v3552
      %v3585 = vunpack.c.l.b16 %v3553
      %v3586 = vunpack.c.l.b16 %v3554
      %v3587 = vunpack.c.l.b16 %v3555
      %v3588 = vunpack.c.l.b16 %v3556
      %v3589 = vunpack.c.l.b16 %v3557
      %v3590 = vunpack.c.l.b16 %v3558
      %v3591 = vunpack.c.l.b16 %v3559
      %v3592 = vunpack.c.l.b16 %v3560
      %v3593 = vunpack.c.l.b16 %v3561
      %v3594 = vunpack.c.l.b16 %v3562
      %v3595 = vunpack.c.l.b16 %v3563
      %v3596 = vunpack.c.l.b16 %v3564
      %v3597 = vpack.c.b16 %v3582, %v3581
      %v3598 = vpack.c.b16 %v3584, %v3583
      %v3599 = vpack.c.b16 %v3586, %v3585
      %v3600 = vpack.c.b16 %v3588, %v3587
      %v3601 = vpack.c.b16 %v3590, %v3589
      %v3602 = vpack.c.b16 %v3592, %v3591
      %v3603 = vpack.c.b16 %v3594, %v3593
      %v3604 = vpack.c.b16 %v3596, %v3595
      %3613 = vmatprep.subr.bf16.mxu0 0
      %3614 = vmatpush1.bf16.msra.mxu0 %v3604
      %3615 = vmatprep.subr.bf16.mxu0 0
      %3616 = vmatpush1.bf16.msra.mxu0 %v3603
      %3617 = vmatprep.subr.bf16.mxu0 0
      %3618 = vmatpush1.bf16.msra.mxu0 %v3602
      %3619 = vmatprep.subr.bf16.mxu0 0
      %3620 = vmatpush1.bf16.msra.mxu0 %v3601
      %3621 = vmatprep.subr.bf16.mxu0 0
      %3622 = vmatpush1.bf16.msra.mxu0 %v3600
      %3623 = vmatprep.subr.bf16.mxu0 0
      %3624 = vmatpush1.bf16.msra.mxu0 %v3599
      %3625 = vmatprep.subr.bf16.mxu0 0
      %3626 = vmatpush1.bf16.msra.mxu0 %v3598
      %3627 = vmatprep.subr.bf16.mxu0 0
      %3628 = vmatpush1.bf16.msra.mxu0 %v3597
      %3629 = vmatprep.subr.bf16.mxu0 0
      %3630 = vmatpush2.bf16.msra.mxu0 0
      %3631 = vmatprep.subr.bf16.mxu0 0
      %3632 = vmatpush2.bf16.msra.mxu0 0
      %3633 = vmatprep.subr.bf16.mxu0 0
      %3634 = vmatpush2.bf16.msra.mxu0 0
      %3635 = vmatprep.subr.bf16.mxu0 0
      %3636 = vmatpush2.bf16.msra.mxu0 0
      %3637 = vmatprep.subr.bf16.mxu0 0
      %3638 = vmatpush2.bf16.msra.mxu0 0
      %3639 = vmatprep.subr.bf16.mxu0 0
      %3640 = vmatpush2.bf16.msra.mxu0 0
      %3641 = vmatprep.subr.bf16.mxu0 0
      %3642 = vmatpush2.bf16.msra.mxu0 0
      %3643 = vmatprep.subr.bf16.mxu0 0
      %3644 = vmatpush2.bf16.msra.mxu0 0
      %3645 = vmatprep.mubr.bf16.mxu0 0
      %3646 = vmatmul.mubr.bf16.gmra.mxu0 %v3532
      %v3647 = vpop.f32.mrf.mxu0
      %v3648 = vadd.f32 0.0, %v3647
      %v3649 = vpop.f32.mrf.mxu0
      %v3650 = vpop.f32.mrf.mxu0
      %v3651 = vadd.f32 0.0, %v3650
      %v3652 = vpop.f32.mrf.mxu0
      %3653 = vmatprep.mubr.bf16.mxu0 0
      %3654 = vmatmul.mubr.bf16.gmra.mxu0 %v3533
      %v3655 = vpop.f32.mrf.mxu0
      %v3656 = vadd.f32 0.0, %v3655
      %v3657 = vpop.f32.mrf.mxu0
      %v3658 = vpop.f32.mrf.mxu0
      %v3659 = vadd.f32 0.0, %v3658
      %v3660 = vpop.f32.mrf.mxu0
      %3661 = vmatprep.mubr.bf16.mxu0 0
      %3662 = vmatmul.mubr.bf16.gmra.mxu0 %v3534
      %v3663 = vpop.f32.mrf.mxu0
      %v3664 = vadd.f32 0.0, %v3663
      %v3665 = vpop.f32.mrf.mxu0
      %v3666 = vpop.f32.mrf.mxu0
      %v3667 = vadd.f32 0.0, %v3666
      %v3668 = vpop.f32.mrf.mxu0
      %3669 = vmatprep.mubr.bf16.mxu0 0
      %3670 = vmatmul.mubr.bf16.gmra.mxu0 %v3535
      %v3671 = vpop.f32.mrf.mxu0
      %v3672 = vadd.f32 0.0, %v3671
      %v3673 = vpop.f32.mrf.mxu0
      %v3674 = vpop.f32.mrf.mxu0
      %v3675 = vadd.f32 0.0, %v3674
      %v3676 = vpop.f32.mrf.mxu0
      %3677 = vmatprep.mubr.bf16.mxu0 0
      %3678 = vmatmul.mubr.bf16.gmra.mxu0 %v3536
      %v3679 = vpop.f32.mrf.mxu0
      %v3680 = vadd.f32 0.0, %v3679
      %v3681 = vpop.f32.mrf.mxu0
      %v3682 = vpop.f32.mrf.mxu0
      %v3683 = vadd.f32 0.0, %v3682
      %v3684 = vpop.f32.mrf.mxu0
      %3685 = vmatprep.mubr.bf16.mxu0 0
      %3686 = vmatmul.mubr.bf16.gmra.mxu0 %v3537
      %v3687 = vpop.f32.mrf.mxu0
      %v3688 = vadd.f32 0.0, %v3687
      %v3689 = vpop.f32.mrf.mxu0
      %v3690 = vpop.f32.mrf.mxu0
      %v3691 = vadd.f32 0.0, %v3690
      %v3692 = vpop.f32.mrf.mxu0
      %3693 = vmatprep.mubr.bf16.mxu0 0
      %3694 = vmatmul.mubr.bf16.gmra.mxu0 %v3538
      %v3695 = vpop.f32.mrf.mxu0
      %v3696 = vadd.f32 0.0, %v3695
      %v3697 = vpop.f32.mrf.mxu0
      %v3698 = vpop.f32.mrf.mxu0
      %v3699 = vadd.f32 0.0, %v3698
      %v3700 = vpop.f32.mrf.mxu0
      %3701 = vmatprep.mubr.bf16.mxu0 0
      %3702 = vmatmul.mubr.bf16.gmra.mxu0 %v3539
      %v3703 = vpop.f32.mrf.mxu0
      %v3704 = vadd.f32 0.0, %v3703
      %v3705 = vpop.f32.mrf.mxu0
      %v3706 = vpop.f32.mrf.mxu0
      %v3707 = vadd.f32 0.0, %v3706
      %v3708 = vpop.f32.mrf.mxu0
      %3709 = vmatprep.mubr.bf16.mxu0 0
      %3710 = vmatmul.mubr.bf16.gmra.mxu0 %v3540
      %v3711 = vpop.f32.mrf.mxu0
      %v3712 = vadd.f32 0.0, %v3711
      %v3713 = vpop.f32.mrf.mxu0
      %v3714 = vpop.f32.mrf.mxu0
      %v3715 = vadd.f32 0.0, %v3714
      %v3716 = vpop.f32.mrf.mxu0
      %3717 = vmatprep.mubr.bf16.mxu0 0
      %3718 = vmatmul.mubr.bf16.gmra.mxu0 %v3541
      %v3719 = vpop.f32.mrf.mxu0
      %v3720 = vadd.f32 0.0, %v3719
      %v3721 = vpop.f32.mrf.mxu0
      %v3722 = vpop.f32.mrf.mxu0
      %v3723 = vadd.f32 0.0, %v3722
      %v3724 = vpop.f32.mrf.mxu0
      %3725 = vmatprep.mubr.bf16.mxu0 0
      %3726 = vmatmul.mubr.bf16.gmra.mxu0 %v3542
      %v3727 = vpop.f32.mrf.mxu0
      %v3728 = vadd.f32 0.0, %v3727
      %v3729 = vpop.f32.mrf.mxu0
      %v3730 = vpop.f32.mrf.mxu0
      %v3731 = vadd.f32 0.0, %v3730
      %v3732 = vpop.f32.mrf.mxu0
      %3733 = vmatprep.mubr.bf16.mxu0 0
      %3734 = vmatmul.mubr.bf16.gmra.mxu0 %v3543
      %v3735 = vpop.f32.mrf.mxu0
      %v3736 = vadd.f32 0.0, %v3735
      %v3737 = vpop.f32.mrf.mxu0
      %v3738 = vpop.f32.mrf.mxu0
      %v3739 = vadd.f32 0.0, %v3738
      %v3740 = vpop.f32.mrf.mxu0
      %3741 = vmatprep.mubr.bf16.mxu0 0
      %3742 = vmatmul.mubr.bf16.gmra.mxu0 %v3544
      %v3743 = vpop.f32.mrf.mxu0
      %v3744 = vadd.f32 0.0, %v3743
      %v3745 = vpop.f32.mrf.mxu0
      %v3746 = vpop.f32.mrf.mxu0
      %v3747 = vadd.f32 0.0, %v3746
      %v3748 = vpop.f32.mrf.mxu0
      %3749 = vmatprep.mubr.bf16.mxu0 0
      %3750 = vmatmul.mubr.bf16.gmra.mxu0 %v3545
      %v3751 = vpop.f32.mrf.mxu0
      %v3752 = vadd.f32 0.0, %v3751
      %v3753 = vpop.f32.mrf.mxu0
      %v3754 = vpop.f32.mrf.mxu0
      %v3755 = vadd.f32 0.0, %v3754
      %v3756 = vpop.f32.mrf.mxu0
      %3757 = vmatprep.mubr.bf16.mxu0 0
      %3758 = vmatmul.mubr.bf16.gmra.mxu0 %v3546
      %v3759 = vpop.f32.mrf.mxu0
      %v3760 = vadd.f32 0.0, %v3759
      %v3761 = vpop.f32.mrf.mxu0
      %v3762 = vpop.f32.mrf.mxu0
      %v3763 = vadd.f32 0.0, %v3762
      %v3764 = vpop.f32.mrf.mxu0
      %3765 = vmatprep.mubr.bf16.mxu0 0
      %3766 = vmatmul.mubr.bf16.gmra.mxu0 %v3547
      %v3767 = vpop.f32.mrf.mxu0
      %v3768 = vadd.f32 0.0, %v3767
      %v3769 = vpop.f32.mrf.mxu0
      %v3770 = vpop.f32.mrf.mxu0
      %v3771 = vadd.f32 0.0, %v3770
      %v3772 = vpop.f32.mrf.mxu0
      %3773 = vdwg.mxu0
      %v3774 = vadd.f32 %v3436, %v3648
      %v3775 = vadd.f32 %v3437, %v3651
      %v3776 = vadd.f32 %v3438, %v3656
      %v3777 = vadd.f32 %v3439, %v3659
      %v3778 = vadd.f32 %v3440, %v3664
      %v3779 = vadd.f32 %v3441, %v3667
      %v3780 = vadd.f32 %v3442, %v3672
      %v3781 = vadd.f32 %v3443, %v3675
      %v3782 = vadd.f32 %v3444, %v3680
      %v3783 = vadd.f32 %v3445, %v3683
      %v3784 = vadd.f32 %v3446, %v3688
      %v3785 = vadd.f32 %v3447, %v3691
      %v3786 = vadd.f32 %v3448, %v3696
      %v3787 = vadd.f32 %v3449, %v3699
      %v3788 = vadd.f32 %v3450, %v3704
      %v3789 = vadd.f32 %v3451, %v3707
      %v3790 = vadd.f32 %v3452, %v3712
      %v3791 = vadd.f32 %v3453, %v3715
      %v3792 = vadd.f32 %v3454, %v3720
      %v3793 = vadd.f32 %v3455, %v3723
      %v3794 = vadd.f32 %v3456, %v3728
      %v3795 = vadd.f32 %v3457, %v3731
      %v3796 = vadd.f32 %v3458, %v3736
      %v3797 = vadd.f32 %v3459, %v3739
      %v3798 = vadd.f32 %v3460, %v3744
      %v3799 = vadd.f32 %v3461, %v3747
      %v3800 = vadd.f32 %v3462, %v3752
      %v3801 = vadd.f32 %v3463, %v3755
      %v3802 = vadd.f32 %v3464, %v3760
      %v3803 = vadd.f32 %v3465, %v3763
      %v3804 = vadd.f32 %v3466, %v3768
      %v3805 = vadd.f32 %v3467, %v3771
      %v3806 = vld [vmem:[%s2] sm:$0x1]
      %v3808 = vlaneseq
      %v3809 = vshrl.u32 %v3808, 7
      %v3810 = vsub.s32 0, %v3809
      %v3811 = vrot.slane %v3806, %v3810
      %v3813 = vmul.f32 %v3774, %v3811
      %v3814 = vmul.f32 %v3775, %v3811
      %v3815 = vmul.f32 %v3776, %v3811
      %v3816 = vmul.f32 %v3777, %v3811
      %v3817 = vmul.f32 %v3778, %v3811
      %v3818 = vmul.f32 %v3779, %v3811
      %v3819 = vmul.f32 %v3780, %v3811
      %v3820 = vmul.f32 %v3781, %v3811
      %v3821 = vmul.f32 %v3782, %v3811
      %v3822 = vmul.f32 %v3783, %v3811
      %v3823 = vmul.f32 %v3784, %v3811
      %v3824 = vmul.f32 %v3785, %v3811
      %v3825 = vmul.f32 %v3786, %v3811
      %v3826 = vmul.f32 %v3787, %v3811
      %v3827 = vmul.f32 %v3788, %v3811
      %v3828 = vmul.f32 %v3789, %v3811
      %v3829 = vmul.f32 %v3790, %v3811
      %v3830 = vmul.f32 %v3791, %v3811
      %v3831 = vmul.f32 %v3792, %v3811
      %v3832 = vmul.f32 %v3793, %v3811
      %v3833 = vmul.f32 %v3794, %v3811
      %v3834 = vmul.f32 %v3795, %v3811
      %v3835 = vmul.f32 %v3796, %v3811
      %v3836 = vmul.f32 %v3797, %v3811
      %v3837 = vmul.f32 %v3798, %v3811
      %v3838 = vmul.f32 %v3799, %v3811
      %v3839 = vmul.f32 %v3800, %v3811
      %v3840 = vmul.f32 %v3801, %v3811
      %v3841 = vmul.f32 %v3802, %v3811
      %v3842 = vmul.f32 %v3803, %v3811
      %v3843 = vmul.f32 %v3804, %v3811
      %v3844 = vmul.f32 %v3805, %v3811
      %v3845 = vld [vmem:[%s3] sm:$0x1]
      %v3847 = vlaneseq
      %v3848 = vshrl.u32 %v3847, 7
      %v3849 = vsub.s32 0, %v3848
      %v3850 = vrot.slane %v3845, %v3849
      %v3852 = vadd.f32 %v3813, %v3850
      %v3853 = vadd.f32 %v3814, %v3850
      %v3854 = vadd.f32 %v3815, %v3850
      %v3855 = vadd.f32 %v3816, %v3850
      %v3856 = vadd.f32 %v3817, %v3850
      %v3857 = vadd.f32 %v3818, %v3850
      %v3858 = vadd.f32 %v3819, %v3850
      %v3859 = vadd.f32 %v3820, %v3850
      %v3860 = vadd.f32 %v3821, %v3850
      %v3861 = vadd.f32 %v3822, %v3850
      %v3862 = vadd.f32 %v3823, %v3850
      %v3863 = vadd.f32 %v3824, %v3850
      %v3864 = vadd.f32 %v3825, %v3850
      %v3865 = vadd.f32 %v3826, %v3850
      %v3866 = vadd.f32 %v3827, %v3850
      %v3867 = vadd.f32 %v3828, %v3850
      %v3868 = vadd.f32 %v3829, %v3850
      %v3869 = vadd.f32 %v3830, %v3850
      %v3870 = vadd.f32 %v3831, %v3850
      %v3871 = vadd.f32 %v3832, %v3850
      %v3872 = vadd.f32 %v3833, %v3850
      %v3873 = vadd.f32 %v3834, %v3850
      %v3874 = vadd.f32 %v3835, %v3850
      %v3875 = vadd.f32 %v3836, %v3850
      %v3876 = vadd.f32 %v3837, %v3850
      %v3877 = vadd.f32 %v3838, %v3850
      %v3878 = vadd.f32 %v3839, %v3850
      %v3879 = vadd.f32 %v3840, %v3850
      %v3880 = vadd.f32 %v3841, %v3850
      %v3881 = vadd.f32 %v3842, %v3850
      %v3882 = vadd.f32 %v3843, %v3850
      %v3883 = vadd.f32 %v3844, %v3850
      %v3884 = vmax.f32 %v3852, 0.0
      %v3885 = vmax.f32 %v3853, 0.0
      %v3886 = vmax.f32 %v3854, 0.0
      %v3887 = vmax.f32 %v3855, 0.0
      %v3888 = vmax.f32 %v3856, 0.0
      %v3889 = vmax.f32 %v3857, 0.0
      %v3890 = vmax.f32 %v3858, 0.0
      %v3891 = vmax.f32 %v3859, 0.0
      %v3892 = vmax.f32 %v3860, 0.0
      %v3893 = vmax.f32 %v3861, 0.0
      %v3894 = vmax.f32 %v3862, 0.0
      %v3895 = vmax.f32 %v3863, 0.0
      %v3896 = vmax.f32 %v3864, 0.0
      %v3897 = vmax.f32 %v3865, 0.0
      %v3898 = vmax.f32 %v3866, 0.0
      %v3899 = vmax.f32 %v3867, 0.0
      %v3900 = vmax.f32 %v3868, 0.0
      %v3901 = vmax.f32 %v3869, 0.0
      %v3902 = vmax.f32 %v3870, 0.0
      %v3903 = vmax.f32 %v3871, 0.0
      %v3904 = vmax.f32 %v3872, 0.0
      %v3905 = vmax.f32 %v3873, 0.0
      %v3906 = vmax.f32 %v3874, 0.0
      %v3907 = vmax.f32 %v3875, 0.0
      %v3908 = vmax.f32 %v3876, 0.0
      %v3909 = vmax.f32 %v3877, 0.0
      %v3910 = vmax.f32 %v3878, 0.0
      %v3911 = vmax.f32 %v3879, 0.0
      %v3912 = vmax.f32 %v3880, 0.0
      %v3913 = vmax.f32 %v3881, 0.0
      %v3914 = vmax.f32 %v3882, 0.0
      %v3915 = vmax.f32 %v3883, 0.0
      %3916 = vst [vmem:[#allocation3 + $0x18] sm:$0xff] %v3884
      %3917 = vst [vmem:[#allocation3 + $0x20] sm:$0xff] %v3885
      %3918 = vst [vmem:[#allocation3 + $0x28] sm:$0xff] %v3886
      %3919 = vst [vmem:[#allocation3 + $0x30] sm:$0xff] %v3887
      %3920 = vst [vmem:[#allocation3 + $0x38] sm:$0xff] %v3888
      %3921 = vst [vmem:[#allocation3 + $0x40] sm:$0xff] %v3889
      %3922 = vst [vmem:[#allocation3 + $0x48] sm:$0xff] %v3890
      %3923 = vst [vmem:[#allocation3 + $0x50] sm:$0xff] %v3891
      %3924 = vst [vmem:[#allocation3 + $0x58] sm:$0xff] %v3892
      %3925 = vst [vmem:[#allocation3 + $0x60] sm:$0xff] %v3893
      %3926 = vst [vmem:[#allocation3 + $0x68] sm:$0xff] %v3894
      %3927 = vst [vmem:[#allocation3 + $0x70] sm:$0xff] %v3895
      %3928 = vst [vmem:[#allocation3 + $0x78] sm:$0xff] %v3896
      %3929 = vst [vmem:[#allocation3 + $0x80] sm:$0xff] %v3897
      %3930 = vst [vmem:[#allocation3 + $0x88] sm:$0xff] %v3898
      %3931 = vst [vmem:[#allocation3 + $0x90] sm:$0xff] %v3899
      %3932 = vst [vmem:[#allocation3 + $0x98] sm:$0xff] %v3900
      %3933 = vst [vmem:[#allocation3 + $0xa0] sm:$0xff] %v3901
      %3934 = vst [vmem:[#allocation3 + $0xa8] sm:$0xff] %v3902
      %3935 = vst [vmem:[#allocation3 + $0xb0] sm:$0xff] %v3903
      %3936 = vst [vmem:[#allocation3 + $0xb8] sm:$0xff] %v3904
      %3937 = vst [vmem:[#allocation3 + $0xc0] sm:$0xff] %v3905
      %3938 = vst [vmem:[#allocation3 + $0xc8] sm:$0xff] %v3906
      %3939 = vst [vmem:[#allocation3 + $0xd0] sm:$0xff] %v3907
      %3940 = vst [vmem:[#allocation3 + $0xd8] sm:$0xff] %v3908
      %3941 = vst [vmem:[#allocation3 + $0xe0] sm:$0xff] %v3909
      %3942 = vst [vmem:[#allocation3 + $0xe8] sm:$0xff] %v3910
      %3943 = vst [vmem:[#allocation3 + $0xf0] sm:$0xff] %v3911
      %3944 = vst [vmem:[#allocation3 + $0xf8] sm:$0xff] %v3912
      %3945 = vst [vmem:[#allocation3 + $0x100] sm:$0xff] %v3913
      %3946 = vst [vmem:[#allocation3 + $0x108] sm:$0xff] %v3914
      %3947 = vst [vmem:[#allocation3 + $0x110] sm:$0xff] %v3915
      %v3948 = vld [vmem:[#allocation3 + $0x7] sm:$0xff]
      %v3949 = vld [vmem:[#allocation3 + $0xf] sm:$0xff]
      %v3950 = vld [vmem:[#allocation3 + $0x17] sm:$0xff]
      %v3951 = vld [vmem:[#allocation3 + $0x1f] sm:$0xff]
      %v3952 = vld [vmem:[#allocation3 + $0x27] sm:$0xff]
      %v3953 = vld [vmem:[#allocation3 + $0x2f] sm:$0xff]
      %v3954 = vld [vmem:[#allocation3 + $0x37] sm:$0xff]
      %v3955 = vld [vmem:[#allocation3 + $0x3f] sm:$0xff]
      %v3956 = vld [vmem:[#allocation3 + $0x47] sm:$0xff]
      %v3957 = vld [vmem:[#allocation3 + $0x4f] sm:$0xff]
      %v3958 = vld [vmem:[#allocation3 + $0x57] sm:$0xff]
      %v3959 = vld [vmem:[#allocation3 + $0x5f] sm:$0xff]
      %v3960 = vld [vmem:[#allocation3 + $0x67] sm:$0xff]
      %v3961 = vld [vmem:[#allocation3 + $0x6f] sm:$0xff]
      %v3962 = vld [vmem:[#allocation3 + $0x77] sm:$0xff]
      %v3963 = vld [vmem:[#allocation3 + $0x7f] sm:$0xff]
      %v3964 = vld [vmem:[#allocation3 + $0x87] sm:$0xff]
      %v3965 = vld [vmem:[#allocation3 + $0x8f] sm:$0xff]
      %v3966 = vld [vmem:[#allocation3 + $0x97] sm:$0xff]
      %v3967 = vld [vmem:[#allocation3 + $0x9f] sm:$0xff]
      %v3968 = vld [vmem:[#allocation3 + $0xa7] sm:$0xff]
      %v3969 = vld [vmem:[#allocation3 + $0xaf] sm:$0xff]
      %v3970 = vld [vmem:[#allocation3 + $0xb7] sm:$0xff]
      %v3971 = vld [vmem:[#allocation3 + $0xbf] sm:$0xff]
      %v3972 = vld [vmem:[#allocation3 + $0xc7] sm:$0xff]
      %v3973 = vld [vmem:[#allocation3 + $0xcf] sm:$0xff]
      %v3974 = vld [vmem:[#allocation3 + $0xd7] sm:$0xff]
      %v3975 = vld [vmem:[#allocation3 + $0xdf] sm:$0xff]
      %v3976 = vld [vmem:[#allocation3 + $0xe7] sm:$0xff]
      %v3977 = vld [vmem:[#allocation3 + $0xef] sm:$0xff]
      %v3978 = vld [vmem:[#allocation3 + $0xf7] sm:$0xff]
      %v3979 = vld [vmem:[#allocation3 + $0xff] sm:$0xff]
      %v3980 = vld [vmem:[%s7] sm:$0xff]
      %v3981 = vld [vmem:[%s7 + $0x8] sm:$0xff]
      %v3982 = vld [vmem:[%s7 + $0x10] sm:$0xff]
      %v3983 = vld [vmem:[%s7 + $0x18] sm:$0xff]
      %v3984 = vld [vmem:[%s7 + $0x20] sm:$0xff]
      %v3985 = vld [vmem:[%s7 + $0x28] sm:$0xff]
      %v3986 = vld [vmem:[%s7 + $0x30] sm:$0xff]
      %v3987 = vld [vmem:[%s7 + $0x38] sm:$0xff]
      %v3988 = vld [vmem:[%s7 + $0x40] sm:$0xff]
      %v3989 = vld [vmem:[%s7 + $0x48] sm:$0xff]
      %v3990 = vld [vmem:[%s7 + $0x50] sm:$0xff]
      %v3991 = vld [vmem:[%s7 + $0x58] sm:$0xff]
      %v3992 = vld [vmem:[%s7 + $0x60] sm:$0xff]
      %v3993 = vld [vmem:[%s7 + $0x68] sm:$0xff]
      %v3994 = vld [vmem:[%s7 + $0x70] sm:$0xff]
      %v3995 = vld [vmem:[%s7 + $0x78] sm:$0xff]
      %v3996 = vld [vmem:[%s7 + $0x80] sm:$0xff]
      %v3997 = vld [vmem:[%s7 + $0x88] sm:$0xff]
      %v3998 = vld [vmem:[%s7 + $0x90] sm:$0xff]
      %v3999 = vld [vmem:[%s7 + $0x98] sm:$0xff]
      %v4000 = vld [vmem:[%s7 + $0xa0] sm:$0xff]
      %v4001 = vld [vmem:[%s7 + $0xa8] sm:$0xff]
      %v4002 = vld [vmem:[%s7 + $0xb0] sm:$0xff]
      %v4003 = vld [vmem:[%s7 + $0xb8] sm:$0xff]
      %v4004 = vld [vmem:[%s7 + $0xc0] sm:$0xff]
      %v4005 = vld [vmem:[%s7 + $0xc8] sm:$0xff]
      %v4006 = vld [vmem:[%s7 + $0xd0] sm:$0xff]
      %v4007 = vld [vmem:[%s7 + $0xd8] sm:$0xff]
      %v4008 = vld [vmem:[%s7 + $0xe0] sm:$0xff]
      %v4009 = vld [vmem:[%s7 + $0xe8] sm:$0xff]
      %v4010 = vld [vmem:[%s7 + $0xf0] sm:$0xff]
      %v4011 = vld [vmem:[%s7 + $0xf8] sm:$0xff]
      %4013 = vset.pattern.permute.xlu0 0
      %4014 = vperm.xlu0 %4013, %v3980
      %v4015 = vpop.permute.xlu0 %4014
      %4018 = vset.pattern.permute.xlu0 0
      %4019 = vperm.xlu0 %4018, %v3981
      %v4020 = vpop.permute.xlu0 %4019
      %4023 = vset.pattern.permute.xlu0 0
      %4024 = vperm.xlu0 %4023, %v3982
      %v4025 = vpop.permute.xlu0 %4024
      %4028 = vset.pattern.permute.xlu0 0
      %4029 = vperm.xlu0 %4028, %v3983
      %v4030 = vpop.permute.xlu0 %4029
      %4033 = vset.pattern.permute.xlu0 0
      %4034 = vperm.xlu0 %4033, %v3984
      %v4035 = vpop.permute.xlu0 %4034
      %4038 = vset.pattern.permute.xlu0 0
      %4039 = vperm.xlu0 %4038, %v3985
      %v4040 = vpop.permute.xlu0 %4039
      %4043 = vset.pattern.permute.xlu0 0
      %4044 = vperm.xlu0 %4043, %v3986
      %v4045 = vpop.permute.xlu0 %4044
      %4048 = vset.pattern.permute.xlu0 0
      %4049 = vperm.xlu0 %4048, %v3987
      %v4050 = vpop.permute.xlu0 %4049
      %4053 = vset.pattern.permute.xlu0 0
      %4054 = vperm.xlu0 %4053, %v3988
      %v4055 = vpop.permute.xlu0 %4054
      %4058 = vset.pattern.permute.xlu0 0
      %4059 = vperm.xlu0 %4058, %v3989
      %v4060 = vpop.permute.xlu0 %4059
      %4063 = vset.pattern.permute.xlu0 0
      %4064 = vperm.xlu0 %4063, %v3990
      %v4065 = vpop.permute.xlu0 %4064
      %4068 = vset.pattern.permute.xlu0 0
      %4069 = vperm.xlu0 %4068, %v3991
      %v4070 = vpop.permute.xlu0 %4069
      %4073 = vset.pattern.permute.xlu0 0
      %4074 = vperm.xlu0 %4073, %v3992
      %v4075 = vpop.permute.xlu0 %4074
      %4078 = vset.pattern.permute.xlu0 0
      %4079 = vperm.xlu0 %4078, %v3993
      %v4080 = vpop.permute.xlu0 %4079
      %4083 = vset.pattern.permute.xlu0 0
      %4084 = vperm.xlu0 %4083, %v3994
      %v4085 = vpop.permute.xlu0 %4084
      %4088 = vset.pattern.permute.xlu0 0
      %4089 = vperm.xlu0 %4088, %v3995
      %v4090 = vpop.permute.xlu0 %4089
      %4093 = vset.pattern.permute.xlu0 0
      %4094 = vperm.xlu0 %4093, %v3996
      %v4095 = vpop.permute.xlu0 %4094
      %4098 = vset.pattern.permute.xlu0 0
      %4099 = vperm.xlu0 %4098, %v3997
      %v4100 = vpop.permute.xlu0 %4099
      %4103 = vset.pattern.permute.xlu0 0
      %4104 = vperm.xlu0 %4103, %v3998
      %v4105 = vpop.permute.xlu0 %4104
      %4108 = vset.pattern.permute.xlu0 0
      %4109 = vperm.xlu0 %4108, %v3999
      %v4110 = vpop.permute.xlu0 %4109
      %4113 = vset.pattern.permute.xlu0 0
      %4114 = vperm.xlu0 %4113, %v4000
      %v4115 = vpop.permute.xlu0 %4114
      %4118 = vset.pattern.permute.xlu0 0
      %4119 = vperm.xlu0 %4118, %v4001
      %v4120 = vpop.permute.xlu0 %4119
      %4123 = vset.pattern.permute.xlu0 0
      %4124 = vperm.xlu0 %4123, %v4002
      %v4125 = vpop.permute.xlu0 %4124
      %4128 = vset.pattern.permute.xlu0 0
      %4129 = vperm.xlu0 %4128, %v4003
      %v4130 = vpop.permute.xlu0 %4129
      %4133 = vset.pattern.permute.xlu0 0
      %4134 = vperm.xlu0 %4133, %v4004
      %v4135 = vpop.permute.xlu0 %4134
      %4138 = vset.pattern.permute.xlu0 0
      %4139 = vperm.xlu0 %4138, %v4005
      %v4140 = vpop.permute.xlu0 %4139
      %4143 = vset.pattern.permute.xlu0 0
      %4144 = vperm.xlu0 %4143, %v4006
      %v4145 = vpop.permute.xlu0 %4144
      %4148 = vset.pattern.permute.xlu0 0
      %4149 = vperm.xlu0 %4148, %v4007
      %v4150 = vpop.permute.xlu0 %4149
      %4153 = vset.pattern.permute.xlu0 0
      %4154 = vperm.xlu0 %4153, %v4008
      %v4155 = vpop.permute.xlu0 %4154
      %4158 = vset.pattern.permute.xlu0 0
      %4159 = vperm.xlu0 %4158, %v4009
      %v4160 = vpop.permute.xlu0 %4159
      %4163 = vset.pattern.permute.xlu0 0
      %4164 = vperm.xlu0 %4163, %v4010
      %v4165 = vpop.permute.xlu0 %4164
      %4168 = vset.pattern.permute.xlu0 0
      %4169 = vperm.xlu0 %4168, %v4011
      %v4170 = vpop.permute.xlu0 %4169
      %v4172 = vmul.f32 %v3948, %v4015
      %v4173 = vmul.f32 %v3949, %v4020
      %v4174 = vmul.f32 %v3950, %v4025
      %v4175 = vmul.f32 %v3951, %v4030
      %v4176 = vmul.f32 %v3952, %v4035
      %v4177 = vmul.f32 %v3953, %v4040
      %v4178 = vmul.f32 %v3954, %v4045
      %v4179 = vmul.f32 %v3955, %v4050
      %v4180 = vmul.f32 %v3956, %v4055
      %v4181 = vmul.f32 %v3957, %v4060
      %v4182 = vmul.f32 %v3958, %v4065
      %v4183 = vmul.f32 %v3959, %v4070
      %v4184 = vmul.f32 %v3960, %v4075
      %v4185 = vmul.f32 %v3961, %v4080
      %v4186 = vmul.f32 %v3962, %v4085
      %v4187 = vmul.f32 %v3963, %v4090
      %v4188 = vmul.f32 %v3964, %v4095
      %v4189 = vmul.f32 %v3965, %v4100
      %v4190 = vmul.f32 %v3966, %v4105
      %v4191 = vmul.f32 %v3967, %v4110
      %v4192 = vmul.f32 %v3968, %v4115
      %v4193 = vmul.f32 %v3969, %v4120
      %v4194 = vmul.f32 %v3970, %v4125
      %v4195 = vmul.f32 %v3971, %v4130
      %v4196 = vmul.f32 %v3972, %v4135
      %v4197 = vmul.f32 %v3973, %v4140
      %v4198 = vmul.f32 %v3974, %v4145
      %v4199 = vmul.f32 %v3975, %v4150
      %v4200 = vmul.f32 %v3976, %v4155
      %v4201 = vmul.f32 %v3977, %v4160
      %v4202 = vmul.f32 %v3978, %v4165
      %v4203 = vmul.f32 %v3979, %v4170
      %v4204 = vpack.c.bf16 %v4173, %v4172
      %v4205 = vpack.c.bf16 %v4175, %v4174
      %v4206 = vpack.c.bf16 %v4177, %v4176
      %v4207 = vpack.c.bf16 %v4179, %v4178
      %v4208 = vpack.c.bf16 %v4181, %v4180
      %v4209 = vpack.c.bf16 %v4183, %v4182
      %v4210 = vpack.c.bf16 %v4185, %v4184
      %v4211 = vpack.c.bf16 %v4187, %v4186
      %v4212 = vpack.c.bf16 %v4189, %v4188
      %v4213 = vpack.c.bf16 %v4191, %v4190
      %v4214 = vpack.c.bf16 %v4193, %v4192
      %v4215 = vpack.c.bf16 %v4195, %v4194
      %v4216 = vpack.c.bf16 %v4197, %v4196
      %v4217 = vpack.c.bf16 %v4199, %v4198
      %v4218 = vpack.c.bf16 %v4201, %v4200
      %v4219 = vpack.c.bf16 %v4203, %v4202
      %v4220 = vld [vmem:[%s4] sm:$0xf]
      %v4221 = vld [vmem:[%s4 + $0x4] sm:$0xf]
      %v4222 = vld [vmem:[%s4 + $0x8] sm:$0xf]
      %v4223 = vld [vmem:[%s4 + $0xc] sm:$0xf]
      %v4224 = vld [vmem:[%s4 + $0x10] sm:$0xf]
      %v4225 = vld [vmem:[%s4 + $0x14] sm:$0xf]
      %v4226 = vld [vmem:[%s4 + $0x18] sm:$0xf]
      %v4227 = vld [vmem:[%s4 + $0x1c] sm:$0xf]
      %v4228 = vld [vmem:[%s4 + $0x20] sm:$0xf]
      %v4229 = vld [vmem:[%s4 + $0x24] sm:$0xf]
      %v4230 = vld [vmem:[%s4 + $0x28] sm:$0xf]
      %v4231 = vld [vmem:[%s4 + $0x2c] sm:$0xf]
      %v4232 = vld [vmem:[%s4 + $0x30] sm:$0xf]
      %v4233 = vld [vmem:[%s4 + $0x34] sm:$0xf]
      %v4234 = vld [vmem:[%s4 + $0x38] sm:$0xf]
      %v4235 = vld [vmem:[%s4 + $0x3c] sm:$0xf]
      %v4236 = vld [vmem:[#allocation3 + $0x8] sm:$0xff]
      %v4237 = vld [vmem:[#allocation3 + $0x10] sm:$0xff]
      %v4238 = vld [vmem:[#allocation3 + $0x18] sm:$0xff]
      %v4239 = vld [vmem:[#allocation3 + $0x20] sm:$0xff]
      %v4240 = vld [vmem:[#allocation3 + $0x28] sm:$0xff]
      %v4241 = vld [vmem:[#allocation3 + $0x30] sm:$0xff]
      %v4242 = vld [vmem:[#allocation3 + $0x38] sm:$0xff]
      %v4243 = vld [vmem:[#allocation3 + $0x40] sm:$0xff]
      %v4244 = vld [vmem:[#allocation3 + $0x48] sm:$0xff]
      %v4245 = vld [vmem:[#allocation3 + $0x50] sm:$0xff]
      %v4246 = vld [vmem:[#allocation3 + $0x58] sm:$0xff]
      %v4247 = vld [vmem:[#allocation3 + $0x60] sm:$0xff]
      %v4248 = vld [vmem:[#allocation3 + $0x68] sm:$0xff]
      %v4249 = vld [vmem:[#allocation3 + $0x70] sm:$0xff]
      %v4250 = vld [vmem:[#allocation3 + $0x78] sm:$0xff]
      %v4251 = vld [vmem:[#allocation3 + $0x80] sm:$0xff]
      %v4252 = vld [vmem:[#allocation3 + $0x88] sm:$0xff]
      %v4253 = vld [vmem:[#allocation3 + $0x90] sm:$0xff]
      %v4254 = vld [vmem:[#allocation3 + $0x98] sm:$0xff]
      %v4255 = vld [vmem:[#allocation3 + $0xa0] sm:$0xff]
      %v4256 = vld [vmem:[#allocation3 + $0xa8] sm:$0xff]
      %v4257 = vld [vmem:[#allocation3 + $0xb0] sm:$0xff]
      %v4258 = vld [vmem:[#allocation3 + $0xb8] sm:$0xff]
      %v4259 = vld [vmem:[#allocation3 + $0xc0] sm:$0xff]
      %v4260 = vld [vmem:[#allocation3 + $0xc8] sm:$0xff]
      %v4261 = vld [vmem:[#allocation3 + $0xd0] sm:$0xff]
      %v4262 = vld [vmem:[#allocation3 + $0xd8] sm:$0xff]
      %v4263 = vld [vmem:[#allocation3 + $0xe0] sm:$0xff]
      %v4264 = vld [vmem:[#allocation3 + $0xe8] sm:$0xff]
      %v4265 = vld [vmem:[#allocation3 + $0xf0] sm:$0xff]
      %v4266 = vld [vmem:[#allocation3 + $0xf8] sm:$0xff]
      %v4267 = vld [vmem:[#allocation3 + $0x100] sm:$0xff]
      %v4268 = vpack.c.bf16 %v4237, %v4236
      %v4269 = vpack.c.bf16 %v4239, %v4238
      %v4270 = vpack.c.bf16 %v4241, %v4240
      %v4271 = vpack.c.bf16 %v4243, %v4242
      %v4272 = vpack.c.bf16 %v4245, %v4244
      %v4273 = vpack.c.bf16 %v4247, %v4246
      %v4274 = vpack.c.bf16 %v4249, %v4248
      %v4275 = vpack.c.bf16 %v4251, %v4250
      %v4276 = vpack.c.bf16 %v4253, %v4252
      %v4277 = vpack.c.bf16 %v4255, %v4254
      %v4278 = vpack.c.bf16 %v4257, %v4256
      %v4279 = vpack.c.bf16 %v4259, %v4258
      %v4280 = vpack.c.bf16 %v4261, %v4260
      %v4281 = vpack.c.bf16 %v4263, %v4262
      %v4282 = vpack.c.bf16 %v4265, %v4264
      %v4283 = vpack.c.bf16 %v4267, %v4266
      %s4284 = scalar_lea.vmem %s4, 64
      %v4285 = vld [vmem:[%s4284] sm:$0xf]
      %v4286 = vld [vmem:[%s4284 + $0x4] sm:$0xf]
      %v4287 = vld [vmem:[%s4284 + $0x8] sm:$0xf]
      %v4288 = vld [vmem:[%s4284 + $0xc] sm:$0xf]
      %v4289 = vld [vmem:[%s4284 + $0x10] sm:$0xf]
      %v4290 = vld [vmem:[%s4284 + $0x14] sm:$0xf]
      %v4291 = vld [vmem:[%s4284 + $0x18] sm:$0xf]
      %v4292 = vld [vmem:[%s4284 + $0x1c] sm:$0xf]
      %v4293 = vld [vmem:[%s4284 + $0x20] sm:$0xf]
      %v4294 = vld [vmem:[%s4284 + $0x24] sm:$0xf]
      %v4295 = vld [vmem:[%s4284 + $0x28] sm:$0xf]
      %v4296 = vld [vmem:[%s4284 + $0x2c] sm:$0xf]
      %v4297 = vld [vmem:[%s4284 + $0x30] sm:$0xf]
      %v4298 = vld [vmem:[%s4284 + $0x34] sm:$0xf]
      %v4299 = vld [vmem:[%s4284 + $0x38] sm:$0xf]
      %v4300 = vld [vmem:[%s4284 + $0x3c] sm:$0xf]
      %v4317 = vunpack.c.l.b16 %v4285
      %v4318 = vunpack.c.l.b16 %v4286
      %v4319 = vunpack.c.l.b16 %v4287
      %v4320 = vunpack.c.l.b16 %v4288
      %v4321 = vunpack.c.l.b16 %v4289
      %v4322 = vunpack.c.l.b16 %v4290
      %v4323 = vunpack.c.l.b16 %v4291
      %v4324 = vunpack.c.l.b16 %v4292
      %v4325 = vunpack.c.l.b16 %v4293
      %v4326 = vunpack.c.l.b16 %v4294
      %v4327 = vunpack.c.l.b16 %v4295
      %v4328 = vunpack.c.l.b16 %v4296
      %v4329 = vunpack.c.l.b16 %v4297
      %v4330 = vunpack.c.l.b16 %v4298
      %v4331 = vunpack.c.l.b16 %v4299
      %v4332 = vunpack.c.l.b16 %v4300
      %v4333 = vpack.c.b16 %v4318, %v4317
      %v4334 = vpack.c.b16 %v4320, %v4319
      %v4335 = vpack.c.b16 %v4322, %v4321
      %v4336 = vpack.c.b16 %v4324, %v4323
      %v4337 = vpack.c.b16 %v4326, %v4325
      %v4338 = vpack.c.b16 %v4328, %v4327
      %v4339 = vpack.c.b16 %v4330, %v4329
      %v4340 = vpack.c.b16 %v4332, %v4331
      %4349 = vmatprep.subr.bf16.mxu0 0
      %4350 = vmatpush1.bf16.msra.mxu0 %v4340
      %4351 = vmatprep.subr.bf16.mxu0 0
      %4352 = vmatpush1.bf16.msra.mxu0 %v4339
      %4353 = vmatprep.subr.bf16.mxu0 0
      %4354 = vmatpush1.bf16.msra.mxu0 %v4338
      %4355 = vmatprep.subr.bf16.mxu0 0
      %4356 = vmatpush1.bf16.msra.mxu0 %v4337
      %4357 = vmatprep.subr.bf16.mxu0 0
      %4358 = vmatpush1.bf16.msra.mxu0 %v4336
      %4359 = vmatprep.subr.bf16.mxu0 0
      %4360 = vmatpush1.bf16.msra.mxu0 %v4335
      %4361 = vmatprep.subr.bf16.mxu0 0
      %4362 = vmatpush1.bf16.msra.mxu0 %v4334
      %4363 = vmatprep.subr.bf16.mxu0 0
      %4364 = vmatpush1.bf16.msra.mxu0 %v4333
      %4365 = vmatprep.subr.bf16.mxu0 0
      %4366 = vmatpush2.bf16.msra.mxu0 0
      %4367 = vmatprep.subr.bf16.mxu0 0
      %4368 = vmatpush2.bf16.msra.mxu0 0
      %4369 = vmatprep.subr.bf16.mxu0 0
      %4370 = vmatpush2.bf16.msra.mxu0 0
      %4371 = vmatprep.subr.bf16.mxu0 0
      %4372 = vmatpush2.bf16.msra.mxu0 0
      %4373 = vmatprep.subr.bf16.mxu0 0
      %4374 = vmatpush2.bf16.msra.mxu0 0
      %4375 = vmatprep.subr.bf16.mxu0 0
      %4376 = vmatpush2.bf16.msra.mxu0 0
      %4377 = vmatprep.subr.bf16.mxu0 0
      %4378 = vmatpush2.bf16.msra.mxu0 0
      %4379 = vmatprep.subr.bf16.mxu0 0
      %4380 = vmatpush2.bf16.msra.mxu0 0
      %4381 = vmatprep.mubr.bf16.mxu0 0
      %4382 = vmatmul.mubr.bf16.gmra.mxu0 %v4268
      %v4383 = vpop.f32.mrf.mxu0
      %v4384 = vadd.f32 0.0, %v4383
      %v4385 = vpop.f32.mrf.mxu0
      %v4386 = vpop.f32.mrf.mxu0
      %v4387 = vadd.f32 0.0, %v4386
      %v4388 = vpop.f32.mrf.mxu0
      %4389 = vmatprep.mubr.bf16.mxu0 0
      %4390 = vmatmul.mubr.bf16.gmra.mxu0 %v4269
      %v4391 = vpop.f32.mrf.mxu0
      %v4392 = vadd.f32 0.0, %v4391
      %v4393 = vpop.f32.mrf.mxu0
      %v4394 = vpop.f32.mrf.mxu0
      %v4395 = vadd.f32 0.0, %v4394
      %v4396 = vpop.f32.mrf.mxu0
      %4397 = vmatprep.mubr.bf16.mxu0 0
      %4398 = vmatmul.mubr.bf16.gmra.mxu0 %v4270
      %v4399 = vpop.f32.mrf.mxu0
      %v4400 = vadd.f32 0.0, %v4399
      %v4401 = vpop.f32.mrf.mxu0
      %v4402 = vpop.f32.mrf.mxu0
      %v4403 = vadd.f32 0.0, %v4402
      %v4404 = vpop.f32.mrf.mxu0
      %4405 = vmatprep.mubr.bf16.mxu0 0
      %4406 = vmatmul.mubr.bf16.gmra.mxu0 %v4271
      %v4407 = vpop.f32.mrf.mxu0
      %v4408 = vadd.f32 0.0, %v4407
      %v4409 = vpop.f32.mrf.mxu0
      %v4410 = vpop.f32.mrf.mxu0
      %v4411 = vadd.f32 0.0, %v4410
      %v4412 = vpop.f32.mrf.mxu0
      %4413 = vmatprep.mubr.bf16.mxu0 0
      %4414 = vmatmul.mubr.bf16.gmra.mxu0 %v4272
      %v4415 = vpop.f32.mrf.mxu0
      %v4416 = vadd.f32 0.0, %v4415
      %v4417 = vpop.f32.mrf.mxu0
      %v4418 = vpop.f32.mrf.mxu0
      %v4419 = vadd.f32 0.0, %v4418
      %v4420 = vpop.f32.mrf.mxu0
      %4421 = vmatprep.mubr.bf16.mxu0 0
      %4422 = vmatmul.mubr.bf16.gmra.mxu0 %v4273
      %v4423 = vpop.f32.mrf.mxu0
      %v4424 = vadd.f32 0.0, %v4423
      %v4425 = vpop.f32.mrf.mxu0
      %v4426 = vpop.f32.mrf.mxu0
      %v4427 = vadd.f32 0.0, %v4426
      %v4428 = vpop.f32.mrf.mxu0
      %4429 = vmatprep.mubr.bf16.mxu0 0
      %4430 = vmatmul.mubr.bf16.gmra.mxu0 %v4274
      %v4431 = vpop.f32.mrf.mxu0
      %v4432 = vadd.f32 0.0, %v4431
      %v4433 = vpop.f32.mrf.mxu0
      %v4434 = vpop.f32.mrf.mxu0
      %v4435 = vadd.f32 0.0, %v4434
      %v4436 = vpop.f32.mrf.mxu0
      %4437 = vmatprep.mubr.bf16.mxu0 0
      %4438 = vmatmul.mubr.bf16.gmra.mxu0 %v4275
      %v4439 = vpop.f32.mrf.mxu0
      %v4440 = vadd.f32 0.0, %v4439
      %v4441 = vpop.f32.mrf.mxu0
      %v4442 = vpop.f32.mrf.mxu0
      %v4443 = vadd.f32 0.0, %v4442
      %v4444 = vpop.f32.mrf.mxu0
      %4445 = vmatprep.mubr.bf16.mxu0 0
      %4446 = vmatmul.mubr.bf16.gmra.mxu0 %v4276
      %v4447 = vpop.f32.mrf.mxu0
      %v4448 = vadd.f32 0.0, %v4447
      %v4449 = vpop.f32.mrf.mxu0
      %v4450 = vpop.f32.mrf.mxu0
      %v4451 = vadd.f32 0.0, %v4450
      %v4452 = vpop.f32.mrf.mxu0
      %4453 = vmatprep.mubr.bf16.mxu0 0
      %4454 = vmatmul.mubr.bf16.gmra.mxu0 %v4277
      %v4455 = vpop.f32.mrf.mxu0
      %v4456 = vadd.f32 0.0, %v4455
      %v4457 = vpop.f32.mrf.mxu0
      %v4458 = vpop.f32.mrf.mxu0
      %v4459 = vadd.f32 0.0, %v4458
      %v4460 = vpop.f32.mrf.mxu0
      %4461 = vmatprep.mubr.bf16.mxu0 0
      %4462 = vmatmul.mubr.bf16.gmra.mxu0 %v4278
      %v4463 = vpop.f32.mrf.mxu0
      %v4464 = vadd.f32 0.0, %v4463
      %v4465 = vpop.f32.mrf.mxu0
      %v4466 = vpop.f32.mrf.mxu0
      %v4467 = vadd.f32 0.0, %v4466
      %v4468 = vpop.f32.mrf.mxu0
      %4469 = vmatprep.mubr.bf16.mxu0 0
      %4470 = vmatmul.mubr.bf16.gmra.mxu0 %v4279
      %v4471 = vpop.f32.mrf.mxu0
      %v4472 = vadd.f32 0.0, %v4471
      %v4473 = vpop.f32.mrf.mxu0
      %v4474 = vpop.f32.mrf.mxu0
      %v4475 = vadd.f32 0.0, %v4474
      %v4476 = vpop.f32.mrf.mxu0
      %4477 = vmatprep.mubr.bf16.mxu0 0
      %4478 = vmatmul.mubr.bf16.gmra.mxu0 %v4280
      %v4479 = vpop.f32.mrf.mxu0
      %v4480 = vadd.f32 0.0, %v4479
      %v4481 = vpop.f32.mrf.mxu0
      %v4482 = vpop.f32.mrf.mxu0
      %v4483 = vadd.f32 0.0, %v4482
      %v4484 = vpop.f32.mrf.mxu0
      %4485 = vmatprep.mubr.bf16.mxu0 0
      %4486 = vmatmul.mubr.bf16.gmra.mxu0 %v4281
      %v4487 = vpop.f32.mrf.mxu0
      %v4488 = vadd.f32 0.0, %v4487
      %v4489 = vpop.f32.mrf.mxu0
      %v4490 = vpop.f32.mrf.mxu0
      %v4491 = vadd.f32 0.0, %v4490
      %v4492 = vpop.f32.mrf.mxu0
      %4493 = vmatprep.mubr.bf16.mxu0 0
      %4494 = vmatmul.mubr.bf16.gmra.mxu0 %v4282
      %v4495 = vpop.f32.mrf.mxu0
      %v4496 = vadd.f32 0.0, %v4495
      %v4497 = vpop.f32.mrf.mxu0
      %v4498 = vpop.f32.mrf.mxu0
      %v4499 = vadd.f32 0.0, %v4498
      %v4500 = vpop.f32.mrf.mxu0
      %4501 = vmatprep.mubr.bf16.mxu0 0
      %4502 = vmatmul.mubr.bf16.gmra.mxu0 %v4283
      %v4503 = vpop.f32.mrf.mxu0
      %v4504 = vadd.f32 0.0, %v4503
      %v4505 = vpop.f32.mrf.mxu0
      %v4506 = vpop.f32.mrf.mxu0
      %v4507 = vadd.f32 0.0, %v4506
      %v4508 = vpop.f32.mrf.mxu0
      %4509 = vdwg.mxu0
      %v4526 = vunpack.c.l.b16 %v4220
      %v4527 = vunpack.c.l.b16 %v4221
      %v4528 = vunpack.c.l.b16 %v4222
      %v4529 = vunpack.c.l.b16 %v4223
      %v4530 = vunpack.c.l.b16 %v4224
      %v4531 = vunpack.c.l.b16 %v4225
      %v4532 = vunpack.c.l.b16 %v4226
      %v4533 = vunpack.c.l.b16 %v4227
      %v4534 = vunpack.c.l.b16 %v4228
      %v4535 = vunpack.c.l.b16 %v4229
      %v4536 = vunpack.c.l.b16 %v4230
      %v4537 = vunpack.c.l.b16 %v4231
      %v4538 = vunpack.c.l.b16 %v4232
      %v4539 = vunpack.c.l.b16 %v4233
      %v4540 = vunpack.c.l.b16 %v4234
      %v4541 = vunpack.c.l.b16 %v4235
      %v4542 = vpack.c.b16 %v4527, %v4526
      %v4543 = vpack.c.b16 %v4529, %v4528
      %v4544 = vpack.c.b16 %v4531, %v4530
      %v4545 = vpack.c.b16 %v4533, %v4532
      %v4546 = vpack.c.b16 %v4535, %v4534
      %v4547 = vpack.c.b16 %v4537, %v4536
      %v4548 = vpack.c.b16 %v4539, %v4538
      %v4549 = vpack.c.b16 %v4541, %v4540
      %4558 = vmatprep.subr.bf16.mxu0 0
      %4559 = vmatpush1.bf16.msra.mxu0 %v4549
      %4560 = vmatprep.subr.bf16.mxu0 0
      %4561 = vmatpush1.bf16.msra.mxu0 %v4548
      %4562 = vmatprep.subr.bf16.mxu0 0
      %4563 = vmatpush1.bf16.msra.mxu0 %v4547
      %4564 = vmatprep.subr.bf16.mxu0 0
      %4565 = vmatpush1.bf16.msra.mxu0 %v4546
      %4566 = vmatprep.subr.bf16.mxu0 0
      %4567 = vmatpush1.bf16.msra.mxu0 %v4545
      %4568 = vmatprep.subr.bf16.mxu0 0
      %4569 = vmatpush1.bf16.msra.mxu0 %v4544
      %4570 = vmatprep.subr.bf16.mxu0 0
      %4571 = vmatpush1.bf16.msra.mxu0 %v4543
      %4572 = vmatprep.subr.bf16.mxu0 0
      %4573 = vmatpush1.bf16.msra.mxu0 %v4542
      %4574 = vmatprep.subr.bf16.mxu0 0
      %4575 = vmatpush2.bf16.msra.mxu0 0
      %4576 = vmatprep.subr.bf16.mxu0 0
      %4577 = vmatpush2.bf16.msra.mxu0 0
      %4578 = vmatprep.subr.bf16.mxu0 0
      %4579 = vmatpush2.bf16.msra.mxu0 0
      %4580 = vmatprep.subr.bf16.mxu0 0
      %4581 = vmatpush2.bf16.msra.mxu0 0
      %4582 = vmatprep.subr.bf16.mxu0 0
      %4583 = vmatpush2.bf16.msra.mxu0 0
      %4584 = vmatprep.subr.bf16.mxu0 0
      %4585 = vmatpush2.bf16.msra.mxu0 0
      %4586 = vmatprep.subr.bf16.mxu0 0
      %4587 = vmatpush2.bf16.msra.mxu0 0
      %4588 = vmatprep.subr.bf16.mxu0 0
      %4589 = vmatpush2.bf16.msra.mxu0 0
      %4590 = vmatprep.mubr.bf16.mxu0 0
      %4591 = vmatmul.mubr.bf16.gmra.mxu0 %v4204
      %v4592 = vpop.f32.mrf.mxu0
      %v4593 = vadd.f32 %v4384, %v4592
      %v4594 = vpop.f32.mrf.mxu0
      %v4595 = vpop.f32.mrf.mxu0
      %v4596 = vadd.f32 %v4387, %v4595
      %v4597 = vpop.f32.mrf.mxu0
      %4598 = vmatprep.mubr.bf16.mxu0 0
      %4599 = vmatmul.mubr.bf16.gmra.mxu0 %v4205
      %v4600 = vpop.f32.mrf.mxu0
      %v4601 = vadd.f32 %v4392, %v4600
      %v4602 = vpop.f32.mrf.mxu0
      %v4603 = vpop.f32.mrf.mxu0
      %v4604 = vadd.f32 %v4395, %v4603
      %v4605 = vpop.f32.mrf.mxu0
      %4606 = vmatprep.mubr.bf16.mxu0 0
      %4607 = vmatmul.mubr.bf16.gmra.mxu0 %v4206
      %v4608 = vpop.f32.mrf.mxu0
      %v4609 = vadd.f32 %v4400, %v4608
      %v4610 = vpop.f32.mrf.mxu0
      %v4611 = vpop.f32.mrf.mxu0
      %v4612 = vadd.f32 %v4403, %v4611
      %v4613 = vpop.f32.mrf.mxu0
      %4614 = vmatprep.mubr.bf16.mxu0 0
      %4615 = vmatmul.mubr.bf16.gmra.mxu0 %v4207
      %v4616 = vpop.f32.mrf.mxu0
      %v4617 = vadd.f32 %v4408, %v4616
      %v4618 = vpop.f32.mrf.mxu0
      %v4619 = vpop.f32.mrf.mxu0
      %v4620 = vadd.f32 %v4411, %v4619
      %v4621 = vpop.f32.mrf.mxu0
      %4622 = vmatprep.mubr.bf16.mxu0 0
      %4623 = vmatmul.mubr.bf16.gmra.mxu0 %v4208
      %v4624 = vpop.f32.mrf.mxu0
      %v4625 = vadd.f32 %v4416, %v4624
      %v4626 = vpop.f32.mrf.mxu0
      %v4627 = vpop.f32.mrf.mxu0
      %v4628 = vadd.f32 %v4419, %v4627
      %v4629 = vpop.f32.mrf.mxu0
      %4630 = vmatprep.mubr.bf16.mxu0 0
      %4631 = vmatmul.mubr.bf16.gmra.mxu0 %v4209
      %v4632 = vpop.f32.mrf.mxu0
      %v4633 = vadd.f32 %v4424, %v4632
      %v4634 = vpop.f32.mrf.mxu0
      %v4635 = vpop.f32.mrf.mxu0
      %v4636 = vadd.f32 %v4427, %v4635
      %v4637 = vpop.f32.mrf.mxu0
      %4638 = vmatprep.mubr.bf16.mxu0 0
      %4639 = vmatmul.mubr.bf16.gmra.mxu0 %v4210
      %v4640 = vpop.f32.mrf.mxu0
      %v4641 = vadd.f32 %v4432, %v4640
      %v4642 = vpop.f32.mrf.mxu0
      %v4643 = vpop.f32.mrf.mxu0
      %v4644 = vadd.f32 %v4435, %v4643
      %v4645 = vpop.f32.mrf.mxu0
      %4646 = vmatprep.mubr.bf16.mxu0 0
      %4647 = vmatmul.mubr.bf16.gmra.mxu0 %v4211
      %v4648 = vpop.f32.mrf.mxu0
      %v4649 = vadd.f32 %v4440, %v4648
      %v4650 = vpop.f32.mrf.mxu0
      %v4651 = vpop.f32.mrf.mxu0
      %v4652 = vadd.f32 %v4443, %v4651
      %v4653 = vpop.f32.mrf.mxu0
      %4654 = vmatprep.mubr.bf16.mxu0 0
      %4655 = vmatmul.mubr.bf16.gmra.mxu0 %v4212
      %v4656 = vpop.f32.mrf.mxu0
      %v4657 = vadd.f32 %v4448, %v4656
      %v4658 = vpop.f32.mrf.mxu0
      %v4659 = vpop.f32.mrf.mxu0
      %v4660 = vadd.f32 %v4451, %v4659
      %v4661 = vpop.f32.mrf.mxu0
      %4662 = vmatprep.mubr.bf16.mxu0 0
      %4663 = vmatmul.mubr.bf16.gmra.mxu0 %v4213
      %v4664 = vpop.f32.mrf.mxu0
      %v4665 = vadd.f32 %v4456, %v4664
      %v4666 = vpop.f32.mrf.mxu0
      %v4667 = vpop.f32.mrf.mxu0
      %v4668 = vadd.f32 %v4459, %v4667
      %v4669 = vpop.f32.mrf.mxu0
      %4670 = vmatprep.mubr.bf16.mxu0 0
      %4671 = vmatmul.mubr.bf16.gmra.mxu0 %v4214
      %v4672 = vpop.f32.mrf.mxu0
      %v4673 = vadd.f32 %v4464, %v4672
      %v4674 = vpop.f32.mrf.mxu0
      %v4675 = vpop.f32.mrf.mxu0
      %v4676 = vadd.f32 %v4467, %v4675
      %v4677 = vpop.f32.mrf.mxu0
      %4678 = vmatprep.mubr.bf16.mxu0 0
      %4679 = vmatmul.mubr.bf16.gmra.mxu0 %v4215
      %v4680 = vpop.f32.mrf.mxu0
      %v4681 = vadd.f32 %v4472, %v4680
      %v4682 = vpop.f32.mrf.mxu0
      %v4683 = vpop.f32.mrf.mxu0
      %v4684 = vadd.f32 %v4475, %v4683
      %v4685 = vpop.f32.mrf.mxu0
      %4686 = vmatprep.mubr.bf16.mxu0 0
      %4687 = vmatmul.mubr.bf16.gmra.mxu0 %v4216
      %v4688 = vpop.f32.mrf.mxu0
      %v4689 = vadd.f32 %v4480, %v4688
      %v4690 = vpop.f32.mrf.mxu0
      %v4691 = vpop.f32.mrf.mxu0
      %v4692 = vadd.f32 %v4483, %v4691
      %v4693 = vpop.f32.mrf.mxu0
      %4694 = vmatprep.mubr.bf16.mxu0 0
      %4695 = vmatmul.mubr.bf16.gmra.mxu0 %v4217
      %v4696 = vpop.f32.mrf.mxu0
      %v4697 = vadd.f32 %v4488, %v4696
      %v4698 = vpop.f32.mrf.mxu0
      %v4699 = vpop.f32.mrf.mxu0
      %v4700 = vadd.f32 %v4491, %v4699
      %v4701 = vpop.f32.mrf.mxu0
      %4702 = vmatprep.mubr.bf16.mxu0 0
      %4703 = vmatmul.mubr.bf16.gmra.mxu0 %v4218
      %v4704 = vpop.f32.mrf.mxu0
      %v4705 = vadd.f32 %v4496, %v4704
      %v4706 = vpop.f32.mrf.mxu0
      %v4707 = vpop.f32.mrf.mxu0
      %v4708 = vadd.f32 %v4499, %v4707
      %v4709 = vpop.f32.mrf.mxu0
      %4710 = vmatprep.mubr.bf16.mxu0 0
      %4711 = vmatmul.mubr.bf16.gmra.mxu0 %v4219
      %v4712 = vpop.f32.mrf.mxu0
      %v4713 = vadd.f32 %v4504, %v4712
      %v4714 = vpop.f32.mrf.mxu0
      %v4715 = vpop.f32.mrf.mxu0
      %v4716 = vadd.f32 %v4507, %v4715
      %v4717 = vpop.f32.mrf.mxu0
      %4718 = vdwg.mxu0
      %v4719 = vld [vmem:[#allocation3 + $0x9] sm:$0xff]
      %v4720 = vld [vmem:[#allocation3 + $0x11] sm:$0xff]
      %v4721 = vld [vmem:[#allocation3 + $0x19] sm:$0xff]
      %v4722 = vld [vmem:[#allocation3 + $0x21] sm:$0xff]
      %v4723 = vld [vmem:[#allocation3 + $0x29] sm:$0xff]
      %v4724 = vld [vmem:[#allocation3 + $0x31] sm:$0xff]
      %v4725 = vld [vmem:[#allocation3 + $0x39] sm:$0xff]
      %v4726 = vld [vmem:[#allocation3 + $0x41] sm:$0xff]
      %v4727 = vld [vmem:[#allocation3 + $0x49] sm:$0xff]
      %v4728 = vld [vmem:[#allocation3 + $0x51] sm:$0xff]
      %v4729 = vld [vmem:[#allocation3 + $0x59] sm:$0xff]
      %v4730 = vld [vmem:[#allocation3 + $0x61] sm:$0xff]
      %v4731 = vld [vmem:[#allocation3 + $0x69] sm:$0xff]
      %v4732 = vld [vmem:[#allocation3 + $0x71] sm:$0xff]
      %v4733 = vld [vmem:[#allocation3 + $0x79] sm:$0xff]
      %v4734 = vld [vmem:[#allocation3 + $0x81] sm:$0xff]
      %v4735 = vld [vmem:[#allocation3 + $0x89] sm:$0xff]
      %v4736 = vld [vmem:[#allocation3 + $0x91] sm:$0xff]
      %v4737 = vld [vmem:[#allocation3 + $0x99] sm:$0xff]
      %v4738 = vld [vmem:[#allocation3 + $0xa1] sm:$0xff]
      %v4739 = vld [vmem:[#allocation3 + $0xa9] sm:$0xff]
      %v4740 = vld [vmem:[#allocation3 + $0xb1] sm:$0xff]
      %v4741 = vld [vmem:[#allocation3 + $0xb9] sm:$0xff]
      %v4742 = vld [vmem:[#allocation3 + $0xc1] sm:$0xff]
      %v4743 = vld [vmem:[#allocation3 + $0xc9] sm:$0xff]
      %v4744 = vld [vmem:[#allocation3 + $0xd1] sm:$0xff]
      %v4745 = vld [vmem:[#allocation3 + $0xd9] sm:$0xff]
      %v4746 = vld [vmem:[#allocation3 + $0xe1] sm:$0xff]
      %v4747 = vld [vmem:[#allocation3 + $0xe9] sm:$0xff]
      %v4748 = vld [vmem:[#allocation3 + $0xf1] sm:$0xff]
      %v4749 = vld [vmem:[#allocation3 + $0xf9] sm:$0xff]
      %v4750 = vld [vmem:[#allocation3 + $0x101] sm:$0xff]
      %v4751 = vld [vmem:[%s8] sm:$0xff]
      %v4752 = vld [vmem:[%s8 + $0x8] sm:$0xff]
      %v4753 = vld [vmem:[%s8 + $0x10] sm:$0xff]
      %v4754 = vld [vmem:[%s8 + $0x18] sm:$0xff]
      %v4755 = vld [vmem:[%s8 + $0x20] sm:$0xff]
      %v4756 = vld [vmem:[%s8 + $0x28] sm:$0xff]
      %v4757 = vld [vmem:[%s8 + $0x30] sm:$0xff]
      %v4758 = vld [vmem:[%s8 + $0x38] sm:$0xff]
      %v4759 = vld [vmem:[%s8 + $0x40] sm:$0xff]
      %v4760 = vld [vmem:[%s8 + $0x48] sm:$0xff]
      %v4761 = vld [vmem:[%s8 + $0x50] sm:$0xff]
      %v4762 = vld [vmem:[%s8 + $0x58] sm:$0xff]
      %v4763 = vld [vmem:[%s8 + $0x60] sm:$0xff]
      %v4764 = vld [vmem:[%s8 + $0x68] sm:$0xff]
      %v4765 = vld [vmem:[%s8 + $0x70] sm:$0xff]
      %v4766 = vld [vmem:[%s8 + $0x78] sm:$0xff]
      %v4767 = vld [vmem:[%s8 + $0x80] sm:$0xff]
      %v4768 = vld [vmem:[%s8 + $0x88] sm:$0xff]
      %v4769 = vld [vmem:[%s8 + $0x90] sm:$0xff]
      %v4770 = vld [vmem:[%s8 + $0x98] sm:$0xff]
      %v4771 = vld [vmem:[%s8 + $0xa0] sm:$0xff]
      %v4772 = vld [vmem:[%s8 + $0xa8] sm:$0xff]
      %v4773 = vld [vmem:[%s8 + $0xb0] sm:$0xff]
      %v4774 = vld [vmem:[%s8 + $0xb8] sm:$0xff]
      %v4775 = vld [vmem:[%s8 + $0xc0] sm:$0xff]
      %v4776 = vld [vmem:[%s8 + $0xc8] sm:$0xff]
      %v4777 = vld [vmem:[%s8 + $0xd0] sm:$0xff]
      %v4778 = vld [vmem:[%s8 + $0xd8] sm:$0xff]
      %v4779 = vld [vmem:[%s8 + $0xe0] sm:$0xff]
      %v4780 = vld [vmem:[%s8 + $0xe8] sm:$0xff]
      %v4781 = vld [vmem:[%s8 + $0xf0] sm:$0xff]
      %v4782 = vld [vmem:[%s8 + $0xf8] sm:$0xff]
      %4784 = vset.pattern.permute.xlu0 0
      %4785 = vperm.xlu0 %4784, %v4751
      %v4786 = vpop.permute.xlu0 %4785
      %4789 = vset.pattern.permute.xlu0 0
      %4790 = vperm.xlu0 %4789, %v4752
      %v4791 = vpop.permute.xlu0 %4790
      %4794 = vset.pattern.permute.xlu0 0
      %4795 = vperm.xlu0 %4794, %v4753
      %v4796 = vpop.permute.xlu0 %4795
      %4799 = vset.pattern.permute.xlu0 0
      %4800 = vperm.xlu0 %4799, %v4754
      %v4801 = vpop.permute.xlu0 %4800
      %4804 = vset.pattern.permute.xlu0 0
      %4805 = vperm.xlu0 %4804, %v4755
      %v4806 = vpop.permute.xlu0 %4805
      %4809 = vset.pattern.permute.xlu0 0
      %4810 = vperm.xlu0 %4809, %v4756
      %v4811 = vpop.permute.xlu0 %4810
      %4814 = vset.pattern.permute.xlu0 0
      %4815 = vperm.xlu0 %4814, %v4757
      %v4816 = vpop.permute.xlu0 %4815
      %4819 = vset.pattern.permute.xlu0 0
      %4820 = vperm.xlu0 %4819, %v4758
      %v4821 = vpop.permute.xlu0 %4820
      %4824 = vset.pattern.permute.xlu0 0
      %4825 = vperm.xlu0 %4824, %v4759
      %v4826 = vpop.permute.xlu0 %4825
      %4829 = vset.pattern.permute.xlu0 0
      %4830 = vperm.xlu0 %4829, %v4760
      %v4831 = vpop.permute.xlu0 %4830
      %4834 = vset.pattern.permute.xlu0 0
      %4835 = vperm.xlu0 %4834, %v4761
      %v4836 = vpop.permute.xlu0 %4835
      %4839 = vset.pattern.permute.xlu0 0
      %4840 = vperm.xlu0 %4839, %v4762
      %v4841 = vpop.permute.xlu0 %4840
      %4844 = vset.pattern.permute.xlu0 0
      %4845 = vperm.xlu0 %4844, %v4763
      %v4846 = vpop.permute.xlu0 %4845
      %4849 = vset.pattern.permute.xlu0 0
      %4850 = vperm.xlu0 %4849, %v4764
      %v4851 = vpop.permute.xlu0 %4850
      %4854 = vset.pattern.permute.xlu0 0
      %4855 = vperm.xlu0 %4854, %v4765
      %v4856 = vpop.permute.xlu0 %4855
      %4859 = vset.pattern.permute.xlu0 0
      %4860 = vperm.xlu0 %4859, %v4766
      %v4861 = vpop.permute.xlu0 %4860
      %4864 = vset.pattern.permute.xlu0 0
      %4865 = vperm.xlu0 %4864, %v4767
      %v4866 = vpop.permute.xlu0 %4865
      %4869 = vset.pattern.permute.xlu0 0
      %4870 = vperm.xlu0 %4869, %v4768
      %v4871 = vpop.permute.xlu0 %4870
      %4874 = vset.pattern.permute.xlu0 0
      %4875 = vperm.xlu0 %4874, %v4769
      %v4876 = vpop.permute.xlu0 %4875
      %4879 = vset.pattern.permute.xlu0 0
      %4880 = vperm.xlu0 %4879, %v4770
      %v4881 = vpop.permute.xlu0 %4880
      %4884 = vset.pattern.permute.xlu0 0
      %4885 = vperm.xlu0 %4884, %v4771
      %v4886 = vpop.permute.xlu0 %4885
      %4889 = vset.pattern.permute.xlu0 0
      %4890 = vperm.xlu0 %4889, %v4772
      %v4891 = vpop.permute.xlu0 %4890
      %4894 = vset.pattern.permute.xlu0 0
      %4895 = vperm.xlu0 %4894, %v4773
      %v4896 = vpop.permute.xlu0 %4895
      %4899 = vset.pattern.permute.xlu0 0
      %4900 = vperm.xlu0 %4899, %v4774
      %v4901 = vpop.permute.xlu0 %4900
      %4904 = vset.pattern.permute.xlu0 0
      %4905 = vperm.xlu0 %4904, %v4775
      %v4906 = vpop.permute.xlu0 %4905
      %4909 = vset.pattern.permute.xlu0 0
      %4910 = vperm.xlu0 %4909, %v4776
      %v4911 = vpop.permute.xlu0 %4910
      %4914 = vset.pattern.permute.xlu0 0
      %4915 = vperm.xlu0 %4914, %v4777
      %v4916 = vpop.permute.xlu0 %4915
      %4919 = vset.pattern.permute.xlu0 0
      %4920 = vperm.xlu0 %4919, %v4778
      %v4921 = vpop.permute.xlu0 %4920
      %4924 = vset.pattern.permute.xlu0 0
      %4925 = vperm.xlu0 %4924, %v4779
      %v4926 = vpop.permute.xlu0 %4925
      %4929 = vset.pattern.permute.xlu0 0
      %4930 = vperm.xlu0 %4929, %v4780
      %v4931 = vpop.permute.xlu0 %4930
      %4934 = vset.pattern.permute.xlu0 0
      %4935 = vperm.xlu0 %4934, %v4781
      %v4936 = vpop.permute.xlu0 %4935
      %4939 = vset.pattern.permute.xlu0 0
      %4940 = vperm.xlu0 %4939, %v4782
      %v4941 = vpop.permute.xlu0 %4940
      %v4943 = vmul.f32 %v4719, %v4786
      %v4944 = vmul.f32 %v4720, %v4791
      %v4945 = vmul.f32 %v4721, %v4796
      %v4946 = vmul.f32 %v4722, %v4801
      %v4947 = vmul.f32 %v4723, %v4806
      %v4948 = vmul.f32 %v4724, %v4811
      %v4949 = vmul.f32 %v4725, %v4816
      %v4950 = vmul.f32 %v4726, %v4821
      %v4951 = vmul.f32 %v4727, %v4826
      %v4952 = vmul.f32 %v4728, %v4831
      %v4953 = vmul.f32 %v4729, %v4836
      %v4954 = vmul.f32 %v4730, %v4841
      %v4955 = vmul.f32 %v4731, %v4846
      %v4956 = vmul.f32 %v4732, %v4851
      %v4957 = vmul.f32 %v4733, %v4856
      %v4958 = vmul.f32 %v4734, %v4861
      %v4959 = vmul.f32 %v4735, %v4866
      %v4960 = vmul.f32 %v4736, %v4871
      %v4961 = vmul.f32 %v4737, %v4876
      %v4962 = vmul.f32 %v4738, %v4881
      %v4963 = vmul.f32 %v4739, %v4886
      %v4964 = vmul.f32 %v4740, %v4891
      %v4965 = vmul.f32 %v4741, %v4896
      %v4966 = vmul.f32 %v4742, %v4901
      %v4967 = vmul.f32 %v4743, %v4906
      %v4968 = vmul.f32 %v4744, %v4911
      %v4969 = vmul.f32 %v4745, %v4916
      %v4970 = vmul.f32 %v4746, %v4921
      %v4971 = vmul.f32 %v4747, %v4926
      %v4972 = vmul.f32 %v4748, %v4931
      %v4973 = vmul.f32 %v4749, %v4936
      %v4974 = vmul.f32 %v4750, %v4941
      %v4975 = vpack.c.bf16 %v4944, %v4943
      %v4976 = vpack.c.bf16 %v4946, %v4945
      %v4977 = vpack.c.bf16 %v4948, %v4947
      %v4978 = vpack.c.bf16 %v4950, %v4949
      %v4979 = vpack.c.bf16 %v4952, %v4951
      %v4980 = vpack.c.bf16 %v4954, %v4953
      %v4981 = vpack.c.bf16 %v4956, %v4955
      %v4982 = vpack.c.bf16 %v4958, %v4957
      %v4983 = vpack.c.bf16 %v4960, %v4959
      %v4984 = vpack.c.bf16 %v4962, %v4961
      %v4985 = vpack.c.bf16 %v4964, %v4963
      %v4986 = vpack.c.bf16 %v4966, %v4965
      %v4987 = vpack.c.bf16 %v4968, %v4967
      %v4988 = vpack.c.bf16 %v4970, %v4969
      %v4989 = vpack.c.bf16 %v4972, %v4971
      %v4990 = vpack.c.bf16 %v4974, %v4973
      %s4991 = scalar_lea.vmem %s4, 128
      %v4992 = vld [vmem:[%s4991] sm:$0xf]
      %v4993 = vld [vmem:[%s4991 + $0x4] sm:$0xf]
      %v4994 = vld [vmem:[%s4991 + $0x8] sm:$0xf]
      %v4995 = vld [vmem:[%s4991 + $0xc] sm:$0xf]
      %v4996 = vld [vmem:[%s4991 + $0x10] sm:$0xf]
      %v4997 = vld [vmem:[%s4991 + $0x14] sm:$0xf]
      %v4998 = vld [vmem:[%s4991 + $0x18] sm:$0xf]
      %v4999 = vld [vmem:[%s4991 + $0x1c] sm:$0xf]
      %v5000 = vld [vmem:[%s4991 + $0x20] sm:$0xf]
      %v5001 = vld [vmem:[%s4991 + $0x24] sm:$0xf]
      %v5002 = vld [vmem:[%s4991 + $0x28] sm:$0xf]
      %v5003 = vld [vmem:[%s4991 + $0x2c] sm:$0xf]
      %v5004 = vld [vmem:[%s4991 + $0x30] sm:$0xf]
      %v5005 = vld [vmem:[%s4991 + $0x34] sm:$0xf]
      %v5006 = vld [vmem:[%s4991 + $0x38] sm:$0xf]
      %v5007 = vld [vmem:[%s4991 + $0x3c] sm:$0xf]
      %v5024 = vunpack.c.l.b16 %v4992
      %v5025 = vunpack.c.l.b16 %v4993
      %v5026 = vunpack.c.l.b16 %v4994
      %v5027 = vunpack.c.l.b16 %v4995
      %v5028 = vunpack.c.l.b16 %v4996
      %v5029 = vunpack.c.l.b16 %v4997
      %v5030 = vunpack.c.l.b16 %v4998
      %v5031 = vunpack.c.l.b16 %v4999
      %v5032 = vunpack.c.l.b16 %v5000
      %v5033 = vunpack.c.l.b16 %v5001
      %v5034 = vunpack.c.l.b16 %v5002
      %v5035 = vunpack.c.l.b16 %v5003
      %v5036 = vunpack.c.l.b16 %v5004
      %v5037 = vunpack.c.l.b16 %v5005
      %v5038 = vunpack.c.l.b16 %v5006
      %v5039 = vunpack.c.l.b16 %v5007
      %v5040 = vpack.c.b16 %v5025, %v5024
      %v5041 = vpack.c.b16 %v5027, %v5026
      %v5042 = vpack.c.b16 %v5029, %v5028
      %v5043 = vpack.c.b16 %v5031, %v5030
      %v5044 = vpack.c.b16 %v5033, %v5032
      %v5045 = vpack.c.b16 %v5035, %v5034
      %v5046 = vpack.c.b16 %v5037, %v5036
      %v5047 = vpack.c.b16 %v5039, %v5038
      %5056 = vmatprep.subr.bf16.mxu0 0
      %5057 = vmatpush1.bf16.msra.mxu0 %v5047
      %5058 = vmatprep.subr.bf16.mxu0 0
      %5059 = vmatpush1.bf16.msra.mxu0 %v5046
      %5060 = vmatprep.subr.bf16.mxu0 0
      %5061 = vmatpush1.bf16.msra.mxu0 %v5045
      %5062 = vmatprep.subr.bf16.mxu0 0
      %5063 = vmatpush1.bf16.msra.mxu0 %v5044
      %5064 = vmatprep.subr.bf16.mxu0 0
      %5065 = vmatpush1.bf16.msra.mxu0 %v5043
      %5066 = vmatprep.subr.bf16.mxu0 0
      %5067 = vmatpush1.bf16.msra.mxu0 %v5042
      %5068 = vmatprep.subr.bf16.mxu0 0
      %5069 = vmatpush1.bf16.msra.mxu0 %v5041
      %5070 = vmatprep.subr.bf16.mxu0 0
      %5071 = vmatpush1.bf16.msra.mxu0 %v5040
      %5072 = vmatprep.subr.bf16.mxu0 0
      %5073 = vmatpush2.bf16.msra.mxu0 0
      %5074 = vmatprep.subr.bf16.mxu0 0
      %5075 = vmatpush2.bf16.msra.mxu0 0
      %5076 = vmatprep.subr.bf16.mxu0 0
      %5077 = vmatpush2.bf16.msra.mxu0 0
      %5078 = vmatprep.subr.bf16.mxu0 0
      %5079 = vmatpush2.bf16.msra.mxu0 0
      %5080 = vmatprep.subr.bf16.mxu0 0
      %5081 = vmatpush2.bf16.msra.mxu0 0
      %5082 = vmatprep.subr.bf16.mxu0 0
      %5083 = vmatpush2.bf16.msra.mxu0 0
      %5084 = vmatprep.subr.bf16.mxu0 0
      %5085 = vmatpush2.bf16.msra.mxu0 0
      %5086 = vmatprep.subr.bf16.mxu0 0
      %5087 = vmatpush2.bf16.msra.mxu0 0
      %5088 = vmatprep.mubr.bf16.mxu0 0
      %5089 = vmatmul.mubr.bf16.gmra.mxu0 %v4975
      %v5090 = vpop.f32.mrf.mxu0
      %v5091 = vadd.f32 0.0, %v5090
      %v5092 = vpop.f32.mrf.mxu0
      %v5093 = vpop.f32.mrf.mxu0
      %v5094 = vadd.f32 0.0, %v5093
      %v5095 = vpop.f32.mrf.mxu0
      %5096 = vmatprep.mubr.bf16.mxu0 0
      %5097 = vmatmul.mubr.bf16.gmra.mxu0 %v4976
      %v5098 = vpop.f32.mrf.mxu0
      %v5099 = vadd.f32 0.0, %v5098
      %v5100 = vpop.f32.mrf.mxu0
      %v5101 = vpop.f32.mrf.mxu0
      %v5102 = vadd.f32 0.0, %v5101
      %v5103 = vpop.f32.mrf.mxu0
      %5104 = vmatprep.mubr.bf16.mxu0 0
      %5105 = vmatmul.mubr.bf16.gmra.mxu0 %v4977
      %v5106 = vpop.f32.mrf.mxu0
      %v5107 = vadd.f32 0.0, %v5106
      %v5108 = vpop.f32.mrf.mxu0
      %v5109 = vpop.f32.mrf.mxu0
      %v5110 = vadd.f32 0.0, %v5109
      %v5111 = vpop.f32.mrf.mxu0
      %5112 = vmatprep.mubr.bf16.mxu0 0
      %5113 = vmatmul.mubr.bf16.gmra.mxu0 %v4978
      %v5114 = vpop.f32.mrf.mxu0
      %v5115 = vadd.f32 0.0, %v5114
      %v5116 = vpop.f32.mrf.mxu0
      %v5117 = vpop.f32.mrf.mxu0
      %v5118 = vadd.f32 0.0, %v5117
      %v5119 = vpop.f32.mrf.mxu0
      %5120 = vmatprep.mubr.bf16.mxu0 0
      %5121 = vmatmul.mubr.bf16.gmra.mxu0 %v4979
      %v5122 = vpop.f32.mrf.mxu0
      %v5123 = vadd.f32 0.0, %v5122
      %v5124 = vpop.f32.mrf.mxu0
      %v5125 = vpop.f32.mrf.mxu0
      %v5126 = vadd.f32 0.0, %v5125
      %v5127 = vpop.f32.mrf.mxu0
      %5128 = vmatprep.mubr.bf16.mxu0 0
      %5129 = vmatmul.mubr.bf16.gmra.mxu0 %v4980
      %v5130 = vpop.f32.mrf.mxu0
      %v5131 = vadd.f32 0.0, %v5130
      %v5132 = vpop.f32.mrf.mxu0
      %v5133 = vpop.f32.mrf.mxu0
      %v5134 = vadd.f32 0.0, %v5133
      %v5135 = vpop.f32.mrf.mxu0
      %5136 = vmatprep.mubr.bf16.mxu0 0
      %5137 = vmatmul.mubr.bf16.gmra.mxu0 %v4981
      %v5138 = vpop.f32.mrf.mxu0
      %v5139 = vadd.f32 0.0, %v5138
      %v5140 = vpop.f32.mrf.mxu0
      %v5141 = vpop.f32.mrf.mxu0
      %v5142 = vadd.f32 0.0, %v5141
      %v5143 = vpop.f32.mrf.mxu0
      %5144 = vmatprep.mubr.bf16.mxu0 0
      %5145 = vmatmul.mubr.bf16.gmra.mxu0 %v4982
      %v5146 = vpop.f32.mrf.mxu0
      %v5147 = vadd.f32 0.0, %v5146
      %v5148 = vpop.f32.mrf.mxu0
      %v5149 = vpop.f32.mrf.mxu0
      %v5150 = vadd.f32 0.0, %v5149
      %v5151 = vpop.f32.mrf.mxu0
      %5152 = vmatprep.mubr.bf16.mxu0 0
      %5153 = vmatmul.mubr.bf16.gmra.mxu0 %v4983
      %v5154 = vpop.f32.mrf.mxu0
      %v5155 = vadd.f32 0.0, %v5154
      %v5156 = vpop.f32.mrf.mxu0
      %v5157 = vpop.f32.mrf.mxu0
      %v5158 = vadd.f32 0.0, %v5157
      %v5159 = vpop.f32.mrf.mxu0
      %5160 = vmatprep.mubr.bf16.mxu0 0
      %5161 = vmatmul.mubr.bf16.gmra.mxu0 %v4984
      %v5162 = vpop.f32.mrf.mxu0
      %v5163 = vadd.f32 0.0, %v5162
      %v5164 = vpop.f32.mrf.mxu0
      %v5165 = vpop.f32.mrf.mxu0
      %v5166 = vadd.f32 0.0, %v5165
      %v5167 = vpop.f32.mrf.mxu0
      %5168 = vmatprep.mubr.bf16.mxu0 0
      %5169 = vmatmul.mubr.bf16.gmra.mxu0 %v4985
      %v5170 = vpop.f32.mrf.mxu0
      %v5171 = vadd.f32 0.0, %v5170
      %v5172 = vpop.f32.mrf.mxu0
      %v5173 = vpop.f32.mrf.mxu0
      %v5174 = vadd.f32 0.0, %v5173
      %v5175 = vpop.f32.mrf.mxu0
      %5176 = vmatprep.mubr.bf16.mxu0 0
      %5177 = vmatmul.mubr.bf16.gmra.mxu0 %v4986
      %v5178 = vpop.f32.mrf.mxu0
      %v5179 = vadd.f32 0.0, %v5178
      %v5180 = vpop.f32.mrf.mxu0
      %v5181 = vpop.f32.mrf.mxu0
      %v5182 = vadd.f32 0.0, %v5181
      %v5183 = vpop.f32.mrf.mxu0
      %5184 = vmatprep.mubr.bf16.mxu0 0
      %5185 = vmatmul.mubr.bf16.gmra.mxu0 %v4987
      %v5186 = vpop.f32.mrf.mxu0
      %v5187 = vadd.f32 0.0, %v5186
      %v5188 = vpop.f32.mrf.mxu0
      %v5189 = vpop.f32.mrf.mxu0
      %v5190 = vadd.f32 0.0, %v5189
      %v5191 = vpop.f32.mrf.mxu0
      %5192 = vmatprep.mubr.bf16.mxu0 0
      %5193 = vmatmul.mubr.bf16.gmra.mxu0 %v4988
      %v5194 = vpop.f32.mrf.mxu0
      %v5195 = vadd.f32 0.0, %v5194
      %v5196 = vpop.f32.mrf.mxu0
      %v5197 = vpop.f32.mrf.mxu0
      %v5198 = vadd.f32 0.0, %v5197
      %v5199 = vpop.f32.mrf.mxu0
      %5200 = vmatprep.mubr.bf16.mxu0 0
      %5201 = vmatmul.mubr.bf16.gmra.mxu0 %v4989
      %v5202 = vpop.f32.mrf.mxu0
      %v5203 = vadd.f32 0.0, %v5202
      %v5204 = vpop.f32.mrf.mxu0
      %v5205 = vpop.f32.mrf.mxu0
      %v5206 = vadd.f32 0.0, %v5205
      %v5207 = vpop.f32.mrf.mxu0
      %5208 = vmatprep.mubr.bf16.mxu0 0
      %5209 = vmatmul.mubr.bf16.gmra.mxu0 %v4990
      %v5210 = vpop.f32.mrf.mxu0
      %v5211 = vadd.f32 0.0, %v5210
      %v5212 = vpop.f32.mrf.mxu0
      %v5213 = vpop.f32.mrf.mxu0
      %v5214 = vadd.f32 0.0, %v5213
      %v5215 = vpop.f32.mrf.mxu0
      %5216 = vdwg.mxu0
      %v5217 = vadd.f32 %v4593, %v5091
      %v5218 = vadd.f32 %v4596, %v5094
      %v5219 = vadd.f32 %v4601, %v5099
      %v5220 = vadd.f32 %v4604, %v5102
      %v5221 = vadd.f32 %v4609, %v5107
      %v5222 = vadd.f32 %v4612, %v5110
      %v5223 = vadd.f32 %v4617, %v5115
      %v5224 = vadd.f32 %v4620, %v5118
      %v5225 = vadd.f32 %v4625, %v5123
      %v5226 = vadd.f32 %v4628, %v5126
      %v5227 = vadd.f32 %v4633, %v5131
      %v5228 = vadd.f32 %v4636, %v5134
      %v5229 = vadd.f32 %v4641, %v5139
      %v5230 = vadd.f32 %v4644, %v5142
      %v5231 = vadd.f32 %v4649, %v5147
      %v5232 = vadd.f32 %v4652, %v5150
      %v5233 = vadd.f32 %v4657, %v5155
      %v5234 = vadd.f32 %v4660, %v5158
      %v5235 = vadd.f32 %v4665, %v5163
      %v5236 = vadd.f32 %v4668, %v5166
      %v5237 = vadd.f32 %v4673, %v5171
      %v5238 = vadd.f32 %v4676, %v5174
      %v5239 = vadd.f32 %v4681, %v5179
      %v5240 = vadd.f32 %v4684, %v5182
      %v5241 = vadd.f32 %v4689, %v5187
      %v5242 = vadd.f32 %v4692, %v5190
      %v5243 = vadd.f32 %v4697, %v5195
      %v5244 = vadd.f32 %v4700, %v5198
      %v5245 = vadd.f32 %v4705, %v5203
      %v5246 = vadd.f32 %v4708, %v5206
      %v5247 = vadd.f32 %v4713, %v5211
      %v5248 = vadd.f32 %v4716, %v5214
      %v5249 = vld [vmem:[#allocation3 + $0x17] sm:$0xff]
      %v5250 = vld [vmem:[#allocation3 + $0x1f] sm:$0xff]
      %v5251 = vld [vmem:[#allocation3 + $0x27] sm:$0xff]
      %v5252 = vld [vmem:[#allocation3 + $0x2f] sm:$0xff]
      %v5253 = vld [vmem:[#allocation3 + $0x37] sm:$0xff]
      %v5254 = vld [vmem:[#allocation3 + $0x3f] sm:$0xff]
      %v5255 = vld [vmem:[#allocation3 + $0x47] sm:$0xff]
      %v5256 = vld [vmem:[#allocation3 + $0x4f] sm:$0xff]
      %v5257 = vld [vmem:[#allocation3 + $0x57] sm:$0xff]
      %v5258 = vld [vmem:[#allocation3 + $0x5f] sm:$0xff]
      %v5259 = vld [vmem:[#allocation3 + $0x67] sm:$0xff]
      %v5260 = vld [vmem:[#allocation3 + $0x6f] sm:$0xff]
      %v5261 = vld [vmem:[#allocation3 + $0x77] sm:$0xff]
      %v5262 = vld [vmem:[#allocation3 + $0x7f] sm:$0xff]
      %v5263 = vld [vmem:[#allocation3 + $0x87] sm:$0xff]
      %v5264 = vld [vmem:[#allocation3 + $0x8f] sm:$0xff]
      %v5265 = vld [vmem:[#allocation3 + $0x97] sm:$0xff]
      %v5266 = vld [vmem:[#allocation3 + $0x9f] sm:$0xff]
      %v5267 = vld [vmem:[#allocation3 + $0xa7] sm:$0xff]
      %v5268 = vld [vmem:[#allocation3 + $0xaf] sm:$0xff]
      %v5269 = vld [vmem:[#allocation3 + $0xb7] sm:$0xff]
      %v5270 = vld [vmem:[#allocation3 + $0xbf] sm:$0xff]
      %v5271 = vld [vmem:[#allocation3 + $0xc7] sm:$0xff]
      %v5272 = vld [vmem:[#allocation3 + $0xcf] sm:$0xff]
      %v5273 = vld [vmem:[#allocation3 + $0xd7] sm:$0xff]
      %v5274 = vld [vmem:[#allocation3 + $0xdf] sm:$0xff]
      %v5275 = vld [vmem:[#allocation3 + $0xe7] sm:$0xff]
      %v5276 = vld [vmem:[#allocation3 + $0xef] sm:$0xff]
      %v5277 = vld [vmem:[#allocation3 + $0xf7] sm:$0xff]
      %v5278 = vld [vmem:[#allocation3 + $0xff] sm:$0xff]
      %v5279 = vld [vmem:[#allocation3 + $0x107] sm:$0xff]
      %v5280 = vld [vmem:[#allocation3 + $0x10f] sm:$0xff]
      %v5281 = vmul.f32 %v5249, %v4015
      %v5282 = vmul.f32 %v5250, %v4020
      %v5283 = vmul.f32 %v5251, %v4025
      %v5284 = vmul.f32 %v5252, %v4030
      %v5285 = vmul.f32 %v5253, %v4035
      %v5286 = vmul.f32 %v5254, %v4040
      %v5287 = vmul.f32 %v5255, %v4045
      %v5288 = vmul.f32 %v5256, %v4050
      %v5289 = vmul.f32 %v5257, %v4055
      %v5290 = vmul.f32 %v5258, %v4060
      %v5291 = vmul.f32 %v5259, %v4065
      %v5292 = vmul.f32 %v5260, %v4070
      %v5293 = vmul.f32 %v5261, %v4075
      %v5294 = vmul.f32 %v5262, %v4080
      %v5295 = vmul.f32 %v5263, %v4085
      %v5296 = vmul.f32 %v5264, %v4090
      %v5297 = vmul.f32 %v5265, %v4095
      %v5298 = vmul.f32 %v5266, %v4100
      %v5299 = vmul.f32 %v5267, %v4105
      %v5300 = vmul.f32 %v5268, %v4110
      %v5301 = vmul.f32 %v5269, %v4115
      %v5302 = vmul.f32 %v5270, %v4120
      %v5303 = vmul.f32 %v5271, %v4125
      %v5304 = vmul.f32 %v5272, %v4130
      %v5305 = vmul.f32 %v5273, %v4135
      %v5306 = vmul.f32 %v5274, %v4140
      %v5307 = vmul.f32 %v5275, %v4145
      %v5308 = vmul.f32 %v5276, %v4150
      %v5309 = vmul.f32 %v5277, %v4155
      %v5310 = vmul.f32 %v5278, %v4160
      %v5311 = vmul.f32 %v5279, %v4165
      %v5312 = vmul.f32 %v5280, %v4170
      %v5313 = vpack.c.bf16 %v5282, %v5281
      %v5314 = vpack.c.bf16 %v5284, %v5283
      %v5315 = vpack.c.bf16 %v5286, %v5285
      %v5316 = vpack.c.bf16 %v5288, %v5287
      %v5317 = vpack.c.bf16 %v5290, %v5289
      %v5318 = vpack.c.bf16 %v5292, %v5291
      %v5319 = vpack.c.bf16 %v5294, %v5293
      %v5320 = vpack.c.bf16 %v5296, %v5295
      %v5321 = vpack.c.bf16 %v5298, %v5297
      %v5322 = vpack.c.bf16 %v5300, %v5299
      %v5323 = vpack.c.bf16 %v5302, %v5301
      %v5324 = vpack.c.bf16 %v5304, %v5303
      %v5325 = vpack.c.bf16 %v5306, %v5305
      %v5326 = vpack.c.bf16 %v5308, %v5307
      %v5327 = vpack.c.bf16 %v5310, %v5309
      %v5328 = vpack.c.bf16 %v5312, %v5311
      %s5329 = scalar_lea.vmem %s4, 192
      %v5330 = vld [vmem:[%s5329] sm:$0xf]
      %v5331 = vld [vmem:[%s5329 + $0x4] sm:$0xf]
      %v5332 = vld [vmem:[%s5329 + $0x8] sm:$0xf]
      %v5333 = vld [vmem:[%s5329 + $0xc] sm:$0xf]
      %v5334 = vld [vmem:[%s5329 + $0x10] sm:$0xf]
      %v5335 = vld [vmem:[%s5329 + $0x14] sm:$0xf]
      %v5336 = vld [vmem:[%s5329 + $0x18] sm:$0xf]
      %v5337 = vld [vmem:[%s5329 + $0x1c] sm:$0xf]
      %v5338 = vld [vmem:[%s5329 + $0x20] sm:$0xf]
      %v5339 = vld [vmem:[%s5329 + $0x24] sm:$0xf]
      %v5340 = vld [vmem:[%s5329 + $0x28] sm:$0xf]
      %v5341 = vld [vmem:[%s5329 + $0x2c] sm:$0xf]
      %v5342 = vld [vmem:[%s5329 + $0x30] sm:$0xf]
      %v5343 = vld [vmem:[%s5329 + $0x34] sm:$0xf]
      %v5344 = vld [vmem:[%s5329 + $0x38] sm:$0xf]
      %v5345 = vld [vmem:[%s5329 + $0x3c] sm:$0xf]
      %v5362 = vunpack.c.l.b16 %v5330
      %v5363 = vunpack.c.l.b16 %v5331
      %v5364 = vunpack.c.l.b16 %v5332
      %v5365 = vunpack.c.l.b16 %v5333
      %v5366 = vunpack.c.l.b16 %v5334
      %v5367 = vunpack.c.l.b16 %v5335
      %v5368 = vunpack.c.l.b16 %v5336
      %v5369 = vunpack.c.l.b16 %v5337
      %v5370 = vunpack.c.l.b16 %v5338
      %v5371 = vunpack.c.l.b16 %v5339
      %v5372 = vunpack.c.l.b16 %v5340
      %v5373 = vunpack.c.l.b16 %v5341
      %v5374 = vunpack.c.l.b16 %v5342
      %v5375 = vunpack.c.l.b16 %v5343
      %v5376 = vunpack.c.l.b16 %v5344
      %v5377 = vunpack.c.l.b16 %v5345
      %v5378 = vpack.c.b16 %v5363, %v5362
      %v5379 = vpack.c.b16 %v5365, %v5364
      %v5380 = vpack.c.b16 %v5367, %v5366
      %v5381 = vpack.c.b16 %v5369, %v5368
      %v5382 = vpack.c.b16 %v5371, %v5370
      %v5383 = vpack.c.b16 %v5373, %v5372
      %v5384 = vpack.c.b16 %v5375, %v5374
      %v5385 = vpack.c.b16 %v5377, %v5376
      %5394 = vmatprep.subr.bf16.mxu0 0
      %5395 = vmatpush1.bf16.msra.mxu0 %v5385
      %5396 = vmatprep.subr.bf16.mxu0 0
      %5397 = vmatpush1.bf16.msra.mxu0 %v5384
      %5398 = vmatprep.subr.bf16.mxu0 0
      %5399 = vmatpush1.bf16.msra.mxu0 %v5383
      %5400 = vmatprep.subr.bf16.mxu0 0
      %5401 = vmatpush1.bf16.msra.mxu0 %v5382
      %5402 = vmatprep.subr.bf16.mxu0 0
      %5403 = vmatpush1.bf16.msra.mxu0 %v5381
      %5404 = vmatprep.subr.bf16.mxu0 0
      %5405 = vmatpush1.bf16.msra.mxu0 %v5380
      %5406 = vmatprep.subr.bf16.mxu0 0
      %5407 = vmatpush1.bf16.msra.mxu0 %v5379
      %5408 = vmatprep.subr.bf16.mxu0 0
      %5409 = vmatpush1.bf16.msra.mxu0 %v5378
      %5410 = vmatprep.subr.bf16.mxu0 0
      %5411 = vmatpush2.bf16.msra.mxu0 0
      %5412 = vmatprep.subr.bf16.mxu0 0
      %5413 = vmatpush2.bf16.msra.mxu0 0
      %5414 = vmatprep.subr.bf16.mxu0 0
      %5415 = vmatpush2.bf16.msra.mxu0 0
      %5416 = vmatprep.subr.bf16.mxu0 0
      %5417 = vmatpush2.bf16.msra.mxu0 0
      %5418 = vmatprep.subr.bf16.mxu0 0
      %5419 = vmatpush2.bf16.msra.mxu0 0
      %5420 = vmatprep.subr.bf16.mxu0 0
      %5421 = vmatpush2.bf16.msra.mxu0 0
      %5422 = vmatprep.subr.bf16.mxu0 0
      %5423 = vmatpush2.bf16.msra.mxu0 0
      %5424 = vmatprep.subr.bf16.mxu0 0
      %5425 = vmatpush2.bf16.msra.mxu0 0
      %5426 = vmatprep.mubr.bf16.mxu0 0
      %5427 = vmatmul.mubr.bf16.gmra.mxu0 %v5313
      %v5428 = vpop.f32.mrf.mxu0
      %v5429 = vadd.f32 0.0, %v5428
      %v5430 = vpop.f32.mrf.mxu0
      %v5431 = vpop.f32.mrf.mxu0
      %v5432 = vadd.f32 0.0, %v5431
      %v5433 = vpop.f32.mrf.mxu0
      %5434 = vmatprep.mubr.bf16.mxu0 0
      %5435 = vmatmul.mubr.bf16.gmra.mxu0 %v5314
      %v5436 = vpop.f32.mrf.mxu0
      %v5437 = vadd.f32 0.0, %v5436
      %v5438 = vpop.f32.mrf.mxu0
      %v5439 = vpop.f32.mrf.mxu0
      %v5440 = vadd.f32 0.0, %v5439
      %v5441 = vpop.f32.mrf.mxu0
      %5442 = vmatprep.mubr.bf16.mxu0 0
      %5443 = vmatmul.mubr.bf16.gmra.mxu0 %v5315
      %v5444 = vpop.f32.mrf.mxu0
      %v5445 = vadd.f32 0.0, %v5444
      %v5446 = vpop.f32.mrf.mxu0
      %v5447 = vpop.f32.mrf.mxu0
      %v5448 = vadd.f32 0.0, %v5447
      %v5449 = vpop.f32.mrf.mxu0
      %5450 = vmatprep.mubr.bf16.mxu0 0
      %5451 = vmatmul.mubr.bf16.gmra.mxu0 %v5316
      %v5452 = vpop.f32.mrf.mxu0
      %v5453 = vadd.f32 0.0, %v5452
      %v5454 = vpop.f32.mrf.mxu0
      %v5455 = vpop.f32.mrf.mxu0
      %v5456 = vadd.f32 0.0, %v5455
      %v5457 = vpop.f32.mrf.mxu0
      %5458 = vmatprep.mubr.bf16.mxu0 0
      %5459 = vmatmul.mubr.bf16.gmra.mxu0 %v5317
      %v5460 = vpop.f32.mrf.mxu0
      %v5461 = vadd.f32 0.0, %v5460
      %v5462 = vpop.f32.mrf.mxu0
      %v5463 = vpop.f32.mrf.mxu0
      %v5464 = vadd.f32 0.0, %v5463
      %v5465 = vpop.f32.mrf.mxu0
      %5466 = vmatprep.mubr.bf16.mxu0 0
      %5467 = vmatmul.mubr.bf16.gmra.mxu0 %v5318
      %v5468 = vpop.f32.mrf.mxu0
      %v5469 = vadd.f32 0.0, %v5468
      %v5470 = vpop.f32.mrf.mxu0
      %v5471 = vpop.f32.mrf.mxu0
      %v5472 = vadd.f32 0.0, %v5471
      %v5473 = vpop.f32.mrf.mxu0
      %5474 = vmatprep.mubr.bf16.mxu0 0
      %5475 = vmatmul.mubr.bf16.gmra.mxu0 %v5319
      %v5476 = vpop.f32.mrf.mxu0
      %v5477 = vadd.f32 0.0, %v5476
      %v5478 = vpop.f32.mrf.mxu0
      %v5479 = vpop.f32.mrf.mxu0
      %v5480 = vadd.f32 0.0, %v5479
      %v5481 = vpop.f32.mrf.mxu0
      %5482 = vmatprep.mubr.bf16.mxu0 0
      %5483 = vmatmul.mubr.bf16.gmra.mxu0 %v5320
      %v5484 = vpop.f32.mrf.mxu0
      %v5485 = vadd.f32 0.0, %v5484
      %v5486 = vpop.f32.mrf.mxu0
      %v5487 = vpop.f32.mrf.mxu0
      %v5488 = vadd.f32 0.0, %v5487
      %v5489 = vpop.f32.mrf.mxu0
      %5490 = vmatprep.mubr.bf16.mxu0 0
      %5491 = vmatmul.mubr.bf16.gmra.mxu0 %v5321
      %v5492 = vpop.f32.mrf.mxu0
      %v5493 = vadd.f32 0.0, %v5492
      %v5494 = vpop.f32.mrf.mxu0
      %v5495 = vpop.f32.mrf.mxu0
      %v5496 = vadd.f32 0.0, %v5495
      %v5497 = vpop.f32.mrf.mxu0
      %5498 = vmatprep.mubr.bf16.mxu0 0
      %5499 = vmatmul.mubr.bf16.gmra.mxu0 %v5322
      %v5500 = vpop.f32.mrf.mxu0
      %v5501 = vadd.f32 0.0, %v5500
      %v5502 = vpop.f32.mrf.mxu0
      %v5503 = vpop.f32.mrf.mxu0
      %v5504 = vadd.f32 0.0, %v5503
      %v5505 = vpop.f32.mrf.mxu0
      %5506 = vmatprep.mubr.bf16.mxu0 0
      %5507 = vmatmul.mubr.bf16.gmra.mxu0 %v5323
      %v5508 = vpop.f32.mrf.mxu0
      %v5509 = vadd.f32 0.0, %v5508
      %v5510 = vpop.f32.mrf.mxu0
      %v5511 = vpop.f32.mrf.mxu0
      %v5512 = vadd.f32 0.0, %v5511
      %v5513 = vpop.f32.mrf.mxu0
      %5514 = vmatprep.mubr.bf16.mxu0 0
      %5515 = vmatmul.mubr.bf16.gmra.mxu0 %v5324
      %v5516 = vpop.f32.mrf.mxu0
      %v5517 = vadd.f32 0.0, %v5516
      %v5518 = vpop.f32.mrf.mxu0
      %v5519 = vpop.f32.mrf.mxu0
      %v5520 = vadd.f32 0.0, %v5519
      %v5521 = vpop.f32.mrf.mxu0
      %5522 = vmatprep.mubr.bf16.mxu0 0
      %5523 = vmatmul.mubr.bf16.gmra.mxu0 %v5325
      %v5524 = vpop.f32.mrf.mxu0
      %v5525 = vadd.f32 0.0, %v5524
      %v5526 = vpop.f32.mrf.mxu0
      %v5527 = vpop.f32.mrf.mxu0
      %v5528 = vadd.f32 0.0, %v5527
      %v5529 = vpop.f32.mrf.mxu0
      %5530 = vmatprep.mubr.bf16.mxu0 0
      %5531 = vmatmul.mubr.bf16.gmra.mxu0 %v5326
      %v5532 = vpop.f32.mrf.mxu0
      %v5533 = vadd.f32 0.0, %v5532
      %v5534 = vpop.f32.mrf.mxu0
      %v5535 = vpop.f32.mrf.mxu0
      %v5536 = vadd.f32 0.0, %v5535
      %v5537 = vpop.f32.mrf.mxu0
      %5538 = vmatprep.mubr.bf16.mxu0 0
      %5539 = vmatmul.mubr.bf16.gmra.mxu0 %v5327
      %v5540 = vpop.f32.mrf.mxu0
      %v5541 = vadd.f32 0.0, %v5540
      %v5542 = vpop.f32.mrf.mxu0
      %v5543 = vpop.f32.mrf.mxu0
      %v5544 = vadd.f32 0.0, %v5543
      %v5545 = vpop.f32.mrf.mxu0
      %5546 = vmatprep.mubr.bf16.mxu0 0
      %5547 = vmatmul.mubr.bf16.gmra.mxu0 %v5328
      %v5548 = vpop.f32.mrf.mxu0
      %v5549 = vadd.f32 0.0, %v5548
      %v5550 = vpop.f32.mrf.mxu0
      %v5551 = vpop.f32.mrf.mxu0
      %v5552 = vadd.f32 0.0, %v5551
      %v5553 = vpop.f32.mrf.mxu0
      %5554 = vdwg.mxu0
      %v5555 = vadd.f32 %v5217, %v5429
      %v5556 = vadd.f32 %v5218, %v5432
      %v5557 = vadd.f32 %v5219, %v5437
      %v5558 = vadd.f32 %v5220, %v5440
      %v5559 = vadd.f32 %v5221, %v5445
      %v5560 = vadd.f32 %v5222, %v5448
      %v5561 = vadd.f32 %v5223, %v5453
      %v5562 = vadd.f32 %v5224, %v5456
      %v5563 = vadd.f32 %v5225, %v5461
      %v5564 = vadd.f32 %v5226, %v5464
      %v5565 = vadd.f32 %v5227, %v5469
      %v5566 = vadd.f32 %v5228, %v5472
      %v5567 = vadd.f32 %v5229, %v5477
      %v5568 = vadd.f32 %v5230, %v5480
      %v5569 = vadd.f32 %v5231, %v5485
      %v5570 = vadd.f32 %v5232, %v5488
      %v5571 = vadd.f32 %v5233, %v5493
      %v5572 = vadd.f32 %v5234, %v5496
      %v5573 = vadd.f32 %v5235, %v5501
      %v5574 = vadd.f32 %v5236, %v5504
      %v5575 = vadd.f32 %v5237, %v5509
      %v5576 = vadd.f32 %v5238, %v5512
      %v5577 = vadd.f32 %v5239, %v5517
      %v5578 = vadd.f32 %v5240, %v5520
      %v5579 = vadd.f32 %v5241, %v5525
      %v5580 = vadd.f32 %v5242, %v5528
      %v5581 = vadd.f32 %v5243, %v5533
      %v5582 = vadd.f32 %v5244, %v5536
      %v5583 = vadd.f32 %v5245, %v5541
      %v5584 = vadd.f32 %v5246, %v5544
      %v5585 = vadd.f32 %v5247, %v5549
      %v5586 = vadd.f32 %v5248, %v5552
      %v5587 = vld [vmem:[#allocation3 + $0x18] sm:$0xff]
      %v5588 = vld [vmem:[#allocation3 + $0x20] sm:$0xff]
      %v5589 = vld [vmem:[#allocation3 + $0x28] sm:$0xff]
      %v5590 = vld [vmem:[#allocation3 + $0x30] sm:$0xff]
      %v5591 = vld [vmem:[#allocation3 + $0x38] sm:$0xff]
      %v5592 = vld [vmem:[#allocation3 + $0x40] sm:$0xff]
      %v5593 = vld [vmem:[#allocation3 + $0x48] sm:$0xff]
      %v5594 = vld [vmem:[#allocation3 + $0x50] sm:$0xff]
      %v5595 = vld [vmem:[#allocation3 + $0x58] sm:$0xff]
      %v5596 = vld [vmem:[#allocation3 + $0x60] sm:$0xff]
      %v5597 = vld [vmem:[#allocation3 + $0x68] sm:$0xff]
      %v5598 = vld [vmem:[#allocation3 + $0x70] sm:$0xff]
      %v5599 = vld [vmem:[#allocation3 + $0x78] sm:$0xff]
      %v5600 = vld [vmem:[#allocation3 + $0x80] sm:$0xff]
      %v5601 = vld [vmem:[#allocation3 + $0x88] sm:$0xff]
      %v5602 = vld [vmem:[#allocation3 + $0x90] sm:$0xff]
      %v5603 = vld [vmem:[#allocation3 + $0x98] sm:$0xff]
      %v5604 = vld [vmem:[#allocation3 + $0xa0] sm:$0xff]
      %v5605 = vld [vmem:[#allocation3 + $0xa8] sm:$0xff]
      %v5606 = vld [vmem:[#allocation3 + $0xb0] sm:$0xff]
      %v5607 = vld [vmem:[#allocation3 + $0xb8] sm:$0xff]
      %v5608 = vld [vmem:[#allocation3 + $0xc0] sm:$0xff]
      %v5609 = vld [vmem:[#allocation3 + $0xc8] sm:$0xff]
      %v5610 = vld [vmem:[#allocation3 + $0xd0] sm:$0xff]
      %v5611 = vld [vmem:[#allocation3 + $0xd8] sm:$0xff]
      %v5612 = vld [vmem:[#allocation3 + $0xe0] sm:$0xff]
      %v5613 = vld [vmem:[#allocation3 + $0xe8] sm:$0xff]
      %v5614 = vld [vmem:[#allocation3 + $0xf0] sm:$0xff]
      %v5615 = vld [vmem:[#allocation3 + $0xf8] sm:$0xff]
      %v5616 = vld [vmem:[#allocation3 + $0x100] sm:$0xff]
      %v5617 = vld [vmem:[#allocation3 + $0x108] sm:$0xff]
      %v5618 = vld [vmem:[#allocation3 + $0x110] sm:$0xff]
      %v5619 = vpack.c.bf16 %v5588, %v5587
      %v5620 = vpack.c.bf16 %v5590, %v5589
      %v5621 = vpack.c.bf16 %v5592, %v5591
      %v5622 = vpack.c.bf16 %v5594, %v5593
      %v5623 = vpack.c.bf16 %v5596, %v5595
      %v5624 = vpack.c.bf16 %v5598, %v5597
      %v5625 = vpack.c.bf16 %v5600, %v5599
      %v5626 = vpack.c.bf16 %v5602, %v5601
      %v5627 = vpack.c.bf16 %v5604, %v5603
      %v5628 = vpack.c.bf16 %v5606, %v5605
      %v5629 = vpack.c.bf16 %v5608, %v5607
      %v5630 = vpack.c.bf16 %v5610, %v5609
      %v5631 = vpack.c.bf16 %v5612, %v5611
      %v5632 = vpack.c.bf16 %v5614, %v5613
      %v5633 = vpack.c.bf16 %v5616, %v5615
      %v5634 = vpack.c.bf16 %v5618, %v5617
      %s5635 = scalar_lea.vmem %s4, 256
      %v5636 = vld [vmem:[%s5635] sm:$0xf]
      %v5637 = vld [vmem:[%s5635 + $0x4] sm:$0xf]
      %v5638 = vld [vmem:[%s5635 + $0x8] sm:$0xf]
      %v5639 = vld [vmem:[%s5635 + $0xc] sm:$0xf]
      %v5640 = vld [vmem:[%s5635 + $0x10] sm:$0xf]
      %v5641 = vld [vmem:[%s5635 + $0x14] sm:$0xf]
      %v5642 = vld [vmem:[%s5635 + $0x18] sm:$0xf]
      %v5643 = vld [vmem:[%s5635 + $0x1c] sm:$0xf]
      %v5644 = vld [vmem:[%s5635 + $0x20] sm:$0xf]
      %v5645 = vld [vmem:[%s5635 + $0x24] sm:$0xf]
      %v5646 = vld [vmem:[%s5635 + $0x28] sm:$0xf]
      %v5647 = vld [vmem:[%s5635 + $0x2c] sm:$0xf]
      %v5648 = vld [vmem:[%s5635 + $0x30] sm:$0xf]
      %v5649 = vld [vmem:[%s5635 + $0x34] sm:$0xf]
      %v5650 = vld [vmem:[%s5635 + $0x38] sm:$0xf]
      %v5651 = vld [vmem:[%s5635 + $0x3c] sm:$0xf]
      %v5668 = vunpack.c.l.b16 %v5636
      %v5669 = vunpack.c.l.b16 %v5637
      %v5670 = vunpack.c.l.b16 %v5638
      %v5671 = vunpack.c.l.b16 %v5639
      %v5672 = vunpack.c.l.b16 %v5640
      %v5673 = vunpack.c.l.b16 %v5641
      %v5674 = vunpack.c.l.b16 %v5642
      %v5675 = vunpack.c.l.b16 %v5643
      %v5676 = vunpack.c.l.b16 %v5644
      %v5677 = vunpack.c.l.b16 %v5645
      %v5678 = vunpack.c.l.b16 %v5646
      %v5679 = vunpack.c.l.b16 %v5647
      %v5680 = vunpack.c.l.b16 %v5648
      %v5681 = vunpack.c.l.b16 %v5649
      %v5682 = vunpack.c.l.b16 %v5650
      %v5683 = vunpack.c.l.b16 %v5651
      %v5684 = vpack.c.b16 %v5669, %v5668
      %v5685 = vpack.c.b16 %v5671, %v5670
      %v5686 = vpack.c.b16 %v5673, %v5672
      %v5687 = vpack.c.b16 %v5675, %v5674
      %v5688 = vpack.c.b16 %v5677, %v5676
      %v5689 = vpack.c.b16 %v5679, %v5678
      %v5690 = vpack.c.b16 %v5681, %v5680
      %v5691 = vpack.c.b16 %v5683, %v5682
      %5700 = vmatprep.subr.bf16.mxu0 0
      %5701 = vmatpush1.bf16.msra.mxu0 %v5691
      %5702 = vmatprep.subr.bf16.mxu0 0
      %5703 = vmatpush1.bf16.msra.mxu0 %v5690
      %5704 = vmatprep.subr.bf16.mxu0 0
      %5705 = vmatpush1.bf16.msra.mxu0 %v5689
      %5706 = vmatprep.subr.bf16.mxu0 0
      %5707 = vmatpush1.bf16.msra.mxu0 %v5688
      %5708 = vmatprep.subr.bf16.mxu0 0
      %5709 = vmatpush1.bf16.msra.mxu0 %v5687
      %5710 = vmatprep.subr.bf16.mxu0 0
      %5711 = vmatpush1.bf16.msra.mxu0 %v5686
      %5712 = vmatprep.subr.bf16.mxu0 0
      %5713 = vmatpush1.bf16.msra.mxu0 %v5685
      %5714 = vmatprep.subr.bf16.mxu0 0
      %5715 = vmatpush1.bf16.msra.mxu0 %v5684
      %5716 = vmatprep.subr.bf16.mxu0 0
      %5717 = vmatpush2.bf16.msra.mxu0 0
      %5718 = vmatprep.subr.bf16.mxu0 0
      %5719 = vmatpush2.bf16.msra.mxu0 0
      %5720 = vmatprep.subr.bf16.mxu0 0
      %5721 = vmatpush2.bf16.msra.mxu0 0
      %5722 = vmatprep.subr.bf16.mxu0 0
      %5723 = vmatpush2.bf16.msra.mxu0 0
      %5724 = vmatprep.subr.bf16.mxu0 0
      %5725 = vmatpush2.bf16.msra.mxu0 0
      %5726 = vmatprep.subr.bf16.mxu0 0
      %5727 = vmatpush2.bf16.msra.mxu0 0
      %5728 = vmatprep.subr.bf16.mxu0 0
      %5729 = vmatpush2.bf16.msra.mxu0 0
      %5730 = vmatprep.subr.bf16.mxu0 0
      %5731 = vmatpush2.bf16.msra.mxu0 0
      %5732 = vmatprep.mubr.bf16.mxu0 0
      %5733 = vmatmul.mubr.bf16.gmra.mxu0 %v5619
      %v5734 = vpop.f32.mrf.mxu0
      %v5735 = vadd.f32 0.0, %v5734
      %v5736 = vpop.f32.mrf.mxu0
      %v5737 = vpop.f32.mrf.mxu0
      %v5738 = vadd.f32 0.0, %v5737
      %v5739 = vpop.f32.mrf.mxu0
      %5740 = vmatprep.mubr.bf16.mxu0 0
      %5741 = vmatmul.mubr.bf16.gmra.mxu0 %v5620
      %v5742 = vpop.f32.mrf.mxu0
      %v5743 = vadd.f32 0.0, %v5742
      %v5744 = vpop.f32.mrf.mxu0
      %v5745 = vpop.f32.mrf.mxu0
      %v5746 = vadd.f32 0.0, %v5745
      %v5747 = vpop.f32.mrf.mxu0
      %5748 = vmatprep.mubr.bf16.mxu0 0
      %5749 = vmatmul.mubr.bf16.gmra.mxu0 %v5621
      %v5750 = vpop.f32.mrf.mxu0
      %v5751 = vadd.f32 0.0, %v5750
      %v5752 = vpop.f32.mrf.mxu0
      %v5753 = vpop.f32.mrf.mxu0
      %v5754 = vadd.f32 0.0, %v5753
      %v5755 = vpop.f32.mrf.mxu0
      %5756 = vmatprep.mubr.bf16.mxu0 0
      %5757 = vmatmul.mubr.bf16.gmra.mxu0 %v5622
      %v5758 = vpop.f32.mrf.mxu0
      %v5759 = vadd.f32 0.0, %v5758
      %v5760 = vpop.f32.mrf.mxu0
      %v5761 = vpop.f32.mrf.mxu0
      %v5762 = vadd.f32 0.0, %v5761
      %v5763 = vpop.f32.mrf.mxu0
      %5764 = vmatprep.mubr.bf16.mxu0 0
      %5765 = vmatmul.mubr.bf16.gmra.mxu0 %v5623
      %v5766 = vpop.f32.mrf.mxu0
      %v5767 = vadd.f32 0.0, %v5766
      %v5768 = vpop.f32.mrf.mxu0
      %v5769 = vpop.f32.mrf.mxu0
      %v5770 = vadd.f32 0.0, %v5769
      %v5771 = vpop.f32.mrf.mxu0
      %5772 = vmatprep.mubr.bf16.mxu0 0
      %5773 = vmatmul.mubr.bf16.gmra.mxu0 %v5624
      %v5774 = vpop.f32.mrf.mxu0
      %v5775 = vadd.f32 0.0, %v5774
      %v5776 = vpop.f32.mrf.mxu0
      %v5777 = vpop.f32.mrf.mxu0
      %v5778 = vadd.f32 0.0, %v5777
      %v5779 = vpop.f32.mrf.mxu0
      %5780 = vmatprep.mubr.bf16.mxu0 0
      %5781 = vmatmul.mubr.bf16.gmra.mxu0 %v5625
      %v5782 = vpop.f32.mrf.mxu0
      %v5783 = vadd.f32 0.0, %v5782
      %v5784 = vpop.f32.mrf.mxu0
      %v5785 = vpop.f32.mrf.mxu0
      %v5786 = vadd.f32 0.0, %v5785
      %v5787 = vpop.f32.mrf.mxu0
      %5788 = vmatprep.mubr.bf16.mxu0 0
      %5789 = vmatmul.mubr.bf16.gmra.mxu0 %v5626
      %v5790 = vpop.f32.mrf.mxu0
      %v5791 = vadd.f32 0.0, %v5790
      %v5792 = vpop.f32.mrf.mxu0
      %v5793 = vpop.f32.mrf.mxu0
      %v5794 = vadd.f32 0.0, %v5793
      %v5795 = vpop.f32.mrf.mxu0
      %5796 = vmatprep.mubr.bf16.mxu0 0
      %5797 = vmatmul.mubr.bf16.gmra.mxu0 %v5627
      %v5798 = vpop.f32.mrf.mxu0
      %v5799 = vadd.f32 0.0, %v5798
      %v5800 = vpop.f32.mrf.mxu0
      %v5801 = vpop.f32.mrf.mxu0
      %v5802 = vadd.f32 0.0, %v5801
      %v5803 = vpop.f32.mrf.mxu0
      %5804 = vmatprep.mubr.bf16.mxu0 0
      %5805 = vmatmul.mubr.bf16.gmra.mxu0 %v5628
      %v5806 = vpop.f32.mrf.mxu0
      %v5807 = vadd.f32 0.0, %v5806
      %v5808 = vpop.f32.mrf.mxu0
      %v5809 = vpop.f32.mrf.mxu0
      %v5810 = vadd.f32 0.0, %v5809
      %v5811 = vpop.f32.mrf.mxu0
      %5812 = vmatprep.mubr.bf16.mxu0 0
      %5813 = vmatmul.mubr.bf16.gmra.mxu0 %v5629
      %v5814 = vpop.f32.mrf.mxu0
      %v5815 = vadd.f32 0.0, %v5814
      %v5816 = vpop.f32.mrf.mxu0
      %v5817 = vpop.f32.mrf.mxu0
      %v5818 = vadd.f32 0.0, %v5817
      %v5819 = vpop.f32.mrf.mxu0
      %5820 = vmatprep.mubr.bf16.mxu0 0
      %5821 = vmatmul.mubr.bf16.gmra.mxu0 %v5630
      %v5822 = vpop.f32.mrf.mxu0
      %v5823 = vadd.f32 0.0, %v5822
      %v5824 = vpop.f32.mrf.mxu0
      %v5825 = vpop.f32.mrf.mxu0
      %v5826 = vadd.f32 0.0, %v5825
      %v5827 = vpop.f32.mrf.mxu0
      %5828 = vmatprep.mubr.bf16.mxu0 0
      %5829 = vmatmul.mubr.bf16.gmra.mxu0 %v5631
      %v5830 = vpop.f32.mrf.mxu0
      %v5831 = vadd.f32 0.0, %v5830
      %v5832 = vpop.f32.mrf.mxu0
      %v5833 = vpop.f32.mrf.mxu0
      %v5834 = vadd.f32 0.0, %v5833
      %v5835 = vpop.f32.mrf.mxu0
      %5836 = vmatprep.mubr.bf16.mxu0 0
      %5837 = vmatmul.mubr.bf16.gmra.mxu0 %v5632
      %v5838 = vpop.f32.mrf.mxu0
      %v5839 = vadd.f32 0.0, %v5838
      %v5840 = vpop.f32.mrf.mxu0
      %v5841 = vpop.f32.mrf.mxu0
      %v5842 = vadd.f32 0.0, %v5841
      %v5843 = vpop.f32.mrf.mxu0
      %5844 = vmatprep.mubr.bf16.mxu0 0
      %5845 = vmatmul.mubr.bf16.gmra.mxu0 %v5633
      %v5846 = vpop.f32.mrf.mxu0
      %v5847 = vadd.f32 0.0, %v5846
      %v5848 = vpop.f32.mrf.mxu0
      %v5849 = vpop.f32.mrf.mxu0
      %v5850 = vadd.f32 0.0, %v5849
      %v5851 = vpop.f32.mrf.mxu0
      %5852 = vmatprep.mubr.bf16.mxu0 0
      %5853 = vmatmul.mubr.bf16.gmra.mxu0 %v5634
      %v5854 = vpop.f32.mrf.mxu0
      %v5855 = vadd.f32 0.0, %v5854
      %v5856 = vpop.f32.mrf.mxu0
      %v5857 = vpop.f32.mrf.mxu0
      %v5858 = vadd.f32 0.0, %v5857
      %v5859 = vpop.f32.mrf.mxu0
      %5860 = vdwg.mxu0
      %v5861 = vadd.f32 %v5555, %v5735
      %v5862 = vadd.f32 %v5556, %v5738
      %v5863 = vadd.f32 %v5557, %v5743
      %v5864 = vadd.f32 %v5558, %v5746
      %v5865 = vadd.f32 %v5559, %v5751
      %v5866 = vadd.f32 %v5560, %v5754
      %v5867 = vadd.f32 %v5561, %v5759
      %v5868 = vadd.f32 %v5562, %v5762
      %v5869 = vadd.f32 %v5563, %v5767
      %v5870 = vadd.f32 %v5564, %v5770
      %v5871 = vadd.f32 %v5565, %v5775
      %v5872 = vadd.f32 %v5566, %v5778
      %v5873 = vadd.f32 %v5567, %v5783
      %v5874 = vadd.f32 %v5568, %v5786
      %v5875 = vadd.f32 %v5569, %v5791
      %v5876 = vadd.f32 %v5570, %v5794
      %v5877 = vadd.f32 %v5571, %v5799
      %v5878 = vadd.f32 %v5572, %v5802
      %v5879 = vadd.f32 %v5573, %v5807
      %v5880 = vadd.f32 %v5574, %v5810
      %v5881 = vadd.f32 %v5575, %v5815
      %v5882 = vadd.f32 %v5576, %v5818
      %v5883 = vadd.f32 %v5577, %v5823
      %v5884 = vadd.f32 %v5578, %v5826
      %v5885 = vadd.f32 %v5579, %v5831
      %v5886 = vadd.f32 %v5580, %v5834
      %v5887 = vadd.f32 %v5581, %v5839
      %v5888 = vadd.f32 %v5582, %v5842
      %v5889 = vadd.f32 %v5583, %v5847
      %v5890 = vadd.f32 %v5584, %v5850
      %v5891 = vadd.f32 %v5585, %v5855
      %v5892 = vadd.f32 %v5586, %v5858
      %v5893 = vld [vmem:[#allocation3 + $0x19] sm:$0xff]
      %v5894 = vld [vmem:[#allocation3 + $0x21] sm:$0xff]
      %v5895 = vld [vmem:[#allocation3 + $0x29] sm:$0xff]
      %v5896 = vld [vmem:[#allocation3 + $0x31] sm:$0xff]
      %v5897 = vld [vmem:[#allocation3 + $0x39] sm:$0xff]
      %v5898 = vld [vmem:[#allocation3 + $0x41] sm:$0xff]
      %v5899 = vld [vmem:[#allocation3 + $0x49] sm:$0xff]
      %v5900 = vld [vmem:[#allocation3 + $0x51] sm:$0xff]
      %v5901 = vld [vmem:[#allocation3 + $0x59] sm:$0xff]
      %v5902 = vld [vmem:[#allocation3 + $0x61] sm:$0xff]
      %v5903 = vld [vmem:[#allocation3 + $0x69] sm:$0xff]
      %v5904 = vld [vmem:[#allocation3 + $0x71] sm:$0xff]
      %v5905 = vld [vmem:[#allocation3 + $0x79] sm:$0xff]
      %v5906 = vld [vmem:[#allocation3 + $0x81] sm:$0xff]
      %v5907 = vld [vmem:[#allocation3 + $0x89] sm:$0xff]
      %v5908 = vld [vmem:[#allocation3 + $0x91] sm:$0xff]
      %v5909 = vld [vmem:[#allocation3 + $0x99] sm:$0xff]
      %v5910 = vld [vmem:[#allocation3 + $0xa1] sm:$0xff]
      %v5911 = vld [vmem:[#allocation3 + $0xa9] sm:$0xff]
      %v5912 = vld [vmem:[#allocation3 + $0xb1] sm:$0xff]
      %v5913 = vld [vmem:[#allocation3 + $0xb9] sm:$0xff]
      %v5914 = vld [vmem:[#allocation3 + $0xc1] sm:$0xff]
      %v5915 = vld [vmem:[#allocation3 + $0xc9] sm:$0xff]
      %v5916 = vld [vmem:[#allocation3 + $0xd1] sm:$0xff]
      %v5917 = vld [vmem:[#allocation3 + $0xd9] sm:$0xff]
      %v5918 = vld [vmem:[#allocation3 + $0xe1] sm:$0xff]
      %v5919 = vld [vmem:[#allocation3 + $0xe9] sm:$0xff]
      %v5920 = vld [vmem:[#allocation3 + $0xf1] sm:$0xff]
      %v5921 = vld [vmem:[#allocation3 + $0xf9] sm:$0xff]
      %v5922 = vld [vmem:[#allocation3 + $0x101] sm:$0xff]
      %v5923 = vld [vmem:[#allocation3 + $0x109] sm:$0xff]
      %v5924 = vld [vmem:[#allocation3 + $0x111] sm:$0xff]
      %v5925 = vmul.f32 %v5893, %v4786
      %v5926 = vmul.f32 %v5894, %v4791
      %v5927 = vmul.f32 %v5895, %v4796
      %v5928 = vmul.f32 %v5896, %v4801
      %v5929 = vmul.f32 %v5897, %v4806
      %v5930 = vmul.f32 %v5898, %v4811
      %v5931 = vmul.f32 %v5899, %v4816
      %v5932 = vmul.f32 %v5900, %v4821
      %v5933 = vmul.f32 %v5901, %v4826
      %v5934 = vmul.f32 %v5902, %v4831
      %v5935 = vmul.f32 %v5903, %v4836
      %v5936 = vmul.f32 %v5904, %v4841
      %v5937 = vmul.f32 %v5905, %v4846
      %v5938 = vmul.f32 %v5906, %v4851
      %v5939 = vmul.f32 %v5907, %v4856
      %v5940 = vmul.f32 %v5908, %v4861
      %v5941 = vmul.f32 %v5909, %v4866
      %v5942 = vmul.f32 %v5910, %v4871
      %v5943 = vmul.f32 %v5911, %v4876
      %v5944 = vmul.f32 %v5912, %v4881
      %v5945 = vmul.f32 %v5913, %v4886
      %v5946 = vmul.f32 %v5914, %v4891
      %v5947 = vmul.f32 %v5915, %v4896
      %v5948 = vmul.f32 %v5916, %v4901
      %v5949 = vmul.f32 %v5917, %v4906
      %v5950 = vmul.f32 %v5918, %v4911
      %v5951 = vmul.f32 %v5919, %v4916
      %v5952 = vmul.f32 %v5920, %v4921
      %v5953 = vmul.f32 %v5921, %v4926
      %v5954 = vmul.f32 %v5922, %v4931
      %v5955 = vmul.f32 %v5923, %v4936
      %v5956 = vmul.f32 %v5924, %v4941
      %v5957 = vpack.c.bf16 %v5926, %v5925
      %v5958 = vpack.c.bf16 %v5928, %v5927
      %v5959 = vpack.c.bf16 %v5930, %v5929
      %v5960 = vpack.c.bf16 %v5932, %v5931
      %v5961 = vpack.c.bf16 %v5934, %v5933
      %v5962 = vpack.c.bf16 %v5936, %v5935
      %v5963 = vpack.c.bf16 %v5938, %v5937
      %v5964 = vpack.c.bf16 %v5940, %v5939
      %v5965 = vpack.c.bf16 %v5942, %v5941
      %v5966 = vpack.c.bf16 %v5944, %v5943
      %v5967 = vpack.c.bf16 %v5946, %v5945
      %v5968 = vpack.c.bf16 %v5948, %v5947
      %v5969 = vpack.c.bf16 %v5950, %v5949
      %v5970 = vpack.c.bf16 %v5952, %v5951
      %v5971 = vpack.c.bf16 %v5954, %v5953
      %v5972 = vpack.c.bf16 %v5956, %v5955
      %s5973 = scalar_lea.vmem %s4, 320
      %v5974 = vld [vmem:[%s5973] sm:$0xf]
      %v5975 = vld [vmem:[%s5973 + $0x4] sm:$0xf]
      %v5976 = vld [vmem:[%s5973 + $0x8] sm:$0xf]
      %v5977 = vld [vmem:[%s5973 + $0xc] sm:$0xf]
      %v5978 = vld [vmem:[%s5973 + $0x10] sm:$0xf]
      %v5979 = vld [vmem:[%s5973 + $0x14] sm:$0xf]
      %v5980 = vld [vmem:[%s5973 + $0x18] sm:$0xf]
      %v5981 = vld [vmem:[%s5973 + $0x1c] sm:$0xf]
      %v5982 = vld [vmem:[%s5973 + $0x20] sm:$0xf]
      %v5983 = vld [vmem:[%s5973 + $0x24] sm:$0xf]
      %v5984 = vld [vmem:[%s5973 + $0x28] sm:$0xf]
      %v5985 = vld [vmem:[%s5973 + $0x2c] sm:$0xf]
      %v5986 = vld [vmem:[%s5973 + $0x30] sm:$0xf]
      %v5987 = vld [vmem:[%s5973 + $0x34] sm:$0xf]
      %v5988 = vld [vmem:[%s5973 + $0x38] sm:$0xf]
      %v5989 = vld [vmem:[%s5973 + $0x3c] sm:$0xf]
      %v6006 = vunpack.c.l.b16 %v5974
      %v6007 = vunpack.c.l.b16 %v5975
      %v6008 = vunpack.c.l.b16 %v5976
      %v6009 = vunpack.c.l.b16 %v5977
      %v6010 = vunpack.c.l.b16 %v5978
      %v6011 = vunpack.c.l.b16 %v5979
      %v6012 = vunpack.c.l.b16 %v5980
      %v6013 = vunpack.c.l.b16 %v5981
      %v6014 = vunpack.c.l.b16 %v5982
      %v6015 = vunpack.c.l.b16 %v5983
      %v6016 = vunpack.c.l.b16 %v5984
      %v6017 = vunpack.c.l.b16 %v5985
      %v6018 = vunpack.c.l.b16 %v5986
      %v6019 = vunpack.c.l.b16 %v5987
      %v6020 = vunpack.c.l.b16 %v5988
      %v6021 = vunpack.c.l.b16 %v5989
      %v6022 = vpack.c.b16 %v6007, %v6006
      %v6023 = vpack.c.b16 %v6009, %v6008
      %v6024 = vpack.c.b16 %v6011, %v6010
      %v6025 = vpack.c.b16 %v6013, %v6012
      %v6026 = vpack.c.b16 %v6015, %v6014
      %v6027 = vpack.c.b16 %v6017, %v6016
      %v6028 = vpack.c.b16 %v6019, %v6018
      %v6029 = vpack.c.b16 %v6021, %v6020
      %6038 = vmatprep.subr.bf16.mxu0 0
      %6039 = vmatpush1.bf16.msra.mxu0 %v6029
      %6040 = vmatprep.subr.bf16.mxu0 0
      %6041 = vmatpush1.bf16.msra.mxu0 %v6028
      %6042 = vmatprep.subr.bf16.mxu0 0
      %6043 = vmatpush1.bf16.msra.mxu0 %v6027
      %6044 = vmatprep.subr.bf16.mxu0 0
      %6045 = vmatpush1.bf16.msra.mxu0 %v6026
      %6046 = vmatprep.subr.bf16.mxu0 0
      %6047 = vmatpush1.bf16.msra.mxu0 %v6025
      %6048 = vmatprep.subr.bf16.mxu0 0
      %6049 = vmatpush1.bf16.msra.mxu0 %v6024
      %6050 = vmatprep.subr.bf16.mxu0 0
      %6051 = vmatpush1.bf16.msra.mxu0 %v6023
      %6052 = vmatprep.subr.bf16.mxu0 0
      %6053 = vmatpush1.bf16.msra.mxu0 %v6022
      %6054 = vmatprep.subr.bf16.mxu0 0
      %6055 = vmatpush2.bf16.msra.mxu0 0
      %6056 = vmatprep.subr.bf16.mxu0 0
      %6057 = vmatpush2.bf16.msra.mxu0 0
      %6058 = vmatprep.subr.bf16.mxu0 0
      %6059 = vmatpush2.bf16.msra.mxu0 0
      %6060 = vmatprep.subr.bf16.mxu0 0
      %6061 = vmatpush2.bf16.msra.mxu0 0
      %6062 = vmatprep.subr.bf16.mxu0 0
      %6063 = vmatpush2.bf16.msra.mxu0 0
      %6064 = vmatprep.subr.bf16.mxu0 0
      %6065 = vmatpush2.bf16.msra.mxu0 0
      %6066 = vmatprep.subr.bf16.mxu0 0
      %6067 = vmatpush2.bf16.msra.mxu0 0
      %6068 = vmatprep.subr.bf16.mxu0 0
      %6069 = vmatpush2.bf16.msra.mxu0 0
      %6070 = vmatprep.mubr.bf16.mxu0 0
      %6071 = vmatmul.mubr.bf16.gmra.mxu0 %v5957
      %v6072 = vpop.f32.mrf.mxu0
      %v6073 = vadd.f32 0.0, %v6072
      %v6074 = vpop.f32.mrf.mxu0
      %v6075 = vpop.f32.mrf.mxu0
      %v6076 = vadd.f32 0.0, %v6075
      %v6077 = vpop.f32.mrf.mxu0
      %6078 = vmatprep.mubr.bf16.mxu0 0
      %6079 = vmatmul.mubr.bf16.gmra.mxu0 %v5958
      %v6080 = vpop.f32.mrf.mxu0
      %v6081 = vadd.f32 0.0, %v6080
      %v6082 = vpop.f32.mrf.mxu0
      %v6083 = vpop.f32.mrf.mxu0
      %v6084 = vadd.f32 0.0, %v6083
      %v6085 = vpop.f32.mrf.mxu0
      %6086 = vmatprep.mubr.bf16.mxu0 0
      %6087 = vmatmul.mubr.bf16.gmra.mxu0 %v5959
      %v6088 = vpop.f32.mrf.mxu0
      %v6089 = vadd.f32 0.0, %v6088
      %v6090 = vpop.f32.mrf.mxu0
      %v6091 = vpop.f32.mrf.mxu0
      %v6092 = vadd.f32 0.0, %v6091
      %v6093 = vpop.f32.mrf.mxu0
      %6094 = vmatprep.mubr.bf16.mxu0 0
      %6095 = vmatmul.mubr.bf16.gmra.mxu0 %v5960
      %v6096 = vpop.f32.mrf.mxu0
      %v6097 = vadd.f32 0.0, %v6096
      %v6098 = vpop.f32.mrf.mxu0
      %v6099 = vpop.f32.mrf.mxu0
      %v6100 = vadd.f32 0.0, %v6099
      %v6101 = vpop.f32.mrf.mxu0
      %6102 = vmatprep.mubr.bf16.mxu0 0
      %6103 = vmatmul.mubr.bf16.gmra.mxu0 %v5961
      %v6104 = vpop.f32.mrf.mxu0
      %v6105 = vadd.f32 0.0, %v6104
      %v6106 = vpop.f32.mrf.mxu0
      %v6107 = vpop.f32.mrf.mxu0
      %v6108 = vadd.f32 0.0, %v6107
      %v6109 = vpop.f32.mrf.mxu0
      %6110 = vmatprep.mubr.bf16.mxu0 0
      %6111 = vmatmul.mubr.bf16.gmra.mxu0 %v5962
      %v6112 = vpop.f32.mrf.mxu0
      %v6113 = vadd.f32 0.0, %v6112
      %v6114 = vpop.f32.mrf.mxu0
      %v6115 = vpop.f32.mrf.mxu0
      %v6116 = vadd.f32 0.0, %v6115
      %v6117 = vpop.f32.mrf.mxu0
      %6118 = vmatprep.mubr.bf16.mxu0 0
      %6119 = vmatmul.mubr.bf16.gmra.mxu0 %v5963
      %v6120 = vpop.f32.mrf.mxu0
      %v6121 = vadd.f32 0.0, %v6120
      %v6122 = vpop.f32.mrf.mxu0
      %v6123 = vpop.f32.mrf.mxu0
      %v6124 = vadd.f32 0.0, %v6123
      %v6125 = vpop.f32.mrf.mxu0
      %6126 = vmatprep.mubr.bf16.mxu0 0
      %6127 = vmatmul.mubr.bf16.gmra.mxu0 %v5964
      %v6128 = vpop.f32.mrf.mxu0
      %v6129 = vadd.f32 0.0, %v6128
      %v6130 = vpop.f32.mrf.mxu0
      %v6131 = vpop.f32.mrf.mxu0
      %v6132 = vadd.f32 0.0, %v6131
      %v6133 = vpop.f32.mrf.mxu0
      %6134 = vmatprep.mubr.bf16.mxu0 0
      %6135 = vmatmul.mubr.bf16.gmra.mxu0 %v5965
      %v6136 = vpop.f32.mrf.mxu0
      %v6137 = vadd.f32 0.0, %v6136
      %v6138 = vpop.f32.mrf.mxu0
      %v6139 = vpop.f32.mrf.mxu0
      %v6140 = vadd.f32 0.0, %v6139
      %v6141 = vpop.f32.mrf.mxu0
      %6142 = vmatprep.mubr.bf16.mxu0 0
      %6143 = vmatmul.mubr.bf16.gmra.mxu0 %v5966
      %v6144 = vpop.f32.mrf.mxu0
      %v6145 = vadd.f32 0.0, %v6144
      %v6146 = vpop.f32.mrf.mxu0
      %v6147 = vpop.f32.mrf.mxu0
      %v6148 = vadd.f32 0.0, %v6147
      %v6149 = vpop.f32.mrf.mxu0
      %6150 = vmatprep.mubr.bf16.mxu0 0
      %6151 = vmatmul.mubr.bf16.gmra.mxu0 %v5967
      %v6152 = vpop.f32.mrf.mxu0
      %v6153 = vadd.f32 0.0, %v6152
      %v6154 = vpop.f32.mrf.mxu0
      %v6155 = vpop.f32.mrf.mxu0
      %v6156 = vadd.f32 0.0, %v6155
      %v6157 = vpop.f32.mrf.mxu0
      %6158 = vmatprep.mubr.bf16.mxu0 0
      %6159 = vmatmul.mubr.bf16.gmra.mxu0 %v5968
      %v6160 = vpop.f32.mrf.mxu0
      %v6161 = vadd.f32 0.0, %v6160
      %v6162 = vpop.f32.mrf.mxu0
      %v6163 = vpop.f32.mrf.mxu0
      %v6164 = vadd.f32 0.0, %v6163
      %v6165 = vpop.f32.mrf.mxu0
      %6166 = vmatprep.mubr.bf16.mxu0 0
      %6167 = vmatmul.mubr.bf16.gmra.mxu0 %v5969
      %v6168 = vpop.f32.mrf.mxu0
      %v6169 = vadd.f32 0.0, %v6168
      %v6170 = vpop.f32.mrf.mxu0
      %v6171 = vpop.f32.mrf.mxu0
      %v6172 = vadd.f32 0.0, %v6171
      %v6173 = vpop.f32.mrf.mxu0
      %6174 = vmatprep.mubr.bf16.mxu0 0
      %6175 = vmatmul.mubr.bf16.gmra.mxu0 %v5970
      %v6176 = vpop.f32.mrf.mxu0
      %v6177 = vadd.f32 0.0, %v6176
      %v6178 = vpop.f32.mrf.mxu0
      %v6179 = vpop.f32.mrf.mxu0
      %v6180 = vadd.f32 0.0, %v6179
      %v6181 = vpop.f32.mrf.mxu0
      %6182 = vmatprep.mubr.bf16.mxu0 0
      %6183 = vmatmul.mubr.bf16.gmra.mxu0 %v5971
      %v6184 = vpop.f32.mrf.mxu0
      %v6185 = vadd.f32 0.0, %v6184
      %v6186 = vpop.f32.mrf.mxu0
      %v6187 = vpop.f32.mrf.mxu0
      %v6188 = vadd.f32 0.0, %v6187
      %v6189 = vpop.f32.mrf.mxu0
      %6190 = vmatprep.mubr.bf16.mxu0 0
      %6191 = vmatmul.mubr.bf16.gmra.mxu0 %v5972
      %v6192 = vpop.f32.mrf.mxu0
      %v6193 = vadd.f32 0.0, %v6192
      %v6194 = vpop.f32.mrf.mxu0
      %v6195 = vpop.f32.mrf.mxu0
      %v6196 = vadd.f32 0.0, %v6195
      %v6197 = vpop.f32.mrf.mxu0
      %6198 = vdwg.mxu0
      %v6199 = vadd.f32 %v5861, %v6073
      %v6200 = vadd.f32 %v5862, %v6076
      %v6201 = vadd.f32 %v5863, %v6081
      %v6202 = vadd.f32 %v5864, %v6084
      %v6203 = vadd.f32 %v5865, %v6089
      %v6204 = vadd.f32 %v5866, %v6092
      %v6205 = vadd.f32 %v5867, %v6097
      %v6206 = vadd.f32 %v5868, %v6100
      %v6207 = vadd.f32 %v5869, %v6105
      %v6208 = vadd.f32 %v5870, %v6108
      %v6209 = vadd.f32 %v5871, %v6113
      %v6210 = vadd.f32 %v5872, %v6116
      %v6211 = vadd.f32 %v5873, %v6121
      %v6212 = vadd.f32 %v5874, %v6124
      %v6213 = vadd.f32 %v5875, %v6129
      %v6214 = vadd.f32 %v5876, %v6132
      %v6215 = vadd.f32 %v5877, %v6137
      %v6216 = vadd.f32 %v5878, %v6140
      %v6217 = vadd.f32 %v5879, %v6145
      %v6218 = vadd.f32 %v5880, %v6148
      %v6219 = vadd.f32 %v5881, %v6153
      %v6220 = vadd.f32 %v5882, %v6156
      %v6221 = vadd.f32 %v5883, %v6161
      %v6222 = vadd.f32 %v5884, %v6164
      %v6223 = vadd.f32 %v5885, %v6169
      %v6224 = vadd.f32 %v5886, %v6172
      %v6225 = vadd.f32 %v5887, %v6177
      %v6226 = vadd.f32 %v5888, %v6180
      %v6227 = vadd.f32 %v5889, %v6185
      %v6228 = vadd.f32 %v5890, %v6188
      %v6229 = vadd.f32 %v5891, %v6193
      %v6230 = vadd.f32 %v5892, %v6196
      %v6231 = vld [vmem:[#allocation3 + $0x27] sm:$0xff]
      %v6232 = vld [vmem:[#allocation3 + $0x2f] sm:$0xff]
      %v6233 = vld [vmem:[#allocation3 + $0x37] sm:$0xff]
      %v6234 = vld [vmem:[#allocation3 + $0x3f] sm:$0xff]
      %v6235 = vld [vmem:[#allocation3 + $0x47] sm:$0xff]
      %v6236 = vld [vmem:[#allocation3 + $0x4f] sm:$0xff]
      %v6237 = vld [vmem:[#allocation3 + $0x57] sm:$0xff]
      %v6238 = vld [vmem:[#allocation3 + $0x5f] sm:$0xff]
      %v6239 = vld [vmem:[#allocation3 + $0x67] sm:$0xff]
      %v6240 = vld [vmem:[#allocation3 + $0x6f] sm:$0xff]
      %v6241 = vld [vmem:[#allocation3 + $0x77] sm:$0xff]
      %v6242 = vld [vmem:[#allocation3 + $0x7f] sm:$0xff]
      %v6243 = vld [vmem:[#allocation3 + $0x87] sm:$0xff]
      %v6244 = vld [vmem:[#allocation3 + $0x8f] sm:$0xff]
      %v6245 = vld [vmem:[#allocation3 + $0x97] sm:$0xff]
      %v6246 = vld [vmem:[#allocation3 + $0x9f] sm:$0xff]
      %v6247 = vld [vmem:[#allocation3 + $0xa7] sm:$0xff]
      %v6248 = vld [vmem:[#allocation3 + $0xaf] sm:$0xff]
      %v6249 = vld [vmem:[#allocation3 + $0xb7] sm:$0xff]
      %v6250 = vld [vmem:[#allocation3 + $0xbf] sm:$0xff]
      %v6251 = vld [vmem:[#allocation3 + $0xc7] sm:$0xff]
      %v6252 = vld [vmem:[#allocation3 + $0xcf] sm:$0xff]
      %v6253 = vld [vmem:[#allocation3 + $0xd7] sm:$0xff]
      %v6254 = vld [vmem:[#allocation3 + $0xdf] sm:$0xff]
      %v6255 = vld [vmem:[#allocation3 + $0xe7] sm:$0xff]
      %v6256 = vld [vmem:[#allocation3 + $0xef] sm:$0xff]
      %v6257 = vld [vmem:[#allocation3 + $0xf7] sm:$0xff]
      %v6258 = vld [vmem:[#allocation3 + $0xff] sm:$0xff]
      %v6259 = vld [vmem:[#allocation3 + $0x107] sm:$0xff]
      %v6260 = vld [vmem:[#allocation3 + $0x10f] sm:$0xff]
      %v6261 = vld [vmem:[#allocation3 + $0x117] sm:$0xff]
      %v6262 = vld [vmem:[#allocation3 + $0x11f] sm:$0xff]
      %v6263 = vmul.f32 %v6231, %v4015
      %v6264 = vmul.f32 %v6232, %v4020
      %v6265 = vmul.f32 %v6233, %v4025
      %v6266 = vmul.f32 %v6234, %v4030
      %v6267 = vmul.f32 %v6235, %v4035
      %v6268 = vmul.f32 %v6236, %v4040
      %v6269 = vmul.f32 %v6237, %v4045
      %v6270 = vmul.f32 %v6238, %v4050
      %v6271 = vmul.f32 %v6239, %v4055
      %v6272 = vmul.f32 %v6240, %v4060
      %v6273 = vmul.f32 %v6241, %v4065
      %v6274 = vmul.f32 %v6242, %v4070
      %v6275 = vmul.f32 %v6243, %v4075
      %v6276 = vmul.f32 %v6244, %v4080
      %v6277 = vmul.f32 %v6245, %v4085
      %v6278 = vmul.f32 %v6246, %v4090
      %v6279 = vmul.f32 %v6247, %v4095
      %v6280 = vmul.f32 %v6248, %v4100
      %v6281 = vmul.f32 %v6249, %v4105
      %v6282 = vmul.f32 %v6250, %v4110
      %v6283 = vmul.f32 %v6251, %v4115
      %v6284 = vmul.f32 %v6252, %v4120
      %v6285 = vmul.f32 %v6253, %v4125
      %v6286 = vmul.f32 %v6254, %v4130
      %v6287 = vmul.f32 %v6255, %v4135
      %v6288 = vmul.f32 %v6256, %v4140
      %v6289 = vmul.f32 %v6257, %v4145
      %v6290 = vmul.f32 %v6258, %v4150
      %v6291 = vmul.f32 %v6259, %v4155
      %v6292 = vmul.f32 %v6260, %v4160
      %v6293 = vmul.f32 %v6261, %v4165
      %v6294 = vmul.f32 %v6262, %v4170
      %v6295 = vpack.c.bf16 %v6264, %v6263
      %v6296 = vpack.c.bf16 %v6266, %v6265
      %v6297 = vpack.c.bf16 %v6268, %v6267
      %v6298 = vpack.c.bf16 %v6270, %v6269
      %v6299 = vpack.c.bf16 %v6272, %v6271
      %v6300 = vpack.c.bf16 %v6274, %v6273
      %v6301 = vpack.c.bf16 %v6276, %v6275
      %v6302 = vpack.c.bf16 %v6278, %v6277
      %v6303 = vpack.c.bf16 %v6280, %v6279
      %v6304 = vpack.c.bf16 %v6282, %v6281
      %v6305 = vpack.c.bf16 %v6284, %v6283
      %v6306 = vpack.c.bf16 %v6286, %v6285
      %v6307 = vpack.c.bf16 %v6288, %v6287
      %v6308 = vpack.c.bf16 %v6290, %v6289
      %v6309 = vpack.c.bf16 %v6292, %v6291
      %v6310 = vpack.c.bf16 %v6294, %v6293
      %s6311 = scalar_lea.vmem %s4, 384
      %v6312 = vld [vmem:[%s6311] sm:$0xf]
      %v6313 = vld [vmem:[%s6311 + $0x4] sm:$0xf]
      %v6314 = vld [vmem:[%s6311 + $0x8] sm:$0xf]
      %v6315 = vld [vmem:[%s6311 + $0xc] sm:$0xf]
      %v6316 = vld [vmem:[%s6311 + $0x10] sm:$0xf]
      %v6317 = vld [vmem:[%s6311 + $0x14] sm:$0xf]
      %v6318 = vld [vmem:[%s6311 + $0x18] sm:$0xf]
      %v6319 = vld [vmem:[%s6311 + $0x1c] sm:$0xf]
      %v6320 = vld [vmem:[%s6311 + $0x20] sm:$0xf]
      %v6321 = vld [vmem:[%s6311 + $0x24] sm:$0xf]
      %v6322 = vld [vmem:[%s6311 + $0x28] sm:$0xf]
      %v6323 = vld [vmem:[%s6311 + $0x2c] sm:$0xf]
      %v6324 = vld [vmem:[%s6311 + $0x30] sm:$0xf]
      %v6325 = vld [vmem:[%s6311 + $0x34] sm:$0xf]
      %v6326 = vld [vmem:[%s6311 + $0x38] sm:$0xf]
      %v6327 = vld [vmem:[%s6311 + $0x3c] sm:$0xf]
      %v6344 = vunpack.c.l.b16 %v6312
      %v6345 = vunpack.c.l.b16 %v6313
      %v6346 = vunpack.c.l.b16 %v6314
      %v6347 = vunpack.c.l.b16 %v6315
      %v6348 = vunpack.c.l.b16 %v6316
      %v6349 = vunpack.c.l.b16 %v6317
      %v6350 = vunpack.c.l.b16 %v6318
      %v6351 = vunpack.c.l.b16 %v6319
      %v6352 = vunpack.c.l.b16 %v6320
      %v6353 = vunpack.c.l.b16 %v6321
      %v6354 = vunpack.c.l.b16 %v6322
      %v6355 = vunpack.c.l.b16 %v6323
      %v6356 = vunpack.c.l.b16 %v6324
      %v6357 = vunpack.c.l.b16 %v6325
      %v6358 = vunpack.c.l.b16 %v6326
      %v6359 = vunpack.c.l.b16 %v6327
      %v6360 = vpack.c.b16 %v6345, %v6344
      %v6361 = vpack.c.b16 %v6347, %v6346
      %v6362 = vpack.c.b16 %v6349, %v6348
      %v6363 = vpack.c.b16 %v6351, %v6350
      %v6364 = vpack.c.b16 %v6353, %v6352
      %v6365 = vpack.c.b16 %v6355, %v6354
      %v6366 = vpack.c.b16 %v6357, %v6356
      %v6367 = vpack.c.b16 %v6359, %v6358
      %6376 = vmatprep.subr.bf16.mxu0 0
      %6377 = vmatpush1.bf16.msra.mxu0 %v6367
      %6378 = vmatprep.subr.bf16.mxu0 0
      %6379 = vmatpush1.bf16.msra.mxu0 %v6366
      %6380 = vmatprep.subr.bf16.mxu0 0
      %6381 = vmatpush1.bf16.msra.mxu0 %v6365
      %6382 = vmatprep.subr.bf16.mxu0 0
      %6383 = vmatpush1.bf16.msra.mxu0 %v6364
      %6384 = vmatprep.subr.bf16.mxu0 0
      %6385 = vmatpush1.bf16.msra.mxu0 %v6363
      %6386 = vmatprep.subr.bf16.mxu0 0
      %6387 = vmatpush1.bf16.msra.mxu0 %v6362
      %6388 = vmatprep.subr.bf16.mxu0 0
      %6389 = vmatpush1.bf16.msra.mxu0 %v6361
      %6390 = vmatprep.subr.bf16.mxu0 0
      %6391 = vmatpush1.bf16.msra.mxu0 %v6360
      %6392 = vmatprep.subr.bf16.mxu0 0
      %6393 = vmatpush2.bf16.msra.mxu0 0
      %6394 = vmatprep.subr.bf16.mxu0 0
      %6395 = vmatpush2.bf16.msra.mxu0 0
      %6396 = vmatprep.subr.bf16.mxu0 0
      %6397 = vmatpush2.bf16.msra.mxu0 0
      %6398 = vmatprep.subr.bf16.mxu0 0
      %6399 = vmatpush2.bf16.msra.mxu0 0
      %6400 = vmatprep.subr.bf16.mxu0 0
      %6401 = vmatpush2.bf16.msra.mxu0 0
      %6402 = vmatprep.subr.bf16.mxu0 0
      %6403 = vmatpush2.bf16.msra.mxu0 0
      %6404 = vmatprep.subr.bf16.mxu0 0
      %6405 = vmatpush2.bf16.msra.mxu0 0
      %6406 = vmatprep.subr.bf16.mxu0 0
      %6407 = vmatpush2.bf16.msra.mxu0 0
      %6408 = vmatprep.mubr.bf16.mxu0 0
      %6409 = vmatmul.mubr.bf16.gmra.mxu0 %v6295
      %v6410 = vpop.f32.mrf.mxu0
      %v6411 = vadd.f32 0.0, %v6410
      %v6412 = vpop.f32.mrf.mxu0
      %v6413 = vpop.f32.mrf.mxu0
      %v6414 = vadd.f32 0.0, %v6413
      %v6415 = vpop.f32.mrf.mxu0
      %6416 = vmatprep.mubr.bf16.mxu0 0
      %6417 = vmatmul.mubr.bf16.gmra.mxu0 %v6296
      %v6418 = vpop.f32.mrf.mxu0
      %v6419 = vadd.f32 0.0, %v6418
      %v6420 = vpop.f32.mrf.mxu0
      %v6421 = vpop.f32.mrf.mxu0
      %v6422 = vadd.f32 0.0, %v6421
      %v6423 = vpop.f32.mrf.mxu0
      %6424 = vmatprep.mubr.bf16.mxu0 0
      %6425 = vmatmul.mubr.bf16.gmra.mxu0 %v6297
      %v6426 = vpop.f32.mrf.mxu0
      %v6427 = vadd.f32 0.0, %v6426
      %v6428 = vpop.f32.mrf.mxu0
      %v6429 = vpop.f32.mrf.mxu0
      %v6430 = vadd.f32 0.0, %v6429
      %v6431 = vpop.f32.mrf.mxu0
      %6432 = vmatprep.mubr.bf16.mxu0 0
      %6433 = vmatmul.mubr.bf16.gmra.mxu0 %v6298
      %v6434 = vpop.f32.mrf.mxu0
      %v6435 = vadd.f32 0.0, %v6434
      %v6436 = vpop.f32.mrf.mxu0
      %v6437 = vpop.f32.mrf.mxu0
      %v6438 = vadd.f32 0.0, %v6437
      %v6439 = vpop.f32.mrf.mxu0
      %6440 = vmatprep.mubr.bf16.mxu0 0
      %6441 = vmatmul.mubr.bf16.gmra.mxu0 %v6299
      %v6442 = vpop.f32.mrf.mxu0
      %v6443 = vadd.f32 0.0, %v6442
      %v6444 = vpop.f32.mrf.mxu0
      %v6445 = vpop.f32.mrf.mxu0
      %v6446 = vadd.f32 0.0, %v6445
      %v6447 = vpop.f32.mrf.mxu0
      %6448 = vmatprep.mubr.bf16.mxu0 0
      %6449 = vmatmul.mubr.bf16.gmra.mxu0 %v6300
      %v6450 = vpop.f32.mrf.mxu0
      %v6451 = vadd.f32 0.0, %v6450
      %v6452 = vpop.f32.mrf.mxu0
      %v6453 = vpop.f32.mrf.mxu0
      %v6454 = vadd.f32 0.0, %v6453
      %v6455 = vpop.f32.mrf.mxu0
      %6456 = vmatprep.mubr.bf16.mxu0 0
      %6457 = vmatmul.mubr.bf16.gmra.mxu0 %v6301
      %v6458 = vpop.f32.mrf.mxu0
      %v6459 = vadd.f32 0.0, %v6458
      %v6460 = vpop.f32.mrf.mxu0
      %v6461 = vpop.f32.mrf.mxu0
      %v6462 = vadd.f32 0.0, %v6461
      %v6463 = vpop.f32.mrf.mxu0
      %6464 = vmatprep.mubr.bf16.mxu0 0
      %6465 = vmatmul.mubr.bf16.gmra.mxu0 %v6302
      %v6466 = vpop.f32.mrf.mxu0
      %v6467 = vadd.f32 0.0, %v6466
      %v6468 = vpop.f32.mrf.mxu0
      %v6469 = vpop.f32.mrf.mxu0
      %v6470 = vadd.f32 0.0, %v6469
      %v6471 = vpop.f32.mrf.mxu0
      %6472 = vmatprep.mubr.bf16.mxu0 0
      %6473 = vmatmul.mubr.bf16.gmra.mxu0 %v6303
      %v6474 = vpop.f32.mrf.mxu0
      %v6475 = vadd.f32 0.0, %v6474
      %v6476 = vpop.f32.mrf.mxu0
      %v6477 = vpop.f32.mrf.mxu0
      %v6478 = vadd.f32 0.0, %v6477
      %v6479 = vpop.f32.mrf.mxu0
      %6480 = vmatprep.mubr.bf16.mxu0 0
      %6481 = vmatmul.mubr.bf16.gmra.mxu0 %v6304
      %v6482 = vpop.f32.mrf.mxu0
      %v6483 = vadd.f32 0.0, %v6482
      %v6484 = vpop.f32.mrf.mxu0
      %v6485 = vpop.f32.mrf.mxu0
      %v6486 = vadd.f32 0.0, %v6485
      %v6487 = vpop.f32.mrf.mxu0
      %6488 = vmatprep.mubr.bf16.mxu0 0
      %6489 = vmatmul.mubr.bf16.gmra.mxu0 %v6305
      %v6490 = vpop.f32.mrf.mxu0
      %v6491 = vadd.f32 0.0, %v6490
      %v6492 = vpop.f32.mrf.mxu0
      %v6493 = vpop.f32.mrf.mxu0
      %v6494 = vadd.f32 0.0, %v6493
      %v6495 = vpop.f32.mrf.mxu0
      %6496 = vmatprep.mubr.bf16.mxu0 0
      %6497 = vmatmul.mubr.bf16.gmra.mxu0 %v6306
      %v6498 = vpop.f32.mrf.mxu0
      %v6499 = vadd.f32 0.0, %v6498
      %v6500 = vpop.f32.mrf.mxu0
      %v6501 = vpop.f32.mrf.mxu0
      %v6502 = vadd.f32 0.0, %v6501
      %v6503 = vpop.f32.mrf.mxu0
      %6504 = vmatprep.mubr.bf16.mxu0 0
      %6505 = vmatmul.mubr.bf16.gmra.mxu0 %v6307
      %v6506 = vpop.f32.mrf.mxu0
      %v6507 = vadd.f32 0.0, %v6506
      %v6508 = vpop.f32.mrf.mxu0
      %v6509 = vpop.f32.mrf.mxu0
      %v6510 = vadd.f32 0.0, %v6509
      %v6511 = vpop.f32.mrf.mxu0
      %6512 = vmatprep.mubr.bf16.mxu0 0
      %6513 = vmatmul.mubr.bf16.gmra.mxu0 %v6308
      %v6514 = vpop.f32.mrf.mxu0
      %v6515 = vadd.f32 0.0, %v6514
      %v6516 = vpop.f32.mrf.mxu0
      %v6517 = vpop.f32.mrf.mxu0
      %v6518 = vadd.f32 0.0, %v6517
      %v6519 = vpop.f32.mrf.mxu0
      %6520 = vmatprep.mubr.bf16.mxu0 0
      %6521 = vmatmul.mubr.bf16.gmra.mxu0 %v6309
      %v6522 = vpop.f32.mrf.mxu0
      %v6523 = vadd.f32 0.0, %v6522
      %v6524 = vpop.f32.mrf.mxu0
      %v6525 = vpop.f32.mrf.mxu0
      %v6526 = vadd.f32 0.0, %v6525
      %v6527 = vpop.f32.mrf.mxu0
      %6528 = vmatprep.mubr.bf16.mxu0 0
      %6529 = vmatmul.mubr.bf16.gmra.mxu0 %v6310
      %v6530 = vpop.f32.mrf.mxu0
      %v6531 = vadd.f32 0.0, %v6530
      %v6532 = vpop.f32.mrf.mxu0
      %v6533 = vpop.f32.mrf.mxu0
      %v6534 = vadd.f32 0.0, %v6533
      %v6535 = vpop.f32.mrf.mxu0
      %6536 = vdwg.mxu0
      %v6537 = vadd.f32 %v6199, %v6411
      %v6538 = vadd.f32 %v6200, %v6414
      %v6539 = vadd.f32 %v6201, %v6419
      %v6540 = vadd.f32 %v6202, %v6422
      %v6541 = vadd.f32 %v6203, %v6427
      %v6542 = vadd.f32 %v6204, %v6430
      %v6543 = vadd.f32 %v6205, %v6435
      %v6544 = vadd.f32 %v6206, %v6438
      %v6545 = vadd.f32 %v6207, %v6443
      %v6546 = vadd.f32 %v6208, %v6446
      %v6547 = vadd.f32 %v6209, %v6451
      %v6548 = vadd.f32 %v6210, %v6454
      %v6549 = vadd.f32 %v6211, %v6459
      %v6550 = vadd.f32 %v6212, %v6462
      %v6551 = vadd.f32 %v6213, %v6467
      %v6552 = vadd.f32 %v6214, %v6470
      %v6553 = vadd.f32 %v6215, %v6475
      %v6554 = vadd.f32 %v6216, %v6478
      %v6555 = vadd.f32 %v6217, %v6483
      %v6556 = vadd.f32 %v6218, %v6486
      %v6557 = vadd.f32 %v6219, %v6491
      %v6558 = vadd.f32 %v6220, %v6494
      %v6559 = vadd.f32 %v6221, %v6499
      %v6560 = vadd.f32 %v6222, %v6502
      %v6561 = vadd.f32 %v6223, %v6507
      %v6562 = vadd.f32 %v6224, %v6510
      %v6563 = vadd.f32 %v6225, %v6515
      %v6564 = vadd.f32 %v6226, %v6518
      %v6565 = vadd.f32 %v6227, %v6523
      %v6566 = vadd.f32 %v6228, %v6526
      %v6567 = vadd.f32 %v6229, %v6531
      %v6568 = vadd.f32 %v6230, %v6534
      %v6569 = vld [vmem:[#allocation3 + $0x28] sm:$0xff]
      %v6570 = vld [vmem:[#allocation3 + $0x30] sm:$0xff]
      %v6571 = vld [vmem:[#allocation3 + $0x38] sm:$0xff]
      %v6572 = vld [vmem:[#allocation3 + $0x40] sm:$0xff]
      %v6573 = vld [vmem:[#allocation3 + $0x48] sm:$0xff]
      %v6574 = vld [vmem:[#allocation3 + $0x50] sm:$0xff]
      %v6575 = vld [vmem:[#allocation3 + $0x58] sm:$0xff]
      %v6576 = vld [vmem:[#allocation3 + $0x60] sm:$0xff]
      %v6577 = vld [vmem:[#allocation3 + $0x68] sm:$0xff]
      %v6578 = vld [vmem:[#allocation3 + $0x70] sm:$0xff]
      %v6579 = vld [vmem:[#allocation3 + $0x78] sm:$0xff]
      %v6580 = vld [vmem:[#allocation3 + $0x80] sm:$0xff]
      %v6581 = vld [vmem:[#allocation3 + $0x88] sm:$0xff]
      %v6582 = vld [vmem:[#allocation3 + $0x90] sm:$0xff]
      %v6583 = vld [vmem:[#allocation3 + $0x98] sm:$0xff]
      %v6584 = vld [vmem:[#allocation3 + $0xa0] sm:$0xff]
      %v6585 = vld [vmem:[#allocation3 + $0xa8] sm:$0xff]
      %v6586 = vld [vmem:[#allocation3 + $0xb0] sm:$0xff]
      %v6587 = vld [vmem:[#allocation3 + $0xb8] sm:$0xff]
      %v6588 = vld [vmem:[#allocation3 + $0xc0] sm:$0xff]
      %v6589 = vld [vmem:[#allocation3 + $0xc8] sm:$0xff]
      %v6590 = vld [vmem:[#allocation3 + $0xd0] sm:$0xff]
      %v6591 = vld [vmem:[#allocation3 + $0xd8] sm:$0xff]
      %v6592 = vld [vmem:[#allocation3 + $0xe0] sm:$0xff]
      %v6593 = vld [vmem:[#allocation3 + $0xe8] sm:$0xff]
      %v6594 = vld [vmem:[#allocation3 + $0xf0] sm:$0xff]
      %v6595 = vld [vmem:[#allocation3 + $0xf8] sm:$0xff]
      %v6596 = vld [vmem:[#allocation3 + $0x100] sm:$0xff]
      %v6597 = vld [vmem:[#allocation3 + $0x108] sm:$0xff]
      %v6598 = vld [vmem:[#allocation3 + $0x110] sm:$0xff]
      %v6599 = vld [vmem:[#allocation3 + $0x118] sm:$0xff]
      %v6600 = vld [vmem:[#allocation3 + $0x120] sm:$0xff]
      %v6601 = vpack.c.bf16 %v6570, %v6569
      %v6602 = vpack.c.bf16 %v6572, %v6571
      %v6603 = vpack.c.bf16 %v6574, %v6573
      %v6604 = vpack.c.bf16 %v6576, %v6575
      %v6605 = vpack.c.bf16 %v6578, %v6577
      %v6606 = vpack.c.bf16 %v6580, %v6579
      %v6607 = vpack.c.bf16 %v6582, %v6581
      %v6608 = vpack.c.bf16 %v6584, %v6583
      %v6609 = vpack.c.bf16 %v6586, %v6585
      %v6610 = vpack.c.bf16 %v6588, %v6587
      %v6611 = vpack.c.bf16 %v6590, %v6589
      %v6612 = vpack.c.bf16 %v6592, %v6591
      %v6613 = vpack.c.bf16 %v6594, %v6593
      %v6614 = vpack.c.bf16 %v6596, %v6595
      %v6615 = vpack.c.bf16 %v6598, %v6597
      %v6616 = vpack.c.bf16 %v6600, %v6599
      %s6617 = scalar_lea.vmem %s4, 448
      %v6618 = vld [vmem:[%s6617] sm:$0xf]
      %v6619 = vld [vmem:[%s6617 + $0x4] sm:$0xf]
      %v6620 = vld [vmem:[%s6617 + $0x8] sm:$0xf]
      %v6621 = vld [vmem:[%s6617 + $0xc] sm:$0xf]
      %v6622 = vld [vmem:[%s6617 + $0x10] sm:$0xf]
      %v6623 = vld [vmem:[%s6617 + $0x14] sm:$0xf]
      %v6624 = vld [vmem:[%s6617 + $0x18] sm:$0xf]
      %v6625 = vld [vmem:[%s6617 + $0x1c] sm:$0xf]
      %v6626 = vld [vmem:[%s6617 + $0x20] sm:$0xf]
      %v6627 = vld [vmem:[%s6617 + $0x24] sm:$0xf]
      %v6628 = vld [vmem:[%s6617 + $0x28] sm:$0xf]
      %v6629 = vld [vmem:[%s6617 + $0x2c] sm:$0xf]
      %v6630 = vld [vmem:[%s6617 + $0x30] sm:$0xf]
      %v6631 = vld [vmem:[%s6617 + $0x34] sm:$0xf]
      %v6632 = vld [vmem:[%s6617 + $0x38] sm:$0xf]
      %v6633 = vld [vmem:[%s6617 + $0x3c] sm:$0xf]
      %v6650 = vunpack.c.l.b16 %v6618
      %v6651 = vunpack.c.l.b16 %v6619
      %v6652 = vunpack.c.l.b16 %v6620
      %v6653 = vunpack.c.l.b16 %v6621
      %v6654 = vunpack.c.l.b16 %v6622
      %v6655 = vunpack.c.l.b16 %v6623
      %v6656 = vunpack.c.l.b16 %v6624
      %v6657 = vunpack.c.l.b16 %v6625
      %v6658 = vunpack.c.l.b16 %v6626
      %v6659 = vunpack.c.l.b16 %v6627
      %v6660 = vunpack.c.l.b16 %v6628
      %v6661 = vunpack.c.l.b16 %v6629
      %v6662 = vunpack.c.l.b16 %v6630
      %v6663 = vunpack.c.l.b16 %v6631
      %v6664 = vunpack.c.l.b16 %v6632
      %v6665 = vunpack.c.l.b16 %v6633
      %v6666 = vpack.c.b16 %v6651, %v6650
      %v6667 = vpack.c.b16 %v6653, %v6652
      %v6668 = vpack.c.b16 %v6655, %v6654
      %v6669 = vpack.c.b16 %v6657, %v6656
      %v6670 = vpack.c.b16 %v6659, %v6658
      %v6671 = vpack.c.b16 %v6661, %v6660
      %v6672 = vpack.c.b16 %v6663, %v6662
      %v6673 = vpack.c.b16 %v6665, %v6664
      %6682 = vmatprep.subr.bf16.mxu0 0
      %6683 = vmatpush1.bf16.msra.mxu0 %v6673
      %6684 = vmatprep.subr.bf16.mxu0 0
      %6685 = vmatpush1.bf16.msra.mxu0 %v6672
      %6686 = vmatprep.subr.bf16.mxu0 0
      %6687 = vmatpush1.bf16.msra.mxu0 %v6671
      %6688 = vmatprep.subr.bf16.mxu0 0
      %6689 = vmatpush1.bf16.msra.mxu0 %v6670
      %6690 = vmatprep.subr.bf16.mxu0 0
      %6691 = vmatpush1.bf16.msra.mxu0 %v6669
      %6692 = vmatprep.subr.bf16.mxu0 0
      %6693 = vmatpush1.bf16.msra.mxu0 %v6668
      %6694 = vmatprep.subr.bf16.mxu0 0
      %6695 = vmatpush1.bf16.msra.mxu0 %v6667
      %6696 = vmatprep.subr.bf16.mxu0 0
      %6697 = vmatpush1.bf16.msra.mxu0 %v6666
      %6698 = vmatprep.subr.bf16.mxu0 0
      %6699 = vmatpush2.bf16.msra.mxu0 0
      %6700 = vmatprep.subr.bf16.mxu0 0
      %6701 = vmatpush2.bf16.msra.mxu0 0
      %6702 = vmatprep.subr.bf16.mxu0 0
      %6703 = vmatpush2.bf16.msra.mxu0 0
      %6704 = vmatprep.subr.bf16.mxu0 0
      %6705 = vmatpush2.bf16.msra.mxu0 0
      %6706 = vmatprep.subr.bf16.mxu0 0
      %6707 = vmatpush2.bf16.msra.mxu0 0
      %6708 = vmatprep.subr.bf16.mxu0 0
      %6709 = vmatpush2.bf16.msra.mxu0 0
      %6710 = vmatprep.subr.bf16.mxu0 0
      %6711 = vmatpush2.bf16.msra.mxu0 0
      %6712 = vmatprep.subr.bf16.mxu0 0
      %6713 = vmatpush2.bf16.msra.mxu0 0
      %6714 = vmatprep.mubr.bf16.mxu0 0
      %6715 = vmatmul.mubr.bf16.gmra.mxu0 %v6601
      %v6716 = vpop.f32.mrf.mxu0
      %v6717 = vadd.f32 0.0, %v6716
      %v6718 = vpop.f32.mrf.mxu0
      %v6719 = vpop.f32.mrf.mxu0
      %v6720 = vadd.f32 0.0, %v6719
      %v6721 = vpop.f32.mrf.mxu0
      %6722 = vmatprep.mubr.bf16.mxu0 0
      %6723 = vmatmul.mubr.bf16.gmra.mxu0 %v6602
      %v6724 = vpop.f32.mrf.mxu0
      %v6725 = vadd.f32 0.0, %v6724
      %v6726 = vpop.f32.mrf.mxu0
      %v6727 = vpop.f32.mrf.mxu0
      %v6728 = vadd.f32 0.0, %v6727
      %v6729 = vpop.f32.mrf.mxu0
      %6730 = vmatprep.mubr.bf16.mxu0 0
      %6731 = vmatmul.mubr.bf16.gmra.mxu0 %v6603
      %v6732 = vpop.f32.mrf.mxu0
      %v6733 = vadd.f32 0.0, %v6732
      %v6734 = vpop.f32.mrf.mxu0
      %v6735 = vpop.f32.mrf.mxu0
      %v6736 = vadd.f32 0.0, %v6735
      %v6737 = vpop.f32.mrf.mxu0
      %6738 = vmatprep.mubr.bf16.mxu0 0
      %6739 = vmatmul.mubr.bf16.gmra.mxu0 %v6604
      %v6740 = vpop.f32.mrf.mxu0
      %v6741 = vadd.f32 0.0, %v6740
      %v6742 = vpop.f32.mrf.mxu0
      %v6743 = vpop.f32.mrf.mxu0
      %v6744 = vadd.f32 0.0, %v6743
      %v6745 = vpop.f32.mrf.mxu0
      %6746 = vmatprep.mubr.bf16.mxu0 0
      %6747 = vmatmul.mubr.bf16.gmra.mxu0 %v6605
      %v6748 = vpop.f32.mrf.mxu0
      %v6749 = vadd.f32 0.0, %v6748
      %v6750 = vpop.f32.mrf.mxu0
      %v6751 = vpop.f32.mrf.mxu0
      %v6752 = vadd.f32 0.0, %v6751
      %v6753 = vpop.f32.mrf.mxu0
      %6754 = vmatprep.mubr.bf16.mxu0 0
      %6755 = vmatmul.mubr.bf16.gmra.mxu0 %v6606
      %v6756 = vpop.f32.mrf.mxu0
      %v6757 = vadd.f32 0.0, %v6756
      %v6758 = vpop.f32.mrf.mxu0
      %v6759 = vpop.f32.mrf.mxu0
      %v6760 = vadd.f32 0.0, %v6759
      %v6761 = vpop.f32.mrf.mxu0
      %6762 = vmatprep.mubr.bf16.mxu0 0
      %6763 = vmatmul.mubr.bf16.gmra.mxu0 %v6607
      %v6764 = vpop.f32.mrf.mxu0
      %v6765 = vadd.f32 0.0, %v6764
      %v6766 = vpop.f32.mrf.mxu0
      %v6767 = vpop.f32.mrf.mxu0
      %v6768 = vadd.f32 0.0, %v6767
      %v6769 = vpop.f32.mrf.mxu0
      %6770 = vmatprep.mubr.bf16.mxu0 0
      %6771 = vmatmul.mubr.bf16.gmra.mxu0 %v6608
      %v6772 = vpop.f32.mrf.mxu0
      %v6773 = vadd.f32 0.0, %v6772
      %v6774 = vpop.f32.mrf.mxu0
      %v6775 = vpop.f32.mrf.mxu0
      %v6776 = vadd.f32 0.0, %v6775
      %v6777 = vpop.f32.mrf.mxu0
      %6778 = vmatprep.mubr.bf16.mxu0 0
      %6779 = vmatmul.mubr.bf16.gmra.mxu0 %v6609
      %v6780 = vpop.f32.mrf.mxu0
      %v6781 = vadd.f32 0.0, %v6780
      %v6782 = vpop.f32.mrf.mxu0
      %v6783 = vpop.f32.mrf.mxu0
      %v6784 = vadd.f32 0.0, %v6783
      %v6785 = vpop.f32.mrf.mxu0
      %6786 = vmatprep.mubr.bf16.mxu0 0
      %6787 = vmatmul.mubr.bf16.gmra.mxu0 %v6610
      %v6788 = vpop.f32.mrf.mxu0
      %v6789 = vadd.f32 0.0, %v6788
      %v6790 = vpop.f32.mrf.mxu0
      %v6791 = vpop.f32.mrf.mxu0
      %v6792 = vadd.f32 0.0, %v6791
      %v6793 = vpop.f32.mrf.mxu0
      %6794 = vmatprep.mubr.bf16.mxu0 0
      %6795 = vmatmul.mubr.bf16.gmra.mxu0 %v6611
      %v6796 = vpop.f32.mrf.mxu0
      %v6797 = vadd.f32 0.0, %v6796
      %v6798 = vpop.f32.mrf.mxu0
      %v6799 = vpop.f32.mrf.mxu0
      %v6800 = vadd.f32 0.0, %v6799
      %v6801 = vpop.f32.mrf.mxu0
      %6802 = vmatprep.mubr.bf16.mxu0 0
      %6803 = vmatmul.mubr.bf16.gmra.mxu0 %v6612
      %v6804 = vpop.f32.mrf.mxu0
      %v6805 = vadd.f32 0.0, %v6804
      %v6806 = vpop.f32.mrf.mxu0
      %v6807 = vpop.f32.mrf.mxu0
      %v6808 = vadd.f32 0.0, %v6807
      %v6809 = vpop.f32.mrf.mxu0
      %6810 = vmatprep.mubr.bf16.mxu0 0
      %6811 = vmatmul.mubr.bf16.gmra.mxu0 %v6613
      %v6812 = vpop.f32.mrf.mxu0
      %v6813 = vadd.f32 0.0, %v6812
      %v6814 = vpop.f32.mrf.mxu0
      %v6815 = vpop.f32.mrf.mxu0
      %v6816 = vadd.f32 0.0, %v6815
      %v6817 = vpop.f32.mrf.mxu0
      %6818 = vmatprep.mubr.bf16.mxu0 0
      %6819 = vmatmul.mubr.bf16.gmra.mxu0 %v6614
      %v6820 = vpop.f32.mrf.mxu0
      %v6821 = vadd.f32 0.0, %v6820
      %v6822 = vpop.f32.mrf.mxu0
      %v6823 = vpop.f32.mrf.mxu0
      %v6824 = vadd.f32 0.0, %v6823
      %v6825 = vpop.f32.mrf.mxu0
      %6826 = vmatprep.mubr.bf16.mxu0 0
      %6827 = vmatmul.mubr.bf16.gmra.mxu0 %v6615
      %v6828 = vpop.f32.mrf.mxu0
      %v6829 = vadd.f32 0.0, %v6828
      %v6830 = vpop.f32.mrf.mxu0
      %v6831 = vpop.f32.mrf.mxu0
      %v6832 = vadd.f32 0.0, %v6831
      %v6833 = vpop.f32.mrf.mxu0
      %6834 = vmatprep.mubr.bf16.mxu0 0
      %6835 = vmatmul.mubr.bf16.gmra.mxu0 %v6616
      %v6836 = vpop.f32.mrf.mxu0
      %v6837 = vadd.f32 0.0, %v6836
      %v6838 = vpop.f32.mrf.mxu0
      %v6839 = vpop.f32.mrf.mxu0
      %v6840 = vadd.f32 0.0, %v6839
      %v6841 = vpop.f32.mrf.mxu0
      %6842 = vdwg.mxu0
      %v6843 = vadd.f32 %v6537, %v6717
      %v6844 = vadd.f32 %v6538, %v6720
      %v6845 = vadd.f32 %v6539, %v6725
      %v6846 = vadd.f32 %v6540, %v6728
      %v6847 = vadd.f32 %v6541, %v6733
      %v6848 = vadd.f32 %v6542, %v6736
      %v6849 = vadd.f32 %v6543, %v6741
      %v6850 = vadd.f32 %v6544, %v6744
      %v6851 = vadd.f32 %v6545, %v6749
      %v6852 = vadd.f32 %v6546, %v6752
      %v6853 = vadd.f32 %v6547, %v6757
      %v6854 = vadd.f32 %v6548, %v6760
      %v6855 = vadd.f32 %v6549, %v6765
      %v6856 = vadd.f32 %v6550, %v6768
      %v6857 = vadd.f32 %v6551, %v6773
      %v6858 = vadd.f32 %v6552, %v6776
      %v6859 = vadd.f32 %v6553, %v6781
      %v6860 = vadd.f32 %v6554, %v6784
      %v6861 = vadd.f32 %v6555, %v6789
      %v6862 = vadd.f32 %v6556, %v6792
      %v6863 = vadd.f32 %v6557, %v6797
      %v6864 = vadd.f32 %v6558, %v6800
      %v6865 = vadd.f32 %v6559, %v6805
      %v6866 = vadd.f32 %v6560, %v6808
      %v6867 = vadd.f32 %v6561, %v6813
      %v6868 = vadd.f32 %v6562, %v6816
      %v6869 = vadd.f32 %v6563, %v6821
      %v6870 = vadd.f32 %v6564, %v6824
      %v6871 = vadd.f32 %v6565, %v6829
      %v6872 = vadd.f32 %v6566, %v6832
      %v6873 = vadd.f32 %v6567, %v6837
      %v6874 = vadd.f32 %v6568, %v6840
      %v6875 = vld [vmem:[#allocation3 + $0x29] sm:$0xff]
      %v6876 = vld [vmem:[#allocation3 + $0x31] sm:$0xff]
      %v6877 = vld [vmem:[#allocation3 + $0x39] sm:$0xff]
      %v6878 = vld [vmem:[#allocation3 + $0x41] sm:$0xff]
      %v6879 = vld [vmem:[#allocation3 + $0x49] sm:$0xff]
      %v6880 = vld [vmem:[#allocation3 + $0x51] sm:$0xff]
      %v6881 = vld [vmem:[#allocation3 + $0x59] sm:$0xff]
      %v6882 = vld [vmem:[#allocation3 + $0x61] sm:$0xff]
      %v6883 = vld [vmem:[#allocation3 + $0x69] sm:$0xff]
      %v6884 = vld [vmem:[#allocation3 + $0x71] sm:$0xff]
      %v6885 = vld [vmem:[#allocation3 + $0x79] sm:$0xff]
      %v6886 = vld [vmem:[#allocation3 + $0x81] sm:$0xff]
      %v6887 = vld [vmem:[#allocation3 + $0x89] sm:$0xff]
      %v6888 = vld [vmem:[#allocation3 + $0x91] sm:$0xff]
      %v6889 = vld [vmem:[#allocation3 + $0x99] sm:$0xff]
      %v6890 = vld [vmem:[#allocation3 + $0xa1] sm:$0xff]
      %v6891 = vld [vmem:[#allocation3 + $0xa9] sm:$0xff]
      %v6892 = vld [vmem:[#allocation3 + $0xb1] sm:$0xff]
      %v6893 = vld [vmem:[#allocation3 + $0xb9] sm:$0xff]
      %v6894 = vld [vmem:[#allocation3 + $0xc1] sm:$0xff]
      %v6895 = vld [vmem:[#allocation3 + $0xc9] sm:$0xff]
      %v6896 = vld [vmem:[#allocation3 + $0xd1] sm:$0xff]
      %v6897 = vld [vmem:[#allocation3 + $0xd9] sm:$0xff]
      %v6898 = vld [vmem:[#allocation3 + $0xe1] sm:$0xff]
      %v6899 = vld [vmem:[#allocation3 + $0xe9] sm:$0xff]
      %v6900 = vld [vmem:[#allocation3 + $0xf1] sm:$0xff]
      %v6901 = vld [vmem:[#allocation3 + $0xf9] sm:$0xff]
      %v6902 = vld [vmem:[#allocation3 + $0x101] sm:$0xff]
      %v6903 = vld [vmem:[#allocation3 + $0x109] sm:$0xff]
      %v6904 = vld [vmem:[#allocation3 + $0x111] sm:$0xff]
      %v6905 = vld [vmem:[#allocation3 + $0x119] sm:$0xff]
      %v6906 = vld [vmem:[#allocation3 + $0x121] sm:$0xff]
      %v6907 = vmul.f32 %v6875, %v4786
      %v6908 = vmul.f32 %v6876, %v4791
      %v6909 = vmul.f32 %v6877, %v4796
      %v6910 = vmul.f32 %v6878, %v4801
      %v6911 = vmul.f32 %v6879, %v4806
      %v6912 = vmul.f32 %v6880, %v4811
      %v6913 = vmul.f32 %v6881, %v4816
      %v6914 = vmul.f32 %v6882, %v4821
      %v6915 = vmul.f32 %v6883, %v4826
      %v6916 = vmul.f32 %v6884, %v4831
      %v6917 = vmul.f32 %v6885, %v4836
      %v6918 = vmul.f32 %v6886, %v4841
      %v6919 = vmul.f32 %v6887, %v4846
      %v6920 = vmul.f32 %v6888, %v4851
      %v6921 = vmul.f32 %v6889, %v4856
      %v6922 = vmul.f32 %v6890, %v4861
      %v6923 = vmul.f32 %v6891, %v4866
      %v6924 = vmul.f32 %v6892, %v4871
      %v6925 = vmul.f32 %v6893, %v4876
      %v6926 = vmul.f32 %v6894, %v4881
      %v6927 = vmul.f32 %v6895, %v4886
      %v6928 = vmul.f32 %v6896, %v4891
      %v6929 = vmul.f32 %v6897, %v4896
      %v6930 = vmul.f32 %v6898, %v4901
      %v6931 = vmul.f32 %v6899, %v4906
      %v6932 = vmul.f32 %v6900, %v4911
      %v6933 = vmul.f32 %v6901, %v4916
      %v6934 = vmul.f32 %v6902, %v4921
      %v6935 = vmul.f32 %v6903, %v4926
      %v6936 = vmul.f32 %v6904, %v4931
      %v6937 = vmul.f32 %v6905, %v4936
      %v6938 = vmul.f32 %v6906, %v4941
      %v6939 = vpack.c.bf16 %v6908, %v6907
      %v6940 = vpack.c.bf16 %v6910, %v6909
      %v6941 = vpack.c.bf16 %v6912, %v6911
      %v6942 = vpack.c.bf16 %v6914, %v6913
      %v6943 = vpack.c.bf16 %v6916, %v6915
      %v6944 = vpack.c.bf16 %v6918, %v6917
      %v6945 = vpack.c.bf16 %v6920, %v6919
      %v6946 = vpack.c.bf16 %v6922, %v6921
      %v6947 = vpack.c.bf16 %v6924, %v6923
      %v6948 = vpack.c.bf16 %v6926, %v6925
      %v6949 = vpack.c.bf16 %v6928, %v6927
      %v6950 = vpack.c.bf16 %v6930, %v6929
      %v6951 = vpack.c.bf16 %v6932, %v6931
      %v6952 = vpack.c.bf16 %v6934, %v6933
      %v6953 = vpack.c.bf16 %v6936, %v6935
      %v6954 = vpack.c.bf16 %v6938, %v6937
      %s6955 = scalar_lea.vmem %s4, 512
      %v6956 = vld [vmem:[%s6955] sm:$0xf]
      %v6957 = vld [vmem:[%s6955 + $0x4] sm:$0xf]
      %v6958 = vld [vmem:[%s6955 + $0x8] sm:$0xf]
      %v6959 = vld [vmem:[%s6955 + $0xc] sm:$0xf]
      %v6960 = vld [vmem:[%s6955 + $0x10] sm:$0xf]
      %v6961 = vld [vmem:[%s6955 + $0x14] sm:$0xf]
      %v6962 = vld [vmem:[%s6955 + $0x18] sm:$0xf]
      %v6963 = vld [vmem:[%s6955 + $0x1c] sm:$0xf]
      %v6964 = vld [vmem:[%s6955 + $0x20] sm:$0xf]
      %v6965 = vld [vmem:[%s6955 + $0x24] sm:$0xf]
      %v6966 = vld [vmem:[%s6955 + $0x28] sm:$0xf]
      %v6967 = vld [vmem:[%s6955 + $0x2c] sm:$0xf]
      %v6968 = vld [vmem:[%s6955 + $0x30] sm:$0xf]
      %v6969 = vld [vmem:[%s6955 + $0x34] sm:$0xf]
      %v6970 = vld [vmem:[%s6955 + $0x38] sm:$0xf]
      %v6971 = vld [vmem:[%s6955 + $0x3c] sm:$0xf]
      %v6988 = vunpack.c.l.b16 %v6956
      %v6989 = vunpack.c.l.b16 %v6957
      %v6990 = vunpack.c.l.b16 %v6958
      %v6991 = vunpack.c.l.b16 %v6959
      %v6992 = vunpack.c.l.b16 %v6960
      %v6993 = vunpack.c.l.b16 %v6961
      %v6994 = vunpack.c.l.b16 %v6962
      %v6995 = vunpack.c.l.b16 %v6963
      %v6996 = vunpack.c.l.b16 %v6964
      %v6997 = vunpack.c.l.b16 %v6965
      %v6998 = vunpack.c.l.b16 %v6966
      %v6999 = vunpack.c.l.b16 %v6967
      %v7000 = vunpack.c.l.b16 %v6968
      %v7001 = vunpack.c.l.b16 %v6969
      %v7002 = vunpack.c.l.b16 %v6970
      %v7003 = vunpack.c.l.b16 %v6971
      %v7004 = vpack.c.b16 %v6989, %v6988
      %v7005 = vpack.c.b16 %v6991, %v6990
      %v7006 = vpack.c.b16 %v6993, %v6992
      %v7007 = vpack.c.b16 %v6995, %v6994
      %v7008 = vpack.c.b16 %v6997, %v6996
      %v7009 = vpack.c.b16 %v6999, %v6998
      %v7010 = vpack.c.b16 %v7001, %v7000
      %v7011 = vpack.c.b16 %v7003, %v7002
      %7020 = vmatprep.subr.bf16.mxu0 0
      %7021 = vmatpush1.bf16.msra.mxu0 %v7011
      %7022 = vmatprep.subr.bf16.mxu0 0
      %7023 = vmatpush1.bf16.msra.mxu0 %v7010
      %7024 = vmatprep.subr.bf16.mxu0 0
      %7025 = vmatpush1.bf16.msra.mxu0 %v7009
      %7026 = vmatprep.subr.bf16.mxu0 0
      %7027 = vmatpush1.bf16.msra.mxu0 %v7008
      %7028 = vmatprep.subr.bf16.mxu0 0
      %7029 = vmatpush1.bf16.msra.mxu0 %v7007
      %7030 = vmatprep.subr.bf16.mxu0 0
      %7031 = vmatpush1.bf16.msra.mxu0 %v7006
      %7032 = vmatprep.subr.bf16.mxu0 0
      %7033 = vmatpush1.bf16.msra.mxu0 %v7005
      %7034 = vmatprep.subr.bf16.mxu0 0
      %7035 = vmatpush1.bf16.msra.mxu0 %v7004
      %7036 = vmatprep.subr.bf16.mxu0 0
      %7037 = vmatpush2.bf16.msra.mxu0 0
      %7038 = vmatprep.subr.bf16.mxu0 0
      %7039 = vmatpush2.bf16.msra.mxu0 0
      %7040 = vmatprep.subr.bf16.mxu0 0
      %7041 = vmatpush2.bf16.msra.mxu0 0
      %7042 = vmatprep.subr.bf16.mxu0 0
      %7043 = vmatpush2.bf16.msra.mxu0 0
      %7044 = vmatprep.subr.bf16.mxu0 0
      %7045 = vmatpush2.bf16.msra.mxu0 0
      %7046 = vmatprep.subr.bf16.mxu0 0
      %7047 = vmatpush2.bf16.msra.mxu0 0
      %7048 = vmatprep.subr.bf16.mxu0 0
      %7049 = vmatpush2.bf16.msra.mxu0 0
      %7050 = vmatprep.subr.bf16.mxu0 0
      %7051 = vmatpush2.bf16.msra.mxu0 0
      %7052 = vmatprep.mubr.bf16.mxu0 0
      %7053 = vmatmul.mubr.bf16.gmra.mxu0 %v6939
      %v7054 = vpop.f32.mrf.mxu0
      %v7055 = vadd.f32 0.0, %v7054
      %v7056 = vpop.f32.mrf.mxu0
      %v7057 = vpop.f32.mrf.mxu0
      %v7058 = vadd.f32 0.0, %v7057
      %v7059 = vpop.f32.mrf.mxu0
      %7060 = vmatprep.mubr.bf16.mxu0 0
      %7061 = vmatmul.mubr.bf16.gmra.mxu0 %v6940
      %v7062 = vpop.f32.mrf.mxu0
      %v7063 = vadd.f32 0.0, %v7062
      %v7064 = vpop.f32.mrf.mxu0
      %v7065 = vpop.f32.mrf.mxu0
      %v7066 = vadd.f32 0.0, %v7065
      %v7067 = vpop.f32.mrf.mxu0
      %7068 = vmatprep.mubr.bf16.mxu0 0
      %7069 = vmatmul.mubr.bf16.gmra.mxu0 %v6941
      %v7070 = vpop.f32.mrf.mxu0
      %v7071 = vadd.f32 0.0, %v7070
      %v7072 = vpop.f32.mrf.mxu0
      %v7073 = vpop.f32.mrf.mxu0
      %v7074 = vadd.f32 0.0, %v7073
      %v7075 = vpop.f32.mrf.mxu0
      %7076 = vmatprep.mubr.bf16.mxu0 0
      %7077 = vmatmul.mubr.bf16.gmra.mxu0 %v6942
      %v7078 = vpop.f32.mrf.mxu0
      %v7079 = vadd.f32 0.0, %v7078
      %v7080 = vpop.f32.mrf.mxu0
      %v7081 = vpop.f32.mrf.mxu0
      %v7082 = vadd.f32 0.0, %v7081
      %v7083 = vpop.f32.mrf.mxu0
      %7084 = vmatprep.mubr.bf16.mxu0 0
      %7085 = vmatmul.mubr.bf16.gmra.mxu0 %v6943
      %v7086 = vpop.f32.mrf.mxu0
      %v7087 = vadd.f32 0.0, %v7086
      %v7088 = vpop.f32.mrf.mxu0
      %v7089 = vpop.f32.mrf.mxu0
      %v7090 = vadd.f32 0.0, %v7089
      %v7091 = vpop.f32.mrf.mxu0
      %7092 = vmatprep.mubr.bf16.mxu0 0
      %7093 = vmatmul.mubr.bf16.gmra.mxu0 %v6944
      %v7094 = vpop.f32.mrf.mxu0
      %v7095 = vadd.f32 0.0, %v7094
      %v7096 = vpop.f32.mrf.mxu0
      %v7097 = vpop.f32.mrf.mxu0
      %v7098 = vadd.f32 0.0, %v7097
      %v7099 = vpop.f32.mrf.mxu0
      %7100 = vmatprep.mubr.bf16.mxu0 0
      %7101 = vmatmul.mubr.bf16.gmra.mxu0 %v6945
      %v7102 = vpop.f32.mrf.mxu0
      %v7103 = vadd.f32 0.0, %v7102
      %v7104 = vpop.f32.mrf.mxu0
      %v7105 = vpop.f32.mrf.mxu0
      %v7106 = vadd.f32 0.0, %v7105
      %v7107 = vpop.f32.mrf.mxu0
      %7108 = vmatprep.mubr.bf16.mxu0 0
      %7109 = vmatmul.mubr.bf16.gmra.mxu0 %v6946
      %v7110 = vpop.f32.mrf.mxu0
      %v7111 = vadd.f32 0.0, %v7110
      %v7112 = vpop.f32.mrf.mxu0
      %v7113 = vpop.f32.mrf.mxu0
      %v7114 = vadd.f32 0.0, %v7113
      %v7115 = vpop.f32.mrf.mxu0
      %7116 = vmatprep.mubr.bf16.mxu0 0
      %7117 = vmatmul.mubr.bf16.gmra.mxu0 %v6947
      %v7118 = vpop.f32.mrf.mxu0
      %v7119 = vadd.f32 0.0, %v7118
      %v7120 = vpop.f32.mrf.mxu0
      %v7121 = vpop.f32.mrf.mxu0
      %v7122 = vadd.f32 0.0, %v7121
      %v7123 = vpop.f32.mrf.mxu0
      %7124 = vmatprep.mubr.bf16.mxu0 0
      %7125 = vmatmul.mubr.bf16.gmra.mxu0 %v6948
      %v7126 = vpop.f32.mrf.mxu0
      %v7127 = vadd.f32 0.0, %v7126
      %v7128 = vpop.f32.mrf.mxu0
      %v7129 = vpop.f32.mrf.mxu0
      %v7130 = vadd.f32 0.0, %v7129
      %v7131 = vpop.f32.mrf.mxu0
      %7132 = vmatprep.mubr.bf16.mxu0 0
      %7133 = vmatmul.mubr.bf16.gmra.mxu0 %v6949
      %v7134 = vpop.f32.mrf.mxu0
      %v7135 = vadd.f32 0.0, %v7134
      %v7136 = vpop.f32.mrf.mxu0
      %v7137 = vpop.f32.mrf.mxu0
      %v7138 = vadd.f32 0.0, %v7137
      %v7139 = vpop.f32.mrf.mxu0
      %7140 = vmatprep.mubr.bf16.mxu0 0
      %7141 = vmatmul.mubr.bf16.gmra.mxu0 %v6950
      %v7142 = vpop.f32.mrf.mxu0
      %v7143 = vadd.f32 0.0, %v7142
      %v7144 = vpop.f32.mrf.mxu0
      %v7145 = vpop.f32.mrf.mxu0
      %v7146 = vadd.f32 0.0, %v7145
      %v7147 = vpop.f32.mrf.mxu0
      %7148 = vmatprep.mubr.bf16.mxu0 0
      %7149 = vmatmul.mubr.bf16.gmra.mxu0 %v6951
      %v7150 = vpop.f32.mrf.mxu0
      %v7151 = vadd.f32 0.0, %v7150
      %v7152 = vpop.f32.mrf.mxu0
      %v7153 = vpop.f32.mrf.mxu0
      %v7154 = vadd.f32 0.0, %v7153
      %v7155 = vpop.f32.mrf.mxu0
      %7156 = vmatprep.mubr.bf16.mxu0 0
      %7157 = vmatmul.mubr.bf16.gmra.mxu0 %v6952
      %v7158 = vpop.f32.mrf.mxu0
      %v7159 = vadd.f32 0.0, %v7158
      %v7160 = vpop.f32.mrf.mxu0
      %v7161 = vpop.f32.mrf.mxu0
      %v7162 = vadd.f32 0.0, %v7161
      %v7163 = vpop.f32.mrf.mxu0
      %7164 = vmatprep.mubr.bf16.mxu0 0
      %7165 = vmatmul.mubr.bf16.gmra.mxu0 %v6953
      %v7166 = vpop.f32.mrf.mxu0
      %v7167 = vadd.f32 0.0, %v7166
      %v7168 = vpop.f32.mrf.mxu0
      %v7169 = vpop.f32.mrf.mxu0
      %v7170 = vadd.f32 0.0, %v7169
      %v7171 = vpop.f32.mrf.mxu0
      %7172 = vmatprep.mubr.bf16.mxu0 0
      %7173 = vmatmul.mubr.bf16.gmra.mxu0 %v6954
      %v7174 = vpop.f32.mrf.mxu0
      %v7175 = vadd.f32 0.0, %v7174
      %v7176 = vpop.f32.mrf.mxu0
      %v7177 = vpop.f32.mrf.mxu0
      %v7178 = vadd.f32 0.0, %v7177
      %v7179 = vpop.f32.mrf.mxu0
      %7180 = vdwg.mxu0
      %v7181 = vadd.f32 %v6843, %v7055
      %v7182 = vadd.f32 %v6844, %v7058
      %v7183 = vadd.f32 %v6845, %v7063
      %v7184 = vadd.f32 %v6846, %v7066
      %v7185 = vadd.f32 %v6847, %v7071
      %v7186 = vadd.f32 %v6848, %v7074
      %v7187 = vadd.f32 %v6849, %v7079
      %v7188 = vadd.f32 %v6850, %v7082
      %v7189 = vadd.f32 %v6851, %v7087
      %v7190 = vadd.f32 %v6852, %v7090
      %v7191 = vadd.f32 %v6853, %v7095
      %v7192 = vadd.f32 %v6854, %v7098
      %v7193 = vadd.f32 %v6855, %v7103
      %v7194 = vadd.f32 %v6856, %v7106
      %v7195 = vadd.f32 %v6857, %v7111
      %v7196 = vadd.f32 %v6858, %v7114
      %v7197 = vadd.f32 %v6859, %v7119
      %v7198 = vadd.f32 %v6860, %v7122
      %v7199 = vadd.f32 %v6861, %v7127
      %v7200 = vadd.f32 %v6862, %v7130
      %v7201 = vadd.f32 %v6863, %v7135
      %v7202 = vadd.f32 %v6864, %v7138
      %v7203 = vadd.f32 %v6865, %v7143
      %v7204 = vadd.f32 %v6866, %v7146
      %v7205 = vadd.f32 %v6867, %v7151
      %v7206 = vadd.f32 %v6868, %v7154
      %v7207 = vadd.f32 %v6869, %v7159
      %v7208 = vadd.f32 %v6870, %v7162
      %v7209 = vadd.f32 %v6871, %v7167
      %v7210 = vadd.f32 %v6872, %v7170
      %v7211 = vadd.f32 %v6873, %v7175
      %v7212 = vadd.f32 %v6874, %v7178
      %v7213 = vld [vmem:[%s5] sm:$0x1]
      %v7215 = vlaneseq
      %v7216 = vshrl.u32 %v7215, 7
      %v7217 = vsub.s32 0, %v7216
      %v7218 = vrot.slane %v7213, %v7217
      %v7220 = vmul.f32 %v7181, %v7218
      %v7221 = vmul.f32 %v7182, %v7218
      %v7222 = vmul.f32 %v7183, %v7218
      %v7223 = vmul.f32 %v7184, %v7218
      %v7224 = vmul.f32 %v7185, %v7218
      %v7225 = vmul.f32 %v7186, %v7218
      %v7226 = vmul.f32 %v7187, %v7218
      %v7227 = vmul.f32 %v7188, %v7218
      %v7228 = vmul.f32 %v7189, %v7218
      %v7229 = vmul.f32 %v7190, %v7218
      %v7230 = vmul.f32 %v7191, %v7218
      %v7231 = vmul.f32 %v7192, %v7218
      %v7232 = vmul.f32 %v7193, %v7218
      %v7233 = vmul.f32 %v7194, %v7218
      %v7234 = vmul.f32 %v7195, %v7218
      %v7235 = vmul.f32 %v7196, %v7218
      %v7236 = vmul.f32 %v7197, %v7218
      %v7237 = vmul.f32 %v7198, %v7218
      %v7238 = vmul.f32 %v7199, %v7218
      %v7239 = vmul.f32 %v7200, %v7218
      %v7240 = vmul.f32 %v7201, %v7218
      %v7241 = vmul.f32 %v7202, %v7218
      %v7242 = vmul.f32 %v7203, %v7218
      %v7243 = vmul.f32 %v7204, %v7218
      %v7244 = vmul.f32 %v7205, %v7218
      %v7245 = vmul.f32 %v7206, %v7218
      %v7246 = vmul.f32 %v7207, %v7218
      %v7247 = vmul.f32 %v7208, %v7218
      %v7248 = vmul.f32 %v7209, %v7218
      %v7249 = vmul.f32 %v7210, %v7218
      %v7250 = vmul.f32 %v7211, %v7218
      %v7251 = vmul.f32 %v7212, %v7218
      %v7252 = vld [vmem:[%s6] sm:$0x1]
      %v7254 = vlaneseq
      %v7255 = vshrl.u32 %v7254, 7
      %v7256 = vsub.s32 0, %v7255
      %v7257 = vrot.slane %v7252, %v7256
      %v7259 = vadd.f32 %v7220, %v7257
      %v7260 = vadd.f32 %v7221, %v7257
      %v7261 = vadd.f32 %v7222, %v7257
      %v7262 = vadd.f32 %v7223, %v7257
      %v7263 = vadd.f32 %v7224, %v7257
      %v7264 = vadd.f32 %v7225, %v7257
      %v7265 = vadd.f32 %v7226, %v7257
      %v7266 = vadd.f32 %v7227, %v7257
      %v7267 = vadd.f32 %v7228, %v7257
      %v7268 = vadd.f32 %v7229, %v7257
      %v7269 = vadd.f32 %v7230, %v7257
      %v7270 = vadd.f32 %v7231, %v7257
      %v7271 = vadd.f32 %v7232, %v7257
      %v7272 = vadd.f32 %v7233, %v7257
      %v7273 = vadd.f32 %v7234, %v7257
      %v7274 = vadd.f32 %v7235, %v7257
      %v7275 = vadd.f32 %v7236, %v7257
      %v7276 = vadd.f32 %v7237, %v7257
      %v7277 = vadd.f32 %v7238, %v7257
      %v7278 = vadd.f32 %v7239, %v7257
      %v7279 = vadd.f32 %v7240, %v7257
      %v7280 = vadd.f32 %v7241, %v7257
      %v7281 = vadd.f32 %v7242, %v7257
      %v7282 = vadd.f32 %v7243, %v7257
      %v7283 = vadd.f32 %v7244, %v7257
      %v7284 = vadd.f32 %v7245, %v7257
      %v7285 = vadd.f32 %v7246, %v7257
      %v7286 = vadd.f32 %v7247, %v7257
      %v7287 = vadd.f32 %v7248, %v7257
      %v7288 = vadd.f32 %v7249, %v7257
      %v7289 = vadd.f32 %v7250, %v7257
      %v7290 = vadd.f32 %v7251, %v7257
      %v7291 = vmax.f32 %v7259, 0.0
      %v7292 = vmax.f32 %v7260, 0.0
      %v7293 = vmax.f32 %v7261, 0.0
      %v7294 = vmax.f32 %v7262, 0.0
      %v7295 = vmax.f32 %v7263, 0.0
      %v7296 = vmax.f32 %v7264, 0.0
      %v7297 = vmax.f32 %v7265, 0.0
      %v7298 = vmax.f32 %v7266, 0.0
      %v7299 = vmax.f32 %v7267, 0.0
      %v7300 = vmax.f32 %v7268, 0.0
      %v7301 = vmax.f32 %v7269, 0.0
      %v7302 = vmax.f32 %v7270, 0.0
      %v7303 = vmax.f32 %v7271, 0.0
      %v7304 = vmax.f32 %v7272, 0.0
      %v7305 = vmax.f32 %v7273, 0.0
      %v7306 = vmax.f32 %v7274, 0.0
      %v7307 = vmax.f32 %v7275, 0.0
      %v7308 = vmax.f32 %v7276, 0.0
      %v7309 = vmax.f32 %v7277, 0.0
      %v7310 = vmax.f32 %v7278, 0.0
      %v7311 = vmax.f32 %v7279, 0.0
      %v7312 = vmax.f32 %v7280, 0.0
      %v7313 = vmax.f32 %v7281, 0.0
      %v7314 = vmax.f32 %v7282, 0.0
      %v7315 = vmax.f32 %v7283, 0.0
      %v7316 = vmax.f32 %v7284, 0.0
      %v7317 = vmax.f32 %v7285, 0.0
      %v7318 = vmax.f32 %v7286, 0.0
      %v7319 = vmax.f32 %v7287, 0.0
      %v7320 = vmax.f32 %v7288, 0.0
      %v7321 = vmax.f32 %v7289, 0.0
      %v7322 = vmax.f32 %v7290, 0.0
      %7323 = vst [vmem:[%s394] sm:$0xff] %v7291
      %7324 = vst [vmem:[%s394 + $0x8] sm:$0xff] %v7292
      %7325 = vst [vmem:[%s394 + $0x10] sm:$0xff] %v7293
      %7326 = vst [vmem:[%s394 + $0x18] sm:$0xff] %v7294
      %7327 = vst [vmem:[%s394 + $0x20] sm:$0xff] %v7295
      %7328 = vst [vmem:[%s394 + $0x28] sm:$0xff] %v7296
      %7329 = vst [vmem:[%s394 + $0x30] sm:$0xff] %v7297
      %7330 = vst [vmem:[%s394 + $0x38] sm:$0xff] %v7298
      %7331 = vst [vmem:[%s394 + $0x40] sm:$0xff] %v7299
      %7332 = vst [vmem:[%s394 + $0x48] sm:$0xff] %v7300
      %7333 = vst [vmem:[%s394 + $0x50] sm:$0xff] %v7301
      %7334 = vst [vmem:[%s394 + $0x58] sm:$0xff] %v7302
      %7335 = vst [vmem:[%s394 + $0x60] sm:$0xff] %v7303
      %7336 = vst [vmem:[%s394 + $0x68] sm:$0xff] %v7304
      %7337 = vst [vmem:[%s394 + $0x70] sm:$0xff] %v7305
      %7338 = vst [vmem:[%s394 + $0x78] sm:$0xff] %v7306
      %7339 = vst [vmem:[%s394 + $0x80] sm:$0xff] %v7307
      %7340 = vst [vmem:[%s394 + $0x88] sm:$0xff] %v7308
      %7341 = vst [vmem:[%s394 + $0x90] sm:$0xff] %v7309
      %7342 = vst [vmem:[%s394 + $0x98] sm:$0xff] %v7310
      %7343 = vst [vmem:[%s394 + $0xa0] sm:$0xff] %v7311
      %7344 = vst [vmem:[%s394 + $0xa8] sm:$0xff] %v7312
      %7345 = vst [vmem:[%s394 + $0xb0] sm:$0xff] %v7313
      %7346 = vst [vmem:[%s394 + $0xb8] sm:$0xff] %v7314
      %7347 = vst [vmem:[%s394 + $0xc0] sm:$0xff] %v7315
      %7348 = vst [vmem:[%s394 + $0xc8] sm:$0xff] %v7316
      %7349 = vst [vmem:[%s394 + $0xd0] sm:$0xff] %v7317
      %7350 = vst [vmem:[%s394 + $0xd8] sm:$0xff] %v7318
      %7351 = vst [vmem:[%s394 + $0xe0] sm:$0xff] %v7319
      %7352 = vst [vmem:[%s394 + $0xe8] sm:$0xff] %v7320
      %7353 = vst [vmem:[%s394 + $0xf0] sm:$0xff] %v7321
      %7354 = vst [vmem:[%s394 + $0xf8] sm:$0xff] %v7322
      %7355 = vst [vmem:[#allocation2] sm:$0xff] %v7291
      %7356 = vst [vmem:[#allocation2 + $0x8] sm:$0xff] %v7292
      %7357 = vst [vmem:[#allocation2 + $0x10] sm:$0xff] %v7293
      %7358 = vst [vmem:[#allocation2 + $0x18] sm:$0xff] %v7294
      %7359 = vst [vmem:[#allocation2 + $0x20] sm:$0xff] %v7295
      %7360 = vst [vmem:[#allocation2 + $0x28] sm:$0xff] %v7296
      %7361 = vst [vmem:[#allocation2 + $0x30] sm:$0xff] %v7297
      %7362 = vst [vmem:[#allocation2 + $0x38] sm:$0xff] %v7298
      %7363 = vst [vmem:[#allocation2 + $0x40] sm:$0xff] %v7299
      %7364 = vst [vmem:[#allocation2 + $0x48] sm:$0xff] %v7300
      %7365 = vst [vmem:[#allocation2 + $0x50] sm:$0xff] %v7301
      %7366 = vst [vmem:[#allocation2 + $0x58] sm:$0xff] %v7302
      %7367 = vst [vmem:[#allocation2 + $0x60] sm:$0xff] %v7303
      %7368 = vst [vmem:[#allocation2 + $0x68] sm:$0xff] %v7304
      %7369 = vst [vmem:[#allocation2 + $0x70] sm:$0xff] %v7305
      %7370 = vst [vmem:[#allocation2 + $0x78] sm:$0xff] %v7306
      %7371 = vst [vmem:[#allocation2 + $0x80] sm:$0xff] %v7307
      %7372 = vst [vmem:[#allocation2 + $0x88] sm:$0xff] %v7308
      %7373 = vst [vmem:[#allocation2 + $0x90] sm:$0xff] %v7309
      %7374 = vst [vmem:[#allocation2 + $0x98] sm:$0xff] %v7310
      %7375 = vst [vmem:[#allocation2 + $0xa0] sm:$0xff] %v7311
      %7376 = vst [vmem:[#allocation2 + $0xa8] sm:$0xff] %v7312
      %7377 = vst [vmem:[#allocation2 + $0xb0] sm:$0xff] %v7313
      %7378 = vst [vmem:[#allocation2 + $0xb8] sm:$0xff] %v7314
      %7379 = vst [vmem:[#allocation2 + $0xc0] sm:$0xff] %v7315
      %7380 = vst [vmem:[#allocation2 + $0xc8] sm:$0xff] %v7316
      %7381 = vst [vmem:[#allocation2 + $0xd0] sm:$0xff] %v7317
      %7382 = vst [vmem:[#allocation2 + $0xd8] sm:$0xff] %v7318
      %7383 = vst [vmem:[#allocation2 + $0xe0] sm:$0xff] %v7319
      %7384 = vst [vmem:[#allocation2 + $0xe8] sm:$0xff] %v7320
      %7385 = vst [vmem:[#allocation2 + $0xf0] sm:$0xff] %v7321
      %7386 = vst [vmem:[#allocation2 + $0xf8] sm:$0xff] %v7322
      %7387 = vst [vmem:[#allocation2 + $0x100] sm:$0xff] 0.0
      %7388 = vst [vmem:[#allocation2 + $0x108] sm:$0xff] 0.0
      %7389 = vst [vmem:[#allocation2 + $0x110] sm:$0xff] 0.0
      %v7390 = vld [vmem:[#allocation2 + $0x1] sm:$0xff]
      %v7391 = vld [vmem:[#allocation2 + $0x9] sm:$0xff]
      %v7392 = vld [vmem:[#allocation2 + $0x11] sm:$0xff]
      %v7393 = vld [vmem:[#allocation2 + $0x19] sm:$0xff]
      %v7394 = vld [vmem:[#allocation2 + $0x21] sm:$0xff]
      %v7395 = vld [vmem:[#allocation2 + $0x29] sm:$0xff]
      %v7396 = vld [vmem:[#allocation2 + $0x31] sm:$0xff]
      %v7397 = vld [vmem:[#allocation2 + $0x39] sm:$0xff]
      %v7398 = vld [vmem:[#allocation2 + $0x41] sm:$0xff]
      %v7399 = vld [vmem:[#allocation2 + $0x49] sm:$0xff]
      %v7400 = vld [vmem:[#allocation2 + $0x51] sm:$0xff]
      %v7401 = vld [vmem:[#allocation2 + $0x59] sm:$0xff]
      %v7402 = vld [vmem:[#allocation2 + $0x61] sm:$0xff]
      %v7403 = vld [vmem:[#allocation2 + $0x69] sm:$0xff]
      %v7404 = vld [vmem:[#allocation2 + $0x71] sm:$0xff]
      %v7405 = vld [vmem:[#allocation2 + $0x79] sm:$0xff]
      %v7406 = vld [vmem:[#allocation2 + $0x81] sm:$0xff]
      %v7407 = vld [vmem:[#allocation2 + $0x89] sm:$0xff]
      %v7408 = vld [vmem:[#allocation2 + $0x91] sm:$0xff]
      %v7409 = vld [vmem:[#allocation2 + $0x99] sm:$0xff]
      %v7410 = vld [vmem:[#allocation2 + $0xa1] sm:$0xff]
      %v7411 = vld [vmem:[#allocation2 + $0xa9] sm:$0xff]
      %v7412 = vld [vmem:[#allocation2 + $0xb1] sm:$0xff]
      %v7413 = vld [vmem:[#allocation2 + $0xb9] sm:$0xff]
      %v7414 = vld [vmem:[#allocation2 + $0xc1] sm:$0xff]
      %v7415 = vld [vmem:[#allocation2 + $0xc9] sm:$0xff]
      %v7416 = vld [vmem:[#allocation2 + $0xd1] sm:$0xff]
      %v7417 = vld [vmem:[#allocation2 + $0xd9] sm:$0xff]
      %v7418 = vld [vmem:[#allocation2 + $0xe1] sm:$0xff]
      %v7419 = vld [vmem:[#allocation2 + $0xe9] sm:$0xff]
      %v7420 = vld [vmem:[#allocation2 + $0xf1] sm:$0xff]
      %v7421 = vld [vmem:[#allocation2 + $0xf9] sm:$0xff]
      %v7422 = vld [vmem:[#allocation2 + $0x10] sm:$0xff]
      %v7423 = vld [vmem:[#allocation2 + $0x18] sm:$0xff]
      %v7424 = vld [vmem:[#allocation2 + $0x20] sm:$0xff]
      %v7425 = vld [vmem:[#allocation2 + $0x28] sm:$0xff]
      %v7426 = vld [vmem:[#allocation2 + $0x30] sm:$0xff]
      %v7427 = vld [vmem:[#allocation2 + $0x38] sm:$0xff]
      %v7428 = vld [vmem:[#allocation2 + $0x40] sm:$0xff]
      %v7429 = vld [vmem:[#allocation2 + $0x48] sm:$0xff]
      %v7430 = vld [vmem:[#allocation2 + $0x50] sm:$0xff]
      %v7431 = vld [vmem:[#allocation2 + $0x58] sm:$0xff]
      %v7432 = vld [vmem:[#allocation2 + $0x60] sm:$0xff]
      %v7433 = vld [vmem:[#allocation2 + $0x68] sm:$0xff]
      %v7434 = vld [vmem:[#allocation2 + $0x70] sm:$0xff]
      %v7435 = vld [vmem:[#allocation2 + $0x78] sm:$0xff]
      %v7436 = vld [vmem:[#allocation2 + $0x80] sm:$0xff]
      %v7437 = vld [vmem:[#allocation2 + $0x88] sm:$0xff]
      %v7438 = vld [vmem:[#allocation2 + $0x90] sm:$0xff]
      %v7439 = vld [vmem:[#allocation2 + $0x98] sm:$0xff]
      %v7440 = vld [vmem:[#allocation2 + $0xa0] sm:$0xff]
      %v7441 = vld [vmem:[#allocation2 + $0xa8] sm:$0xff]
      %v7442 = vld [vmem:[#allocation2 + $0xb0] sm:$0xff]
      %v7443 = vld [vmem:[#allocation2 + $0xb8] sm:$0xff]
      %v7444 = vld [vmem:[#allocation2 + $0xc0] sm:$0xff]
      %v7445 = vld [vmem:[#allocation2 + $0xc8] sm:$0xff]
      %v7446 = vld [vmem:[#allocation2 + $0xd0] sm:$0xff]
      %v7447 = vld [vmem:[#allocation2 + $0xd8] sm:$0xff]
      %v7448 = vld [vmem:[#allocation2 + $0xe0] sm:$0xff]
      %v7449 = vld [vmem:[#allocation2 + $0xe8] sm:$0xff]
      %v7450 = vld [vmem:[#allocation2 + $0xf0] sm:$0xff]
      %v7451 = vld [vmem:[#allocation2 + $0xf8] sm:$0xff]
      %v7452 = vld [vmem:[#allocation2 + $0x100] sm:$0xff]
      %v7453 = vld [vmem:[#allocation2 + $0x108] sm:$0xff]
      %v7454 = vld [vmem:[#allocation2 + $0x101] sm:$0xff]
      %v7455 = vld [vmem:[#allocation2 + $0x109] sm:$0xff]
      %v7456 = vmax.f32 %v7291, %v7390
      %v7457 = vmax.f32 %v7292, %v7391
      %v7458 = vmax.f32 %v7293, %v7392
      %v7459 = vmax.f32 %v7294, %v7393
      %v7460 = vmax.f32 %v7295, %v7394
      %v7461 = vmax.f32 %v7296, %v7395
      %v7462 = vmax.f32 %v7297, %v7396
      %v7463 = vmax.f32 %v7298, %v7397
      %v7464 = vmax.f32 %v7299, %v7398
      %v7465 = vmax.f32 %v7300, %v7399
      %v7466 = vmax.f32 %v7301, %v7400
      %v7467 = vmax.f32 %v7302, %v7401
      %v7468 = vmax.f32 %v7303, %v7402
      %v7469 = vmax.f32 %v7304, %v7403
      %v7470 = vmax.f32 %v7305, %v7404
      %v7471 = vmax.f32 %v7306, %v7405
      %v7472 = vmax.f32 %v7307, %v7406
      %v7473 = vmax.f32 %v7308, %v7407
      %v7474 = vmax.f32 %v7309, %v7408
      %v7475 = vmax.f32 %v7310, %v7409
      %v7476 = vmax.f32 %v7311, %v7410
      %v7477 = vmax.f32 %v7312, %v7411
      %v7478 = vmax.f32 %v7313, %v7412
      %v7479 = vmax.f32 %v7314, %v7413
      %v7480 = vmax.f32 %v7315, %v7414
      %v7481 = vmax.f32 %v7316, %v7415
      %v7482 = vmax.f32 %v7317, %v7416
      %v7483 = vmax.f32 %v7318, %v7417
      %v7484 = vmax.f32 %v7319, %v7418
      %v7485 = vmax.f32 %v7320, %v7419
      %v7486 = vmax.f32 %v7321, %v7420
      %v7487 = vmax.f32 %v7322, %v7421
      %v7488 = vmax.f32 %v7422, %v7392
      %v7489 = vmax.f32 %v7423, %v7393
      %v7490 = vmax.f32 %v7424, %v7394
      %v7491 = vmax.f32 %v7425, %v7395
      %v7492 = vmax.f32 %v7426, %v7396
      %v7493 = vmax.f32 %v7427, %v7397
      %v7494 = vmax.f32 %v7428, %v7398
      %v7495 = vmax.f32 %v7429, %v7399
      %v7496 = vmax.f32 %v7430, %v7400
      %v7497 = vmax.f32 %v7431, %v7401
      %v7498 = vmax.f32 %v7432, %v7402
      %v7499 = vmax.f32 %v7433, %v7403
      %v7500 = vmax.f32 %v7434, %v7404
      %v7501 = vmax.f32 %v7435, %v7405
      %v7502 = vmax.f32 %v7436, %v7406
      %v7503 = vmax.f32 %v7437, %v7407
      %v7504 = vmax.f32 %v7438, %v7408
      %v7505 = vmax.f32 %v7439, %v7409
      %v7506 = vmax.f32 %v7440, %v7410
      %v7507 = vmax.f32 %v7441, %v7411
      %v7508 = vmax.f32 %v7442, %v7412
      %v7509 = vmax.f32 %v7443, %v7413
      %v7510 = vmax.f32 %v7444, %v7414
      %v7511 = vmax.f32 %v7445, %v7415
      %v7512 = vmax.f32 %v7446, %v7416
      %v7513 = vmax.f32 %v7447, %v7417
      %v7514 = vmax.f32 %v7448, %v7418
      %v7515 = vmax.f32 %v7449, %v7419
      %v7516 = vmax.f32 %v7450, %v7420
      %v7517 = vmax.f32 %v7451, %v7421
      %v7518 = vmax.f32 %v7452, %v7454
      %v7519 = vmax.f32 %v7453, %v7455
      %v7520 = vmax.f32 %v7456, %v7488
      %v7521 = vmax.f32 %v7457, %v7489
      %v7522 = vmax.f32 %v7458, %v7490
      %v7523 = vmax.f32 %v7459, %v7491
      %v7524 = vmax.f32 %v7460, %v7492
      %v7525 = vmax.f32 %v7461, %v7493
      %v7526 = vmax.f32 %v7462, %v7494
      %v7527 = vmax.f32 %v7463, %v7495
      %v7528 = vmax.f32 %v7464, %v7496
      %v7529 = vmax.f32 %v7465, %v7497
      %v7530 = vmax.f32 %v7466, %v7498
      %v7531 = vmax.f32 %v7467, %v7499
      %v7532 = vmax.f32 %v7468, %v7500
      %v7533 = vmax.f32 %v7469, %v7501
      %v7534 = vmax.f32 %v7470, %v7502
      %v7535 = vmax.f32 %v7471, %v7503
      %v7536 = vmax.f32 %v7472, %v7504
      %v7537 = vmax.f32 %v7473, %v7505
      %v7538 = vmax.f32 %v7474, %v7506
      %v7539 = vmax.f32 %v7475, %v7507
      %v7540 = vmax.f32 %v7476, %v7508
      %v7541 = vmax.f32 %v7477, %v7509
      %v7542 = vmax.f32 %v7478, %v7510
      %v7543 = vmax.f32 %v7479, %v7511
      %v7544 = vmax.f32 %v7480, %v7512
      %v7545 = vmax.f32 %v7481, %v7513
      %v7546 = vmax.f32 %v7482, %v7514
      %v7547 = vmax.f32 %v7483, %v7515
      %v7548 = vmax.f32 %v7484, %v7516
      %v7549 = vmax.f32 %v7485, %v7517
      %v7550 = vmax.f32 %v7486, %v7518
      %v7551 = vmax.f32 %v7487, %v7519
      %v7552 = vpack.c.bf16 %v7521, %v7520
      %v7553 = vpack.c.bf16 %v7523, %v7522
      %v7554 = vpack.c.bf16 %v7525, %v7524
      %v7555 = vpack.c.bf16 %v7527, %v7526
      %v7556 = vpack.c.bf16 %v7529, %v7528
      %v7557 = vpack.c.bf16 %v7531, %v7530
      %v7558 = vpack.c.bf16 %v7533, %v7532
      %v7559 = vpack.c.bf16 %v7535, %v7534
      %v7560 = vpack.c.bf16 %v7537, %v7536
      %v7561 = vpack.c.bf16 %v7539, %v7538
      %v7562 = vpack.c.bf16 %v7541, %v7540
      %v7563 = vpack.c.bf16 %v7543, %v7542
      %v7564 = vpack.c.bf16 %v7545, %v7544
      %v7565 = vpack.c.bf16 %v7547, %v7546
      %v7566 = vpack.c.bf16 %v7549, %v7548
      %v7567 = vpack.c.bf16 %v7551, %v7550
      %v7568 = vunpack.c.l.bf16 %v7552
      %v7569 = vunpack.c.h.bf16 %v7552
      %v7570 = vunpack.c.l.bf16 %v7553
      %v7571 = vunpack.c.h.bf16 %v7553
      %v7572 = vunpack.c.l.bf16 %v7554
      %v7573 = vunpack.c.h.bf16 %v7554
      %v7574 = vunpack.c.l.bf16 %v7555
      %v7575 = vunpack.c.h.bf16 %v7555
      %v7576 = vunpack.c.l.bf16 %v7556
      %v7577 = vunpack.c.h.bf16 %v7556
      %v7578 = vunpack.c.l.bf16 %v7557
      %v7579 = vunpack.c.h.bf16 %v7557
      %v7580 = vunpack.c.l.bf16 %v7558
      %v7581 = vunpack.c.h.bf16 %v7558
      %v7582 = vunpack.c.l.bf16 %v7559
      %v7583 = vunpack.c.h.bf16 %v7559
      %v7584 = vunpack.c.l.bf16 %v7560
      %v7585 = vunpack.c.h.bf16 %v7560
      %v7586 = vunpack.c.l.bf16 %v7561
      %v7587 = vunpack.c.h.bf16 %v7561
      %v7588 = vunpack.c.l.bf16 %v7562
      %v7589 = vunpack.c.h.bf16 %v7562
      %v7590 = vunpack.c.l.bf16 %v7563
      %v7591 = vunpack.c.h.bf16 %v7563
      %v7592 = vunpack.c.l.bf16 %v7564
      %v7593 = vunpack.c.h.bf16 %v7564
      %v7594 = vunpack.c.l.bf16 %v7565
      %v7595 = vunpack.c.h.bf16 %v7565
      %v7596 = vunpack.c.l.bf16 %v7566
      %v7597 = vunpack.c.h.bf16 %v7566
      %v7598 = vunpack.c.l.bf16 %v7567
      %v7599 = vunpack.c.h.bf16 %v7567
      %v7600 = vsub.f32 %v7520, %v7568
      %v7601 = vsub.f32 %v7521, %v7569
      %v7602 = vsub.f32 %v7522, %v7570
      %v7603 = vsub.f32 %v7523, %v7571
      %v7604 = vsub.f32 %v7524, %v7572
      %v7605 = vsub.f32 %v7525, %v7573
      %v7606 = vsub.f32 %v7526, %v7574
      %v7607 = vsub.f32 %v7527, %v7575
      %v7608 = vsub.f32 %v7528, %v7576
      %v7609 = vsub.f32 %v7529, %v7577
      %v7610 = vsub.f32 %v7530, %v7578
      %v7611 = vsub.f32 %v7531, %v7579
      %v7612 = vsub.f32 %v7532, %v7580
      %v7613 = vsub.f32 %v7533, %v7581
      %v7614 = vsub.f32 %v7534, %v7582
      %v7615 = vsub.f32 %v7535, %v7583
      %v7616 = vsub.f32 %v7536, %v7584
      %v7617 = vsub.f32 %v7537, %v7585
      %v7618 = vsub.f32 %v7538, %v7586
      %v7619 = vsub.f32 %v7539, %v7587
      %v7620 = vsub.f32 %v7540, %v7588
      %v7621 = vsub.f32 %v7541, %v7589
      %v7622 = vsub.f32 %v7542, %v7590
      %v7623 = vsub.f32 %v7543, %v7591
      %v7624 = vsub.f32 %v7544, %v7592
      %v7625 = vsub.f32 %v7545, %v7593
      %v7626 = vsub.f32 %v7546, %v7594
      %v7627 = vsub.f32 %v7547, %v7595
      %v7628 = vsub.f32 %v7548, %v7596
      %v7629 = vsub.f32 %v7549, %v7597
      %v7630 = vsub.f32 %v7550, %v7598
      %v7631 = vsub.f32 %v7551, %v7599
      %v7632 = vpack.c.bf16 %v7601, %v7600
      %v7633 = vpack.c.bf16 %v7603, %v7602
      %v7634 = vpack.c.bf16 %v7605, %v7604
      %v7635 = vpack.c.bf16 %v7607, %v7606
      %v7636 = vpack.c.bf16 %v7609, %v7608
      %v7637 = vpack.c.bf16 %v7611, %v7610
      %v7638 = vpack.c.bf16 %v7613, %v7612
      %v7639 = vpack.c.bf16 %v7615, %v7614
      %v7640 = vpack.c.bf16 %v7617, %v7616
      %v7641 = vpack.c.bf16 %v7619, %v7618
      %v7642 = vpack.c.bf16 %v7621, %v7620
      %v7643 = vpack.c.bf16 %v7623, %v7622
      %v7644 = vpack.c.bf16 %v7625, %v7624
      %v7645 = vpack.c.bf16 %v7627, %v7626
      %v7646 = vpack.c.bf16 %v7629, %v7628
      %v7647 = vpack.c.bf16 %v7631, %v7630
      %v7648 = vld [vmem:[%s9] sm:$0xff]
      %v7649 = vld [vmem:[%s9 + $0x8] sm:$0xff]
      %v7650 = vld [vmem:[%s9 + $0x10] sm:$0xff]
      %v7651 = vld [vmem:[%s9 + $0x18] sm:$0xff]
      %v7652 = vld [vmem:[%s9 + $0x20] sm:$0xff]
      %v7653 = vld [vmem:[%s9 + $0x28] sm:$0xff]
      %v7654 = vld [vmem:[%s9 + $0x30] sm:$0xff]
      %v7655 = vld [vmem:[%s9 + $0x38] sm:$0xff]
      %v7664 = vunpack.c.l.b16 %v7648
      %v7665 = vunpack.c.h.b16 %v7648
      %v7666 = vunpack.c.l.b16 %v7649
      %v7667 = vunpack.c.h.b16 %v7649
      %v7668 = vunpack.c.l.b16 %v7650
      %v7669 = vunpack.c.h.b16 %v7650
      %v7670 = vunpack.c.l.b16 %v7651
      %v7671 = vunpack.c.h.b16 %v7651
      %v7672 = vunpack.c.l.b16 %v7652
      %v7673 = vunpack.c.h.b16 %v7652
      %v7674 = vunpack.c.l.b16 %v7653
      %v7675 = vunpack.c.h.b16 %v7653
      %v7676 = vunpack.c.l.b16 %v7654
      %v7677 = vunpack.c.h.b16 %v7654
      %v7678 = vunpack.c.l.b16 %v7655
      %v7679 = vunpack.c.h.b16 %v7655
      %v7680 = vpack.c.b16 %v7666, %v7664
      %v7681 = vpack.c.b16 %v7667, %v7665
      %v7682 = vpack.c.b16 %v7670, %v7668
      %v7683 = vpack.c.b16 %v7671, %v7669
      %v7684 = vpack.c.b16 %v7674, %v7672
      %v7685 = vpack.c.b16 %v7675, %v7673
      %v7686 = vpack.c.b16 %v7678, %v7676
      %v7687 = vpack.c.b16 %v7679, %v7677
      %7696 = vmatprep.subr.bf16.mxu0 0
      %7697 = vmatpush1.bf16.msra.mxu0 %v7639
      %7698 = vmatprep.subr.bf16.mxu0 0
      %7699 = vmatpush1.bf16.msra.mxu0 %v7638
      %7700 = vmatprep.subr.bf16.mxu0 0
      %7701 = vmatpush1.bf16.msra.mxu0 %v7637
      %7702 = vmatprep.subr.bf16.mxu0 0
      %7703 = vmatpush1.bf16.msra.mxu0 %v7636
      %7704 = vmatprep.subr.bf16.mxu0 0
      %7705 = vmatpush1.bf16.msra.mxu0 %v7635
      %7706 = vmatprep.subr.bf16.mxu0 0
      %7707 = vmatpush1.bf16.msra.mxu0 %v7634
      %7708 = vmatprep.subr.bf16.mxu0 0
      %7709 = vmatpush1.bf16.msra.mxu0 %v7633
      %7710 = vmatprep.subr.bf16.mxu0 0
      %7711 = vmatpush1.bf16.msra.mxu0 %v7632
      %7712 = vmatprep.subr.bf16.mxu0 0
      %7713 = vmatpush2.bf16.msra.mxu0 %v7647
      %7714 = vmatprep.subr.bf16.mxu0 0
      %7715 = vmatpush2.bf16.msra.mxu0 %v7646
      %7716 = vmatprep.subr.bf16.mxu0 0
      %7717 = vmatpush2.bf16.msra.mxu0 %v7645
      %7718 = vmatprep.subr.bf16.mxu0 0
      %7719 = vmatpush2.bf16.msra.mxu0 %v7644
      %7720 = vmatprep.subr.bf16.mxu0 0
      %7721 = vmatpush2.bf16.msra.mxu0 %v7643
      %7722 = vmatprep.subr.bf16.mxu0 0
      %7723 = vmatpush2.bf16.msra.mxu0 %v7642
      %7724 = vmatprep.subr.bf16.mxu0 0
      %7725 = vmatpush2.bf16.msra.mxu0 %v7641
      %7726 = vmatprep.subr.bf16.mxu0 0
      %7727 = vmatpush2.bf16.msra.mxu0 %v7640
      %7728 = vmatprep.mubr.bf16.mxu0 %v7681
      %7729 = vmatmul.mubr.bf16.gmra.mxu0 %v7680
      %v7730 = vpop.f32.mrf.mxu0
      %v7731 = vadd.f32 0.0, %v7730
      %v7732 = vpop.f32.mrf.mxu0
      %v7733 = vpop.f32.mrf.mxu0
      %v7734 = vadd.f32 0.0, %v7733
      %v7735 = vpop.f32.mrf.mxu0
      %7736 = vmatprep.mubr.bf16.mxu0 %v7683
      %7737 = vmatmul.mubr.bf16.gmra.mxu0 %v7682
      %v7738 = vpop.f32.mrf.mxu0
      %v7739 = vadd.f32 0.0, %v7738
      %v7740 = vpop.f32.mrf.mxu0
      %v7741 = vpop.f32.mrf.mxu0
      %v7742 = vadd.f32 0.0, %v7741
      %v7743 = vpop.f32.mrf.mxu0
      %7744 = vmatprep.mubr.bf16.mxu0 %v7685
      %7745 = vmatmul.mubr.bf16.gmra.mxu0 %v7684
      %v7746 = vpop.f32.mrf.mxu0
      %v7747 = vadd.f32 0.0, %v7746
      %v7748 = vpop.f32.mrf.mxu0
      %v7749 = vpop.f32.mrf.mxu0
      %v7750 = vadd.f32 0.0, %v7749
      %v7751 = vpop.f32.mrf.mxu0
      %7752 = vmatprep.mubr.bf16.mxu0 %v7687
      %7753 = vmatmul.mubr.bf16.gmra.mxu0 %v7686
      %v7754 = vpop.f32.mrf.mxu0
      %v7755 = vadd.f32 0.0, %v7754
      %v7756 = vpop.f32.mrf.mxu0
      %v7757 = vpop.f32.mrf.mxu0
      %v7758 = vadd.f32 0.0, %v7757
      %v7759 = vpop.f32.mrf.mxu0
      %7760 = vdwg.mxu0
      %7761 = vmatprep.subr.bf16.mxu0 0
      %7762 = vmatpush1.bf16.msra.mxu0 %v7559
      %7763 = vmatprep.subr.bf16.mxu0 0
      %7764 = vmatpush1.bf16.msra.mxu0 %v7558
      %7765 = vmatprep.subr.bf16.mxu0 0
      %7766 = vmatpush1.bf16.msra.mxu0 %v7557
      %7767 = vmatprep.subr.bf16.mxu0 0
      %7768 = vmatpush1.bf16.msra.mxu0 %v7556
      %7769 = vmatprep.subr.bf16.mxu0 0
      %7770 = vmatpush1.bf16.msra.mxu0 %v7555
      %7771 = vmatprep.subr.bf16.mxu0 0
      %7772 = vmatpush1.bf16.msra.mxu0 %v7554
      %7773 = vmatprep.subr.bf16.mxu0 0
      %7774 = vmatpush1.bf16.msra.mxu0 %v7553
      %7775 = vmatprep.subr.bf16.mxu0 0
      %7776 = vmatpush1.bf16.msra.mxu0 %v7552
      %7777 = vmatprep.subr.bf16.mxu0 0
      %7778 = vmatpush2.bf16.msra.mxu0 %v7567
      %7779 = vmatprep.subr.bf16.mxu0 0
      %7780 = vmatpush2.bf16.msra.mxu0 %v7566
      %7781 = vmatprep.subr.bf16.mxu0 0
      %7782 = vmatpush2.bf16.msra.mxu0 %v7565
      %7783 = vmatprep.subr.bf16.mxu0 0
      %7784 = vmatpush2.bf16.msra.mxu0 %v7564
      %7785 = vmatprep.subr.bf16.mxu0 0
      %7786 = vmatpush2.bf16.msra.mxu0 %v7563
      %7787 = vmatprep.subr.bf16.mxu0 0
      %7788 = vmatpush2.bf16.msra.mxu0 %v7562
      %7789 = vmatprep.subr.bf16.mxu0 0
      %7790 = vmatpush2.bf16.msra.mxu0 %v7561
      %7791 = vmatprep.subr.bf16.mxu0 0
      %7792 = vmatpush2.bf16.msra.mxu0 %v7560
      %7793 = vmatprep.mubr.bf16.mxu0 %v7681
      %7794 = vmatmul.mubr.bf16.gmra.mxu0 %v7680
      %v7795 = vpop.f32.mrf.mxu0
      %v7796 = vadd.f32 %v7731, %v7795
      %v7797 = vpop.f32.mrf.mxu0
      %v7798 = vpop.f32.mrf.mxu0
      %v7799 = vadd.f32 %v7734, %v7798
      %v7800 = vpop.f32.mrf.mxu0
      %7801 = vmatprep.mubr.bf16.mxu0 %v7683
      %7802 = vmatmul.mubr.bf16.gmra.mxu0 %v7682
      %v7803 = vpop.f32.mrf.mxu0
      %v7804 = vadd.f32 %v7739, %v7803
      %v7805 = vpop.f32.mrf.mxu0
      %v7806 = vpop.f32.mrf.mxu0
      %v7807 = vadd.f32 %v7742, %v7806
      %v7808 = vpop.f32.mrf.mxu0
      %7809 = vmatprep.mubr.bf16.mxu0 %v7685
      %7810 = vmatmul.mubr.bf16.gmra.mxu0 %v7684
      %v7811 = vpop.f32.mrf.mxu0
      %v7812 = vadd.f32 %v7747, %v7811
      %v7813 = vpop.f32.mrf.mxu0
      %v7814 = vpop.f32.mrf.mxu0
      %v7815 = vadd.f32 %v7750, %v7814
      %v7816 = vpop.f32.mrf.mxu0
      %7817 = vmatprep.mubr.bf16.mxu0 %v7687
      %7818 = vmatmul.mubr.bf16.gmra.mxu0 %v7686
      %v7819 = vpop.f32.mrf.mxu0
      %v7820 = vadd.f32 %v7755, %v7819
      %v7821 = vpop.f32.mrf.mxu0
      %v7822 = vpop.f32.mrf.mxu0
      %v7823 = vadd.f32 %v7758, %v7822
      %v7824 = vpop.f32.mrf.mxu0
      %7825 = vdwg.mxu0
      %7826 = vst [vmem:[%s399] sm:$0xff] %v7796
      %7827 = vst [vmem:[%s399 + $0x8] sm:$0xff] %v7799
      %7828 = vst [vmem:[%s399 + $0x10] sm:$0xff] %v7804
      %7829 = vst [vmem:[%s399 + $0x18] sm:$0xff] %v7807
      %7830 = vst [vmem:[%s399 + $0x20] sm:$0xff] %v7812
      %7831 = vst [vmem:[%s399 + $0x28] sm:$0xff] %v7815
      %7832 = vst [vmem:[%s399 + $0x30] sm:$0xff] %v7820
      %7833 = vst [vmem:[%s399 + $0x38] sm:$0xff] %v7823
      %p7834 = scmp.lt.s32.totalorder %s23, 1
      %s7835 = scalar_select %p7834, %s23, 1
      %s7836 = smul.addr %s7835, 32
      %s7837 = smul.addr %s7836, 8
      %s7838 = scalar_lea.vmem %s10, %s7837
      %p7839 = scmp.lt.s32.totalorder %s23, 1
      %s7840 = scalar_select %p7839, %s23, 1
      %s7841 = smul.addr %s7840, 8
      %s7842 = smul.addr %s7841, 8
      %s7843 = scalar_lea.vmem %s11, %s7842
      // Predicated region
      $region61: #{down_block_forward.1} parent=59 // pred_check
        %p7844 = pneg %p256
      $region62: #{down_block_forward.1} parent=59 // pred_check_branch
        %7846 = sbr.rel (%p7844) target = $region64
      $region63: #{down_block_forward.1} parent=59 // pred_region
        _
      $region64: #{down_block_forward.1} parent=59 // pred_fallthru
        _
      // Predicated region
      $region65: #{down_block_forward.1} parent=59 // pred_check
        %p7847 = pneg %p282
      $region66: #{down_block_forward.1} parent=59 // pred_check_branch
        %7849 = sbr.rel (%p7847) target = $region68
      $region67: #{down_block_forward.1} parent=59 // pred_region
        _
      $region68: #{down_block_forward.1} parent=59 // pred_fallthru
        _
    $region60: #{down_block_forward.1} parent=5 // pred_fallthru
      _
    %p7850 = scmp.le.s32.totalorder 2, %s18
    // Predicated region
    $region69: #{down_block_forward.1} parent=5 // pred_check
      %p7851 = pneg %p7850
    $region70: #{down_block_forward.1} parent=5 // pred_check_branch
      %7853 = sbr.rel (%p7851) target = $region72
    $region71: #{down_block_forward.1} parent=5 // pred_region
      %s7854 = ssub.s32 %s18, 2
      // Predicated region
      $region73: #{down_block_forward.1} parent=71 // pred_check
        %p7855 = pneg %p262
      $region74: #{down_block_forward.1} parent=71 // pred_check_branch
        %7857 = sbr.rel (%p7855) target = $region76
      $region75: #{down_block_forward.1} parent=71 // pred_region
        %p7858 = scmp.lt.s32.totalorder %s24, 1
        %s7859 = scalar_select %p7858, %s24, 1
        %s7860 = smul.addr %s7859, 32
        %s7861 = smul.addr %s7860, 8
        %s7862 = scalar_lea.vmem %s10, %s7861
      $region76: #{down_block_forward.1} parent=71 // pred_fallthru
        _
      // Predicated region
      $region77: #{down_block_forward.1} parent=71 // pred_check
        %p7863 = pneg %p288
      $region78: #{down_block_forward.1} parent=71 // pred_check_branch
        %7865 = sbr.rel (%p7863) target = $region80
      $region79: #{down_block_forward.1} parent=71 // pred_region
        %p7866 = scmp.lt.s32.totalorder %s24, 1
        %s7867 = scalar_select %p7866, %s24, 1
        %s7868 = smul.addr %s7867, 8
        %s7869 = smul.addr %s7868, 8
        %s7870 = scalar_lea.vmem %s11, %s7869
      $region80: #{down_block_forward.1} parent=71 // pred_fallthru
        _
    $region72: #{down_block_forward.1} parent=5 // pred_fallthru
      _
  $region6: #{down_block_forward.1} parent=0 // loop_footer
    %s22 = sadd.s32 1, %s18
  $region7: #{down_block_forward.1} parent=0 // loop_footer_branch
    %17 = sbr.rel target = $region3
  $region8: #{down_block_forward.1} parent=0 // loop_exit
    _

</llo_original>
